<compile_context>
chip_gen: v6e
topology: v6e:2x2x1
jax: 0.10.0
libtpu: 0.0.40
codegen_flags: <defaults>
</compile_context>

<pallas_src>
import jax
import jax.numpy as jnp
from jax.experimental import pallas as pl
from jax.experimental.pallas import tpu as pltpu

# ----------------------------- model dims -----------------------------------
KDIM = 256          # knowledge_dim / stu_dim
TEXT_DIM = 768      # BERT-style text embedding dim fed to diff/know/disc
KNOW_NUM = 128      # knowledge_n (free hyper-parameter; lane-aligned)
PRED_L1 = 512       # prednet_len1
STUDENT_N = 16
DOMAIN_NUM = 4
N_IDS = STUDENT_N * DOMAIN_NUM          # embedding rows (sublane-aligned: 64)
BATCH = 16          # must be a multiple of BLOCK_B
BLOCK_B = 8         # rows per grid step (sublane-aligned)


# ----------------------------- fused kernel ----------------------------------
def _fused_kernel(
        id_spe_ref, id_oth_ref, id_glo_ref,
        q_spe_ref, q_oth_ref, q_sha_ref,
        ex_spe_ref, ex_oth_ref, ex_sha_ref,
        kn_spe_ref, kn_oth_ref, kn_sha_ref,
        emb_spe_ref, emb_sha_ref,
        w_diff_ref, b_diff_ref, w_know_ref, b_know_ref,
        w_disc_ref, b_disc_ref,
        w_stu_a_ref, w_stu_b_ref, b_stu_ref,
        w_exer_a_ref, w_exer_b_ref, b_exer_ref,
        w1_ref, b1_ref, w2_ref, b2_ref,
        o_spe_ref, o_oth_ref, o_glo_ref, o_sha_ref):
    """Entire Net.forward (all four branch outputs) for one batch chunk."""
    f32 = jnp.float32
    bf16 = jnp.bfloat16

    # ---- in-kernel embedding gather: exact one-hot bf16 matmul --------------
    def gather(ids_ref, tbl_ref):
        ids = ids_ref[...]                                        # (B, 1) int32
        cols = jax.lax.broadcasted_iota(jnp.int32, (ids.shape[0], N_IDS), 1)
        onehot = (ids == cols).astype(bf16)                       # (B, 64)
        # 1.0(bf16) * table(bf16) accumulated in f32 -> exact table rows.
        return jnp.dot(onehot, tbl_ref[...], preferred_element_type=f32)

    stu_spe = jax.nn.sigmoid(gather(id_spe_ref, emb_spe_ref))     # (B, 256)
    stu_oth = gather(id_oth_ref, emb_spe_ref)
    stu_glo = gather(id_glo_ref, emb_sha_ref)
    stu_sha = gather(id_spe_ref, emb_sha_ref)

    # ---- front-end projections (per variant, no concats) --------------------
    w_diff = w_diff_ref[...]          # bf16 (768, 256)
    w_know = w_know_ref[...]          # bf16 (768, 256)
    b_diff = b_diff_ref[...]          # f32  (1, 256)
    b_know = b_know_ref[...]
    w_disc = w_disc_ref[...]          # f32  (1, 768)
    b_disc = b_disc_ref[...]          # f32  (1, 1)

    def proj(ex_ref, kn_ref):
        ex = ex_ref[...]              # f32 (B, 768)
        kn = kn_ref[...]
        d = jnp.dot(ex.astype(bf16), w_diff, preferred_element_type=f32) + b_diff
        k = jnp.dot(kn.astype(bf16), w_know, preferred_element_type=f32) + b_know
        # 768 -> 1 disc projection: f32 elementwise mul + lane (XLU) reduction.
        dc = jnp.sum(ex * w_disc, axis=-1, keepdims=True) + b_disc
        return d, k, dc

    diff_spe, know_spe, disc_spe_raw = proj(ex_spe_ref, kn_spe_ref)
    diff_oth, know_oth, disc_oth_raw = proj(ex_oth_ref, kn_oth_ref)
    diff_glo, know_glo, disc_glo_raw = proj(ex_sha_ref, kn_sha_ref)

    # per-variant activations (only `spe` gets extra sigmoids)
    exe_spe = jax.nn.sigmoid(diff_spe)
    k_spe = jax.nn.sigmoid(know_spe)
    exe_oth, k_oth = diff_oth, know_oth
    exe_glo, k_glo = diff_glo, know_glo

    disc_spe = jax.nn.sigmoid(jax.nn.sigmoid(disc_spe_raw)) * 10.0
    disc_oth = jax.nn.sigmoid(disc_oth_raw) * 10.0
    disc_glo = jax.nn.sigmoid(disc_glo_raw) * 10.0

    # ---- proficiency (full_stu) / difficulty (full_exer) --------------------
    w_sa, w_sb, b_s = w_stu_a_ref[...], w_stu_b_ref[...], b_stu_ref[...]
    w_ea, w_eb, b_e = w_exer_a_ref[...], w_exer_b_ref[...], b_exer_ref[...]

    def full_stu(stu, k):
        return jax.nn.sigmoid(
            jnp.dot(stu.astype(bf16), w_sa, preferred_element_type=f32)
            + jnp.dot(k.astype(bf16), w_sb, preferred_element_type=f32) + b_s)

    def full_exer(exe, k):
        return jax.nn.sigmoid(
            jnp.dot(exe.astype(bf16), w_ea, preferred_element_type=f32)
            + jnp.dot(k.astype(bf16), w_eb, preferred_element_type=f32) + b_e)

    pro_spe = full_stu(stu_spe, k_spe)
    pro_oth = full_stu(stu_oth, k_oth)
    pro_glo = full_stu(stu_glo, k_glo)
    pro_sha = full_stu(stu_sha, k_spe)          # sha reuses k_spe

    dif_spe = full_exer(exe_spe, k_spe)         # shared by spe & sha branches
    dif_oth = full_exer(exe_oth, k_oth)
    dif_glo = full_exer(exe_glo, k_glo)

    q_spe = q_spe_ref[...]
    q_oth = q_oth_ref[...]
    q_sha = q_sha_ref[...]

    x_spe = disc_spe * (pro_spe - dif_spe) * q_spe
    x_oth = disc_oth * (pro_oth - dif_oth) * q_oth
    x_glo = disc_glo * (pro_glo - dif_glo) * q_sha
    x_sha = disc_spe * (pro_sha - dif_spe) * q_spe

    # ---- prediction net ------------------------------------------------------
    w1, b1 = w1_ref[...], b1_ref[...]
    w2, b2 = w2_ref[...], b2_ref[...]

    def pred(x):
        h = jax.nn.sigmoid(
            jnp.dot(x.astype(bf16), w1, preferred_element_type=f32) + b1)
        # 512 -> 1 as f32 elementwise mul + lane reduction.
        return jax.nn.sigmoid(jnp.sum(h * w2, axis=-1, keepdims=True) + b2)

    o_spe_ref[...] = pred(x_spe)
    o_oth_ref[...] = pred(x_oth)
    o_glo_ref[...] = pred(x_glo)
    o_sha_ref[...] = pred(x_sha)


# ------------------------------ forward pass ---------------------------------
@jax.jit
def net_forward(params,
                stu_id_spe, stu_ids_spe_other, stu_ids_glo_sha,
                q_emb_spe, q_emb_spe_other, q_emb_sha,
                exer_emb_spe, exer_emb_spe_other, exer_emb_sha,
                know_emb_spe, know_emb_spe_other, know_emb_sha,
                input_domain=None):        # unused, kept for signature fidelity
    del input_domain
    b = stu_id_spe.shape[0]
    assert b % BLOCK_B == 0, "batch must be a multiple of BLOCK_B (8)"
    grid = (b // BLOCK_B,)

    ids_spe = stu_id_spe.reshape(b, 1).astype(jnp.int32)
    ids_oth = stu_ids_spe_other.reshape(b, 1).astype(jnp.int32)
    ids_glo = stu_ids_glo_sha.reshape(b, 1).astype(jnp.int32)

    def chunk(cols):           # batch-streamed input / output blocks
        return pl.BlockSpec((BLOCK_B, cols), lambda i: (i, 0))

    def whole(arr):            # constant index_map -> fetched once per call
        return pl.BlockSpec(arr.shape, lambda i: (0, 0))

    p = params
    weights = (p["emb_spe"], p["emb_sha"],
               p["w_diff"], p["b_diff"], p["w_know"], p["b_know"],
               p["w_disc"], p["b_disc"],
               p["w_full_stu_a"], p["w_full_stu_b"], p["b_full_stu"],
               p["w_full_exer_a"], p["w_full_exer_b"], p["b_full_exer"],
               p["w_pred1"], p["b_pred1"], p["w_pred2"], p["b_pred2"])

    in_specs = ([chunk(1)] * 3
                + [chunk(KNOW_NUM)] * 3
                + [chunk(TEXT_DIM)] * 6
                + [whole(w) for w in weights])

    out_sds = tuple(jax.ShapeDtypeStruct((b, 1), jnp.float32) for _ in range(4))
    out_specs = tuple(chunk(1) for _ in range(4))

    outs = pl.pallas_call(
        _fused_kernel,
        grid=grid,
        in_specs=in_specs,
        out_specs=out_specs,
        out_shape=out_sds,
        compiler_params=pltpu.CompilerParams(
            dimension_semantics=("parallel",)),
    )(ids_spe, ids_oth, ids_glo,
      q_emb_spe, q_emb_spe_other, q_emb_sha,
      exer_emb_spe, exer_emb_spe_other, exer_emb_sha,
      know_emb_spe, know_emb_spe_other, know_emb_sha,
      *weights)

    o_spe, o_oth, o_glo, o_sha = (o[:, 0] for o in outs)
    # order: (output_spe, output_spe_other, output_glo_sha, output_sha)
    return o_spe, o_oth, o_glo, o_sha


# ------------------------------ reference ------------------------------------
def _ref_forward(params, *args):
    """Pure-jnp f32 reference mirroring the PyTorch forward semantics."""
    (stu_id_spe, stu_ids_spe_other, stu_ids_glo_sha,
     q_spe, q_spe_other, q_sha,
     ex_spe, ex_other, ex_sha,
     kn_spe, kn_other, kn_sha) = args
    p = {k: v.astype(jnp.float32) for k, v in params.items()}
    lin = lambda x, w, b: x @ w + b

    def full_stu(a, b_):
        return jax.nn.sigmoid(a @ p["w_full_stu_a"] + b_ @ p["w_full_stu_b"]
                              + p["b_full_stu"])

    def full_exer(a, b_):
        return jax.nn.sigmoid(a @ p["w_full_exer_a"] + b_ @ p["w_full_exer_b"]
                              + p["b_full_exer"])

    def pred(x):
        h = jax.nn.sigmoid(x @ p["w_pred1"] + p["b_pred1"])
        return jax.nn.sigmoid(jnp.sum(h * p["w_pred2"], -1, keepdims=True)
                              + p["b_pred2"])[:, 0]

    disc = lambda x: jnp.sum(x * p["w_disc"], -1, keepdims=True) + p["b_disc"]

    stu_spe = jax.nn.sigmoid(p["emb_spe"][stu_id_spe])
    stu_glo_sha = p["emb_sha"][stu_ids_glo_sha]
    stu_sha = p["emb_sha"][stu_id_spe]
    stu_spe_other = p["emb_spe"][stu_ids_spe_other]

    exe_spe = jax.nn.sigmoid(lin(ex_spe, p["w_diff"], p["b_diff"]))
    k_spe = jax.nn.sigmoid(lin(kn_spe, p["w_know"], p["b_know"]))
    exe_other = lin(ex_other, p["w_diff"], p["b_diff"])
    k_other = lin(kn_other, p["w_know"], p["b_know"])
    exe_glo = lin(ex_sha, p["w_diff"], p["b_diff"])
    k_glo = lin(kn_sha, p["w_know"], p["b_know"])
    ed_spe = jax.nn.sigmoid(jax.nn.sigmoid(disc(ex_spe))) * 10.0
    ed_other = jax.nn.sigmoid(disc(ex_other)) * 10.0
    ed_glo = jax.nn.sigmoid(disc(ex_sha)) * 10.0

    pro_spe = full_stu(stu_spe, k_spe)
    dif_spe = full_exer(exe_spe, k_spe)
    o_spe = pred(ed_spe * (pro_spe - dif_spe) * q_spe)

    pro_glo = full_stu(stu_glo_sha, k_glo)
    dif_glo = full_exer(exe_glo, k_glo)
    o_glo = pred(ed_glo * (pro_glo - dif_glo) * q_sha)

    pro_sha = full_stu(stu_sha, k_spe)
    o_sha = pred(ed_spe * (pro_sha - dif_spe) * q_spe)

    pro_oth = full_stu(stu_spe_other, k_other)
    dif_oth = full_exer(exe_other, k_other)
    o_oth = pred(ed_other * (pro_oth - dif_oth) * q_spe_other)

    return o_spe, o_oth, o_glo, o_sha


# ------------------------------ param init -----------------------------------
def init_params(key):
    def xavier(k, shape):  # shape = (in, out)
        fan_in, fan_out = shape[0], shape[-1]
        std = (2.0 / (fan_in + fan_out)) ** 0.5
        return std * jax.random.normal(k, shape, dtype=jnp.float32)

    ks = jax.random.split(key, 16)
    z = lambda *s: jnp.zeros(s, jnp.float32)
    bf16 = jnp.bfloat16
    return {
        # matmul-side weights stored bf16 (native MXU dtype, half the HBM/VMEM
        # traffic); biases and the two lane-reduction weight rows stay f32.
        "emb_spe": xavier(ks[0], (N_IDS, KDIM)).astype(bf16),
        "emb_sha": xavier(ks[1], (N_IDS, KDIM)).astype(bf16),
        "w_diff": xavier(ks[2], (TEXT_DIM, KDIM)).astype(bf16), "b_diff": z(1, KDIM),
        "w_know": xavier(ks[3], (TEXT_DIM, KDIM)).astype(bf16), "b_know": z(1, KDIM),
        "w_disc": xavier(ks[4], (1, TEXT_DIM)),                 "b_disc": z(1, 1),
        "w_full_stu_a": xavier(ks[5], (KDIM, KNOW_NUM)).astype(bf16),
        "w_full_stu_b": xavier(ks[6], (KDIM, KNOW_NUM)).astype(bf16),
        "b_full_stu": z(1, KNOW_NUM),
        "w_full_exer_a": xavier(ks[7], (KDIM, KNOW_NUM)).astype(bf16),
        "w_full_exer_b": xavier(ks[8], (KDIM, KNOW_NUM)).astype(bf16),
        "b_full_exer": z(1, KNOW_NUM),
        "w_pred1": xavier(ks[9], (KNOW_NUM, PRED_L1)).astype(bf16),
        "b_pred1": z(1, PRED_L1),
        "w_pred2": xavier(ks[10], (1, PRED_L1)), "b_pred2": z(1, 1),
        # TODO(synk): fp8 storage for w_diff/w_know would further halve weight
        # DMA on v7x only; left at bf16 for cross-generation portability.
    }


# --------------------------------- main ---------------------------------------
if __name__ == "__main__":
    key = jax.random.PRNGKey(0)
    kp, *kd = jax.random.split(key, 13)
    params = init_params(kp)

    stu_id_spe = jax.random.randint(kd[0], (BATCH,), 0, N_IDS)
    stu_ids_spe_other = jax.random.randint(kd[1], (BATCH,), 0, N_IDS)
    stu_ids_glo_sha = jax.random.randint(kd[2], (BATCH,), 0, N_IDS)
    q_spe = jax.random.uniform(kd[3], (BATCH, KNOW_NUM), jnp.float32)
    q_spe_other = jax.random.uniform(kd[4], (BATCH, KNOW_NUM), jnp.float32)
    q_sha = jax.random.uniform(kd[5], (BATCH, KNOW_NUM), jnp.float32)
    ex_spe = jax.random.normal(kd[6], (BATCH, TEXT_DIM), jnp.float32)
    ex_other = jax.random.normal(kd[7], (BATCH, TEXT_DIM), jnp.float32)
    ex_sha = jax.random.normal(kd[8], (BATCH, TEXT_DIM), jnp.float32)
    kn_spe = jax.random.normal(kd[9], (BATCH, TEXT_DIM), jnp.float32)
    kn_other = jax.random.normal(kd[10], (BATCH, TEXT_DIM), jnp.float32)
    kn_sha = jax.random.normal(kd[11], (BATCH, TEXT_DIM), jnp.float32)

    args = (stu_id_spe, stu_ids_spe_other, stu_ids_glo_sha,
            q_spe, q_spe_other, q_sha,
            ex_spe, ex_other, ex_sha,
            kn_spe, kn_other, kn_sha)

    outs = net_forward(params, *args)
    outs = jax.block_until_ready(outs)

    refs = _ref_forward(params, *args)
    # bf16 activation rounding at the MXU inputs adds a few e-3 of noise on
    # top of the f32 reference; outputs are sigmoid probabilities in (0,1).
    for o, r in zip(outs, refs):
        assert o.shape == (BATCH,)
        assert jnp.allclose(o, r, atol=1e-2, rtol=1e-2), (o, r)

    print("KERNEL_OK")
</pallas_src>

<mosaic_0001>
module attributes {stable_mosaic.version = 11 : i64} {
  func.func @_fused_kernel(%arg0: i32, %arg1: memref<8x1xi32, #tpu.memory_space<vmem>>, %arg2: memref<8x1xi32, #tpu.memory_space<vmem>>, %arg3: memref<8x1xi32, #tpu.memory_space<vmem>>, %arg4: memref<8x128xf32, #tpu.memory_space<vmem>>, %arg5: memref<8x128xf32, #tpu.memory_space<vmem>>, %arg6: memref<8x128xf32, #tpu.memory_space<vmem>>, %arg7: memref<8x768xf32, #tpu.memory_space<vmem>>, %arg8: memref<8x768xf32, #tpu.memory_space<vmem>>, %arg9: memref<8x768xf32, #tpu.memory_space<vmem>>, %arg10: memref<8x768xf32, #tpu.memory_space<vmem>>, %arg11: memref<8x768xf32, #tpu.memory_space<vmem>>, %arg12: memref<8x768xf32, #tpu.memory_space<vmem>>, %arg13: memref<64x256xbf16, #tpu.memory_space<vmem>>, %arg14: memref<64x256xbf16, #tpu.memory_space<vmem>>, %arg15: memref<768x256xbf16, #tpu.memory_space<vmem>>, %arg16: memref<1x256xf32, #tpu.memory_space<vmem>>, %arg17: memref<768x256xbf16, #tpu.memory_space<vmem>>, %arg18: memref<1x256xf32, #tpu.memory_space<vmem>>, %arg19: memref<1x768xf32, #tpu.memory_space<vmem>>, %arg20: memref<1x1xf32, #tpu.memory_space<vmem>>, %arg21: memref<256x128xbf16, #tpu.memory_space<vmem>>, %arg22: memref<256x128xbf16, #tpu.memory_space<vmem>>, %arg23: memref<1x128xf32, #tpu.memory_space<vmem>>, %arg24: memref<256x128xbf16, #tpu.memory_space<vmem>>, %arg25: memref<256x128xbf16, #tpu.memory_space<vmem>>, %arg26: memref<1x128xf32, #tpu.memory_space<vmem>>, %arg27: memref<128x512xbf16, #tpu.memory_space<vmem>>, %arg28: memref<1x512xf32, #tpu.memory_space<vmem>>, %arg29: memref<1x512xf32, #tpu.memory_space<vmem>>, %arg30: memref<1x1xf32, #tpu.memory_space<vmem>>, %arg31: memref<8x1xf32, #tpu.memory_space<vmem>>, %arg32: memref<8x1xf32, #tpu.memory_space<vmem>>, %arg33: memref<8x1xf32, #tpu.memory_space<vmem>>, %arg34: memref<8x1xf32, #tpu.memory_space<vmem>>) attributes {dimension_semantics = [#tpu.dimension_semantics<parallel>], iteration_bounds = array<i64: 2>, scalar_prefetch = 0 : i64, scratch_operands = 0 : i64, tpu.core_type = #tpu.core_type<tc>, window_params = [{transform_indices = @transform_0, window_bounds = array<i64: 8, 1>}, {transform_indices = @transform_1, window_bounds = array<i64: 8, 1>}, {transform_indices = @transform_2, window_bounds = array<i64: 8, 1>}, {transform_indices = @transform_3, window_bounds = array<i64: 8, 128>}, {transform_indices = @transform_4, window_bounds = array<i64: 8, 128>}, {transform_indices = @transform_5, window_bounds = array<i64: 8, 128>}, {transform_indices = @transform_6, window_bounds = array<i64: 8, 768>}, {transform_indices = @transform_7, window_bounds = array<i64: 8, 768>}, {transform_indices = @transform_8, window_bounds = array<i64: 8, 768>}, {transform_indices = @transform_9, window_bounds = array<i64: 8, 768>}, {transform_indices = @transform_10, window_bounds = array<i64: 8, 768>}, {transform_indices = @transform_11, window_bounds = array<i64: 8, 768>}, {pipeline_mode = #tpu.pipeline_mode<synchronous>, transform_indices = @transform_12, window_bounds = array<i64: 64, 256>}, {pipeline_mode = #tpu.pipeline_mode<synchronous>, transform_indices = @transform_13, window_bounds = array<i64: 64, 256>}, {pipeline_mode = #tpu.pipeline_mode<synchronous>, transform_indices = @transform_14, window_bounds = array<i64: 768, 256>}, {pipeline_mode = #tpu.pipeline_mode<synchronous>, transform_indices = @transform_15, window_bounds = array<i64: 1, 256>}, {pipeline_mode = #tpu.pipeline_mode<synchronous>, transform_indices = @transform_16, window_bounds = array<i64: 768, 256>}, {pipeline_mode = #tpu.pipeline_mode<synchronous>, transform_indices = @transform_17, window_bounds = array<i64: 1, 256>}, {pipeline_mode = #tpu.pipeline_mode<synchronous>, transform_indices = @transform_18, window_bounds = array<i64: 1, 768>}, {pipeline_mode = #tpu.pipeline_mode<synchronous>, transform_indices = @transform_19, window_bounds = array<i64: 1, 1>}, {pipeline_mode = #tpu.pipeline_mode<synchronous>, transform_indices = @transform_20, window_bounds = array<i64: 256, 128>}, {pipeline_mode = #tpu.pipeline_mode<synchronous>, transform_indices = @transform_21, window_bounds = array<i64: 256, 128>}, {pipeline_mode = #tpu.pipeline_mode<synchronous>, transform_indices = @transform_22, window_bounds = array<i64: 1, 128>}, {pipeline_mode = #tpu.pipeline_mode<synchronous>, transform_indices = @transform_23, window_bounds = array<i64: 256, 128>}, {pipeline_mode = #tpu.pipeline_mode<synchronous>, transform_indices = @transform_24, window_bounds = array<i64: 256, 128>}, {pipeline_mode = #tpu.pipeline_mode<synchronous>, transform_indices = @transform_25, window_bounds = array<i64: 1, 128>}, {pipeline_mode = #tpu.pipeline_mode<synchronous>, transform_indices = @transform_26, window_bounds = array<i64: 128, 512>}, {pipeline_mode = #tpu.pipeline_mode<synchronous>, transform_indices = @transform_27, window_bounds = array<i64: 1, 512>}, {pipeline_mode = #tpu.pipeline_mode<synchronous>, transform_indices = @transform_28, window_bounds = array<i64: 1, 512>}, {pipeline_mode = #tpu.pipeline_mode<synchronous>, transform_indices = @transform_29, window_bounds = array<i64: 1, 1>}, {transform_indices = @transform_30, window_bounds = array<i64: 8, 1>}, {transform_indices = @transform_31, window_bounds = array<i64: 8, 1>}, {transform_indices = @transform_32, window_bounds = array<i64: 8, 1>}, {transform_indices = @transform_33, window_bounds = array<i64: 8, 1>}]} {
    %c0 = arith.constant 0 : index
    %c0_0 = arith.constant 0 : index
    %0 = vector.load %arg1[%c0, %c0_0] : memref<8x1xi32, #tpu.memory_space<vmem>>, vector<8x1xi32>
    %1 = tpu.iota {dimensions = array<i32: 1>} : vector<8x64xi32>
    %2 = vector.broadcast %0 : vector<8x1xi32> to vector<8x64xi32>
    %3 = arith.cmpi eq, %2, %1 : vector<8x64xi32>
    %4 = arith.extui %3 : vector<8x64xi1> to vector<8x64xi32>
    %5 = arith.sitofp %4 : vector<8x64xi32> to vector<8x64xf32>
    %6 = arith.truncf %5 : vector<8x64xf32> to vector<8x64xbf16>
    %c0_1 = arith.constant 0 : index
    %c0_2 = arith.constant 0 : index
    %7 = vector.load %arg13[%c0_1, %c0_2] : memref<64x256xbf16, #tpu.memory_space<vmem>>, vector<64x256xbf16>
    %cst = arith.constant dense<0.000000e+00> : vector<8x256xf32>
    %8 = tpu.matmul %6, %7, %cst {dimension_numbers = #tpu.dot_dimension_numbers<[1], [0], [0], [1], [0, 0, 1, 1], [], []>} : vector<8x64xbf16>, vector<64x256xbf16>, vector<8x256xf32> -> vector<8x256xf32>
    %9 = arith.negf %8 : vector<8x256xf32>
    %10 = math.exp %9 : vector<8x256xf32>
    %cst_3 = arith.constant 1.000000e+00 : f32
    %11 = vector.broadcast %cst_3 : f32 to vector<8x256xf32>
    %12 = arith.addf %11, %10 : vector<8x256xf32>
    %13 = arith.divf %11, %12 : vector<8x256xf32>
    %c0_4 = arith.constant 0 : index
    %c0_5 = arith.constant 0 : index
    %14 = vector.load %arg2[%c0_4, %c0_5] : memref<8x1xi32, #tpu.memory_space<vmem>>, vector<8x1xi32>
    %15 = tpu.iota {dimensions = array<i32: 1>} : vector<8x64xi32>
    %16 = vector.broadcast %14 : vector<8x1xi32> to vector<8x64xi32>
    %17 = arith.cmpi eq, %16, %15 : vector<8x64xi32>
    %18 = arith.extui %17 : vector<8x64xi1> to vector<8x64xi32>
    %19 = arith.sitofp %18 : vector<8x64xi32> to vector<8x64xf32>
    %20 = arith.truncf %19 : vector<8x64xf32> to vector<8x64xbf16>
    %c0_6 = arith.constant 0 : index
    %c0_7 = arith.constant 0 : index
    %21 = vector.load %arg13[%c0_6, %c0_7] : memref<64x256xbf16, #tpu.memory_space<vmem>>, vector<64x256xbf16>
    %cst_8 = arith.constant dense<0.000000e+00> : vector<8x256xf32>
    %22 = tpu.matmul %20, %21, %cst_8 {dimension_numbers = #tpu.dot_dimension_numbers<[1], [0], [0], [1], [0, 0, 1, 1], [], []>} : vector<8x64xbf16>, vector<64x256xbf16>, vector<8x256xf32> -> vector<8x256xf32>
    %c0_9 = arith.constant 0 : index
    %c0_10 = arith.constant 0 : index
    %23 = vector.load %arg3[%c0_9, %c0_10] : memref<8x1xi32, #tpu.memory_space<vmem>>, vector<8x1xi32>
    %24 = tpu.iota {dimensions = array<i32: 1>} : vector<8x64xi32>
    %25 = vector.broadcast %23 : vector<8x1xi32> to vector<8x64xi32>
    %26 = arith.cmpi eq, %25, %24 : vector<8x64xi32>
    %27 = arith.extui %26 : vector<8x64xi1> to vector<8x64xi32>
    %28 = arith.sitofp %27 : vector<8x64xi32> to vector<8x64xf32>
    %29 = arith.truncf %28 : vector<8x64xf32> to vector<8x64xbf16>
    %c0_11 = arith.constant 0 : index
    %c0_12 = arith.constant 0 : index
    %30 = vector.load %arg14[%c0_11, %c0_12] : memref<64x256xbf16, #tpu.memory_space<vmem>>, vector<64x256xbf16>
    %cst_13 = arith.constant dense<0.000000e+00> : vector<8x256xf32>
    %31 = tpu.matmul %29, %30, %cst_13 {dimension_numbers = #tpu.dot_dimension_numbers<[1], [0], [0], [1], [0, 0, 1, 1], [], []>} : vector<8x64xbf16>, vector<64x256xbf16>, vector<8x256xf32> -> vector<8x256xf32>
    %c0_14 = arith.constant 0 : index
    %c0_15 = arith.constant 0 : index
    %32 = vector.load %arg1[%c0_14, %c0_15] : memref<8x1xi32, #tpu.memory_space<vmem>>, vector<8x1xi32>
    %33 = tpu.iota {dimensions = array<i32: 1>} : vector<8x64xi32>
    %34 = vector.broadcast %32 : vector<8x1xi32> to vector<8x64xi32>
    %35 = arith.cmpi eq, %34, %33 : vector<8x64xi32>
    %36 = arith.extui %35 : vector<8x64xi1> to vector<8x64xi32>
    %37 = arith.sitofp %36 : vector<8x64xi32> to vector<8x64xf32>
    %38 = arith.truncf %37 : vector<8x64xf32> to vector<8x64xbf16>
    %c0_16 = arith.constant 0 : index
    %c0_17 = arith.constant 0 : index
    %39 = vector.load %arg14[%c0_16, %c0_17] : memref<64x256xbf16, #tpu.memory_space<vmem>>, vector<64x256xbf16>
    %cst_18 = arith.constant dense<0.000000e+00> : vector<8x256xf32>
    %40 = tpu.matmul %38, %39, %cst_18 {dimension_numbers = #tpu.dot_dimension_numbers<[1], [0], [0], [1], [0, 0, 1, 1], [], []>} : vector<8x64xbf16>, vector<64x256xbf16>, vector<8x256xf32> -> vector<8x256xf32>
    %c0_19 = arith.constant 0 : index
    %c0_20 = arith.constant 0 : index
    %41 = vector.load %arg15[%c0_19, %c0_20] : memref<768x256xbf16, #tpu.memory_space<vmem>>, vector<768x256xbf16>
    %c0_21 = arith.constant 0 : index
    %c0_22 = arith.constant 0 : index
    %42 = vector.load %arg17[%c0_21, %c0_22] : memref<768x256xbf16, #tpu.memory_space<vmem>>, vector<768x256xbf16>
    %c0_23 = arith.constant 0 : index
    %c0_24 = arith.constant 0 : index
    %43 = vector.load %arg16[%c0_23, %c0_24] : memref<1x256xf32, #tpu.memory_space<vmem>>, vector<1x256xf32>
    %c0_25 = arith.constant 0 : index
    %c0_26 = arith.constant 0 : index
    %44 = vector.load %arg18[%c0_25, %c0_26] : memref<1x256xf32, #tpu.memory_space<vmem>>, vector<1x256xf32>
    %c0_27 = arith.constant 0 : index
    %c0_28 = arith.constant 0 : index
    %45 = vector.load %arg19[%c0_27, %c0_28] : memref<1x768xf32, #tpu.memory_space<vmem>>, vector<1x768xf32>
    %c0_29 = arith.constant 0 : index
    %c0_30 = arith.constant 0 : index
    %46 = vector.load %arg20[%c0_29, %c0_30] : memref<1x1xf32, #tpu.memory_space<vmem>>, vector<1x1xf32>
    %c0_31 = arith.constant 0 : index
    %c0_32 = arith.constant 0 : index
    %47 = vector.load %arg7[%c0_31, %c0_32] : memref<8x768xf32, #tpu.memory_space<vmem>>, vector<8x768xf32>
    %c0_33 = arith.constant 0 : index
    %c0_34 = arith.constant 0 : index
    %48 = vector.load %arg10[%c0_33, %c0_34] : memref<8x768xf32, #tpu.memory_space<vmem>>, vector<8x768xf32>
    %49 = arith.truncf %47 : vector<8x768xf32> to vector<8x768xbf16>
    %cst_35 = arith.constant dense<0.000000e+00> : vector<8x256xf32>
    %50 = tpu.matmul %49, %41, %cst_35 {dimension_numbers = #tpu.dot_dimension_numbers<[1], [0], [0], [1], [0, 0, 1, 1], [], []>} : vector<8x768xbf16>, vector<768x256xbf16>, vector<8x256xf32> -> vector<8x256xf32>
    %51 = vector.broadcast %43 : vector<1x256xf32> to vector<8x256xf32>
    %52 = arith.addf %50, %51 : vector<8x256xf32>
    %53 = arith.truncf %48 : vector<8x768xf32> to vector<8x768xbf16>
    %cst_36 = arith.constant dense<0.000000e+00> : vector<8x256xf32>
    %54 = tpu.matmul %53, %42, %cst_36 {dimension_numbers = #tpu.dot_dimension_numbers<[1], [0], [0], [1], [0, 0, 1, 1], [], []>} : vector<8x768xbf16>, vector<768x256xbf16>, vector<8x256xf32> -> vector<8x256xf32>
    %55 = vector.broadcast %44 : vector<1x256xf32> to vector<8x256xf32>
    %56 = arith.addf %54, %55 : vector<8x256xf32>
    %57 = vector.broadcast %45 : vector<1x768xf32> to vector<8x768xf32>
    %58 = arith.mulf %47, %57 : vector<8x768xf32>
    %cst_37 = arith.constant dense<0.000000e+00> : vector<8xf32>
    %59 = vector.multi_reduction <add>, %58, %cst_37 [1] : vector<8x768xf32> to vector<8xf32>
    %60 = vector.shape_cast %59 : vector<8xf32> to vector<8x1xf32>
    %61 = vector.broadcast %46 : vector<1x1xf32> to vector<8x1xf32>
    %62 = arith.addf %60, %61 : vector<8x1xf32>
    %c0_38 = arith.constant 0 : index
    %c0_39 = arith.constant 0 : index
    %63 = vector.load %arg8[%c0_38, %c0_39] : memref<8x768xf32, #tpu.memory_space<vmem>>, vector<8x768xf32>
    %c0_40 = arith.constant 0 : index
    %c0_41 = arith.constant 0 : index
    %64 = vector.load %arg11[%c0_40, %c0_41] : memref<8x768xf32, #tpu.memory_space<vmem>>, vector<8x768xf32>
    %65 = arith.truncf %63 : vector<8x768xf32> to vector<8x768xbf16>
    %cst_42 = arith.constant dense<0.000000e+00> : vector<8x256xf32>
    %66 = tpu.matmul %65, %41, %cst_42 {dimension_numbers = #tpu.dot_dimension_numbers<[1], [0], [0], [1], [0, 0, 1, 1], [], []>} : vector<8x768xbf16>, vector<768x256xbf16>, vector<8x256xf32> -> vector<8x256xf32>
    %67 = vector.broadcast %43 : vector<1x256xf32> to vector<8x256xf32>
    %68 = arith.addf %66, %67 : vector<8x256xf32>
    %69 = arith.truncf %64 : vector<8x768xf32> to vector<8x768xbf16>
    %cst_43 = arith.constant dense<0.000000e+00> : vector<8x256xf32>
    %70 = tpu.matmul %69, %42, %cst_43 {dimension_numbers = #tpu.dot_dimension_numbers<[1], [0], [0], [1], [0, 0, 1, 1], [], []>} : vector<8x768xbf16>, vector<768x256xbf16>, vector<8x256xf32> -> vector<8x256xf32>
    %71 = vector.broadcast %44 : vector<1x256xf32> to vector<8x256xf32>
    %72 = arith.addf %70, %71 : vector<8x256xf32>
    %73 = vector.broadcast %45 : vector<1x768xf32> to vector<8x768xf32>
    %74 = arith.mulf %63, %73 : vector<8x768xf32>
    %cst_44 = arith.constant dense<0.000000e+00> : vector<8xf32>
    %75 = vector.multi_reduction <add>, %74, %cst_44 [1] : vector<8x768xf32> to vector<8xf32>
    %76 = vector.shape_cast %75 : vector<8xf32> to vector<8x1xf32>
    %77 = vector.broadcast %46 : vector<1x1xf32> to vector<8x1xf32>
    %78 = arith.addf %76, %77 : vector<8x1xf32>
    %c0_45 = arith.constant 0 : index
    %c0_46 = arith.constant 0 : index
    %79 = vector.load %arg9[%c0_45, %c0_46] : memref<8x768xf32, #tpu.memory_space<vmem>>, vector<8x768xf32>
    %c0_47 = arith.constant 0 : index
    %c0_48 = arith.constant 0 : index
    %80 = vector.load %arg12[%c0_47, %c0_48] : memref<8x768xf32, #tpu.memory_space<vmem>>, vector<8x768xf32>
    %81 = arith.truncf %79 : vector<8x768xf32> to vector<8x768xbf16>
    %cst_49 = arith.constant dense<0.000000e+00> : vector<8x256xf32>
    %82 = tpu.matmul %81, %41, %cst_49 {dimension_numbers = #tpu.dot_dimension_numbers<[1], [0], [0], [1], [0, 0, 1, 1], [], []>} : vector<8x768xbf16>, vector<768x256xbf16>, vector<8x256xf32> -> vector<8x256xf32>
    %83 = vector.broadcast %43 : vector<1x256xf32> to vector<8x256xf32>
    %84 = arith.addf %82, %83 : vector<8x256xf32>
    %85 = arith.truncf %80 : vector<8x768xf32> to vector<8x768xbf16>
    %cst_50 = arith.constant dense<0.000000e+00> : vector<8x256xf32>
    %86 = tpu.matmul %85, %42, %cst_50 {dimension_numbers = #tpu.dot_dimension_numbers<[1], [0], [0], [1], [0, 0, 1, 1], [], []>} : vector<8x768xbf16>, vector<768x256xbf16>, vector<8x256xf32> -> vector<8x256xf32>
    %87 = vector.broadcast %44 : vector<1x256xf32> to vector<8x256xf32>
    %88 = arith.addf %86, %87 : vector<8x256xf32>
    %89 = vector.broadcast %45 : vector<1x768xf32> to vector<8x768xf32>
    %90 = arith.mulf %79, %89 : vector<8x768xf32>
    %cst_51 = arith.constant dense<0.000000e+00> : vector<8xf32>
    %91 = vector.multi_reduction <add>, %90, %cst_51 [1] : vector<8x768xf32> to vector<8xf32>
    %92 = vector.shape_cast %91 : vector<8xf32> to vector<8x1xf32>
    %93 = vector.broadcast %46 : vector<1x1xf32> to vector<8x1xf32>
    %94 = arith.addf %92, %93 : vector<8x1xf32>
    %95 = arith.negf %52 : vector<8x256xf32>
    %96 = math.exp %95 : vector<8x256xf32>
    %cst_52 = arith.constant 1.000000e+00 : f32
    %97 = vector.broadcast %cst_52 : f32 to vector<8x256xf32>
    %98 = arith.addf %97, %96 : vector<8x256xf32>
    %99 = arith.divf %97, %98 : vector<8x256xf32>
    %100 = arith.negf %56 : vector<8x256xf32>
    %101 = math.exp %100 : vector<8x256xf32>
    %cst_53 = arith.constant 1.000000e+00 : f32
    %102 = vector.broadcast %cst_53 : f32 to vector<8x256xf32>
    %103 = arith.addf %102, %101 : vector<8x256xf32>
    %104 = arith.divf %102, %103 : vector<8x256xf32>
    %105 = arith.negf %62 : vector<8x1xf32>
    %106 = math.exp %105 : vector<8x1xf32>
    %cst_54 = arith.constant 1.000000e+00 : f32
    %107 = vector.broadcast %cst_54 : f32 to vector<8x1xf32>
    %108 = arith.addf %107, %106 : vector<8x1xf32>
    %109 = arith.divf %107, %108 : vector<8x1xf32>
    %110 = arith.negf %109 : vector<8x1xf32>
    %111 = math.exp %110 : vector<8x1xf32>
    %cst_55 = arith.constant 1.000000e+00 : f32
    %112 = vector.broadcast %cst_55 : f32 to vector<8x1xf32>
    %113 = arith.addf %112, %111 : vector<8x1xf32>
    %114 = arith.divf %112, %113 : vector<8x1xf32>
    %cst_56 = arith.constant 1.000000e+01 : f32
    %115 = vector.broadcast %cst_56 : f32 to vector<8x1xf32>
    %116 = arith.mulf %114, %115 : vector<8x1xf32>
    %117 = arith.negf %78 : vector<8x1xf32>
    %118 = math.exp %117 : vector<8x1xf32>
    %cst_57 = arith.constant 1.000000e+00 : f32
    %119 = vector.broadcast %cst_57 : f32 to vector<8x1xf32>
    %120 = arith.addf %119, %118 : vector<8x1xf32>
    %121 = arith.divf %119, %120 : vector<8x1xf32>
    %cst_58 = arith.constant 1.000000e+01 : f32
    %122 = vector.broadcast %cst_58 : f32 to vector<8x1xf32>
    %123 = arith.mulf %121, %122 : vector<8x1xf32>
    %124 = arith.negf %94 : vector<8x1xf32>
    %125 = math.exp %124 : vector<8x1xf32>
    %cst_59 = arith.constant 1.000000e+00 : f32
    %126 = vector.broadcast %cst_59 : f32 to vector<8x1xf32>
    %127 = arith.addf %126, %125 : vector<8x1xf32>
    %128 = arith.divf %126, %127 : vector<8x1xf32>
    %cst_60 = arith.constant 1.000000e+01 : f32
    %129 = vector.broadcast %cst_60 : f32 to vector<8x1xf32>
    %130 = arith.mulf %128, %129 : vector<8x1xf32>
    %c0_61 = arith.constant 0 : index
    %c0_62 = arith.constant 0 : index
    %131 = vector.load %arg21[%c0_61, %c0_62] : memref<256x128xbf16, #tpu.memory_space<vmem>>, vector<256x128xbf16>
    %c0_63 = arith.constant 0 : index
    %c0_64 = arith.constant 0 : index
    %132 = vector.load %arg22[%c0_63, %c0_64] : memref<256x128xbf16, #tpu.memory_space<vmem>>, vector<256x128xbf16>
    %c0_65 = arith.constant 0 : index
    %c0_66 = arith.constant 0 : index
    %133 = vector.load %arg23[%c0_65, %c0_66] : memref<1x128xf32, #tpu.memory_space<vmem>>, vector<1x128xf32>
    %c0_67 = arith.constant 0 : index
    %c0_68 = arith.constant 0 : index
    %134 = vector.load %arg24[%c0_67, %c0_68] : memref<256x128xbf16, #tpu.memory_space<vmem>>, vector<256x128xbf16>
    %c0_69 = arith.constant 0 : index
    %c0_70 = arith.constant 0 : index
    %135 = vector.load %arg25[%c0_69, %c0_70] : memref<256x128xbf16, #tpu.memory_space<vmem>>, vector<256x128xbf16>
    %c0_71 = arith.constant 0 : index
    %c0_72 = arith.constant 0 : index
    %136 = vector.load %arg26[%c0_71, %c0_72] : memref<1x128xf32, #tpu.memory_space<vmem>>, vector<1x128xf32>
    %137 = arith.truncf %13 : vector<8x256xf32> to vector<8x256xbf16>
    %cst_73 = arith.constant dense<0.000000e+00> : vector<8x128xf32>
    %138 = tpu.matmul %137, %131, %cst_73 {dimension_numbers = #tpu.dot_dimension_numbers<[1], [0], [0], [1], [0, 0, 1, 1], [], []>} : vector<8x256xbf16>, vector<256x128xbf16>, vector<8x128xf32> -> vector<8x128xf32>
    %139 = arith.truncf %104 : vector<8x256xf32> to vector<8x256xbf16>
    %cst_74 = arith.constant dense<0.000000e+00> : vector<8x128xf32>
    %140 = tpu.matmul %139, %132, %cst_74 {dimension_numbers = #tpu.dot_dimension_numbers<[1], [0], [0], [1], [0, 0, 1, 1], [], []>} : vector<8x256xbf16>, vector<256x128xbf16>, vector<8x128xf32> -> vector<8x128xf32>
    %141 = arith.addf %138, %140 : vector<8x128xf32>
    %142 = vector.broadcast %133 : vector<1x128xf32> to vector<8x128xf32>
    %143 = arith.addf %141, %142 : vector<8x128xf32>
    %144 = arith.negf %143 : vector<8x128xf32>
    %145 = math.exp %144 : vector<8x128xf32>
    %cst_75 = arith.constant 1.000000e+00 : f32
    %146 = vector.broadcast %cst_75 : f32 to vector<8x128xf32>
    %147 = arith.addf %146, %145 : vector<8x128xf32>
    %148 = arith.divf %146, %147 : vector<8x128xf32>
    %149 = arith.truncf %22 : vector<8x256xf32> to vector<8x256xbf16>
    %cst_76 = arith.constant dense<0.000000e+00> : vector<8x128xf32>
    %150 = tpu.matmul %149, %131, %cst_76 {dimension_numbers = #tpu.dot_dimension_numbers<[1], [0], [0], [1], [0, 0, 1, 1], [], []>} : vector<8x256xbf16>, vector<256x128xbf16>, vector<8x128xf32> -> vector<8x128xf32>
    %151 = arith.truncf %72 : vector<8x256xf32> to vector<8x256xbf16>
    %cst_77 = arith.constant dense<0.000000e+00> : vector<8x128xf32>
    %152 = tpu.matmul %151, %132, %cst_77 {dimension_numbers = #tpu.dot_dimension_numbers<[1], [0], [0], [1], [0, 0, 1, 1], [], []>} : vector<8x256xbf16>, vector<256x128xbf16>, vector<8x128xf32> -> vector<8x128xf32>
    %153 = arith.addf %150, %152 : vector<8x128xf32>
    %154 = vector.broadcast %133 : vector<1x128xf32> to vector<8x128xf32>
    %155 = arith.addf %153, %154 : vector<8x128xf32>
    %156 = arith.negf %155 : vector<8x128xf32>
    %157 = math.exp %156 : vector<8x128xf32>
    %cst_78 = arith.constant 1.000000e+00 : f32
    %158 = vector.broadcast %cst_78 : f32 to vector<8x128xf32>
    %159 = arith.addf %158, %157 : vector<8x128xf32>
    %160 = arith.divf %158, %159 : vector<8x128xf32>
    %161 = arith.truncf %31 : vector<8x256xf32> to vector<8x256xbf16>
    %cst_79 = arith.constant dense<0.000000e+00> : vector<8x128xf32>
    %162 = tpu.matmul %161, %131, %cst_79 {dimension_numbers = #tpu.dot_dimension_numbers<[1], [0], [0], [1], [0, 0, 1, 1], [], []>} : vector<8x256xbf16>, vector<256x128xbf16>, vector<8x128xf32> -> vector<8x128xf32>
    %163 = arith.truncf %88 : vector<8x256xf32> to vector<8x256xbf16>
    %cst_80 = arith.constant dense<0.000000e+00> : vector<8x128xf32>
    %164 = tpu.matmul %163, %132, %cst_80 {dimension_numbers = #tpu.dot_dimension_numbers<[1], [0], [0], [1], [0, 0, 1, 1], [], []>} : vector<8x256xbf16>, vector<256x128xbf16>, vector<8x128xf32> -> vector<8x128xf32>
    %165 = arith.addf %162, %164 : vector<8x128xf32>
    %166 = vector.broadcast %133 : vector<1x128xf32> to vector<8x128xf32>
    %167 = arith.addf %165, %166 : vector<8x128xf32>
    %168 = arith.negf %167 : vector<8x128xf32>
    %169 = math.exp %168 : vector<8x128xf32>
    %cst_81 = arith.constant 1.000000e+00 : f32
    %170 = vector.broadcast %cst_81 : f32 to vector<8x128xf32>
    %171 = arith.addf %170, %169 : vector<8x128xf32>
    %172 = arith.divf %170, %171 : vector<8x128xf32>
    %173 = arith.truncf %40 : vector<8x256xf32> to vector<8x256xbf16>
    %cst_82 = arith.constant dense<0.000000e+00> : vector<8x128xf32>
    %174 = tpu.matmul %173, %131, %cst_82 {dimension_numbers = #tpu.dot_dimension_numbers<[1], [0], [0], [1], [0, 0, 1, 1], [], []>} : vector<8x256xbf16>, vector<256x128xbf16>, vector<8x128xf32> -> vector<8x128xf32>
    %175 = arith.truncf %104 : vector<8x256xf32> to vector<8x256xbf16>
    %cst_83 = arith.constant dense<0.000000e+00> : vector<8x128xf32>
    %176 = tpu.matmul %175, %132, %cst_83 {dimension_numbers = #tpu.dot_dimension_numbers<[1], [0], [0], [1], [0, 0, 1, 1], [], []>} : vector<8x256xbf16>, vector<256x128xbf16>, vector<8x128xf32> -> vector<8x128xf32>
    %177 = arith.addf %174, %176 : vector<8x128xf32>
    %178 = vector.broadcast %133 : vector<1x128xf32> to vector<8x128xf32>
    %179 = arith.addf %177, %178 : vector<8x128xf32>
    %180 = arith.negf %179 : vector<8x128xf32>
    %181 = math.exp %180 : vector<8x128xf32>
    %cst_84 = arith.constant 1.000000e+00 : f32
    %182 = vector.broadcast %cst_84 : f32 to vector<8x128xf32>
    %183 = arith.addf %182, %181 : vector<8x128xf32>
    %184 = arith.divf %182, %183 : vector<8x128xf32>
    %185 = arith.truncf %99 : vector<8x256xf32> to vector<8x256xbf16>
    %cst_85 = arith.constant dense<0.000000e+00> : vector<8x128xf32>
    %186 = tpu.matmul %185, %134, %cst_85 {dimension_numbers = #tpu.dot_dimension_numbers<[1], [0], [0], [1], [0, 0, 1, 1], [], []>} : vector<8x256xbf16>, vector<256x128xbf16>, vector<8x128xf32> -> vector<8x128xf32>
    %187 = arith.truncf %104 : vector<8x256xf32> to vector<8x256xbf16>
    %cst_86 = arith.constant dense<0.000000e+00> : vector<8x128xf32>
    %188 = tpu.matmul %187, %135, %cst_86 {dimension_numbers = #tpu.dot_dimension_numbers<[1], [0], [0], [1], [0, 0, 1, 1], [], []>} : vector<8x256xbf16>, vector<256x128xbf16>, vector<8x128xf32> -> vector<8x128xf32>
    %189 = arith.addf %186, %188 : vector<8x128xf32>
    %190 = vector.broadcast %136 : vector<1x128xf32> to vector<8x128xf32>
    %191 = arith.addf %189, %190 : vector<8x128xf32>
    %192 = arith.negf %191 : vector<8x128xf32>
    %193 = math.exp %192 : vector<8x128xf32>
    %cst_87 = arith.constant 1.000000e+00 : f32
    %194 = vector.broadcast %cst_87 : f32 to vector<8x128xf32>
    %195 = arith.addf %194, %193 : vector<8x128xf32>
    %196 = arith.divf %194, %195 : vector<8x128xf32>
    %197 = arith.truncf %68 : vector<8x256xf32> to vector<8x256xbf16>
    %cst_88 = arith.constant dense<0.000000e+00> : vector<8x128xf32>
    %198 = tpu.matmul %197, %134, %cst_88 {dimension_numbers = #tpu.dot_dimension_numbers<[1], [0], [0], [1], [0, 0, 1, 1], [], []>} : vector<8x256xbf16>, vector<256x128xbf16>, vector<8x128xf32> -> vector<8x128xf32>
    %199 = arith.truncf %72 : vector<8x256xf32> to vector<8x256xbf16>
    %cst_89 = arith.constant dense<0.000000e+00> : vector<8x128xf32>
    %200 = tpu.matmul %199, %135, %cst_89 {dimension_numbers = #tpu.dot_dimension_numbers<[1], [0], [0], [1], [0, 0, 1, 1], [], []>} : vector<8x256xbf16>, vector<256x128xbf16>, vector<8x128xf32> -> vector<8x128xf32>
    %201 = arith.addf %198, %200 : vector<8x128xf32>
    %202 = vector.broadcast %136 : vector<1x128xf32> to vector<8x128xf32>
    %203 = arith.addf %201, %202 : vector<8x128xf32>
    %204 = arith.negf %203 : vector<8x128xf32>
    %205 = math.exp %204 : vector<8x128xf32>
    %cst_90 = arith.constant 1.000000e+00 : f32
    %206 = vector.broadcast %cst_90 : f32 to vector<8x128xf32>
    %207 = arith.addf %206, %205 : vector<8x128xf32>
    %208 = arith.divf %206, %207 : vector<8x128xf32>
    %209 = arith.truncf %84 : vector<8x256xf32> to vector<8x256xbf16>
    %cst_91 = arith.constant dense<0.000000e+00> : vector<8x128xf32>
    %210 = tpu.matmul %209, %134, %cst_91 {dimension_numbers = #tpu.dot_dimension_numbers<[1], [0], [0], [1], [0, 0, 1, 1], [], []>} : vector<8x256xbf16>, vector<256x128xbf16>, vector<8x128xf32> -> vector<8x128xf32>
    %211 = arith.truncf %88 : vector<8x256xf32> to vector<8x256xbf16>
    %cst_92 = arith.constant dense<0.000000e+00> : vector<8x128xf32>
    %212 = tpu.matmul %211, %135, %cst_92 {dimension_numbers = #tpu.dot_dimension_numbers<[1], [0], [0], [1], [0, 0, 1, 1], [], []>} : vector<8x256xbf16>, vector<256x128xbf16>, vector<8x128xf32> -> vector<8x128xf32>
    %213 = arith.addf %210, %212 : vector<8x128xf32>
    %214 = vector.broadcast %136 : vector<1x128xf32> to vector<8x128xf32>
    %215 = arith.addf %213, %214 : vector<8x128xf32>
    %216 = arith.negf %215 : vector<8x128xf32>
    %217 = math.exp %216 : vector<8x128xf32>
    %cst_93 = arith.constant 1.000000e+00 : f32
    %218 = vector.broadcast %cst_93 : f32 to vector<8x128xf32>
    %219 = arith.addf %218, %217 : vector<8x128xf32>
    %220 = arith.divf %218, %219 : vector<8x128xf32>
    %c0_94 = arith.constant 0 : index
    %c0_95 = arith.constant 0 : index
    %221 = vector.load %arg4[%c0_94, %c0_95] : memref<8x128xf32, #tpu.memory_space<vmem>>, vector<8x128xf32>
    %c0_96 = arith.constant 0 : index
    %c0_97 = arith.constant 0 : index
    %222 = vector.load %arg5[%c0_96, %c0_97] : memref<8x128xf32, #tpu.memory_space<vmem>>, vector<8x128xf32>
    %c0_98 = arith.constant 0 : index
    %c0_99 = arith.constant 0 : index
    %223 = vector.load %arg6[%c0_98, %c0_99] : memref<8x128xf32, #tpu.memory_space<vmem>>, vector<8x128xf32>
    %224 = arith.subf %148, %196 : vector<8x128xf32>
    %225 = vector.broadcast %116 : vector<8x1xf32> to vector<8x128xf32>
    %226 = arith.mulf %225, %224 : vector<8x128xf32>
    %227 = arith.mulf %226, %221 : vector<8x128xf32>
    %228 = arith.subf %160, %208 : vector<8x128xf32>
    %229 = vector.broadcast %123 : vector<8x1xf32> to vector<8x128xf32>
    %230 = arith.mulf %229, %228 : vector<8x128xf32>
    %231 = arith.mulf %230, %222 : vector<8x128xf32>
    %232 = arith.subf %172, %220 : vector<8x128xf32>
    %233 = vector.broadcast %130 : vector<8x1xf32> to vector<8x128xf32>
    %234 = arith.mulf %233, %232 : vector<8x128xf32>
    %235 = arith.mulf %234, %223 : vector<8x128xf32>
    %236 = arith.subf %184, %196 : vector<8x128xf32>
    %237 = vector.broadcast %116 : vector<8x1xf32> to vector<8x128xf32>
    %238 = arith.mulf %237, %236 : vector<8x128xf32>
    %239 = arith.mulf %238, %221 : vector<8x128xf32>
    %c0_100 = arith.constant 0 : index
    %c0_101 = arith.constant 0 : index
    %240 = vector.load %arg27[%c0_100, %c0_101] : memref<128x512xbf16, #tpu.memory_space<vmem>>, vector<128x512xbf16>
    %c0_102 = arith.constant 0 : index
    %c0_103 = arith.constant 0 : index
    %241 = vector.load %arg28[%c0_102, %c0_103] : memref<1x512xf32, #tpu.memory_space<vmem>>, vector<1x512xf32>
    %c0_104 = arith.constant 0 : index
    %c0_105 = arith.constant 0 : index
    %242 = vector.load %arg29[%c0_104, %c0_105] : memref<1x512xf32, #tpu.memory_space<vmem>>, vector<1x512xf32>
    %c0_106 = arith.constant 0 : index
    %c0_107 = arith.constant 0 : index
    %243 = vector.load %arg30[%c0_106, %c0_107] : memref<1x1xf32, #tpu.memory_space<vmem>>, vector<1x1xf32>
    %244 = arith.truncf %227 : vector<8x128xf32> to vector<8x128xbf16>
    %cst_108 = arith.constant dense<0.000000e+00> : vector<8x512xf32>
    %245 = tpu.matmul %244, %240, %cst_108 {dimension_numbers = #tpu.dot_dimension_numbers<[1], [0], [0], [1], [0, 0, 1, 1], [], []>} : vector<8x128xbf16>, vector<128x512xbf16>, vector<8x512xf32> -> vector<8x512xf32>
    %246 = vector.broadcast %241 : vector<1x512xf32> to vector<8x512xf32>
    %247 = arith.addf %245, %246 : vector<8x512xf32>
    %248 = arith.negf %247 : vector<8x512xf32>
    %249 = math.exp %248 : vector<8x512xf32>
    %cst_109 = arith.constant 1.000000e+00 : f32
    %250 = vector.broadcast %cst_109 : f32 to vector<8x512xf32>
    %251 = arith.addf %250, %249 : vector<8x512xf32>
    %252 = arith.divf %250, %251 : vector<8x512xf32>
    %253 = vector.broadcast %242 : vector<1x512xf32> to vector<8x512xf32>
    %254 = arith.mulf %252, %253 : vector<8x512xf32>
    %cst_110 = arith.constant dense<0.000000e+00> : vector<8xf32>
    %255 = vector.multi_reduction <add>, %254, %cst_110 [1] : vector<8x512xf32> to vector<8xf32>
    %256 = vector.shape_cast %255 : vector<8xf32> to vector<8x1xf32>
    %257 = vector.broadcast %243 : vector<1x1xf32> to vector<8x1xf32>
    %258 = arith.addf %256, %257 : vector<8x1xf32>
    %259 = arith.negf %258 : vector<8x1xf32>
    %260 = math.exp %259 : vector<8x1xf32>
    %cst_111 = arith.constant 1.000000e+00 : f32
    %261 = vector.broadcast %cst_111 : f32 to vector<8x1xf32>
    %262 = arith.addf %261, %260 : vector<8x1xf32>
    %263 = arith.divf %261, %262 : vector<8x1xf32>
    %c0_112 = arith.constant 0 : index
    %c0_113 = arith.constant 0 : index
    %264 = vector.load %arg31[%c0_112, %c0_113] : memref<8x1xf32, #tpu.memory_space<vmem>>, vector<8x1xf32>
    tpu.vector_store %arg31[%c0_112, %c0_113], %263 {strides = array<i32>} : memref<8x1xf32, #tpu.memory_space<vmem>>, vector<8x1xf32>,
    %265 = arith.truncf %231 : vector<8x128xf32> to vector<8x128xbf16>
    %cst_114 = arith.constant dense<0.000000e+00> : vector<8x512xf32>
    %266 = tpu.matmul %265, %240, %cst_114 {dimension_numbers = #tpu.dot_dimension_numbers<[1], [0], [0], [1], [0, 0, 1, 1], [], []>} : vector<8x128xbf16>, vector<128x512xbf16>, vector<8x512xf32> -> vector<8x512xf32>
    %267 = vector.broadcast %241 : vector<1x512xf32> to vector<8x512xf32>
    %268 = arith.addf %266, %267 : vector<8x512xf32>
    %269 = arith.negf %268 : vector<8x512xf32>
    %270 = math.exp %269 : vector<8x512xf32>
    %cst_115 = arith.constant 1.000000e+00 : f32
    %271 = vector.broadcast %cst_115 : f32 to vector<8x512xf32>
    %272 = arith.addf %271, %270 : vector<8x512xf32>
    %273 = arith.divf %271, %272 : vector<8x512xf32>
    %274 = vector.broadcast %242 : vector<1x512xf32> to vector<8x512xf32>
    %275 = arith.mulf %273, %274 : vector<8x512xf32>
    %cst_116 = arith.constant dense<0.000000e+00> : vector<8xf32>
    %276 = vector.multi_reduction <add>, %275, %cst_116 [1] : vector<8x512xf32> to vector<8xf32>
    %277 = vector.shape_cast %276 : vector<8xf32> to vector<8x1xf32>
    %278 = vector.broadcast %243 : vector<1x1xf32> to vector<8x1xf32>
    %279 = arith.addf %277, %278 : vector<8x1xf32>
    %280 = arith.negf %279 : vector<8x1xf32>
    %281 = math.exp %280 : vector<8x1xf32>
    %cst_117 = arith.constant 1.000000e+00 : f32
    %282 = vector.broadcast %cst_117 : f32 to vector<8x1xf32>
    %283 = arith.addf %282, %281 : vector<8x1xf32>
    %284 = arith.divf %282, %283 : vector<8x1xf32>
    %c0_118 = arith.constant 0 : index
    %c0_119 = arith.constant 0 : index
    %285 = vector.load %arg32[%c0_118, %c0_119] : memref<8x1xf32, #tpu.memory_space<vmem>>, vector<8x1xf32>
    tpu.vector_store %arg32[%c0_118, %c0_119], %284 {strides = array<i32>} : memref<8x1xf32, #tpu.memory_space<vmem>>, vector<8x1xf32>,
    %286 = arith.truncf %235 : vector<8x128xf32> to vector<8x128xbf16>
    %cst_120 = arith.constant dense<0.000000e+00> : vector<8x512xf32>
    %287 = tpu.matmul %286, %240, %cst_120 {dimension_numbers = #tpu.dot_dimension_numbers<[1], [0], [0], [1], [0, 0, 1, 1], [], []>} : vector<8x128xbf16>, vector<128x512xbf16>, vector<8x512xf32> -> vector<8x512xf32>
    %288 = vector.broadcast %241 : vector<1x512xf32> to vector<8x512xf32>
    %289 = arith.addf %287, %288 : vector<8x512xf32>
    %290 = arith.negf %289 : vector<8x512xf32>
    %291 = math.exp %290 : vector<8x512xf32>
    %cst_121 = arith.constant 1.000000e+00 : f32
    %292 = vector.broadcast %cst_121 : f32 to vector<8x512xf32>
    %293 = arith.addf %292, %291 : vector<8x512xf32>
    %294 = arith.divf %292, %293 : vector<8x512xf32>
    %295 = vector.broadcast %242 : vector<1x512xf32> to vector<8x512xf32>
    %296 = arith.mulf %294, %295 : vector<8x512xf32>
    %cst_122 = arith.constant dense<0.000000e+00> : vector<8xf32>
    %297 = vector.multi_reduction <add>, %296, %cst_122 [1] : vector<8x512xf32> to vector<8xf32>
    %298 = vector.shape_cast %297 : vector<8xf32> to vector<8x1xf32>
    %299 = vector.broadcast %243 : vector<1x1xf32> to vector<8x1xf32>
    %300 = arith.addf %298, %299 : vector<8x1xf32>
    %301 = arith.negf %300 : vector<8x1xf32>
    %302 = math.exp %301 : vector<8x1xf32>
    %cst_123 = arith.constant 1.000000e+00 : f32
    %303 = vector.broadcast %cst_123 : f32 to vector<8x1xf32>
    %304 = arith.addf %303, %302 : vector<8x1xf32>
    %305 = arith.divf %303, %304 : vector<8x1xf32>
    %c0_124 = arith.constant 0 : index
    %c0_125 = arith.constant 0 : index
    %306 = vector.load %arg33[%c0_124, %c0_125] : memref<8x1xf32, #tpu.memory_space<vmem>>, vector<8x1xf32>
    tpu.vector_store %arg33[%c0_124, %c0_125], %305 {strides = array<i32>} : memref<8x1xf32, #tpu.memory_space<vmem>>, vector<8x1xf32>,
    %307 = arith.truncf %239 : vector<8x128xf32> to vector<8x128xbf16>
    %cst_126 = arith.constant dense<0.000000e+00> : vector<8x512xf32>
    %308 = tpu.matmul %307, %240, %cst_126 {dimension_numbers = #tpu.dot_dimension_numbers<[1], [0], [0], [1], [0, 0, 1, 1], [], []>} : vector<8x128xbf16>, vector<128x512xbf16>, vector<8x512xf32> -> vector<8x512xf32>
    %309 = vector.broadcast %241 : vector<1x512xf32> to vector<8x512xf32>
    %310 = arith.addf %308, %309 : vector<8x512xf32>
    %311 = arith.negf %310 : vector<8x512xf32>
    %312 = math.exp %311 : vector<8x512xf32>
    %cst_127 = arith.constant 1.000000e+00 : f32
    %313 = vector.broadcast %cst_127 : f32 to vector<8x512xf32>
    %314 = arith.addf %313, %312 : vector<8x512xf32>
    %315 = arith.divf %313, %314 : vector<8x512xf32>
    %316 = vector.broadcast %242 : vector<1x512xf32> to vector<8x512xf32>
    %317 = arith.mulf %315, %316 : vector<8x512xf32>
    %cst_128 = arith.constant dense<0.000000e+00> : vector<8xf32>
    %318 = vector.multi_reduction <add>, %317, %cst_128 [1] : vector<8x512xf32> to vector<8xf32>
    %319 = vector.shape_cast %318 : vector<8xf32> to vector<8x1xf32>
    %320 = vector.broadcast %243 : vector<1x1xf32> to vector<8x1xf32>
    %321 = arith.addf %319, %320 : vector<8x1xf32>
    %322 = arith.negf %321 : vector<8x1xf32>
    %323 = math.exp %322 : vector<8x1xf32>
    %cst_129 = arith.constant 1.000000e+00 : f32
    %324 = vector.broadcast %cst_129 : f32 to vector<8x1xf32>
    %325 = arith.addf %324, %323 : vector<8x1xf32>
    %326 = arith.divf %324, %325 : vector<8x1xf32>
    %c0_130 = arith.constant 0 : index
    %c0_131 = arith.constant 0 : index
    %327 = vector.load %arg34[%c0_130, %c0_131] : memref<8x1xf32, #tpu.memory_space<vmem>>, vector<8x1xf32>
    tpu.vector_store %arg34[%c0_130, %c0_131], %326 {strides = array<i32>} : memref<8x1xf32, #tpu.memory_space<vmem>>, vector<8x1xf32>,
    return
  }
  func.func @transform_0(%arg0: i32) -> (i32, i32) {
    %c0_i32 = arith.constant 0 : i32
    %c0_i32_0 = arith.constant 0 : i32
    return %arg0, %c0_i32 : i32, i32
  }
  func.func @transform_1(%arg0: i32) -> (i32, i32) {
    %c0_i32 = arith.constant 0 : i32
    %c0_i32_0 = arith.constant 0 : i32
    return %arg0, %c0_i32 : i32, i32
  }
  func.func @transform_2(%arg0: i32) -> (i32, i32) {
    %c0_i32 = arith.constant 0 : i32
    %c0_i32_0 = arith.constant 0 : i32
    return %arg0, %c0_i32 : i32, i32
  }
  func.func @transform_3(%arg0: i32) -> (i32, i32) {
    %c0_i32 = arith.constant 0 : i32
    %c0_i32_0 = arith.constant 0 : i32
    return %arg0, %c0_i32 : i32, i32
  }
  func.func @transform_4(%arg0: i32) -> (i32, i32) {
    %c0_i32 = arith.constant 0 : i32
    %c0_i32_0 = arith.constant 0 : i32
    return %arg0, %c0_i32 : i32, i32
  }
  func.func @transform_5(%arg0: i32) -> (i32, i32) {
    %c0_i32 = arith.constant 0 : i32
    %c0_i32_0 = arith.constant 0 : i32
    return %arg0, %c0_i32 : i32, i32
  }
  func.func @transform_6(%arg0: i32) -> (i32, i32) {
    %c0_i32 = arith.constant 0 : i32
    %c0_i32_0 = arith.constant 0 : i32
    return %arg0, %c0_i32 : i32, i32
  }
  func.func @transform_7(%arg0: i32) -> (i32, i32) {
    %c0_i32 = arith.constant 0 : i32
    %c0_i32_0 = arith.constant 0 : i32
    return %arg0, %c0_i32 : i32, i32
  }
  func.func @transform_8(%arg0: i32) -> (i32, i32) {
    %c0_i32 = arith.constant 0 : i32
    %c0_i32_0 = arith.constant 0 : i32
    return %arg0, %c0_i32 : i32, i32
  }
  func.func @transform_9(%arg0: i32) -> (i32, i32) {
    %c0_i32 = arith.constant 0 : i32
    %c0_i32_0 = arith.constant 0 : i32
    return %arg0, %c0_i32 : i32, i32
  }
  func.func @transform_10(%arg0: i32) -> (i32, i32) {
    %c0_i32 = arith.constant 0 : i32
    %c0_i32_0 = arith.constant 0 : i32
    return %arg0, %c0_i32 : i32, i32
  }
  func.func @transform_11(%arg0: i32) -> (i32, i32) {
    %c0_i32 = arith.constant 0 : i32
    %c0_i32_0 = arith.constant 0 : i32
    return %arg0, %c0_i32 : i32, i32
  }
  func.func @transform_12(%arg0: i32) -> (i32, i32) {
    %c0_i32 = arith.constant 0 : i32
    %c0_i32_0 = arith.constant 0 : i32
    %c0_i32_1 = arith.constant 0 : i32
    return %c0_i32, %c0_i32_0 : i32, i32
  }
  func.func @transform_13(%arg0: i32) -> (i32, i32) {
    %c0_i32 = arith.constant 0 : i32
    %c0_i32_0 = arith.constant 0 : i32
    %c0_i32_1 = arith.constant 0 : i32
    return %c0_i32, %c0_i32_0 : i32, i32
  }
  func.func @transform_14(%arg0: i32) -> (i32, i32) {
    %c0_i32 = arith.constant 0 : i32
    %c0_i32_0 = arith.constant 0 : i32
    %c0_i32_1 = arith.constant 0 : i32
    return %c0_i32, %c0_i32_0 : i32, i32
  }
  func.func @transform_15(%arg0: i32) -> (i32, i32) {
    %c0_i32 = arith.constant 0 : i32
    %c0_i32_0 = arith.constant 0 : i32
    %c0_i32_1 = arith.constant 0 : i32
    return %c0_i32, %c0_i32_0 : i32, i32
  }
  func.func @transform_16(%arg0: i32) -> (i32, i32) {
    %c0_i32 = arith.constant 0 : i32
    %c0_i32_0 = arith.constant 0 : i32
    %c0_i32_1 = arith.constant 0 : i32
    return %c0_i32, %c0_i32_0 : i32, i32
  }
  func.func @transform_17(%arg0: i32) -> (i32, i32) {
    %c0_i32 = arith.constant 0 : i32
    %c0_i32_0 = arith.constant 0 : i32
    %c0_i32_1 = arith.constant 0 : i32
    return %c0_i32, %c0_i32_0 : i32, i32
  }
  func.func @transform_18(%arg0: i32) -> (i32, i32) {
    %c0_i32 = arith.constant 0 : i32
    %c0_i32_0 = arith.constant 0 : i32
    %c0_i32_1 = arith.constant 0 : i32
    return %c0_i32, %c0_i32_0 : i32, i32
  }
  func.func @transform_19(%arg0: i32) -> (i32, i32) {
    %c0_i32 = arith.constant 0 : i32
    %c0_i32_0 = arith.constant 0 : i32
    %c0_i32_1 = arith.constant 0 : i32
    return %c0_i32, %c0_i32_0 : i32, i32
  }
  func.func @transform_20(%arg0: i32) -> (i32, i32) {
    %c0_i32 = arith.constant 0 : i32
    %c0_i32_0 = arith.constant 0 : i32
    %c0_i32_1 = arith.constant 0 : i32
    return %c0_i32, %c0_i32_0 : i32, i32
  }
  func.func @transform_21(%arg0: i32) -> (i32, i32) {
    %c0_i32 = arith.constant 0 : i32
    %c0_i32_0 = arith.constant 0 : i32
    %c0_i32_1 = arith.constant 0 : i32
    return %c0_i32, %c0_i32_0 : i32, i32
  }
  func.func @transform_22(%arg0: i32) -> (i32, i32) {
    %c0_i32 = arith.constant 0 : i32
    %c0_i32_0 = arith.constant 0 : i32
    %c0_i32_1 = arith.constant 0 : i32
    return %c0_i32, %c0_i32_0 : i32, i32
  }
  func.func @transform_23(%arg0: i32) -> (i32, i32) {
    %c0_i32 = arith.constant 0 : i32
    %c0_i32_0 = arith.constant 0 : i32
    %c0_i32_1 = arith.constant 0 : i32
    return %c0_i32, %c0_i32_0 : i32, i32
  }
  func.func @transform_24(%arg0: i32) -> (i32, i32) {
    %c0_i32 = arith.constant 0 : i32
    %c0_i32_0 = arith.constant 0 : i32
    %c0_i32_1 = arith.constant 0 : i32
    return %c0_i32, %c0_i32_0 : i32, i32
  }
  func.func @transform_25(%arg0: i32) -> (i32, i32) {
    %c0_i32 = arith.constant 0 : i32
    %c0_i32_0 = arith.constant 0 : i32
    %c0_i32_1 = arith.constant 0 : i32
    return %c0_i32, %c0_i32_0 : i32, i32
  }
  func.func @transform_26(%arg0: i32) -> (i32, i32) {
    %c0_i32 = arith.constant 0 : i32
    %c0_i32_0 = arith.constant 0 : i32
    %c0_i32_1 = arith.constant 0 : i32
    return %c0_i32, %c0_i32_0 : i32, i32
  }
  func.func @transform_27(%arg0: i32) -> (i32, i32) {
    %c0_i32 = arith.constant 0 : i32
    %c0_i32_0 = arith.constant 0 : i32
    %c0_i32_1 = arith.constant 0 : i32
    return %c0_i32, %c0_i32_0 : i32, i32
  }
  func.func @transform_28(%arg0: i32) -> (i32, i32) {
    %c0_i32 = arith.constant 0 : i32
    %c0_i32_0 = arith.constant 0 : i32
    %c0_i32_1 = arith.constant 0 : i32
    return %c0_i32, %c0_i32_0 : i32, i32
  }
  func.func @transform_29(%arg0: i32) -> (i32, i32) {
    %c0_i32 = arith.constant 0 : i32
    %c0_i32_0 = arith.constant 0 : i32
    %c0_i32_1 = arith.constant 0 : i32
    return %c0_i32, %c0_i32_0 : i32, i32
  }
  func.func @transform_30(%arg0: i32) -> (i32, i32) {
    %c0_i32 = arith.constant 0 : i32
    %c0_i32_0 = arith.constant 0 : i32
    return %arg0, %c0_i32 : i32, i32
  }
  func.func @transform_31(%arg0: i32) -> (i32, i32) {
    %c0_i32 = arith.constant 0 : i32
    %c0_i32_0 = arith.constant 0 : i32
    return %arg0, %c0_i32 : i32, i32
  }
  func.func @transform_32(%arg0: i32) -> (i32, i32) {
    %c0_i32 = arith.constant 0 : i32
    %c0_i32_0 = arith.constant 0 : i32
    return %arg0, %c0_i32 : i32, i32
  }
  func.func @transform_33(%arg0: i32) -> (i32, i32) {
    %c0_i32 = arith.constant 0 : i32
    %c0_i32_0 = arith.constant 0 : i32
    return %arg0, %c0_i32 : i32, i32
  }
}

</mosaic_0001>

<llo_original>
// kernel: net_forward.1
$region0: #{net_forward.1}
  #allocation0 [shape = 'u32[]', space=smem, size = 0x4, offset = 0x4, fixed_abs, tag = 'smem constant byte address 0x4 - core index']
  #allocation1 [shape = 'u32[144,128]{1,0:T(1,128)}', space=vmem, size = 0x12000, scoped, tag = 'internal scratch']
  #allocation2 [shape = 'f32[1,1]{1,0:T(1,128)S(1)}', space=vmem, size = 0x200, scoped, tag = 'scoped memory for net_forward.1']
  #allocation3 [shape = 'f32[1,1]{1,0:T(1,128)S(1)}', space=vmem, size = 0x200, scoped, tag = 'scoped memory for net_forward.1']
  %s0 = inlined_call_operand.smem [shape: u32[34], index: -1, kind: input, shape index: {}]
  %s1 = sld [smem:[%s0]]
  %s2 = scalar_lea.smem %s0, 1
  %s3 = sld [smem:[%s2]]
  %s4 = scalar_lea.smem %s0, 2
  %s5 = sld [smem:[%s4]]
  %s6 = scalar_lea.smem %s0, 3
  %s7 = sld [smem:[%s6]]
  %s8 = scalar_lea.smem %s0, 4
  %s9 = sld [smem:[%s8]]
  %s10 = scalar_lea.smem %s0, 5
  %s11 = sld [smem:[%s10]]
  %s12 = scalar_lea.smem %s0, 6
  %s13 = sld [smem:[%s12]]
  %s14 = scalar_lea.smem %s0, 7
  %s15 = sld [smem:[%s14]]
  %s16 = scalar_lea.smem %s0, 8
  %s17 = sld [smem:[%s16]]
  %s18 = scalar_lea.smem %s0, 9
  %s19 = sld [smem:[%s18]]
  %s20 = scalar_lea.smem %s0, 10
  %s21 = sld [smem:[%s20]]
  %s22 = scalar_lea.smem %s0, 11
  %s23 = sld [smem:[%s22]]
  %s24 = scalar_lea.smem %s0, 12
  %s25 = sld [smem:[%s24]]
  %s26 = scalar_lea.smem %s0, 13
  %s27 = sld [smem:[%s26]]
  %s28 = scalar_lea.smem %s0, 14
  %s29 = sld [smem:[%s28]]
  %s30 = scalar_lea.smem %s0, 15
  %s31 = sld [smem:[%s30]]
  %s32 = scalar_lea.smem %s0, 16
  %s33 = sld [smem:[%s32]]
  %s34 = scalar_lea.smem %s0, 17
  %s35 = sld [smem:[%s34]]
  %s36 = scalar_lea.smem %s0, 18
  %s37 = sld [smem:[%s36]]
  %s38 = scalar_lea.smem %s0, 19
  %s39 = sld [smem:[%s38]]
  %s40 = scalar_lea.smem %s0, 20
  %s41 = sld [smem:[%s40]]
  %s42 = scalar_lea.smem %s0, 21
  %s43 = sld [smem:[%s42]]
  %s44 = scalar_lea.smem %s0, 22
  %s45 = sld [smem:[%s44]]
  %s46 = scalar_lea.smem %s0, 23
  %s47 = sld [smem:[%s46]]
  %s48 = scalar_lea.smem %s0, 24
  %s49 = sld [smem:[%s48]]
  %s50 = scalar_lea.smem %s0, 25
  %s51 = sld [smem:[%s50]]
  %s52 = scalar_lea.smem %s0, 26
  %s53 = sld [smem:[%s52]]
  %s54 = scalar_lea.smem %s0, 27
  %s55 = sld [smem:[%s54]]
  %s56 = scalar_lea.smem %s0, 28
  %s57 = sld [smem:[%s56]]
  %s58 = scalar_lea.smem %s0, 29
  %s59 = sld [smem:[%s58]]
  %s60 = scalar_lea.smem %s0, 30
  %s61 = sld [smem:[%s60]]
  %s62 = scalar_lea.smem %s0, 31
  %s63 = sld [smem:[%s62]]
  %s64 = scalar_lea.smem %s0, 32
  %s65 = sld [smem:[%s64]]
  %s66 = scalar_lea.smem %s0, 33
  %s67 = sld [smem:[%s66]]
  %68 = xla_tuple %s61, %s63, %s65, %s67
  %s69 = sld [smem:[#allocation0]]
  $region269: #{net_forward.1} parent=0
    _
  %s71 = ssub.s32 1, %s69
  %s72 = scalar_select 0, %s71, %s69
  %v73 = vstv %s39
  %74 = vst [vmem:[#allocation2] sm:$0x1] %v73
  %v75 = vstv %s59
  %76 = vst [vmem:[#allocation3] sm:$0x1] %v75
  $region1: #{net_forward.1} parent=0
    #allocation4 [shape = 'u8[8192]{0}', space=vmem, size = 0x2000, scoped, tag = 'input window, operand 3']
    #allocation5 [shape = 's32[2]{0}', space=sflag, size = 0x8, scoped, tag = 'scoped memory for net_forward.1']
    #allocation6 [shape = 'u8[8192]{0}', space=vmem, size = 0x2000, scoped, tag = 'input window, operand 4']
    #allocation7 [shape = 's32[2]{0}', space=sflag, size = 0x8, scoped, tag = 'scoped memory for net_forward.1']
    #allocation8 [shape = 'u8[8192]{0}', space=vmem, size = 0x2000, scoped, tag = 'input window, operand 5']
    #allocation9 [shape = 'u8[49152]{0}', space=vmem, size = 0xc000, scoped, tag = 'input window, operand 7']
    #allocation10 [shape = 's32[2]{0}', space=sflag, size = 0x8, scoped, tag = 'scoped memory for net_forward.1']
    #allocation11 [shape = 'u8[49152]{0}', space=vmem, size = 0xc000, scoped, tag = 'input window, operand 8']
    #allocation12 [shape = 'u8[49152]{0}', space=vmem, size = 0xc000, scoped, tag = 'input window, operand 9']
    #allocation13 [shape = 's32[2]{0}', space=sflag, size = 0x8, scoped, tag = 'scoped memory for net_forward.1']
    #allocation14 [shape = 'u8[49152]{0}', space=vmem, size = 0xc000, scoped, tag = 'input window, operand 10']
    #allocation15 [shape = 'u8[49152]{0}', space=vmem, size = 0xc000, scoped, tag = 'input window, operand 11']
    #allocation16 [shape = 's32[2]{0}', space=sflag, size = 0x8, scoped, tag = 'scoped memory for net_forward.1']
    #allocation17 [shape = 'u8[32768]{0}', space=vmem, size = 0x8000, scoped, tag = 'input window, operand 12, single buffered']
    #allocation18 [shape = 'u8[32768]{0}', space=vmem, size = 0x8000, scoped, tag = 'input window, operand 13, single buffered']
    #allocation19 [shape = 's32[1]{0}', space=sflag, size = 0x4, scoped, tag = 'scoped memory for net_forward.1']
    #allocation20 [shape = 'u8[393216]{0}', space=vmem, size = 0x60000, scoped, tag = 'input window, operand 14, single buffered']
    #allocation21 [shape = 'u8[1024]{0}', space=vmem, size = 0x400, scoped, tag = 'input window, operand 15, single buffered']
    #allocation22 [shape = 's32[1]{0}', space=sflag, size = 0x4, scoped, tag = 'scoped memory for net_forward.1']
    #allocation23 [shape = 'u8[393216]{0}', space=vmem, size = 0x60000, scoped, tag = 'input window, operand 16, single buffered']
    #allocation24 [shape = 'u8[1024]{0}', space=vmem, size = 0x400, scoped, tag = 'input window, operand 17, single buffered']
    #allocation25 [shape = 's32[1]{0}', space=sflag, size = 0x4, scoped, tag = 'scoped memory for net_forward.1']
    #allocation26 [shape = 'u8[3072]{0}', space=vmem, size = 0xc00, scoped, tag = 'input window, operand 18, single buffered']
    #allocation27 [shape = 'u8[65536]{0}', space=vmem, size = 0x10000, scoped, tag = 'input window, operand 20, single buffered']
    #allocation28 [shape = 's32[1]{0}', space=sflag, size = 0x4, scoped, tag = 'scoped memory for net_forward.1']
    #allocation29 [shape = 'u8[65536]{0}', space=vmem, size = 0x10000, scoped, tag = 'input window, operand 21, single buffered']
    #allocation30 [shape = 'u8[512]{0}', space=vmem, size = 0x400, scoped, tag = 'input window, operand 22, single buffered']
    #allocation31 [shape = 's32[1]{0}', space=sflag, size = 0x4, scoped, tag = 'scoped memory for net_forward.1']
    #allocation32 [shape = 'u8[65536]{0}', space=vmem, size = 0x10000, scoped, tag = 'input window, operand 23, single buffered']
    #allocation33 [shape = 'u8[65536]{0}', space=vmem, size = 0x10000, scoped, tag = 'input window, operand 24, single buffered']
    #allocation34 [shape = 's32[1]{0}', space=sflag, size = 0x4, scoped, tag = 'scoped memory for net_forward.1']
    #allocation35 [shape = 'u8[512]{0}', space=vmem, size = 0x400, scoped, tag = 'input window, operand 25, single buffered']
    #allocation36 [shape = 'u8[131072]{0}', space=vmem, size = 0x20000, scoped, tag = 'input window, operand 26, single buffered']
    #allocation37 [shape = 's32[1]{0}', space=sflag, size = 0x4, scoped, tag = 'scoped memory for net_forward.1']
    #allocation38 [shape = 'u8[2048]{0}', space=vmem, size = 0x800, scoped, tag = 'input window, operand 28, single buffered']
    %77 = vsyncpa [#allocation5], 0
    %s78 = scalar_lea.sflag [#allocation5], 1
    %79 = vsyncpa %s78, 0
    %80 = vsyncpa [#allocation7], 0
    %s81 = scalar_lea.sflag [#allocation7], 1
    %82 = vsyncpa %s81, 0
    %83 = vsyncpa [#allocation10], 0
    %s84 = scalar_lea.sflag [#allocation10], 1
    %85 = vsyncpa %s84, 0
    %86 = vsyncpa [#allocation13], 0
    %s87 = scalar_lea.sflag [#allocation13], 1
    %88 = vsyncpa %s87, 0
    %89 = vsyncpa [#allocation16], 0
    %s90 = scalar_lea.sflag [#allocation16], 1
    %91 = vsyncpa %s90, 0
    %92 = vsyncpa [#allocation19], 0
    %93 = vsyncpa [#allocation22], 0
    %94 = vsyncpa [#allocation25], 0
    %95 = vsyncpa [#allocation28], 0
    %96 = vsyncpa [#allocation31], 0
    %97 = vsyncpa [#allocation34], 0
    %98 = vsyncpa [#allocation37], 0
    loop: start=0, step=1, limit=4
    $region2: #{net_forward.1} parent=1 // loop_pre_header
      _
    $region3: #{net_forward.1} parent=1 // loop_header
      %s100 = sphi 0, %s104
      %p101 = scmp.ge.s32.totalorder %s100, 4
      %s110 = sphi 0, %s112
      %s113 = sphi 0, %s110
      %s114 = sphi 0, %s113
      %s130 = sphi 0, %s114
      %s136 = sphi 0, %s138
      %s139 = sphi 0, %s136
      %s140 = sphi 0, %s139
      %s156 = sphi 0, %s140
      %s162 = sphi 0, %s164
      %s165 = sphi 0, %s162
      %s166 = sphi 0, %s165
      %s182 = sphi 0, %s166
      %s188 = sphi 0, %s190
      %s191 = sphi 0, %s188
      %s192 = sphi 0, %s191
      %s208 = sphi 0, %s192
      %s214 = sphi 0, %s216
      %s217 = sphi 0, %s214
      %s218 = sphi 0, %s217
      %s234 = sphi 0, %s218
      %s240 = sphi 0, %s242
      %s243 = sphi 0, %s240
      %s244 = sphi 0, %s243
      %s260 = sphi 0, %s244
      %s266 = sphi 0, %s268
      %s269 = sphi 0, %s266
      %s270 = sphi 0, %s269
      %s286 = sphi 0, %s270
      %s292 = sphi 0, %s294
      %s295 = sphi 0, %s292
      %s296 = sphi 0, %s295
      %s312 = sphi 0, %s296
      %s318 = sphi 0, %s320
      %s321 = sphi 0, %s318
      %s322 = sphi 0, %s321
      %s338 = sphi 0, %s322
      %s344 = sphi 0, %s346
      %s347 = sphi 0, %s344
      %s348 = sphi 0, %s347
      %s364 = sphi 0, %s348
      %s370 = sphi 0, %s372
      %s373 = sphi 0, %s370
      %s374 = sphi 0, %s373
      %s390 = sphi 0, %s374
      %s396 = sphi 0, %s398
      %s399 = sphi 0, %s396
      %s400 = sphi 0, %s399
      %s416 = sphi 0, %s400
      %s420 = sphi 0, %s420
      %s422 = sphi 0, %s420
      %s423 = sphi 0, %s422
      %s437 = sphi 0, %s423
      %s441 = sphi 0, %s441
      %s443 = sphi 0, %s441
      %s444 = sphi 0, %s443
      %s458 = sphi 0, %s444
      %s462 = sphi 0, %s462
      %s464 = sphi 0, %s462
      %s465 = sphi 0, %s464
      %s479 = sphi 0, %s465
      %s483 = sphi 0, %s483
      %s485 = sphi 0, %s483
      %s486 = sphi 0, %s485
      %s500 = sphi 0, %s486
      %s504 = sphi 0, %s504
      %s506 = sphi 0, %s504
      %s507 = sphi 0, %s506
      %s521 = sphi 0, %s507
      %s525 = sphi 0, %s525
      %s527 = sphi 0, %s525
      %s528 = sphi 0, %s527
      %s542 = sphi 0, %s528
      %s546 = sphi 0, %s546
      %s548 = sphi 0, %s546
      %s549 = sphi 0, %s548
      %s563 = sphi 0, %s549
      %s567 = sphi 0, %s567
      %s569 = sphi 0, %s567
      %s570 = sphi 0, %s569
      %s584 = sphi 0, %s570
      %s588 = sphi 0, %s588
      %s590 = sphi 0, %s588
      %s591 = sphi 0, %s590
      %s605 = sphi 0, %s591
      %s609 = sphi 0, %s609
      %s611 = sphi 0, %s609
      %s612 = sphi 0, %s611
      %s626 = sphi 0, %s612
      %s630 = sphi 0, %s630
      %s632 = sphi 0, %s630
      %s633 = sphi 0, %s632
      %s647 = sphi 0, %s633
      %s651 = sphi 0, %s651
      %s653 = sphi 0, %s651
      %s654 = sphi 0, %s653
      %s668 = sphi 0, %s654
      %s672 = sphi 0, %s672
      %s674 = sphi 0, %s672
      %s675 = sphi 0, %s674
      %s689 = sphi 0, %s675
      %s693 = sphi 0, %s693
      %s695 = sphi 0, %s693
      %s696 = sphi 0, %s695
      %s710 = sphi 0, %s696
      %s714 = sphi 0, %s714
      %s716 = sphi 0, %s714
      %s717 = sphi 0, %s716
      %s731 = sphi 0, %s717
      %s735 = sphi 0, %s735
      %s737 = sphi 0, %s735
      %s738 = sphi 0, %s737
      %s752 = sphi 0, %s738
      %s756 = sphi 0, %s756
      %s758 = sphi 0, %s756
      %s759 = sphi 0, %s758
      %s773 = sphi 0, %s759
      %s777 = sphi 0, %s777
      %s779 = sphi 0, %s777
      %s780 = sphi 0, %s779
      %s794 = sphi 0, %s780
      %s800 = sphi 0, %s802
      %s803 = sphi 0, %s800
      %s804 = sphi 0, %s803
      %s820 = sphi 0, %s804
      %s826 = sphi 0, %s828
      %s829 = sphi 0, %s826
      %s830 = sphi 0, %s829
      %s846 = sphi 0, %s830
      %s852 = sphi 0, %s854
      %s855 = sphi 0, %s852
      %s856 = sphi 0, %s855
      %s872 = sphi 0, %s856
      %s878 = sphi 0, %s880
      %s881 = sphi 0, %s878
      %s882 = sphi 0, %s881
      %s898 = sphi 0, %s882
    $region4: #{net_forward.1} parent=1 // loop_header_branch
      %103 = sbr.rel (%p101) target = $region8
    $region5: #{net_forward.1} parent=1 // loop_body
      %s105 = ssub.s32 %s100, 1
      %s106 = ssub.s32 %s100, 2
      %s107 = sadd.s32 %s100, 1
      %s108 = ssub.s32 %s100, %s107
      %p109 = scmp.eq.s32.totalorder %s108, 0
      %s111 = sadd.s32 %s110, 1
      %s112 = scalar_select %p109, %s110, %s111
      %p115 = pneg %p109
      %p116 = scmp.eq.s32.totalorder %s100, 1
      %p117 = por %p115, %p116
      %p118 = scmp.ne.s32.totalorder %s110, %s113
      %p119 = scmp.eq.s32.totalorder %s100, 0
      %p120 = por %p118, %p119
      %p121 = scmp.ne.s32.totalorder %s110, %s113
      %p122 = scmp.eq.s32.totalorder %s105, 1
      %p123 = por %p121, %p122
      %p124 = scmp.ne.s32.totalorder %s113, %s114
      %p125 = scmp.eq.s32.totalorder %s105, 0
      %p126 = por %p124, %p125
      %p127 = scmp.ne.s32.totalorder %s113, %s114
      %p128 = scmp.eq.s32.totalorder %s106, 1
      %p129 = por %p127, %p128
      %p131 = scmp.ne.s32.totalorder %s114, %s130
      %p132 = scmp.eq.s32.totalorder %s106, 0
      %p133 = por %p131, %p132
      %s134 = ssub.s32 %s100, %s107
      %p135 = scmp.eq.s32.totalorder %s134, 0
      %s137 = sadd.s32 %s136, 1
      %s138 = scalar_select %p135, %s136, %s137
      %p141 = pneg %p135
      %p142 = scmp.eq.s32.totalorder %s100, 1
      %p143 = por %p141, %p142
      %p144 = scmp.ne.s32.totalorder %s136, %s139
      %p145 = scmp.eq.s32.totalorder %s100, 0
      %p146 = por %p144, %p145
      %p147 = scmp.ne.s32.totalorder %s136, %s139
      %p148 = scmp.eq.s32.totalorder %s105, 1
      %p149 = por %p147, %p148
      %p150 = scmp.ne.s32.totalorder %s139, %s140
      %p151 = scmp.eq.s32.totalorder %s105, 0
      %p152 = por %p150, %p151
      %p153 = scmp.ne.s32.totalorder %s139, %s140
      %p154 = scmp.eq.s32.totalorder %s106, 1
      %p155 = por %p153, %p154
      %p157 = scmp.ne.s32.totalorder %s140, %s156
      %p158 = scmp.eq.s32.totalorder %s106, 0
      %p159 = por %p157, %p158
      %s160 = ssub.s32 %s100, %s107
      %p161 = scmp.eq.s32.totalorder %s160, 0
      %s163 = sadd.s32 %s162, 1
      %s164 = scalar_select %p161, %s162, %s163
      %p167 = pneg %p161
      %p168 = scmp.eq.s32.totalorder %s100, 1
      %p169 = por %p167, %p168
      %p170 = scmp.ne.s32.totalorder %s162, %s165
      %p171 = scmp.eq.s32.totalorder %s100, 0
      %p172 = por %p170, %p171
      %p173 = scmp.ne.s32.totalorder %s162, %s165
      %p174 = scmp.eq.s32.totalorder %s105, 1
      %p175 = por %p173, %p174
      %p176 = scmp.ne.s32.totalorder %s165, %s166
      %p177 = scmp.eq.s32.totalorder %s105, 0
      %p178 = por %p176, %p177
      %p179 = scmp.ne.s32.totalorder %s165, %s166
      %p180 = scmp.eq.s32.totalorder %s106, 1
      %p181 = por %p179, %p180
      %p183 = scmp.ne.s32.totalorder %s166, %s182
      %p184 = scmp.eq.s32.totalorder %s106, 0
      %p185 = por %p183, %p184
      %s186 = ssub.s32 %s100, %s107
      %p187 = scmp.eq.s32.totalorder %s186, 0
      %s189 = sadd.s32 %s188, 1
      %s190 = scalar_select %p187, %s188, %s189
      %p193 = pneg %p187
      %p194 = scmp.eq.s32.totalorder %s100, 1
      %p195 = por %p193, %p194
      %p196 = scmp.ne.s32.totalorder %s188, %s191
      %p197 = scmp.eq.s32.totalorder %s100, 0
      %p198 = por %p196, %p197
      %p199 = scmp.ne.s32.totalorder %s188, %s191
      %p200 = scmp.eq.s32.totalorder %s105, 1
      %p201 = por %p199, %p200
      %p202 = scmp.ne.s32.totalorder %s191, %s192
      %p203 = scmp.eq.s32.totalorder %s105, 0
      %p204 = por %p202, %p203
      %p205 = scmp.ne.s32.totalorder %s191, %s192
      %p206 = scmp.eq.s32.totalorder %s106, 1
      %p207 = por %p205, %p206
      %p209 = scmp.ne.s32.totalorder %s192, %s208
      %p210 = scmp.eq.s32.totalorder %s106, 0
      %p211 = por %p209, %p210
      %s212 = ssub.s32 %s100, %s107
      %p213 = scmp.eq.s32.totalorder %s212, 0
      %s215 = sadd.s32 %s214, 1
      %s216 = scalar_select %p213, %s214, %s215
      %p219 = pneg %p213
      %p220 = scmp.eq.s32.totalorder %s100, 1
      %p221 = por %p219, %p220
      %p222 = scmp.ne.s32.totalorder %s214, %s217
      %p223 = scmp.eq.s32.totalorder %s100, 0
      %p224 = por %p222, %p223
      %p225 = scmp.ne.s32.totalorder %s214, %s217
      %p226 = scmp.eq.s32.totalorder %s105, 1
      %p227 = por %p225, %p226
      %p228 = scmp.ne.s32.totalorder %s217, %s218
      %p229 = scmp.eq.s32.totalorder %s105, 0
      %p230 = por %p228, %p229
      %p231 = scmp.ne.s32.totalorder %s217, %s218
      %p232 = scmp.eq.s32.totalorder %s106, 1
      %p233 = por %p231, %p232
      %p235 = scmp.ne.s32.totalorder %s218, %s234
      %p236 = scmp.eq.s32.totalorder %s106, 0
      %p237 = por %p235, %p236
      %s238 = ssub.s32 %s100, %s107
      %p239 = scmp.eq.s32.totalorder %s238, 0
      %s241 = sadd.s32 %s240, 1
      %s242 = scalar_select %p239, %s240, %s241
      %p245 = pneg %p239
      %p246 = scmp.eq.s32.totalorder %s100, 1
      %p247 = por %p245, %p246
      %p248 = scmp.ne.s32.totalorder %s240, %s243
      %p249 = scmp.eq.s32.totalorder %s100, 0
      %p250 = por %p248, %p249
      %p251 = scmp.ne.s32.totalorder %s240, %s243
      %p252 = scmp.eq.s32.totalorder %s105, 1
      %p253 = por %p251, %p252
      %p254 = scmp.ne.s32.totalorder %s243, %s244
      %p255 = scmp.eq.s32.totalorder %s105, 0
      %p256 = por %p254, %p255
      %p257 = scmp.ne.s32.totalorder %s243, %s244
      %p258 = scmp.eq.s32.totalorder %s106, 1
      %p259 = por %p257, %p258
      %p261 = scmp.ne.s32.totalorder %s244, %s260
      %p262 = scmp.eq.s32.totalorder %s106, 0
      %p263 = por %p261, %p262
      %s264 = ssub.s32 %s100, %s107
      %p265 = scmp.eq.s32.totalorder %s264, 0
      %s267 = sadd.s32 %s266, 1
      %s268 = scalar_select %p265, %s266, %s267
      %p271 = pneg %p265
      %p272 = scmp.eq.s32.totalorder %s100, 1
      %p273 = por %p271, %p272
      %p274 = scmp.ne.s32.totalorder %s266, %s269
      %p275 = scmp.eq.s32.totalorder %s100, 0
      %p276 = por %p274, %p275
      %p277 = scmp.ne.s32.totalorder %s266, %s269
      %p278 = scmp.eq.s32.totalorder %s105, 1
      %p279 = por %p277, %p278
      %p280 = scmp.ne.s32.totalorder %s269, %s270
      %p281 = scmp.eq.s32.totalorder %s105, 0
      %p282 = por %p280, %p281
      %p283 = scmp.ne.s32.totalorder %s269, %s270
      %p284 = scmp.eq.s32.totalorder %s106, 1
      %p285 = por %p283, %p284
      %p287 = scmp.ne.s32.totalorder %s270, %s286
      %p288 = scmp.eq.s32.totalorder %s106, 0
      %p289 = por %p287, %p288
      %s290 = ssub.s32 %s100, %s107
      %p291 = scmp.eq.s32.totalorder %s290, 0
      %s293 = sadd.s32 %s292, 1
      %s294 = scalar_select %p291, %s292, %s293
      %p297 = pneg %p291
      %p298 = scmp.eq.s32.totalorder %s100, 1
      %p299 = por %p297, %p298
      %p300 = scmp.ne.s32.totalorder %s292, %s295
      %p301 = scmp.eq.s32.totalorder %s100, 0
      %p302 = por %p300, %p301
      %p303 = scmp.ne.s32.totalorder %s292, %s295
      %p304 = scmp.eq.s32.totalorder %s105, 1
      %p305 = por %p303, %p304
      %p306 = scmp.ne.s32.totalorder %s295, %s296
      %p307 = scmp.eq.s32.totalorder %s105, 0
      %p308 = por %p306, %p307
      %p309 = scmp.ne.s32.totalorder %s295, %s296
      %p310 = scmp.eq.s32.totalorder %s106, 1
      %p311 = por %p309, %p310
      %p313 = scmp.ne.s32.totalorder %s296, %s312
      %p314 = scmp.eq.s32.totalorder %s106, 0
      %p315 = por %p313, %p314
      %s316 = ssub.s32 %s100, %s107
      %p317 = scmp.eq.s32.totalorder %s316, 0
      %s319 = sadd.s32 %s318, 1
      %s320 = scalar_select %p317, %s318, %s319
      %p323 = pneg %p317
      %p324 = scmp.eq.s32.totalorder %s100, 1
      %p325 = por %p323, %p324
      %p326 = scmp.ne.s32.totalorder %s318, %s321
      %p327 = scmp.eq.s32.totalorder %s100, 0
      %p328 = por %p326, %p327
      %p329 = scmp.ne.s32.totalorder %s318, %s321
      %p330 = scmp.eq.s32.totalorder %s105, 1
      %p331 = por %p329, %p330
      %p332 = scmp.ne.s32.totalorder %s321, %s322
      %p333 = scmp.eq.s32.totalorder %s105, 0
      %p334 = por %p332, %p333
      %p335 = scmp.ne.s32.totalorder %s321, %s322
      %p336 = scmp.eq.s32.totalorder %s106, 1
      %p337 = por %p335, %p336
      %p339 = scmp.ne.s32.totalorder %s322, %s338
      %p340 = scmp.eq.s32.totalorder %s106, 0
      %p341 = por %p339, %p340
      %s342 = ssub.s32 %s100, %s107
      %p343 = scmp.eq.s32.totalorder %s342, 0
      %s345 = sadd.s32 %s344, 1
      %s346 = scalar_select %p343, %s344, %s345
      %p349 = pneg %p343
      %p350 = scmp.eq.s32.totalorder %s100, 1
      %p351 = por %p349, %p350
      %p352 = scmp.ne.s32.totalorder %s344, %s347
      %p353 = scmp.eq.s32.totalorder %s100, 0
      %p354 = por %p352, %p353
      %p355 = scmp.ne.s32.totalorder %s344, %s347
      %p356 = scmp.eq.s32.totalorder %s105, 1
      %p357 = por %p355, %p356
      %p358 = scmp.ne.s32.totalorder %s347, %s348
      %p359 = scmp.eq.s32.totalorder %s105, 0
      %p360 = por %p358, %p359
      %p361 = scmp.ne.s32.totalorder %s347, %s348
      %p362 = scmp.eq.s32.totalorder %s106, 1
      %p363 = por %p361, %p362
      %p365 = scmp.ne.s32.totalorder %s348, %s364
      %p366 = scmp.eq.s32.totalorder %s106, 0
      %p367 = por %p365, %p366
      %s368 = ssub.s32 %s100, %s107
      %p369 = scmp.eq.s32.totalorder %s368, 0
      %s371 = sadd.s32 %s370, 1
      %s372 = scalar_select %p369, %s370, %s371
      %p375 = pneg %p369
      %p376 = scmp.eq.s32.totalorder %s100, 1
      %p377 = por %p375, %p376
      %p378 = scmp.ne.s32.totalorder %s370, %s373
      %p379 = scmp.eq.s32.totalorder %s100, 0
      %p380 = por %p378, %p379
      %p381 = scmp.ne.s32.totalorder %s370, %s373
      %p382 = scmp.eq.s32.totalorder %s105, 1
      %p383 = por %p381, %p382
      %p384 = scmp.ne.s32.totalorder %s373, %s374
      %p385 = scmp.eq.s32.totalorder %s105, 0
      %p386 = por %p384, %p385
      %p387 = scmp.ne.s32.totalorder %s373, %s374
      %p388 = scmp.eq.s32.totalorder %s106, 1
      %p389 = por %p387, %p388
      %p391 = scmp.ne.s32.totalorder %s374, %s390
      %p392 = scmp.eq.s32.totalorder %s106, 0
      %p393 = por %p391, %p392
      %s394 = ssub.s32 %s100, %s107
      %p395 = scmp.eq.s32.totalorder %s394, 0
      %s397 = sadd.s32 %s396, 1
      %s398 = scalar_select %p395, %s396, %s397
      %p401 = pneg %p395
      %p402 = scmp.eq.s32.totalorder %s100, 1
      %p403 = por %p401, %p402
      %p404 = scmp.ne.s32.totalorder %s396, %s399
      %p405 = scmp.eq.s32.totalorder %s100, 0
      %p406 = por %p404, %p405
      %p407 = scmp.ne.s32.totalorder %s396, %s399
      %p408 = scmp.eq.s32.totalorder %s105, 1
      %p409 = por %p407, %p408
      %p410 = scmp.ne.s32.totalorder %s399, %s400
      %p411 = scmp.eq.s32.totalorder %s105, 0
      %p412 = por %p410, %p411
      %p413 = scmp.ne.s32.totalorder %s399, %s400
      %p414 = scmp.eq.s32.totalorder %s106, 1
      %p415 = por %p413, %p414
      %p417 = scmp.ne.s32.totalorder %s400, %s416
      %p418 = scmp.eq.s32.totalorder %s106, 0
      %p419 = por %p417, %p418
      %s421 = sadd.s32 %s420, 1
      %p424 = scmp.eq.s32.totalorder %s100, 1
      %p425 = scmp.ne.s32.totalorder %s420, %s422
      %p426 = scmp.eq.s32.totalorder %s100, 0
      %p427 = por %p425, %p426
      %p428 = scmp.ne.s32.totalorder %s420, %s422
      %p429 = scmp.eq.s32.totalorder %s105, 1
      %p430 = por %p428, %p429
      %p431 = scmp.ne.s32.totalorder %s422, %s423
      %p432 = scmp.eq.s32.totalorder %s105, 0
      %p433 = por %p431, %p432
      %p434 = scmp.ne.s32.totalorder %s422, %s423
      %p435 = scmp.eq.s32.totalorder %s106, 1
      %p436 = por %p434, %p435
      %p438 = scmp.ne.s32.totalorder %s423, %s437
      %p439 = scmp.eq.s32.totalorder %s106, 0
      %p440 = por %p438, %p439
      %s442 = sadd.s32 %s441, 1
      %p445 = scmp.eq.s32.totalorder %s100, 1
      %p446 = scmp.ne.s32.totalorder %s441, %s443
      %p447 = scmp.eq.s32.totalorder %s100, 0
      %p448 = por %p446, %p447
      %p449 = scmp.ne.s32.totalorder %s441, %s443
      %p450 = scmp.eq.s32.totalorder %s105, 1
      %p451 = por %p449, %p450
      %p452 = scmp.ne.s32.totalorder %s443, %s444
      %p453 = scmp.eq.s32.totalorder %s105, 0
      %p454 = por %p452, %p453
      %p455 = scmp.ne.s32.totalorder %s443, %s444
      %p456 = scmp.eq.s32.totalorder %s106, 1
      %p457 = por %p455, %p456
      %p459 = scmp.ne.s32.totalorder %s444, %s458
      %p460 = scmp.eq.s32.totalorder %s106, 0
      %p461 = por %p459, %p460
      %s463 = sadd.s32 %s462, 1
      %p466 = scmp.eq.s32.totalorder %s100, 1
      %p467 = scmp.ne.s32.totalorder %s462, %s464
      %p468 = scmp.eq.s32.totalorder %s100, 0
      %p469 = por %p467, %p468
      %p470 = scmp.ne.s32.totalorder %s462, %s464
      %p471 = scmp.eq.s32.totalorder %s105, 1
      %p472 = por %p470, %p471
      %p473 = scmp.ne.s32.totalorder %s464, %s465
      %p474 = scmp.eq.s32.totalorder %s105, 0
      %p475 = por %p473, %p474
      %p476 = scmp.ne.s32.totalorder %s464, %s465
      %p477 = scmp.eq.s32.totalorder %s106, 1
      %p478 = por %p476, %p477
      %p480 = scmp.ne.s32.totalorder %s465, %s479
      %p481 = scmp.eq.s32.totalorder %s106, 0
      %p482 = por %p480, %p481
      %s484 = sadd.s32 %s483, 1
      %p487 = scmp.eq.s32.totalorder %s100, 1
      %p488 = scmp.ne.s32.totalorder %s483, %s485
      %p489 = scmp.eq.s32.totalorder %s100, 0
      %p490 = por %p488, %p489
      %p491 = scmp.ne.s32.totalorder %s483, %s485
      %p492 = scmp.eq.s32.totalorder %s105, 1
      %p493 = por %p491, %p492
      %p494 = scmp.ne.s32.totalorder %s485, %s486
      %p495 = scmp.eq.s32.totalorder %s105, 0
      %p496 = por %p494, %p495
      %p497 = scmp.ne.s32.totalorder %s485, %s486
      %p498 = scmp.eq.s32.totalorder %s106, 1
      %p499 = por %p497, %p498
      %p501 = scmp.ne.s32.totalorder %s486, %s500
      %p502 = scmp.eq.s32.totalorder %s106, 0
      %p503 = por %p501, %p502
      %s505 = sadd.s32 %s504, 1
      %p508 = scmp.eq.s32.totalorder %s100, 1
      %p509 = scmp.ne.s32.totalorder %s504, %s506
      %p510 = scmp.eq.s32.totalorder %s100, 0
      %p511 = por %p509, %p510
      %p512 = scmp.ne.s32.totalorder %s504, %s506
      %p513 = scmp.eq.s32.totalorder %s105, 1
      %p514 = por %p512, %p513
      %p515 = scmp.ne.s32.totalorder %s506, %s507
      %p516 = scmp.eq.s32.totalorder %s105, 0
      %p517 = por %p515, %p516
      %p518 = scmp.ne.s32.totalorder %s506, %s507
      %p519 = scmp.eq.s32.totalorder %s106, 1
      %p520 = por %p518, %p519
      %p522 = scmp.ne.s32.totalorder %s507, %s521
      %p523 = scmp.eq.s32.totalorder %s106, 0
      %p524 = por %p522, %p523
      %s526 = sadd.s32 %s525, 1
      %p529 = scmp.eq.s32.totalorder %s100, 1
      %p530 = scmp.ne.s32.totalorder %s525, %s527
      %p531 = scmp.eq.s32.totalorder %s100, 0
      %p532 = por %p530, %p531
      %p533 = scmp.ne.s32.totalorder %s525, %s527
      %p534 = scmp.eq.s32.totalorder %s105, 1
      %p535 = por %p533, %p534
      %p536 = scmp.ne.s32.totalorder %s527, %s528
      %p537 = scmp.eq.s32.totalorder %s105, 0
      %p538 = por %p536, %p537
      %p539 = scmp.ne.s32.totalorder %s527, %s528
      %p540 = scmp.eq.s32.totalorder %s106, 1
      %p541 = por %p539, %p540
      %p543 = scmp.ne.s32.totalorder %s528, %s542
      %p544 = scmp.eq.s32.totalorder %s106, 0
      %p545 = por %p543, %p544
      %s547 = sadd.s32 %s546, 1
      %p550 = scmp.eq.s32.totalorder %s100, 1
      %p551 = scmp.ne.s32.totalorder %s546, %s548
      %p552 = scmp.eq.s32.totalorder %s100, 0
      %p553 = por %p551, %p552
      %p554 = scmp.ne.s32.totalorder %s546, %s548
      %p555 = scmp.eq.s32.totalorder %s105, 1
      %p556 = por %p554, %p555
      %p557 = scmp.ne.s32.totalorder %s548, %s549
      %p558 = scmp.eq.s32.totalorder %s105, 0
      %p559 = por %p557, %p558
      %p560 = scmp.ne.s32.totalorder %s548, %s549
      %p561 = scmp.eq.s32.totalorder %s106, 1
      %p562 = por %p560, %p561
      %p564 = scmp.ne.s32.totalorder %s549, %s563
      %p565 = scmp.eq.s32.totalorder %s106, 0
      %p566 = por %p564, %p565
      %s568 = sadd.s32 %s567, 1
      %p571 = scmp.eq.s32.totalorder %s100, 1
      %p572 = scmp.ne.s32.totalorder %s567, %s569
      %p573 = scmp.eq.s32.totalorder %s100, 0
      %p574 = por %p572, %p573
      %p575 = scmp.ne.s32.totalorder %s567, %s569
      %p576 = scmp.eq.s32.totalorder %s105, 1
      %p577 = por %p575, %p576
      %p578 = scmp.ne.s32.totalorder %s569, %s570
      %p579 = scmp.eq.s32.totalorder %s105, 0
      %p580 = por %p578, %p579
      %p581 = scmp.ne.s32.totalorder %s569, %s570
      %p582 = scmp.eq.s32.totalorder %s106, 1
      %p583 = por %p581, %p582
      %p585 = scmp.ne.s32.totalorder %s570, %s584
      %p586 = scmp.eq.s32.totalorder %s106, 0
      %p587 = por %p585, %p586
      %s589 = sadd.s32 %s588, 1
      %p592 = scmp.eq.s32.totalorder %s100, 1
      %p593 = scmp.ne.s32.totalorder %s588, %s590
      %p594 = scmp.eq.s32.totalorder %s100, 0
      %p595 = por %p593, %p594
      %p596 = scmp.ne.s32.totalorder %s588, %s590
      %p597 = scmp.eq.s32.totalorder %s105, 1
      %p598 = por %p596, %p597
      %p599 = scmp.ne.s32.totalorder %s590, %s591
      %p600 = scmp.eq.s32.totalorder %s105, 0
      %p601 = por %p599, %p600
      %p602 = scmp.ne.s32.totalorder %s590, %s591
      %p603 = scmp.eq.s32.totalorder %s106, 1
      %p604 = por %p602, %p603
      %p606 = scmp.ne.s32.totalorder %s591, %s605
      %p607 = scmp.eq.s32.totalorder %s106, 0
      %p608 = por %p606, %p607
      %s610 = sadd.s32 %s609, 1
      %p613 = scmp.eq.s32.totalorder %s100, 1
      %p614 = scmp.ne.s32.totalorder %s609, %s611
      %p615 = scmp.eq.s32.totalorder %s100, 0
      %p616 = por %p614, %p615
      %p617 = scmp.ne.s32.totalorder %s609, %s611
      %p618 = scmp.eq.s32.totalorder %s105, 1
      %p619 = por %p617, %p618
      %p620 = scmp.ne.s32.totalorder %s611, %s612
      %p621 = scmp.eq.s32.totalorder %s105, 0
      %p622 = por %p620, %p621
      %p623 = scmp.ne.s32.totalorder %s611, %s612
      %p624 = scmp.eq.s32.totalorder %s106, 1
      %p625 = por %p623, %p624
      %p627 = scmp.ne.s32.totalorder %s612, %s626
      %p628 = scmp.eq.s32.totalorder %s106, 0
      %p629 = por %p627, %p628
      %s631 = sadd.s32 %s630, 1
      %p634 = scmp.eq.s32.totalorder %s100, 1
      %p635 = scmp.ne.s32.totalorder %s630, %s632
      %p636 = scmp.eq.s32.totalorder %s100, 0
      %p637 = por %p635, %p636
      %p638 = scmp.ne.s32.totalorder %s630, %s632
      %p639 = scmp.eq.s32.totalorder %s105, 1
      %p640 = por %p638, %p639
      %p641 = scmp.ne.s32.totalorder %s632, %s633
      %p642 = scmp.eq.s32.totalorder %s105, 0
      %p643 = por %p641, %p642
      %p644 = scmp.ne.s32.totalorder %s632, %s633
      %p645 = scmp.eq.s32.totalorder %s106, 1
      %p646 = por %p644, %p645
      %p648 = scmp.ne.s32.totalorder %s633, %s647
      %p649 = scmp.eq.s32.totalorder %s106, 0
      %p650 = por %p648, %p649
      %s652 = sadd.s32 %s651, 1
      %p655 = scmp.eq.s32.totalorder %s100, 1
      %p656 = scmp.ne.s32.totalorder %s651, %s653
      %p657 = scmp.eq.s32.totalorder %s100, 0
      %p658 = por %p656, %p657
      %p659 = scmp.ne.s32.totalorder %s651, %s653
      %p660 = scmp.eq.s32.totalorder %s105, 1
      %p661 = por %p659, %p660
      %p662 = scmp.ne.s32.totalorder %s653, %s654
      %p663 = scmp.eq.s32.totalorder %s105, 0
      %p664 = por %p662, %p663
      %p665 = scmp.ne.s32.totalorder %s653, %s654
      %p666 = scmp.eq.s32.totalorder %s106, 1
      %p667 = por %p665, %p666
      %p669 = scmp.ne.s32.totalorder %s654, %s668
      %p670 = scmp.eq.s32.totalorder %s106, 0
      %p671 = por %p669, %p670
      %s673 = sadd.s32 %s672, 1
      %p676 = scmp.eq.s32.totalorder %s100, 1
      %p677 = scmp.ne.s32.totalorder %s672, %s674
      %p678 = scmp.eq.s32.totalorder %s100, 0
      %p679 = por %p677, %p678
      %p680 = scmp.ne.s32.totalorder %s672, %s674
      %p681 = scmp.eq.s32.totalorder %s105, 1
      %p682 = por %p680, %p681
      %p683 = scmp.ne.s32.totalorder %s674, %s675
      %p684 = scmp.eq.s32.totalorder %s105, 0
      %p685 = por %p683, %p684
      %p686 = scmp.ne.s32.totalorder %s674, %s675
      %p687 = scmp.eq.s32.totalorder %s106, 1
      %p688 = por %p686, %p687
      %p690 = scmp.ne.s32.totalorder %s675, %s689
      %p691 = scmp.eq.s32.totalorder %s106, 0
      %p692 = por %p690, %p691
      %s694 = sadd.s32 %s693, 1
      %p697 = scmp.eq.s32.totalorder %s100, 1
      %p698 = scmp.ne.s32.totalorder %s693, %s695
      %p699 = scmp.eq.s32.totalorder %s100, 0
      %p700 = por %p698, %p699
      %p701 = scmp.ne.s32.totalorder %s693, %s695
      %p702 = scmp.eq.s32.totalorder %s105, 1
      %p703 = por %p701, %p702
      %p704 = scmp.ne.s32.totalorder %s695, %s696
      %p705 = scmp.eq.s32.totalorder %s105, 0
      %p706 = por %p704, %p705
      %p707 = scmp.ne.s32.totalorder %s695, %s696
      %p708 = scmp.eq.s32.totalorder %s106, 1
      %p709 = por %p707, %p708
      %p711 = scmp.ne.s32.totalorder %s696, %s710
      %p712 = scmp.eq.s32.totalorder %s106, 0
      %p713 = por %p711, %p712
      %s715 = sadd.s32 %s714, 1
      %p718 = scmp.eq.s32.totalorder %s100, 1
      %p719 = scmp.ne.s32.totalorder %s714, %s716
      %p720 = scmp.eq.s32.totalorder %s100, 0
      %p721 = por %p719, %p720
      %p722 = scmp.ne.s32.totalorder %s714, %s716
      %p723 = scmp.eq.s32.totalorder %s105, 1
      %p724 = por %p722, %p723
      %p725 = scmp.ne.s32.totalorder %s716, %s717
      %p726 = scmp.eq.s32.totalorder %s105, 0
      %p727 = por %p725, %p726
      %p728 = scmp.ne.s32.totalorder %s716, %s717
      %p729 = scmp.eq.s32.totalorder %s106, 1
      %p730 = por %p728, %p729
      %p732 = scmp.ne.s32.totalorder %s717, %s731
      %p733 = scmp.eq.s32.totalorder %s106, 0
      %p734 = por %p732, %p733
      %s736 = sadd.s32 %s735, 1
      %p739 = scmp.eq.s32.totalorder %s100, 1
      %p740 = scmp.ne.s32.totalorder %s735, %s737
      %p741 = scmp.eq.s32.totalorder %s100, 0
      %p742 = por %p740, %p741
      %p743 = scmp.ne.s32.totalorder %s735, %s737
      %p744 = scmp.eq.s32.totalorder %s105, 1
      %p745 = por %p743, %p744
      %p746 = scmp.ne.s32.totalorder %s737, %s738
      %p747 = scmp.eq.s32.totalorder %s105, 0
      %p748 = por %p746, %p747
      %p749 = scmp.ne.s32.totalorder %s737, %s738
      %p750 = scmp.eq.s32.totalorder %s106, 1
      %p751 = por %p749, %p750
      %p753 = scmp.ne.s32.totalorder %s738, %s752
      %p754 = scmp.eq.s32.totalorder %s106, 0
      %p755 = por %p753, %p754
      %s757 = sadd.s32 %s756, 1
      %p760 = scmp.eq.s32.totalorder %s100, 1
      %p761 = scmp.ne.s32.totalorder %s756, %s758
      %p762 = scmp.eq.s32.totalorder %s100, 0
      %p763 = por %p761, %p762
      %p764 = scmp.ne.s32.totalorder %s756, %s758
      %p765 = scmp.eq.s32.totalorder %s105, 1
      %p766 = por %p764, %p765
      %p767 = scmp.ne.s32.totalorder %s758, %s759
      %p768 = scmp.eq.s32.totalorder %s105, 0
      %p769 = por %p767, %p768
      %p770 = scmp.ne.s32.totalorder %s758, %s759
      %p771 = scmp.eq.s32.totalorder %s106, 1
      %p772 = por %p770, %p771
      %p774 = scmp.ne.s32.totalorder %s759, %s773
      %p775 = scmp.eq.s32.totalorder %s106, 0
      %p776 = por %p774, %p775
      %s778 = sadd.s32 %s777, 1
      %p781 = scmp.eq.s32.totalorder %s100, 1
      %p782 = scmp.ne.s32.totalorder %s777, %s779
      %p783 = scmp.eq.s32.totalorder %s100, 0
      %p784 = por %p782, %p783
      %p785 = scmp.ne.s32.totalorder %s777, %s779
      %p786 = scmp.eq.s32.totalorder %s105, 1
      %p787 = por %p785, %p786
      %p788 = scmp.ne.s32.totalorder %s779, %s780
      %p789 = scmp.eq.s32.totalorder %s105, 0
      %p790 = por %p788, %p789
      %p791 = scmp.ne.s32.totalorder %s779, %s780
      %p792 = scmp.eq.s32.totalorder %s106, 1
      %p793 = por %p791, %p792
      %p795 = scmp.ne.s32.totalorder %s780, %s794
      %p796 = scmp.eq.s32.totalorder %s106, 0
      %p797 = por %p795, %p796
      %s798 = ssub.s32 %s100, %s107
      %p799 = scmp.eq.s32.totalorder %s798, 0
      %s801 = sadd.s32 %s800, 1
      %s802 = scalar_select %p799, %s800, %s801
      %p805 = pneg %p799
      %p806 = scmp.eq.s32.totalorder %s100, 1
      %p807 = por %p805, %p806
      %p808 = scmp.ne.s32.totalorder %s800, %s803
      %p809 = scmp.eq.s32.totalorder %s100, 0
      %p810 = por %p808, %p809
      %p811 = scmp.ne.s32.totalorder %s800, %s803
      %p812 = scmp.eq.s32.totalorder %s105, 1
      %p813 = por %p811, %p812
      %p814 = scmp.ne.s32.totalorder %s803, %s804
      %p815 = scmp.eq.s32.totalorder %s105, 0
      %p816 = por %p814, %p815
      %p817 = scmp.ne.s32.totalorder %s803, %s804
      %p818 = scmp.eq.s32.totalorder %s106, 1
      %p819 = por %p817, %p818
      %p821 = scmp.ne.s32.totalorder %s804, %s820
      %p822 = scmp.eq.s32.totalorder %s106, 0
      %p823 = por %p821, %p822
      %s824 = ssub.s32 %s100, %s107
      %p825 = scmp.eq.s32.totalorder %s824, 0
      %s827 = sadd.s32 %s826, 1
      %s828 = scalar_select %p825, %s826, %s827
      %p831 = pneg %p825
      %p832 = scmp.eq.s32.totalorder %s100, 1
      %p833 = por %p831, %p832
      %p834 = scmp.ne.s32.totalorder %s826, %s829
      %p835 = scmp.eq.s32.totalorder %s100, 0
      %p836 = por %p834, %p835
      %p837 = scmp.ne.s32.totalorder %s826, %s829
      %p838 = scmp.eq.s32.totalorder %s105, 1
      %p839 = por %p837, %p838
      %p840 = scmp.ne.s32.totalorder %s829, %s830
      %p841 = scmp.eq.s32.totalorder %s105, 0
      %p842 = por %p840, %p841
      %p843 = scmp.ne.s32.totalorder %s829, %s830
      %p844 = scmp.eq.s32.totalorder %s106, 1
      %p845 = por %p843, %p844
      %p847 = scmp.ne.s32.totalorder %s830, %s846
      %p848 = scmp.eq.s32.totalorder %s106, 0
      %p849 = por %p847, %p848
      %s850 = ssub.s32 %s100, %s107
      %p851 = scmp.eq.s32.totalorder %s850, 0
      %s853 = sadd.s32 %s852, 1
      %s854 = scalar_select %p851, %s852, %s853
      %p857 = pneg %p851
      %p858 = scmp.eq.s32.totalorder %s100, 1
      %p859 = por %p857, %p858
      %p860 = scmp.ne.s32.totalorder %s852, %s855
      %p861 = scmp.eq.s32.totalorder %s100, 0
      %p862 = por %p860, %p861
      %p863 = scmp.ne.s32.totalorder %s852, %s855
      %p864 = scmp.eq.s32.totalorder %s105, 1
      %p865 = por %p863, %p864
      %p866 = scmp.ne.s32.totalorder %s855, %s856
      %p867 = scmp.eq.s32.totalorder %s105, 0
      %p868 = por %p866, %p867
      %p869 = scmp.ne.s32.totalorder %s855, %s856
      %p870 = scmp.eq.s32.totalorder %s106, 1
      %p871 = por %p869, %p870
      %p873 = scmp.ne.s32.totalorder %s856, %s872
      %p874 = scmp.eq.s32.totalorder %s106, 0
      %p875 = por %p873, %p874
      %s876 = ssub.s32 %s100, %s107
      %p877 = scmp.eq.s32.totalorder %s876, 0
      %s879 = sadd.s32 %s878, 1
      %s880 = scalar_select %p877, %s878, %s879
      %p883 = pneg %p877
      %p884 = scmp.eq.s32.totalorder %s100, 1
      %p885 = por %p883, %p884
      %p886 = scmp.ne.s32.totalorder %s878, %s881
      %p887 = scmp.eq.s32.totalorder %s100, 0
      %p888 = por %p886, %p887
      %p889 = scmp.ne.s32.totalorder %s878, %s881
      %p890 = scmp.eq.s32.totalorder %s105, 1
      %p891 = por %p889, %p890
      %p892 = scmp.ne.s32.totalorder %s881, %s882
      %p893 = scmp.eq.s32.totalorder %s105, 0
      %p894 = por %p892, %p893
      %p895 = scmp.ne.s32.totalorder %s881, %s882
      %p896 = scmp.eq.s32.totalorder %s106, 1
      %p897 = por %p895, %p896
      %p899 = scmp.ne.s32.totalorder %s882, %s898
      %p900 = scmp.eq.s32.totalorder %s106, 0
      %p901 = por %p899, %p900
      %p902 = scmp.le.s32.totalorder 1, %s100
      %p903 = scmp.lt.s32.totalorder %s100, 3
      %p904 = pnand %p902, %p903
      %p905 = pneg %p904
      // Predicated region
      $region9: #{net_forward.1} parent=5 // pred_check
        _
      $region10: #{net_forward.1} parent=5 // pred_check_branch
        %907 = sbr.rel (%p904) target = $region12
      $region11: #{net_forward.1} parent=5 // pred_region
        %s908 = ssub.s32 %s100, 1
        // Predicated region
        $region13: #{net_forward.1} parent=11 // pred_check
          %p909 = pneg %p433
        $region14: #{net_forward.1} parent=11 // pred_check_branch
          %911 = sbr.rel (%p909) target = $region16
        $region15: #{net_forward.1} parent=11 // pred_region
          %s913 = ssub.s32 1024, 1024
          %914 = vsyncadd [#allocation16], %s913
          %s915 = sshll.u32 [#allocation17], 4
          %s916 = int_to_ptr.vmem [resolvable:$true] %s915
          %921 = dma.hbm_to_vmem [thread:$0]  %s25, 1024, %s916, [#allocation16], 128, 128, 8
        $region16: #{net_forward.1} parent=11 // pred_fallthru
          _
        // Predicated region
        $region17: #{net_forward.1} parent=11 // pred_check
          %p922 = pneg %p454
        $region18: #{net_forward.1} parent=11 // pred_check_branch
          %924 = sbr.rel (%p922) target = $region20
        $region19: #{net_forward.1} parent=11 // pred_region
          %s926 = ssub.s32 1024, 1024
          %927 = vsyncadd [#allocation19], %s926
          %s928 = sshll.u32 [#allocation18], 4
          %s929 = int_to_ptr.vmem [resolvable:$true] %s928
          %934 = dma.hbm_to_vmem [thread:$0]  %s27, 1024, %s929, [#allocation19], 128, 128, 8
        $region20: #{net_forward.1} parent=11 // pred_fallthru
          _
        // Predicated region
        $region21: #{net_forward.1} parent=11 // pred_check
          %p935 = pneg %p475
        $region22: #{net_forward.1} parent=11 // pred_check_branch
          %937 = sbr.rel (%p935) target = $region24
        $region23: #{net_forward.1} parent=11 // pred_region
          %s939 = ssub.s32 12288, 12288
          %940 = vsyncadd [#allocation19], %s939
          %s941 = sshll.u32 [#allocation20], 4
          %s942 = int_to_ptr.vmem [resolvable:$true] %s941
          %947 = dma.hbm_to_vmem [thread:$0]  %s29, 12288, %s942, [#allocation19], 128, 128, 8
        $region24: #{net_forward.1} parent=11 // pred_fallthru
          _
        // Predicated region
        $region25: #{net_forward.1} parent=11 // pred_check
          %p948 = pneg %p496
        $region26: #{net_forward.1} parent=11 // pred_check_branch
          %950 = sbr.rel (%p948) target = $region28
        $region27: #{net_forward.1} parent=11 // pred_region
          %s952 = ssub.s32 32, 32
          %953 = vsyncadd [#allocation22], %s952
          %s955 = sshll.u32 [#allocation21], 4
          %s956 = int_to_ptr.vmem [resolvable:$true] %s955
          %958 = dma.hbm_to_vmem [thread:$0]  %s31, 32, %s956, [#allocation22]
        $region28: #{net_forward.1} parent=11 // pred_fallthru
          _
        // Predicated region
        $region29: #{net_forward.1} parent=11 // pred_check
          %p959 = pneg %p517
        $region30: #{net_forward.1} parent=11 // pred_check_branch
          %961 = sbr.rel (%p959) target = $region32
        $region31: #{net_forward.1} parent=11 // pred_region
          %s963 = ssub.s32 12288, 12288
          %964 = vsyncadd [#allocation22], %s963
          %s965 = sshll.u32 [#allocation23], 4
          %s966 = int_to_ptr.vmem [resolvable:$true] %s965
          %971 = dma.hbm_to_vmem [thread:$0]  %s33, 12288, %s966, [#allocation22], 128, 128, 8
        $region32: #{net_forward.1} parent=11 // pred_fallthru
          _
        // Predicated region
        $region33: #{net_forward.1} parent=11 // pred_check
          %p972 = pneg %p538
        $region34: #{net_forward.1} parent=11 // pred_check_branch
          %974 = sbr.rel (%p972) target = $region36
        $region35: #{net_forward.1} parent=11 // pred_region
          %s976 = ssub.s32 32, 32
          %977 = vsyncadd [#allocation25], %s976
          %s979 = sshll.u32 [#allocation24], 4
          %s980 = int_to_ptr.vmem [resolvable:$true] %s979
          %982 = dma.hbm_to_vmem [thread:$0]  %s35, 32, %s980, [#allocation25]
        $region36: #{net_forward.1} parent=11 // pred_fallthru
          _
        // Predicated region
        $region37: #{net_forward.1} parent=11 // pred_check
          %p983 = pneg %p559
        $region38: #{net_forward.1} parent=11 // pred_check_branch
          %985 = sbr.rel (%p983) target = $region40
        $region39: #{net_forward.1} parent=11 // pred_region
          %s987 = ssub.s32 96, 96
          %988 = vsyncadd [#allocation25], %s987
          %s990 = sshll.u32 [#allocation26], 4
          %s991 = int_to_ptr.vmem [resolvable:$true] %s990
          %993 = dma.hbm_to_vmem [thread:$0]  %s37, 96, %s991, [#allocation25]
        $region40: #{net_forward.1} parent=11 // pred_fallthru
          _
        // Predicated region
        $region41: #{net_forward.1} parent=11 // pred_check
          %p994 = pneg %p580
        $region42: #{net_forward.1} parent=11 // pred_check_branch
          %996 = sbr.rel (%p994) target = $region44
        $region43: #{net_forward.1} parent=11 // pred_region
          _
        $region44: #{net_forward.1} parent=11 // pred_fallthru
          _
        // Predicated region
        $region45: #{net_forward.1} parent=11 // pred_check
          %p997 = pneg %p601
        $region46: #{net_forward.1} parent=11 // pred_check_branch
          %999 = sbr.rel (%p997) target = $region48
        $region47: #{net_forward.1} parent=11 // pred_region
          %s1001 = ssub.s32 2048, 2048
          %1002 = vsyncadd [#allocation28], %s1001
          %s1003 = sshll.u32 [#allocation27], 4
          %s1004 = int_to_ptr.vmem [resolvable:$true] %s1003
          %1009 = dma.hbm_to_vmem [thread:$0]  %s41, 2048, %s1004, [#allocation28], 64, 64, 4
        $region48: #{net_forward.1} parent=11 // pred_fallthru
          _
        // Predicated region
        $region49: #{net_forward.1} parent=11 // pred_check
          %p1010 = pneg %p622
        $region50: #{net_forward.1} parent=11 // pred_check_branch
          %1012 = sbr.rel (%p1010) target = $region52
        $region51: #{net_forward.1} parent=11 // pred_region
          %s1014 = ssub.s32 2048, 2048
          %1015 = vsyncadd [#allocation28], %s1014
          %s1016 = sshll.u32 [#allocation29], 4
          %s1017 = int_to_ptr.vmem [resolvable:$true] %s1016
          %1022 = dma.hbm_to_vmem [thread:$0]  %s43, 2048, %s1017, [#allocation28], 64, 64, 4
        $region52: #{net_forward.1} parent=11 // pred_fallthru
          _
        // Predicated region
        $region53: #{net_forward.1} parent=11 // pred_check
          %p1023 = pneg %p643
        $region54: #{net_forward.1} parent=11 // pred_check_branch
          %1025 = sbr.rel (%p1023) target = $region56
        $region55: #{net_forward.1} parent=11 // pred_region
          %s1027 = ssub.s32 16, 16
          %1028 = vsyncadd [#allocation31], %s1027
          %s1030 = sshll.u32 [#allocation30], 4
          %s1031 = int_to_ptr.vmem [resolvable:$true] %s1030
          %1033 = dma.hbm_to_vmem [thread:$0]  %s45, 16, %s1031, [#allocation31]
        $region56: #{net_forward.1} parent=11 // pred_fallthru
          _
        // Predicated region
        $region57: #{net_forward.1} parent=11 // pred_check
          %p1034 = pneg %p664
        $region58: #{net_forward.1} parent=11 // pred_check_branch
          %1036 = sbr.rel (%p1034) target = $region60
        $region59: #{net_forward.1} parent=11 // pred_region
          %s1038 = ssub.s32 2048, 2048
          %1039 = vsyncadd [#allocation31], %s1038
          %s1040 = sshll.u32 [#allocation32], 4
          %s1041 = int_to_ptr.vmem [resolvable:$true] %s1040
          %1046 = dma.hbm_to_vmem [thread:$0]  %s47, 2048, %s1041, [#allocation31], 64, 64, 4
        $region60: #{net_forward.1} parent=11 // pred_fallthru
          _
        // Predicated region
        $region61: #{net_forward.1} parent=11 // pred_check
          %p1047 = pneg %p685
        $region62: #{net_forward.1} parent=11 // pred_check_branch
          %1049 = sbr.rel (%p1047) target = $region64
        $region63: #{net_forward.1} parent=11 // pred_region
          %s1051 = ssub.s32 2048, 2048
          %1052 = vsyncadd [#allocation34], %s1051
          %s1053 = sshll.u32 [#allocation33], 4
          %s1054 = int_to_ptr.vmem [resolvable:$true] %s1053
          %1059 = dma.hbm_to_vmem [thread:$0]  %s49, 2048, %s1054, [#allocation34], 64, 64, 4
        $region64: #{net_forward.1} parent=11 // pred_fallthru
          _
        // Predicated region
        $region65: #{net_forward.1} parent=11 // pred_check
          %p1060 = pneg %p706
        $region66: #{net_forward.1} parent=11 // pred_check_branch
          %1062 = sbr.rel (%p1060) target = $region68
        $region67: #{net_forward.1} parent=11 // pred_region
          %s1064 = ssub.s32 16, 16
          %1065 = vsyncadd [#allocation34], %s1064
          %s1067 = sshll.u32 [#allocation35], 4
          %s1068 = int_to_ptr.vmem [resolvable:$true] %s1067
          %1070 = dma.hbm_to_vmem [thread:$0]  %s51, 16, %s1068, [#allocation34]
        $region68: #{net_forward.1} parent=11 // pred_fallthru
          _
        // Predicated region
        $region69: #{net_forward.1} parent=11 // pred_check
          %p1071 = pneg %p727
        $region70: #{net_forward.1} parent=11 // pred_check_branch
          %1073 = sbr.rel (%p1071) target = $region72
        $region71: #{net_forward.1} parent=11 // pred_region
          %s1075 = ssub.s32 4096, 4096
          %1076 = vsyncadd [#allocation37], %s1075
          %s1077 = sshll.u32 [#allocation36], 4
          %s1078 = int_to_ptr.vmem [resolvable:$true] %s1077
          %1083 = dma.hbm_to_vmem [thread:$0]  %s53, 4096, %s1078, [#allocation37], 256, 256, 16
        $region72: #{net_forward.1} parent=11 // pred_fallthru
          _
        // Predicated region
        $region73: #{net_forward.1} parent=11 // pred_check
          %p1084 = pneg %p748
        $region74: #{net_forward.1} parent=11 // pred_check_branch
          %1086 = sbr.rel (%p1084) target = $region76
        $region75: #{net_forward.1} parent=11 // pred_region
          _
        $region76: #{net_forward.1} parent=11 // pred_fallthru
          _
        // Predicated region
        $region77: #{net_forward.1} parent=11 // pred_check
          %p1087 = pneg %p769
        $region78: #{net_forward.1} parent=11 // pred_check_branch
          %1089 = sbr.rel (%p1087) target = $region80
        $region79: #{net_forward.1} parent=11 // pred_region
          %s1091 = ssub.s32 64, 64
          %1092 = vsyncadd [#allocation37], %s1091
          %s1094 = sshll.u32 [#allocation38], 4
          %s1095 = int_to_ptr.vmem [resolvable:$true] %s1094
          %1097 = dma.hbm_to_vmem [thread:$0]  %s57, 64, %s1095, [#allocation37]
        $region80: #{net_forward.1} parent=11 // pred_fallthru
          _
        // Predicated region
        $region81: #{net_forward.1} parent=11 // pred_check
          %p1098 = pneg %p790
        $region82: #{net_forward.1} parent=11 // pred_check_branch
          %1100 = sbr.rel (%p1098) target = $region84
        $region83: #{net_forward.1} parent=11 // pred_region
          _
        $region84: #{net_forward.1} parent=11 // pred_fallthru
          _
      $region12: #{net_forward.1} parent=5 // pred_fallthru
        _
      %p1101 = scmp.lt.s32.totalorder %s100, 2
      // Predicated region
      $region85: #{net_forward.1} parent=5 // pred_check
        %p1102 = pneg %p1101
      $region86: #{net_forward.1} parent=5 // pred_check_branch
        %1104 = sbr.rel (%p1102) target = $region88
      $region87: #{net_forward.1} parent=5 // pred_region
        // Predicated region
        $region89: #{net_forward.1} parent=87 // pred_check
          %p1105 = pneg %p120
        $region90: #{net_forward.1} parent=87 // pred_check_branch
          %1107 = sbr.rel (%p1105) target = $region92
        $region91: #{net_forward.1} parent=87 // pred_region
          %p1108 = scmp.lt.s32.totalorder %s100, 1
          %s1109 = scalar_select %p1108, %s100, 1
          %s1110 = smul.addr %s1109, 8
          %s1111 = scalar_lea.vmem %s1, %s1110
        $region92: #{net_forward.1} parent=87 // pred_fallthru
          _
        // Predicated region
        $region93: #{net_forward.1} parent=87 // pred_check
          %p1112 = pneg %p146
        $region94: #{net_forward.1} parent=87 // pred_check_branch
          %1114 = sbr.rel (%p1112) target = $region96
        $region95: #{net_forward.1} parent=87 // pred_region
          %p1115 = scmp.lt.s32.totalorder %s100, 1
          %s1116 = scalar_select %p1115, %s100, 1
          %s1117 = smul.addr %s1116, 8
          %s1118 = scalar_lea.vmem %s3, %s1117
        $region96: #{net_forward.1} parent=87 // pred_fallthru
          _
        // Predicated region
        $region97: #{net_forward.1} parent=87 // pred_check
          %p1119 = pneg %p172
        $region98: #{net_forward.1} parent=87 // pred_check_branch
          %1121 = sbr.rel (%p1119) target = $region100
        $region99: #{net_forward.1} parent=87 // pred_region
          %p1122 = scmp.lt.s32.totalorder %s100, 1
          %s1123 = scalar_select %p1122, %s100, 1
          %s1124 = smul.addr %s1123, 8
          %s1125 = scalar_lea.vmem %s5, %s1124
        $region100: #{net_forward.1} parent=87 // pred_fallthru
          _
        // Predicated region
        $region101: #{net_forward.1} parent=87 // pred_check
          %p1126 = pneg %p198
        $region102: #{net_forward.1} parent=87 // pred_check_branch
          %1128 = sbr.rel (%p1126) target = $region104
        $region103: #{net_forward.1} parent=87 // pred_region
          %s1129 = sand.u32 %s188, 1
          %s1130 = scalar_lea.sflag [#allocation5], %s1129
          %s1131 = sand.u32 %s188, 1
          %s1132 = smul.addr %s1131, 8
          %s1133 = scalar_lea.vmem [#allocation4], %s1132
          %s1135 = ssub.s32 128, 128
          %1136 = vsyncadd %s1130, %s1135
          %s1137 = smul.addr %s100, 128
          %s1138 = scalar_lea.hbm %s7, %s1137
          %s1140 = sshll.u32 %s1133, 4
          %s1141 = int_to_ptr.vmem [resolvable:$true] %s1140
          %1143 = dma.hbm_to_vmem [thread:$0]  %s1138, 128, %s1141, %s1130
        $region104: #{net_forward.1} parent=87 // pred_fallthru
          _
        // Predicated region
        $region105: #{net_forward.1} parent=87 // pred_check
          %p1144 = pneg %p224
        $region106: #{net_forward.1} parent=87 // pred_check_branch
          %1146 = sbr.rel (%p1144) target = $region108
        $region107: #{net_forward.1} parent=87 // pred_region
          %s1147 = sand.u32 %s100, 1
          %s1148 = scalar_lea.sflag [#allocation7], %s1147
          %s1149 = sand.u32 %s214, 1
          %s1150 = smul.addr %s1149, 8
          %s1151 = scalar_lea.vmem [#allocation6], %s1150
          %s1153 = ssub.s32 128, 128
          %1154 = vsyncadd %s1148, %s1153
          %s1155 = smul.addr %s100, 128
          %s1156 = scalar_lea.hbm %s9, %s1155
          %s1158 = sshll.u32 %s1151, 4
          %s1159 = int_to_ptr.vmem [resolvable:$true] %s1158
          %1161 = dma.hbm_to_vmem [thread:$0]  %s1156, 128, %s1159, %s1148
        $region108: #{net_forward.1} parent=87 // pred_fallthru
          _
        // Predicated region
        $region109: #{net_forward.1} parent=87 // pred_check
          %p1162 = pneg %p250
        $region110: #{net_forward.1} parent=87 // pred_check_branch
          %1164 = sbr.rel (%p1162) target = $region112
        $region111: #{net_forward.1} parent=87 // pred_region
          %s1165 = sand.u32 %s100, 1
          %s1166 = scalar_lea.sflag [#allocation7], %s1165
          %s1167 = sand.u32 %s240, 1
          %s1168 = smul.addr %s1167, 8
          %s1169 = scalar_lea.vmem [#allocation8], %s1168
          %s1171 = ssub.s32 128, 128
          %1172 = vsyncadd %s1166, %s1171
          %s1173 = smul.addr %s100, 128
          %s1174 = scalar_lea.hbm %s11, %s1173
          %s1176 = sshll.u32 %s1169, 4
          %s1177 = int_to_ptr.vmem [resolvable:$true] %s1176
          %1179 = dma.hbm_to_vmem [thread:$0]  %s1174, 128, %s1177, %s1166
        $region112: #{net_forward.1} parent=87 // pred_fallthru
          _
        // Predicated region
        $region113: #{net_forward.1} parent=87 // pred_check
          %p1180 = pneg %p276
        $region114: #{net_forward.1} parent=87 // pred_check_branch
          %1182 = sbr.rel (%p1180) target = $region116
        $region115: #{net_forward.1} parent=87 // pred_region
          %p1183 = scmp.lt.s32.totalorder %s100, 1
          %s1184 = scalar_select %p1183, %s100, 1
          %s1185 = smul.addr %s1184, 6
          %s1186 = smul.addr %s1185, 8
          %s1187 = scalar_lea.vmem %s13, %s1186
        $region116: #{net_forward.1} parent=87 // pred_fallthru
          _
        // Predicated region
        $region117: #{net_forward.1} parent=87 // pred_check
          %p1188 = pneg %p302
        $region118: #{net_forward.1} parent=87 // pred_check_branch
          %1190 = sbr.rel (%p1188) target = $region120
        $region119: #{net_forward.1} parent=87 // pred_region
          %s1191 = sand.u32 %s100, 1
          %s1192 = scalar_lea.sflag [#allocation10], %s1191
          %s1193 = sand.u32 %s292, 1
          %s1194 = smul.addr %s1193, 48
          %s1195 = scalar_lea.vmem [#allocation9], %s1194
          %s1197 = ssub.s32 768, 768
          %1198 = vsyncadd %s1192, %s1197
          %s1199 = smul.addr %s100, 6
          %s1200 = smul.addr %s1199, 128
          %s1201 = scalar_lea.hbm %s15, %s1200
          %s1203 = sshll.u32 %s1195, 4
          %s1204 = int_to_ptr.vmem [resolvable:$true] %s1203
          %1206 = dma.hbm_to_vmem [thread:$0]  %s1201, 768, %s1204, %s1192
        $region120: #{net_forward.1} parent=87 // pred_fallthru
          _
        // Predicated region
        $region121: #{net_forward.1} parent=87 // pred_check
          %p1207 = pneg %p328
        $region122: #{net_forward.1} parent=87 // pred_check_branch
          %1209 = sbr.rel (%p1207) target = $region124
        $region123: #{net_forward.1} parent=87 // pred_region
          %s1210 = sand.u32 %s100, 1
          %s1211 = scalar_lea.sflag [#allocation10], %s1210
          %s1212 = sand.u32 %s318, 1
          %s1213 = smul.addr %s1212, 48
          %s1214 = scalar_lea.vmem [#allocation11], %s1213
          %s1216 = ssub.s32 768, 768
          %1217 = vsyncadd %s1211, %s1216
          %s1218 = smul.addr %s100, 6
          %s1219 = smul.addr %s1218, 128
          %s1220 = scalar_lea.hbm %s17, %s1219
          %s1222 = sshll.u32 %s1214, 4
          %s1223 = int_to_ptr.vmem [resolvable:$true] %s1222
          %1225 = dma.hbm_to_vmem [thread:$0]  %s1220, 768, %s1223, %s1211
        $region124: #{net_forward.1} parent=87 // pred_fallthru
          _
        // Predicated region
        $region125: #{net_forward.1} parent=87 // pred_check
          %p1226 = pneg %p354
        $region126: #{net_forward.1} parent=87 // pred_check_branch
          %1228 = sbr.rel (%p1226) target = $region128
        $region127: #{net_forward.1} parent=87 // pred_region
          %s1229 = sand.u32 %s100, 1
          %s1230 = scalar_lea.sflag [#allocation13], %s1229
          %s1231 = sand.u32 %s344, 1
          %s1232 = smul.addr %s1231, 48
          %s1233 = scalar_lea.vmem [#allocation12], %s1232
          %s1235 = ssub.s32 768, 768
          %1236 = vsyncadd %s1230, %s1235
          %s1237 = smul.addr %s100, 6
          %s1238 = smul.addr %s1237, 128
          %s1239 = scalar_lea.hbm %s19, %s1238
          %s1241 = sshll.u32 %s1233, 4
          %s1242 = int_to_ptr.vmem [resolvable:$true] %s1241
          %1244 = dma.hbm_to_vmem [thread:$0]  %s1239, 768, %s1242, %s1230
        $region128: #{net_forward.1} parent=87 // pred_fallthru
          _
        // Predicated region
        $region129: #{net_forward.1} parent=87 // pred_check
          %p1245 = pneg %p380
        $region130: #{net_forward.1} parent=87 // pred_check_branch
          %1247 = sbr.rel (%p1245) target = $region132
        $region131: #{net_forward.1} parent=87 // pred_region
          %s1248 = sand.u32 %s100, 1
          %s1249 = scalar_lea.sflag [#allocation13], %s1248
          %s1250 = sand.u32 %s370, 1
          %s1251 = smul.addr %s1250, 48
          %s1252 = scalar_lea.vmem [#allocation14], %s1251
          %s1254 = ssub.s32 768, 768
          %1255 = vsyncadd %s1249, %s1254
          %s1256 = smul.addr %s100, 6
          %s1257 = smul.addr %s1256, 128
          %s1258 = scalar_lea.hbm %s21, %s1257
          %s1260 = sshll.u32 %s1252, 4
          %s1261 = int_to_ptr.vmem [resolvable:$true] %s1260
          %1263 = dma.hbm_to_vmem [thread:$0]  %s1258, 768, %s1261, %s1249
        $region132: #{net_forward.1} parent=87 // pred_fallthru
          _
        // Predicated region
        $region133: #{net_forward.1} parent=87 // pred_check
          %p1264 = pneg %p406
        $region134: #{net_forward.1} parent=87 // pred_check_branch
          %1266 = sbr.rel (%p1264) target = $region136
        $region135: #{net_forward.1} parent=87 // pred_region
          %s1267 = sand.u32 %s100, 1
          %s1268 = scalar_lea.sflag [#allocation16], %s1267
          %s1269 = sand.u32 %s396, 1
          %s1270 = smul.addr %s1269, 48
          %s1271 = scalar_lea.vmem [#allocation15], %s1270
          %s1273 = ssub.s32 768, 768
          %1274 = vsyncadd %s1268, %s1273
          %s1275 = smul.addr %s100, 6
          %s1276 = smul.addr %s1275, 128
          %s1277 = scalar_lea.hbm %s23, %s1276
          %s1279 = sshll.u32 %s1271, 4
          %s1280 = int_to_ptr.vmem [resolvable:$true] %s1279
          %1282 = dma.hbm_to_vmem [thread:$0]  %s1277, 768, %s1280, %s1268
        $region136: #{net_forward.1} parent=87 // pred_fallthru
          _
      $region88: #{net_forward.1} parent=5 // pred_fallthru
        _
      %p1283 = scmp.le.s32.totalorder 1, %s100
      %p1284 = scmp.lt.s32.totalorder %s100, 3
      %p1285 = pnand %p1283, %p1284
      %p1286 = pneg %p1285
      // Predicated region
      $region137: #{net_forward.1} parent=5 // pred_check
        _
      $region138: #{net_forward.1} parent=5 // pred_check_branch
        %1288 = sbr.rel (%p1285) target = $region140
      $region139: #{net_forward.1} parent=5 // pred_region
        %s1289 = ssub.s32 %s100, 1
        %s1290 = sand.u32 %s191, 1
        %s1291 = scalar_lea.sflag [#allocation5], %s1290
        %s1292 = sand.u32 %s191, 1
        %s1293 = smul.addr %s1292, 8
        %s1294 = scalar_lea.vmem [#allocation4], %s1293
        // Predicated region
        $region141: #{net_forward.1} parent=139 // pred_check
          %p1295 = pneg %p204
        $region142: #{net_forward.1} parent=139 // pred_check_branch
          %1297 = sbr.rel (%p1295) target = $region144
        $region143: #{net_forward.1} parent=139 // pred_region
          %1298 = dma.done %s1291, 128
        $region144: #{net_forward.1} parent=139 // pred_fallthru
          _
        %s1299 = sand.u32 %s105, 1
        %s1300 = scalar_lea.sflag [#allocation7], %s1299
        %s1301 = sand.u32 %s217, 1
        %s1302 = smul.addr %s1301, 8
        %s1303 = scalar_lea.vmem [#allocation6], %s1302
        // Predicated region
        $region145: #{net_forward.1} parent=139 // pred_check
          %p1304 = pneg %p230
        $region146: #{net_forward.1} parent=139 // pred_check_branch
          %1306 = sbr.rel (%p1304) target = $region148
        $region147: #{net_forward.1} parent=139 // pred_region
          %1307 = dma.done %s1300, 128
        $region148: #{net_forward.1} parent=139 // pred_fallthru
          _
        %s1308 = sand.u32 %s105, 1
        %s1309 = scalar_lea.sflag [#allocation7], %s1308
        %s1310 = sand.u32 %s243, 1
        %s1311 = smul.addr %s1310, 8
        %s1312 = scalar_lea.vmem [#allocation8], %s1311
        // Predicated region
        $region149: #{net_forward.1} parent=139 // pred_check
          %p1313 = pneg %p256
        $region150: #{net_forward.1} parent=139 // pred_check_branch
          %1315 = sbr.rel (%p1313) target = $region152
        $region151: #{net_forward.1} parent=139 // pred_region
          %1316 = dma.done %s1309, 128
        $region152: #{net_forward.1} parent=139 // pred_fallthru
          _
        %s1317 = sand.u32 %s105, 1
        %s1318 = scalar_lea.sflag [#allocation10], %s1317
        %s1319 = sand.u32 %s295, 1
        %s1320 = smul.addr %s1319, 48
        %s1321 = scalar_lea.vmem [#allocation9], %s1320
        // Predicated region
        $region153: #{net_forward.1} parent=139 // pred_check
          %p1322 = pneg %p308
        $region154: #{net_forward.1} parent=139 // pred_check_branch
          %1324 = sbr.rel (%p1322) target = $region156
        $region155: #{net_forward.1} parent=139 // pred_region
          %1325 = dma.done %s1318, 768
        $region156: #{net_forward.1} parent=139 // pred_fallthru
          _
        %s1326 = sand.u32 %s105, 1
        %s1327 = scalar_lea.sflag [#allocation10], %s1326
        %s1328 = sand.u32 %s321, 1
        %s1329 = smul.addr %s1328, 48
        %s1330 = scalar_lea.vmem [#allocation11], %s1329
        // Predicated region
        $region157: #{net_forward.1} parent=139 // pred_check
          %p1331 = pneg %p334
        $region158: #{net_forward.1} parent=139 // pred_check_branch
          %1333 = sbr.rel (%p1331) target = $region160
        $region159: #{net_forward.1} parent=139 // pred_region
          %1334 = dma.done %s1327, 768
        $region160: #{net_forward.1} parent=139 // pred_fallthru
          _
        %s1335 = sand.u32 %s105, 1
        %s1336 = scalar_lea.sflag [#allocation13], %s1335
        %s1337 = sand.u32 %s347, 1
        %s1338 = smul.addr %s1337, 48
        %s1339 = scalar_lea.vmem [#allocation12], %s1338
        // Predicated region
        $region161: #{net_forward.1} parent=139 // pred_check
          %p1340 = pneg %p360
        $region162: #{net_forward.1} parent=139 // pred_check_branch
          %1342 = sbr.rel (%p1340) target = $region164
        $region163: #{net_forward.1} parent=139 // pred_region
          %1343 = dma.done %s1336, 768
        $region164: #{net_forward.1} parent=139 // pred_fallthru
          _
        %s1344 = sand.u32 %s105, 1
        %s1345 = scalar_lea.sflag [#allocation13], %s1344
        %s1346 = sand.u32 %s373, 1
        %s1347 = smul.addr %s1346, 48
        %s1348 = scalar_lea.vmem [#allocation14], %s1347
        // Predicated region
        $region165: #{net_forward.1} parent=139 // pred_check
          %p1349 = pneg %p386
        $region166: #{net_forward.1} parent=139 // pred_check_branch
          %1351 = sbr.rel (%p1349) target = $region168
        $region167: #{net_forward.1} parent=139 // pred_region
          %1352 = dma.done %s1345, 768
        $region168: #{net_forward.1} parent=139 // pred_fallthru
          _
        %s1353 = sand.u32 %s105, 1
        %s1354 = scalar_lea.sflag [#allocation16], %s1353
        %s1355 = sand.u32 %s399, 1
        %s1356 = smul.addr %s1355, 48
        %s1357 = scalar_lea.vmem [#allocation15], %s1356
        // Predicated region
        $region169: #{net_forward.1} parent=139 // pred_check
          %p1358 = pneg %p412
        $region170: #{net_forward.1} parent=139 // pred_check_branch
          %1360 = sbr.rel (%p1358) target = $region172
        $region171: #{net_forward.1} parent=139 // pred_region
          %1361 = dma.done %s1354, 768
        $region172: #{net_forward.1} parent=139 // pred_fallthru
          _
        // Predicated region
        $region173: #{net_forward.1} parent=139 // pred_check
          %p1362 = pneg %p433
        $region174: #{net_forward.1} parent=139 // pred_check_branch
          %1364 = sbr.rel (%p1362) target = $region176
        $region175: #{net_forward.1} parent=139 // pred_region
          %1365 = dma.done [#allocation16], 1024
        $region176: #{net_forward.1} parent=139 // pred_fallthru
          _
        // Predicated region
        $region177: #{net_forward.1} parent=139 // pred_check
          %p1366 = pneg %p454
        $region178: #{net_forward.1} parent=139 // pred_check_branch
          %1368 = sbr.rel (%p1366) target = $region180
        $region179: #{net_forward.1} parent=139 // pred_region
          %1369 = dma.done [#allocation19], 1024
        $region180: #{net_forward.1} parent=139 // pred_fallthru
          _
        // Predicated region
        $region181: #{net_forward.1} parent=139 // pred_check
          %p1370 = pneg %p475
        $region182: #{net_forward.1} parent=139 // pred_check_branch
          %1372 = sbr.rel (%p1370) target = $region184
        $region183: #{net_forward.1} parent=139 // pred_region
          %1373 = dma.done [#allocation19], 12288
        $region184: #{net_forward.1} parent=139 // pred_fallthru
          _
        // Predicated region
        $region185: #{net_forward.1} parent=139 // pred_check
          %p1374 = pneg %p496
        $region186: #{net_forward.1} parent=139 // pred_check_branch
          %1376 = sbr.rel (%p1374) target = $region188
        $region187: #{net_forward.1} parent=139 // pred_region
          %1377 = dma.done [#allocation22], 32
        $region188: #{net_forward.1} parent=139 // pred_fallthru
          _
        // Predicated region
        $region189: #{net_forward.1} parent=139 // pred_check
          %p1378 = pneg %p517
        $region190: #{net_forward.1} parent=139 // pred_check_branch
          %1380 = sbr.rel (%p1378) target = $region192
        $region191: #{net_forward.1} parent=139 // pred_region
          %1381 = dma.done [#allocation22], 12288
        $region192: #{net_forward.1} parent=139 // pred_fallthru
          _
        // Predicated region
        $region193: #{net_forward.1} parent=139 // pred_check
          %p1382 = pneg %p538
        $region194: #{net_forward.1} parent=139 // pred_check_branch
          %1384 = sbr.rel (%p1382) target = $region196
        $region195: #{net_forward.1} parent=139 // pred_region
          %1385 = dma.done [#allocation25], 32
        $region196: #{net_forward.1} parent=139 // pred_fallthru
          _
        // Predicated region
        $region197: #{net_forward.1} parent=139 // pred_check
          %p1386 = pneg %p559
        $region198: #{net_forward.1} parent=139 // pred_check_branch
          %1388 = sbr.rel (%p1386) target = $region200
        $region199: #{net_forward.1} parent=139 // pred_region
          %1389 = dma.done [#allocation25], 96
        $region200: #{net_forward.1} parent=139 // pred_fallthru
          _
        // Predicated region
        $region201: #{net_forward.1} parent=139 // pred_check
          %p1390 = pneg %p601
        $region202: #{net_forward.1} parent=139 // pred_check_branch
          %1392 = sbr.rel (%p1390) target = $region204
        $region203: #{net_forward.1} parent=139 // pred_region
          %1393 = dma.done [#allocation28], 2048
        $region204: #{net_forward.1} parent=139 // pred_fallthru
          _
        // Predicated region
        $region205: #{net_forward.1} parent=139 // pred_check
          %p1394 = pneg %p622
        $region206: #{net_forward.1} parent=139 // pred_check_branch
          %1396 = sbr.rel (%p1394) target = $region208
        $region207: #{net_forward.1} parent=139 // pred_region
          %1397 = dma.done [#allocation28], 2048
        $region208: #{net_forward.1} parent=139 // pred_fallthru
          _
        // Predicated region
        $region209: #{net_forward.1} parent=139 // pred_check
          %p1398 = pneg %p643
        $region210: #{net_forward.1} parent=139 // pred_check_branch
          %1400 = sbr.rel (%p1398) target = $region212
        $region211: #{net_forward.1} parent=139 // pred_region
          %1401 = dma.done [#allocation31], 16
        $region212: #{net_forward.1} parent=139 // pred_fallthru
          _
        // Predicated region
        $region213: #{net_forward.1} parent=139 // pred_check
          %p1402 = pneg %p664
        $region214: #{net_forward.1} parent=139 // pred_check_branch
          %1404 = sbr.rel (%p1402) target = $region216
        $region215: #{net_forward.1} parent=139 // pred_region
          %1405 = dma.done [#allocation31], 2048
        $region216: #{net_forward.1} parent=139 // pred_fallthru
          _
        // Predicated region
        $region217: #{net_forward.1} parent=139 // pred_check
          %p1406 = pneg %p685
        $region218: #{net_forward.1} parent=139 // pred_check_branch
          %1408 = sbr.rel (%p1406) target = $region220
        $region219: #{net_forward.1} parent=139 // pred_region
          %1409 = dma.done [#allocation34], 2048
        $region220: #{net_forward.1} parent=139 // pred_fallthru
          _
        // Predicated region
        $region221: #{net_forward.1} parent=139 // pred_check
          %p1410 = pneg %p706
        $region222: #{net_forward.1} parent=139 // pred_check_branch
          %1412 = sbr.rel (%p1410) target = $region224
        $region223: #{net_forward.1} parent=139 // pred_region
          %1413 = dma.done [#allocation34], 16
        $region224: #{net_forward.1} parent=139 // pred_fallthru
          _
        // Predicated region
        $region225: #{net_forward.1} parent=139 // pred_check
          %p1414 = pneg %p727
        $region226: #{net_forward.1} parent=139 // pred_check_branch
          %1416 = sbr.rel (%p1414) target = $region228
        $region227: #{net_forward.1} parent=139 // pred_region
          %1417 = dma.done [#allocation37], 4096
        $region228: #{net_forward.1} parent=139 // pred_fallthru
          _
        // Predicated region
        $region229: #{net_forward.1} parent=139 // pred_check
          %p1418 = pneg %p769
        $region230: #{net_forward.1} parent=139 // pred_check_branch
          %1420 = sbr.rel (%p1418) target = $region232
        $region231: #{net_forward.1} parent=139 // pred_region
          %1421 = dma.done [#allocation37], 64
        $region232: #{net_forward.1} parent=139 // pred_fallthru
          _
        %p1422 = scmp.lt.s32.totalorder %s105, 1
        %s1423 = scalar_select %p1422, %s105, 1
        %s1424 = smul.addr %s1423, 8
        %s1425 = scalar_lea.vmem %s1, %s1424
        %p1426 = pneg %p126
        %p1427 = pneg %p123
        %p1428 = scmp.lt.s32.totalorder %s105, 1
        %s1429 = scalar_select %p1428, %s105, 1
        %s1430 = smul.addr %s1429, 8
        %s1431 = scalar_lea.vmem %s3, %s1430
        %p1432 = pneg %p152
        %p1433 = pneg %p149
        %p1434 = scmp.lt.s32.totalorder %s105, 1
        %s1435 = scalar_select %p1434, %s105, 1
        %s1436 = smul.addr %s1435, 8
        %s1437 = scalar_lea.vmem %s5, %s1436
        %p1438 = pneg %p178
        %p1439 = pneg %p175
        %s1440 = sand.u32 %s191, 1
        %s1441 = scalar_lea.sflag [#allocation5], %s1440
        %s1442 = sand.u32 %s191, 1
        %s1443 = smul.addr %s1442, 8
        %s1444 = scalar_lea.vmem [#allocation4], %s1443
        %p1445 = pneg %p204
        %p1446 = pneg %p201
        %s1447 = sand.u32 %s105, 1
        %s1448 = scalar_lea.sflag [#allocation7], %s1447
        %s1449 = sand.u32 %s217, 1
        %s1450 = smul.addr %s1449, 8
        %s1451 = scalar_lea.vmem [#allocation6], %s1450
        %p1452 = pneg %p230
        %p1453 = pneg %p227
        %s1454 = sand.u32 %s105, 1
        %s1455 = scalar_lea.sflag [#allocation7], %s1454
        %s1456 = sand.u32 %s243, 1
        %s1457 = smul.addr %s1456, 8
        %s1458 = scalar_lea.vmem [#allocation8], %s1457
        %p1459 = pneg %p256
        %p1460 = pneg %p253
        %p1461 = scmp.lt.s32.totalorder %s105, 1
        %s1462 = scalar_select %p1461, %s105, 1
        %s1463 = smul.addr %s1462, 6
        %s1464 = smul.addr %s1463, 8
        %s1465 = scalar_lea.vmem %s13, %s1464
        %p1466 = pneg %p282
        %p1467 = pneg %p279
        %s1468 = sand.u32 %s105, 1
        %s1469 = scalar_lea.sflag [#allocation10], %s1468
        %s1470 = sand.u32 %s295, 1
        %s1471 = smul.addr %s1470, 48
        %s1472 = scalar_lea.vmem [#allocation9], %s1471
        %p1473 = pneg %p308
        %p1474 = pneg %p305
        %s1475 = sand.u32 %s105, 1
        %s1476 = scalar_lea.sflag [#allocation10], %s1475
        %s1477 = sand.u32 %s321, 1
        %s1478 = smul.addr %s1477, 48
        %s1479 = scalar_lea.vmem [#allocation11], %s1478
        %p1480 = pneg %p334
        %p1481 = pneg %p331
        %s1482 = sand.u32 %s105, 1
        %s1483 = scalar_lea.sflag [#allocation13], %s1482
        %s1484 = sand.u32 %s347, 1
        %s1485 = smul.addr %s1484, 48
        %s1486 = scalar_lea.vmem [#allocation12], %s1485
        %p1487 = pneg %p360
        %p1488 = pneg %p357
        %s1489 = sand.u32 %s105, 1
        %s1490 = scalar_lea.sflag [#allocation13], %s1489
        %s1491 = sand.u32 %s373, 1
        %s1492 = smul.addr %s1491, 48
        %s1493 = scalar_lea.vmem [#allocation14], %s1492
        %p1494 = pneg %p386
        %p1495 = pneg %p383
        %s1496 = sand.u32 %s105, 1
        %s1497 = scalar_lea.sflag [#allocation16], %s1496
        %s1498 = sand.u32 %s399, 1
        %s1499 = smul.addr %s1498, 48
        %s1500 = scalar_lea.vmem [#allocation15], %s1499
        %p1501 = pneg %p412
        %p1502 = pneg %p409
        %p1503 = pneg %p433
        %p1504 = pneg %p430
        %p1505 = pneg %p454
        %p1506 = pneg %p451
        %p1507 = pneg %p475
        %p1508 = pneg %p472
        %p1509 = pneg %p496
        %p1510 = pneg %p493
        %p1511 = pneg %p517
        %p1512 = pneg %p514
        %p1513 = pneg %p538
        %p1514 = pneg %p535
        %p1515 = pneg %p559
        %p1516 = pneg %p556
        %p1517 = pneg %p580
        %p1518 = pneg %p577
        %p1519 = pneg %p601
        %p1520 = pneg %p598
        %p1521 = pneg %p622
        %p1522 = pneg %p619
        %p1523 = pneg %p643
        %p1524 = pneg %p640
        %p1525 = pneg %p664
        %p1526 = pneg %p661
        %p1527 = pneg %p685
        %p1528 = pneg %p682
        %p1529 = pneg %p706
        %p1530 = pneg %p703
        %p1531 = pneg %p727
        %p1532 = pneg %p724
        %p1533 = pneg %p748
        %p1534 = pneg %p745
        %p1535 = pneg %p769
        %p1536 = pneg %p766
        %p1537 = pneg %p790
        %p1538 = pneg %p787
        %p1539 = pneg %p816
        %p1540 = pneg %p813
        %p1541 = scmp.lt.s32.totalorder %s105, 1
        %s1542 = scalar_select %p1541, %s105, 1
        %s1543 = smul.addr %s1542, 8
        %s1544 = scalar_lea.vmem %s61, %s1543
        %p1545 = pneg %p842
        %p1546 = pneg %p839
        %p1547 = scmp.lt.s32.totalorder %s105, 1
        %s1548 = scalar_select %p1547, %s105, 1
        %s1549 = smul.addr %s1548, 8
        %s1550 = scalar_lea.vmem %s63, %s1549
        %p1551 = pneg %p868
        %p1552 = pneg %p865
        %p1553 = scmp.lt.s32.totalorder %s105, 1
        %s1554 = scalar_select %p1553, %s105, 1
        %s1555 = smul.addr %s1554, 8
        %s1556 = scalar_lea.vmem %s65, %s1555
        %p1557 = pneg %p894
        %p1558 = pneg %p891
        %p1559 = scmp.lt.s32.totalorder %s105, 1
        %s1560 = scalar_select %p1559, %s105, 1
        %s1561 = smul.addr %s1560, 8
        %s1562 = scalar_lea.vmem %s67, %s1561
        %p1563 = scmp.lt.s32.totalorder %s105, 1
        %s1564 = scalar_select %p1563, %s105, 1
        %s1565 = smul.addr %s1564, 8
        %s1566 = scalar_lea.vmem %s1, %s1565
        %p1567 = scmp.lt.s32.totalorder %s105, 1
        %s1568 = scalar_select %p1567, %s105, 1
        %s1569 = smul.addr %s1568, 8
        %s1570 = scalar_lea.vmem %s3, %s1569
        %p1571 = scmp.lt.s32.totalorder %s105, 1
        %s1572 = scalar_select %p1571, %s105, 1
        %s1573 = smul.addr %s1572, 8
        %s1574 = scalar_lea.vmem %s5, %s1573
        %p1575 = scmp.lt.s32.totalorder %s105, 1
        %s1576 = scalar_select %p1575, %s105, 1
        %s1577 = smul.addr %s1576, 6
        %s1578 = smul.addr %s1577, 8
        %s1579 = scalar_lea.vmem %s13, %s1578
        %p1580 = scmp.lt.s32.totalorder %s105, 1
        %s1581 = scalar_select %p1580, %s105, 1
        %s1582 = smul.addr %s1581, 8
        %s1583 = scalar_lea.vmem %s61, %s1582
        %p1584 = scmp.lt.s32.totalorder %s105, 1
        %s1585 = scalar_select %p1584, %s105, 1
        %s1586 = smul.addr %s1585, 8
        %s1587 = scalar_lea.vmem %s63, %s1586
        %p1588 = scmp.lt.s32.totalorder %s105, 1
        %s1589 = scalar_select %p1588, %s105, 1
        %s1590 = smul.addr %s1589, 8
        %s1591 = scalar_lea.vmem %s65, %s1590
        %p1592 = scmp.lt.s32.totalorder %s105, 1
        %s1593 = scalar_select %p1592, %s105, 1
        %s1594 = smul.addr %s1593, 8
        %s1595 = scalar_lea.vmem %s67, %s1594
        %v1597 = vld [vmem:[%s1566] sm:$0xff]
        %v1598 = vlaneseq
        %v1599 = vand.u32 %v1598, 127
        %1600 = vset.pattern.permute.xlu0 0
        %1601 = vperm.xlu0 %1600, %v1597
        %v1602 = vpop.permute.xlu0 %1601
        %vm1603 = vcmp.eq.s32.totalorder %v1602, %v1599
        %v1604 = vsel %vm1603, 1, 0
        %v1605 = vcvt.s32.f32 %v1604
        %v1606 = vpack.c.bf16 %v1605, %v1605
        %v1607 = vld [vmem:[#allocation17] sm:$0xff]
        %v1608 = vld [vmem:[#allocation17 + $0x8] sm:$0xff]
        %v1609 = vld [vmem:[#allocation17 + $0x10] sm:$0xff]
        %v1610 = vld [vmem:[#allocation17 + $0x18] sm:$0xff]
        %v1611 = vld [vmem:[#allocation17 + $0x20] sm:$0xff]
        %v1612 = vld [vmem:[#allocation17 + $0x28] sm:$0xff]
        %v1613 = vld [vmem:[#allocation17 + $0x30] sm:$0xff]
        %v1614 = vld [vmem:[#allocation17 + $0x38] sm:$0xff]
        %v1623 = vunpack.c.l.b16 %v1607
        %v1624 = vunpack.c.h.b16 %v1607
        %v1625 = vunpack.c.l.b16 %v1608
        %v1626 = vunpack.c.h.b16 %v1608
        %v1627 = vunpack.c.l.b16 %v1609
        %v1628 = vunpack.c.h.b16 %v1609
        %v1629 = vunpack.c.l.b16 %v1610
        %v1630 = vunpack.c.h.b16 %v1610
        %v1631 = vunpack.c.l.b16 %v1611
        %v1632 = vunpack.c.h.b16 %v1611
        %v1633 = vunpack.c.l.b16 %v1612
        %v1634 = vunpack.c.h.b16 %v1612
        %v1635 = vunpack.c.l.b16 %v1613
        %v1636 = vunpack.c.h.b16 %v1613
        %v1637 = vunpack.c.l.b16 %v1614
        %v1638 = vunpack.c.h.b16 %v1614
        %v1639 = vpack.c.b16 %v1625, %v1623
        %v1640 = vpack.c.b16 %v1626, %v1624
        %v1641 = vpack.c.b16 %v1629, %v1627
        %v1642 = vpack.c.b16 %v1630, %v1628
        %v1643 = vpack.c.b16 %v1633, %v1631
        %v1644 = vpack.c.b16 %v1634, %v1632
        %v1645 = vpack.c.b16 %v1637, %v1635
        %v1646 = vpack.c.b16 %v1638, %v1636
        %vm1655 = vcmask 523264
        %v1657 = vsel %vm1655, %v1606, 0
        %1659 = vmatprep.subr.bf16.mxu0 0
        %1660 = vmatpush1.bf16.msra.mxu0 0
        %1661 = vmatprep.subr.bf16.mxu0 0
        %1662 = vmatpush1.bf16.msra.mxu0 0
        %1663 = vmatprep.subr.bf16.mxu0 0
        %1664 = vmatpush1.bf16.msra.mxu0 0
        %1665 = vmatprep.subr.bf16.mxu0 0
        %1666 = vmatpush1.bf16.msra.mxu0 0
        %1667 = vmatprep.subr.bf16.mxu0 %v1646
        %1668 = vmatpush1.bf16.msra.mxu0 %v1645
        %1669 = vmatprep.subr.bf16.mxu0 %v1644
        %1670 = vmatpush1.bf16.msra.mxu0 %v1643
        %1671 = vmatprep.subr.bf16.mxu0 %v1642
        %1672 = vmatpush1.bf16.msra.mxu0 %v1641
        %1673 = vmatprep.subr.bf16.mxu0 %v1640
        %1674 = vmatpush1.bf16.msra.mxu0 %v1639
        %1675 = vmatprep.subr.bf16.mxu0 0
        %1676 = vmatpush2.bf16.msra.mxu0 0
        %1677 = vmatprep.subr.bf16.mxu0 0
        %1678 = vmatpush2.bf16.msra.mxu0 0
        %1679 = vmatprep.subr.bf16.mxu0 0
        %1680 = vmatpush2.bf16.msra.mxu0 0
        %1681 = vmatprep.subr.bf16.mxu0 0
        %1682 = vmatpush2.bf16.msra.mxu0 0
        %1683 = vmatprep.subr.bf16.mxu0 0
        %1684 = vmatpush2.bf16.msra.mxu0 0
        %1685 = vmatprep.subr.bf16.mxu0 0
        %1686 = vmatpush2.bf16.msra.mxu0 0
        %1687 = vmatprep.subr.bf16.mxu0 0
        %1688 = vmatpush2.bf16.msra.mxu0 0
        %1689 = vmatprep.subr.bf16.mxu0 0
        %1690 = vmatpush2.bf16.msra.mxu0 0
        %1691 = vmatprep.mubr.bf16.mxu0 0
        %1692 = vmatmul.mubr.bf16.gmra.mxu0 %v1657
        %v1693 = vpop.f32.mrf.mxu0
        %v1694 = vadd.f32 0.0, %v1693
        %v1695 = vpop.f32.mrf.mxu0
        %v1696 = vadd.f32 0.0, %v1695
        %v1697 = vpop.f32.mrf.mxu0
        %v1698 = vpop.f32.mrf.mxu0
        %1699 = vdwg.mxu0
        %v1700 = vxor.u32 %v1694, 2147483648
        %v1701 = vxor.u32 %v1696, 2147483648
        %v1702 = vmul.f32 %v1700, 1.442695
        %v1703 = vpow.pop %v1702
        %v1704 = vmul.f32 %v1701, 1.442695
        %v1705 = vpow.pop %v1704
        %v1706 = vadd.f32 %v1703, 1.0
        %v1707 = vadd.f32 %v1705, 1.0
        %v1708 = vrcp.pop %v1706
        %v1709 = vmul.f32 1.0, %v1708
        %v1710 = vrcp.pop %v1707
        %v1711 = vmul.f32 1.0, %v1710
        %v1712 = vld [vmem:[%s1570] sm:$0xff]
        %1713 = vset.pattern.permute.xlu0 0
        %1714 = vperm.xlu0 %1713, %v1712
        %v1715 = vpop.permute.xlu0 %1714
        %vm1716 = vcmp.eq.s32.totalorder %v1715, %v1599
        %v1717 = vsel %vm1716, 1, 0
        %v1718 = vcvt.s32.f32 %v1717
        %v1719 = vpack.c.bf16 %v1718, %v1718
        %v1721 = vsel %vm1655, %v1719, 0
        %1723 = vmatprep.subr.bf16.mxu0 0
        %1724 = vmatpush1.bf16.msra.mxu0 0
        %1725 = vmatprep.subr.bf16.mxu0 0
        %1726 = vmatpush1.bf16.msra.mxu0 0
        %1727 = vmatprep.subr.bf16.mxu0 0
        %1728 = vmatpush1.bf16.msra.mxu0 0
        %1729 = vmatprep.subr.bf16.mxu0 0
        %1730 = vmatpush1.bf16.msra.mxu0 0
        %1731 = vmatprep.subr.bf16.mxu0 %v1646
        %1732 = vmatpush1.bf16.msra.mxu0 %v1645
        %1733 = vmatprep.subr.bf16.mxu0 %v1644
        %1734 = vmatpush1.bf16.msra.mxu0 %v1643
        %1735 = vmatprep.subr.bf16.mxu0 %v1642
        %1736 = vmatpush1.bf16.msra.mxu0 %v1641
        %1737 = vmatprep.subr.bf16.mxu0 %v1640
        %1738 = vmatpush1.bf16.msra.mxu0 %v1639
        %1739 = vmatprep.subr.bf16.mxu0 0
        %1740 = vmatpush2.bf16.msra.mxu0 0
        %1741 = vmatprep.subr.bf16.mxu0 0
        %1742 = vmatpush2.bf16.msra.mxu0 0
        %1743 = vmatprep.subr.bf16.mxu0 0
        %1744 = vmatpush2.bf16.msra.mxu0 0
        %1745 = vmatprep.subr.bf16.mxu0 0
        %1746 = vmatpush2.bf16.msra.mxu0 0
        %1747 = vmatprep.subr.bf16.mxu0 0
        %1748 = vmatpush2.bf16.msra.mxu0 0
        %1749 = vmatprep.subr.bf16.mxu0 0
        %1750 = vmatpush2.bf16.msra.mxu0 0
        %1751 = vmatprep.subr.bf16.mxu0 0
        %1752 = vmatpush2.bf16.msra.mxu0 0
        %1753 = vmatprep.subr.bf16.mxu0 0
        %1754 = vmatpush2.bf16.msra.mxu0 0
        %1755 = vmatprep.mubr.bf16.mxu0 0
        %1756 = vmatmul.mubr.bf16.gmra.mxu0 %v1721
        %v1757 = vpop.f32.mrf.mxu0
        %v1758 = vadd.f32 0.0, %v1757
        %v1759 = vpop.f32.mrf.mxu0
        %v1760 = vadd.f32 0.0, %v1759
        %v1761 = vpop.f32.mrf.mxu0
        %v1762 = vpop.f32.mrf.mxu0
        %1763 = vdwg.mxu0
        %v1764 = vld [vmem:[%s1574] sm:$0xff]
        %1765 = vset.pattern.permute.xlu0 0
        %1766 = vperm.xlu0 %1765, %v1764
        %v1767 = vpop.permute.xlu0 %1766
        %vm1768 = vcmp.eq.s32.totalorder %v1767, %v1599
        %v1769 = vsel %vm1768, 1, 0
        %v1770 = vcvt.s32.f32 %v1769
        %v1771 = vpack.c.bf16 %v1770, %v1770
        %v1772 = vld [vmem:[#allocation18] sm:$0xff]
        %v1773 = vld [vmem:[#allocation18 + $0x8] sm:$0xff]
        %v1774 = vld [vmem:[#allocation18 + $0x10] sm:$0xff]
        %v1775 = vld [vmem:[#allocation18 + $0x18] sm:$0xff]
        %v1776 = vld [vmem:[#allocation18 + $0x20] sm:$0xff]
        %v1777 = vld [vmem:[#allocation18 + $0x28] sm:$0xff]
        %v1778 = vld [vmem:[#allocation18 + $0x30] sm:$0xff]
        %v1779 = vld [vmem:[#allocation18 + $0x38] sm:$0xff]
        %v1788 = vunpack.c.l.b16 %v1772
        %v1789 = vunpack.c.h.b16 %v1772
        %v1790 = vunpack.c.l.b16 %v1773
        %v1791 = vunpack.c.h.b16 %v1773
        %v1792 = vunpack.c.l.b16 %v1774
        %v1793 = vunpack.c.h.b16 %v1774
        %v1794 = vunpack.c.l.b16 %v1775
        %v1795 = vunpack.c.h.b16 %v1775
        %v1796 = vunpack.c.l.b16 %v1776
        %v1797 = vunpack.c.h.b16 %v1776
        %v1798 = vunpack.c.l.b16 %v1777
        %v1799 = vunpack.c.h.b16 %v1777
        %v1800 = vunpack.c.l.b16 %v1778
        %v1801 = vunpack.c.h.b16 %v1778
        %v1802 = vunpack.c.l.b16 %v1779
        %v1803 = vunpack.c.h.b16 %v1779
        %v1804 = vpack.c.b16 %v1790, %v1788
        %v1805 = vpack.c.b16 %v1791, %v1789
        %v1806 = vpack.c.b16 %v1794, %v1792
        %v1807 = vpack.c.b16 %v1795, %v1793
        %v1808 = vpack.c.b16 %v1798, %v1796
        %v1809 = vpack.c.b16 %v1799, %v1797
        %v1810 = vpack.c.b16 %v1802, %v1800
        %v1811 = vpack.c.b16 %v1803, %v1801
        %v1821 = vsel %vm1655, %v1771, 0
        %1823 = vmatprep.subr.bf16.mxu0 0
        %1824 = vmatpush1.bf16.msra.mxu0 0
        %1825 = vmatprep.subr.bf16.mxu0 0
        %1826 = vmatpush1.bf16.msra.mxu0 0
        %1827 = vmatprep.subr.bf16.mxu0 0
        %1828 = vmatpush1.bf16.msra.mxu0 0
        %1829 = vmatprep.subr.bf16.mxu0 0
        %1830 = vmatpush1.bf16.msra.mxu0 0
        %1831 = vmatprep.subr.bf16.mxu0 %v1811
        %1832 = vmatpush1.bf16.msra.mxu0 %v1810
        %1833 = vmatprep.subr.bf16.mxu0 %v1809
        %1834 = vmatpush1.bf16.msra.mxu0 %v1808
        %1835 = vmatprep.subr.bf16.mxu0 %v1807
        %1836 = vmatpush1.bf16.msra.mxu0 %v1806
        %1837 = vmatprep.subr.bf16.mxu0 %v1805
        %1838 = vmatpush1.bf16.msra.mxu0 %v1804
        %1839 = vmatprep.subr.bf16.mxu0 0
        %1840 = vmatpush2.bf16.msra.mxu0 0
        %1841 = vmatprep.subr.bf16.mxu0 0
        %1842 = vmatpush2.bf16.msra.mxu0 0
        %1843 = vmatprep.subr.bf16.mxu0 0
        %1844 = vmatpush2.bf16.msra.mxu0 0
        %1845 = vmatprep.subr.bf16.mxu0 0
        %1846 = vmatpush2.bf16.msra.mxu0 0
        %1847 = vmatprep.subr.bf16.mxu0 0
        %1848 = vmatpush2.bf16.msra.mxu0 0
        %1849 = vmatprep.subr.bf16.mxu0 0
        %1850 = vmatpush2.bf16.msra.mxu0 0
        %1851 = vmatprep.subr.bf16.mxu0 0
        %1852 = vmatpush2.bf16.msra.mxu0 0
        %1853 = vmatprep.subr.bf16.mxu0 0
        %1854 = vmatpush2.bf16.msra.mxu0 0
        %1855 = vmatprep.mubr.bf16.mxu0 0
        %1856 = vmatmul.mubr.bf16.gmra.mxu0 %v1821
        %v1857 = vpop.f32.mrf.mxu0
        %v1858 = vadd.f32 0.0, %v1857
        %v1859 = vpop.f32.mrf.mxu0
        %v1860 = vadd.f32 0.0, %v1859
        %v1861 = vpop.f32.mrf.mxu0
        %v1862 = vpop.f32.mrf.mxu0
        %1863 = vdwg.mxu0
        %1864 = vmatprep.subr.bf16.mxu0 0
        %1865 = vmatpush1.bf16.msra.mxu0 0
        %1866 = vmatprep.subr.bf16.mxu0 0
        %1867 = vmatpush1.bf16.msra.mxu0 0
        %1868 = vmatprep.subr.bf16.mxu0 0
        %1869 = vmatpush1.bf16.msra.mxu0 0
        %1870 = vmatprep.subr.bf16.mxu0 0
        %1871 = vmatpush1.bf16.msra.mxu0 0
        %1872 = vmatprep.subr.bf16.mxu0 %v1811
        %1873 = vmatpush1.bf16.msra.mxu0 %v1810
        %1874 = vmatprep.subr.bf16.mxu0 %v1809
        %1875 = vmatpush1.bf16.msra.mxu0 %v1808
        %1876 = vmatprep.subr.bf16.mxu0 %v1807
        %1877 = vmatpush1.bf16.msra.mxu0 %v1806
        %1878 = vmatprep.subr.bf16.mxu0 %v1805
        %1879 = vmatpush1.bf16.msra.mxu0 %v1804
        %1880 = vmatprep.subr.bf16.mxu0 0
        %1881 = vmatpush2.bf16.msra.mxu0 0
        %1882 = vmatprep.subr.bf16.mxu0 0
        %1883 = vmatpush2.bf16.msra.mxu0 0
        %1884 = vmatprep.subr.bf16.mxu0 0
        %1885 = vmatpush2.bf16.msra.mxu0 0
        %1886 = vmatprep.subr.bf16.mxu0 0
        %1887 = vmatpush2.bf16.msra.mxu0 0
        %1888 = vmatprep.subr.bf16.mxu0 0
        %1889 = vmatpush2.bf16.msra.mxu0 0
        %1890 = vmatprep.subr.bf16.mxu0 0
        %1891 = vmatpush2.bf16.msra.mxu0 0
        %1892 = vmatprep.subr.bf16.mxu0 0
        %1893 = vmatpush2.bf16.msra.mxu0 0
        %1894 = vmatprep.subr.bf16.mxu0 0
        %1895 = vmatpush2.bf16.msra.mxu0 0
        %1896 = vmatprep.mubr.bf16.mxu0 0
        %1897 = vmatmul.mubr.bf16.gmra.mxu0 %v1657
        %v1898 = vpop.f32.mrf.mxu0
        %v1899 = vadd.f32 0.0, %v1898
        %v1900 = vpop.f32.mrf.mxu0
        %v1901 = vadd.f32 0.0, %v1900
        %v1902 = vpop.f32.mrf.mxu0
        %v1903 = vpop.f32.mrf.mxu0
        %1904 = vdwg.mxu0
        %v1905 = vld [vmem:[#allocation20] sm:$0xff]
        %v1906 = vld [vmem:[#allocation20 + $0x8] sm:$0xff]
        %v1907 = vld [vmem:[#allocation20 + $0x10] sm:$0xff]
        %v1908 = vld [vmem:[#allocation20 + $0x18] sm:$0xff]
        %v1909 = vld [vmem:[#allocation20 + $0x20] sm:$0xff]
        %v1910 = vld [vmem:[#allocation20 + $0x28] sm:$0xff]
        %v1911 = vld [vmem:[#allocation20 + $0x30] sm:$0xff]
        %v1912 = vld [vmem:[#allocation20 + $0x38] sm:$0xff]
        %v1913 = vld [vmem:[#allocation20 + $0x40] sm:$0xff]
        %v1914 = vld [vmem:[#allocation20 + $0x48] sm:$0xff]
        %v1915 = vld [vmem:[#allocation20 + $0x50] sm:$0xff]
        %v1916 = vld [vmem:[#allocation20 + $0x58] sm:$0xff]
        %v1917 = vld [vmem:[#allocation20 + $0x60] sm:$0xff]
        %v1918 = vld [vmem:[#allocation20 + $0x68] sm:$0xff]
        %v1919 = vld [vmem:[#allocation20 + $0x70] sm:$0xff]
        %v1920 = vld [vmem:[#allocation20 + $0x78] sm:$0xff]
        %v1921 = vld [vmem:[#allocation20 + $0x80] sm:$0xff]
        %v1922 = vld [vmem:[#allocation20 + $0x88] sm:$0xff]
        %v1923 = vld [vmem:[#allocation20 + $0x90] sm:$0xff]
        %v1924 = vld [vmem:[#allocation20 + $0x98] sm:$0xff]
        %v1925 = vld [vmem:[#allocation20 + $0xa0] sm:$0xff]
        %v1926 = vld [vmem:[#allocation20 + $0xa8] sm:$0xff]
        %v1927 = vld [vmem:[#allocation20 + $0xb0] sm:$0xff]
        %v1928 = vld [vmem:[#allocation20 + $0xb8] sm:$0xff]
        %v1929 = vld [vmem:[#allocation20 + $0xc0] sm:$0xff]
        %v1930 = vld [vmem:[#allocation20 + $0xc8] sm:$0xff]
        %v1931 = vld [vmem:[#allocation20 + $0xd0] sm:$0xff]
        %v1932 = vld [vmem:[#allocation20 + $0xd8] sm:$0xff]
        %v1933 = vld [vmem:[#allocation20 + $0xe0] sm:$0xff]
        %v1934 = vld [vmem:[#allocation20 + $0xe8] sm:$0xff]
        %v1935 = vld [vmem:[#allocation20 + $0xf0] sm:$0xff]
        %v1936 = vld [vmem:[#allocation20 + $0xf8] sm:$0xff]
        %v1937 = vld [vmem:[#allocation20 + $0x100] sm:$0xff]
        %v1938 = vld [vmem:[#allocation20 + $0x108] sm:$0xff]
        %v1939 = vld [vmem:[#allocation20 + $0x110] sm:$0xff]
        %v1940 = vld [vmem:[#allocation20 + $0x118] sm:$0xff]
        %v1941 = vld [vmem:[#allocation20 + $0x120] sm:$0xff]
        %v1942 = vld [vmem:[#allocation20 + $0x128] sm:$0xff]
        %v1943 = vld [vmem:[#allocation20 + $0x130] sm:$0xff]
        %v1944 = vld [vmem:[#allocation20 + $0x138] sm:$0xff]
        %v1945 = vld [vmem:[#allocation20 + $0x140] sm:$0xff]
        %v1946 = vld [vmem:[#allocation20 + $0x148] sm:$0xff]
        %v1947 = vld [vmem:[#allocation20 + $0x150] sm:$0xff]
        %v1948 = vld [vmem:[#allocation20 + $0x158] sm:$0xff]
        %v1949 = vld [vmem:[#allocation20 + $0x160] sm:$0xff]
        %v1950 = vld [vmem:[#allocation20 + $0x168] sm:$0xff]
        %v1951 = vld [vmem:[#allocation20 + $0x170] sm:$0xff]
        %v1952 = vld [vmem:[#allocation20 + $0x178] sm:$0xff]
        %v1953 = vld [vmem:[#allocation20 + $0x180] sm:$0xff]
        %v1954 = vld [vmem:[#allocation20 + $0x188] sm:$0xff]
        %v1955 = vld [vmem:[#allocation20 + $0x190] sm:$0xff]
        %v1956 = vld [vmem:[#allocation20 + $0x198] sm:$0xff]
        %v1957 = vld [vmem:[#allocation20 + $0x1a0] sm:$0xff]
        %v1958 = vld [vmem:[#allocation20 + $0x1a8] sm:$0xff]
        %v1959 = vld [vmem:[#allocation20 + $0x1b0] sm:$0xff]
        %v1960 = vld [vmem:[#allocation20 + $0x1b8] sm:$0xff]
        %v1961 = vld [vmem:[#allocation20 + $0x1c0] sm:$0xff]
        %v1962 = vld [vmem:[#allocation20 + $0x1c8] sm:$0xff]
        %v1963 = vld [vmem:[#allocation20 + $0x1d0] sm:$0xff]
        %v1964 = vld [vmem:[#allocation20 + $0x1d8] sm:$0xff]
        %v1965 = vld [vmem:[#allocation20 + $0x1e0] sm:$0xff]
        %v1966 = vld [vmem:[#allocation20 + $0x1e8] sm:$0xff]
        %v1967 = vld [vmem:[#allocation20 + $0x1f0] sm:$0xff]
        %v1968 = vld [vmem:[#allocation20 + $0x1f8] sm:$0xff]
        %v1969 = vld [vmem:[#allocation20 + $0x200] sm:$0xff]
        %v1970 = vld [vmem:[#allocation20 + $0x208] sm:$0xff]
        %v1971 = vld [vmem:[#allocation20 + $0x210] sm:$0xff]
        %v1972 = vld [vmem:[#allocation20 + $0x218] sm:$0xff]
        %v1973 = vld [vmem:[#allocation20 + $0x220] sm:$0xff]
        %v1974 = vld [vmem:[#allocation20 + $0x228] sm:$0xff]
        %v1975 = vld [vmem:[#allocation20 + $0x230] sm:$0xff]
        %v1976 = vld [vmem:[#allocation20 + $0x238] sm:$0xff]
        %v1977 = vld [vmem:[#allocation20 + $0x240] sm:$0xff]
        %v1978 = vld [vmem:[#allocation20 + $0x248] sm:$0xff]
        %v1979 = vld [vmem:[#allocation20 + $0x250] sm:$0xff]
        %v1980 = vld [vmem:[#allocation20 + $0x258] sm:$0xff]
        %v1981 = vld [vmem:[#allocation20 + $0x260] sm:$0xff]
        %v1982 = vld [vmem:[#allocation20 + $0x268] sm:$0xff]
        %v1983 = vld [vmem:[#allocation20 + $0x270] sm:$0xff]
        %v1984 = vld [vmem:[#allocation20 + $0x278] sm:$0xff]
        %v1985 = vld [vmem:[#allocation20 + $0x280] sm:$0xff]
        %v1986 = vld [vmem:[#allocation20 + $0x288] sm:$0xff]
        %v1987 = vld [vmem:[#allocation20 + $0x290] sm:$0xff]
        %v1988 = vld [vmem:[#allocation20 + $0x298] sm:$0xff]
        %v1989 = vld [vmem:[#allocation20 + $0x2a0] sm:$0xff]
        %v1990 = vld [vmem:[#allocation20 + $0x2a8] sm:$0xff]
        %v1991 = vld [vmem:[#allocation20 + $0x2b0] sm:$0xff]
        %v1992 = vld [vmem:[#allocation20 + $0x2b8] sm:$0xff]
        %v1993 = vld [vmem:[#allocation20 + $0x2c0] sm:$0xff]
        %v1994 = vld [vmem:[#allocation20 + $0x2c8] sm:$0xff]
        %v1995 = vld [vmem:[#allocation20 + $0x2d0] sm:$0xff]
        %v1996 = vld [vmem:[#allocation20 + $0x2d8] sm:$0xff]
        %v1997 = vld [vmem:[#allocation20 + $0x2e0] sm:$0xff]
        %v1998 = vld [vmem:[#allocation20 + $0x2e8] sm:$0xff]
        %v1999 = vld [vmem:[#allocation20 + $0x2f0] sm:$0xff]
        %v2000 = vld [vmem:[#allocation20 + $0x2f8] sm:$0xff]
        %v2001 = vld [vmem:[#allocation23] sm:$0xff]
        %v2002 = vld [vmem:[#allocation23 + $0x8] sm:$0xff]
        %v2003 = vld [vmem:[#allocation23 + $0x10] sm:$0xff]
        %v2004 = vld [vmem:[#allocation23 + $0x18] sm:$0xff]
        %v2005 = vld [vmem:[#allocation23 + $0x20] sm:$0xff]
        %v2006 = vld [vmem:[#allocation23 + $0x28] sm:$0xff]
        %v2007 = vld [vmem:[#allocation23 + $0x30] sm:$0xff]
        %v2008 = vld [vmem:[#allocation23 + $0x38] sm:$0xff]
        %v2009 = vld [vmem:[#allocation23 + $0x40] sm:$0xff]
        %v2010 = vld [vmem:[#allocation23 + $0x48] sm:$0xff]
        %v2011 = vld [vmem:[#allocation23 + $0x50] sm:$0xff]
        %v2012 = vld [vmem:[#allocation23 + $0x58] sm:$0xff]
        %v2013 = vld [vmem:[#allocation23 + $0x60] sm:$0xff]
        %v2014 = vld [vmem:[#allocation23 + $0x68] sm:$0xff]
        %v2015 = vld [vmem:[#allocation23 + $0x70] sm:$0xff]
        %v2016 = vld [vmem:[#allocation23 + $0x78] sm:$0xff]
        %v2017 = vld [vmem:[#allocation23 + $0x80] sm:$0xff]
        %v2018 = vld [vmem:[#allocation23 + $0x88] sm:$0xff]
        %v2019 = vld [vmem:[#allocation23 + $0x90] sm:$0xff]
        %v2020 = vld [vmem:[#allocation23 + $0x98] sm:$0xff]
        %v2021 = vld [vmem:[#allocation23 + $0xa0] sm:$0xff]
        %v2022 = vld [vmem:[#allocation23 + $0xa8] sm:$0xff]
        %v2023 = vld [vmem:[#allocation23 + $0xb0] sm:$0xff]
        %v2024 = vld [vmem:[#allocation23 + $0xb8] sm:$0xff]
        %v2025 = vld [vmem:[#allocation23 + $0xc0] sm:$0xff]
        %v2026 = vld [vmem:[#allocation23 + $0xc8] sm:$0xff]
        %v2027 = vld [vmem:[#allocation23 + $0xd0] sm:$0xff]
        %v2028 = vld [vmem:[#allocation23 + $0xd8] sm:$0xff]
        %v2029 = vld [vmem:[#allocation23 + $0xe0] sm:$0xff]
        %v2030 = vld [vmem:[#allocation23 + $0xe8] sm:$0xff]
        %v2031 = vld [vmem:[#allocation23 + $0xf0] sm:$0xff]
        %v2032 = vld [vmem:[#allocation23 + $0xf8] sm:$0xff]
        %v2033 = vld [vmem:[#allocation23 + $0x100] sm:$0xff]
        %v2034 = vld [vmem:[#allocation23 + $0x108] sm:$0xff]
        %v2035 = vld [vmem:[#allocation23 + $0x110] sm:$0xff]
        %v2036 = vld [vmem:[#allocation23 + $0x118] sm:$0xff]
        %v2037 = vld [vmem:[#allocation23 + $0x120] sm:$0xff]
        %v2038 = vld [vmem:[#allocation23 + $0x128] sm:$0xff]
        %v2039 = vld [vmem:[#allocation23 + $0x130] sm:$0xff]
        %v2040 = vld [vmem:[#allocation23 + $0x138] sm:$0xff]
        %v2041 = vld [vmem:[#allocation23 + $0x140] sm:$0xff]
        %v2042 = vld [vmem:[#allocation23 + $0x148] sm:$0xff]
        %v2043 = vld [vmem:[#allocation23 + $0x150] sm:$0xff]
        %v2044 = vld [vmem:[#allocation23 + $0x158] sm:$0xff]
        %v2045 = vld [vmem:[#allocation23 + $0x160] sm:$0xff]
        %v2046 = vld [vmem:[#allocation23 + $0x168] sm:$0xff]
        %v2047 = vld [vmem:[#allocation23 + $0x170] sm:$0xff]
        %v2048 = vld [vmem:[#allocation23 + $0x178] sm:$0xff]
        %v2049 = vld [vmem:[#allocation23 + $0x180] sm:$0xff]
        %v2050 = vld [vmem:[#allocation23 + $0x188] sm:$0xff]
        %v2051 = vld [vmem:[#allocation23 + $0x190] sm:$0xff]
        %v2052 = vld [vmem:[#allocation23 + $0x198] sm:$0xff]
        %v2053 = vld [vmem:[#allocation23 + $0x1a0] sm:$0xff]
        %v2054 = vld [vmem:[#allocation23 + $0x1a8] sm:$0xff]
        %v2055 = vld [vmem:[#allocation23 + $0x1b0] sm:$0xff]
        %v2056 = vld [vmem:[#allocation23 + $0x1b8] sm:$0xff]
        %v2057 = vld [vmem:[#allocation23 + $0x1c0] sm:$0xff]
        %v2058 = vld [vmem:[#allocation23 + $0x1c8] sm:$0xff]
        %v2059 = vld [vmem:[#allocation23 + $0x1d0] sm:$0xff]
        %v2060 = vld [vmem:[#allocation23 + $0x1d8] sm:$0xff]
        %v2061 = vld [vmem:[#allocation23 + $0x1e0] sm:$0xff]
        %v2062 = vld [vmem:[#allocation23 + $0x1e8] sm:$0xff]
        %v2063 = vld [vmem:[#allocation23 + $0x1f0] sm:$0xff]
        %v2064 = vld [vmem:[#allocation23 + $0x1f8] sm:$0xff]
        %v2065 = vld [vmem:[#allocation23 + $0x200] sm:$0xff]
        %v2066 = vld [vmem:[#allocation23 + $0x208] sm:$0xff]
        %v2067 = vld [vmem:[#allocation23 + $0x210] sm:$0xff]
        %v2068 = vld [vmem:[#allocation23 + $0x218] sm:$0xff]
        %v2069 = vld [vmem:[#allocation23 + $0x220] sm:$0xff]
        %v2070 = vld [vmem:[#allocation23 + $0x228] sm:$0xff]
        %v2071 = vld [vmem:[#allocation23 + $0x230] sm:$0xff]
        %v2072 = vld [vmem:[#allocation23 + $0x238] sm:$0xff]
        %v2073 = vld [vmem:[#allocation23 + $0x240] sm:$0xff]
        %v2074 = vld [vmem:[#allocation23 + $0x248] sm:$0xff]
        %v2075 = vld [vmem:[#allocation23 + $0x250] sm:$0xff]
        %v2076 = vld [vmem:[#allocation23 + $0x258] sm:$0xff]
        %v2077 = vld [vmem:[#allocation23 + $0x260] sm:$0xff]
        %v2078 = vld [vmem:[#allocation23 + $0x268] sm:$0xff]
        %v2079 = vld [vmem:[#allocation23 + $0x270] sm:$0xff]
        %v2080 = vld [vmem:[#allocation23 + $0x278] sm:$0xff]
        %v2081 = vld [vmem:[#allocation23 + $0x280] sm:$0xff]
        %v2082 = vld [vmem:[#allocation23 + $0x288] sm:$0xff]
        %v2083 = vld [vmem:[#allocation23 + $0x290] sm:$0xff]
        %v2084 = vld [vmem:[#allocation23 + $0x298] sm:$0xff]
        %v2085 = vld [vmem:[#allocation23 + $0x2a0] sm:$0xff]
        %v2086 = vld [vmem:[#allocation23 + $0x2a8] sm:$0xff]
        %v2087 = vld [vmem:[#allocation23 + $0x2b0] sm:$0xff]
        %v2088 = vld [vmem:[#allocation23 + $0x2b8] sm:$0xff]
        %v2089 = vld [vmem:[#allocation23 + $0x2c0] sm:$0xff]
        %v2090 = vld [vmem:[#allocation23 + $0x2c8] sm:$0xff]
        %v2091 = vld [vmem:[#allocation23 + $0x2d0] sm:$0xff]
        %v2092 = vld [vmem:[#allocation23 + $0x2d8] sm:$0xff]
        %v2093 = vld [vmem:[#allocation23 + $0x2e0] sm:$0xff]
        %v2094 = vld [vmem:[#allocation23 + $0x2e8] sm:$0xff]
        %v2095 = vld [vmem:[#allocation23 + $0x2f0] sm:$0xff]
        %v2096 = vld [vmem:[#allocation23 + $0x2f8] sm:$0xff]
        %v2097 = vld [vmem:[#allocation21] sm:$0x3]
        %v2098 = vld [vmem:[#allocation24] sm:$0x3]
        %v2099 = vld [vmem:[#allocation26] sm:$0x3f]
        %v2100 = vld [vmem:[#allocation2] sm:$0x1]
        %v2101 = vld [vmem:[%s1579] sm:$0xff]
        %v2102 = vld [vmem:[%s1579 + $0x8] sm:$0xff]
        %v2103 = vld [vmem:[%s1579 + $0x10] sm:$0xff]
        %v2104 = vld [vmem:[%s1579 + $0x18] sm:$0xff]
        %v2105 = vld [vmem:[%s1579 + $0x20] sm:$0xff]
        %v2106 = vld [vmem:[%s1579 + $0x28] sm:$0xff]
        %v2107 = vld [vmem:[%s1339] sm:$0xff]
        %v2108 = vld [vmem:[%s1339 + $0x8] sm:$0xff]
        %v2109 = vld [vmem:[%s1339 + $0x10] sm:$0xff]
        %v2110 = vld [vmem:[%s1339 + $0x18] sm:$0xff]
        %v2111 = vld [vmem:[%s1339 + $0x20] sm:$0xff]
        %v2112 = vld [vmem:[%s1339 + $0x28] sm:$0xff]
        %v2113 = vpack.c.bf16 %v2101, %v2101
        %v2114 = vpack.c.bf16 %v2102, %v2102
        %v2115 = vpack.c.bf16 %v2103, %v2103
        %v2116 = vpack.c.bf16 %v2104, %v2104
        %v2117 = vpack.c.bf16 %v2105, %v2105
        %v2118 = vpack.c.bf16 %v2106, %v2106
        %v2120 = vlaneseq
        %v2121 = vshrl.u32 %v2120, 7
        %v2122 = vsub.s32 0, %v2121
        %v2123 = vrot.slane %v2097, %v2122
        %v2124 = vlaneseq
        %v2125 = vshrl.u32 %v2124, 7
        %v2126 = vsub.s32 1, %v2125
        %v2127 = vrot.slane %v2097, %v2126
        %v2226 = vunpack.c.l.b16 %v1905
        %v2227 = vunpack.c.h.b16 %v1905
        %v2228 = vunpack.c.l.b16 %v1906
        %v2229 = vunpack.c.h.b16 %v1906
        %v2230 = vunpack.c.l.b16 %v1907
        %v2231 = vunpack.c.h.b16 %v1907
        %v2232 = vunpack.c.l.b16 %v1908
        %v2233 = vunpack.c.h.b16 %v1908
        %v2234 = vunpack.c.l.b16 %v1909
        %v2235 = vunpack.c.h.b16 %v1909
        %v2236 = vunpack.c.l.b16 %v1910
        %v2237 = vunpack.c.h.b16 %v1910
        %v2238 = vunpack.c.l.b16 %v1911
        %v2239 = vunpack.c.h.b16 %v1911
        %v2240 = vunpack.c.l.b16 %v1912
        %v2241 = vunpack.c.h.b16 %v1912
        %v2242 = vunpack.c.l.b16 %v1913
        %v2243 = vunpack.c.h.b16 %v1913
        %v2244 = vunpack.c.l.b16 %v1914
        %v2245 = vunpack.c.h.b16 %v1914
        %v2246 = vunpack.c.l.b16 %v1915
        %v2247 = vunpack.c.h.b16 %v1915
        %v2248 = vunpack.c.l.b16 %v1916
        %v2249 = vunpack.c.h.b16 %v1916
        %v2250 = vunpack.c.l.b16 %v1917
        %v2251 = vunpack.c.h.b16 %v1917
        %v2252 = vunpack.c.l.b16 %v1918
        %v2253 = vunpack.c.h.b16 %v1918
        %v2254 = vunpack.c.l.b16 %v1919
        %v2255 = vunpack.c.h.b16 %v1919
        %v2256 = vunpack.c.l.b16 %v1920
        %v2257 = vunpack.c.h.b16 %v1920
        %v2258 = vunpack.c.l.b16 %v1921
        %v2259 = vunpack.c.h.b16 %v1921
        %v2260 = vunpack.c.l.b16 %v1922
        %v2261 = vunpack.c.h.b16 %v1922
        %v2262 = vunpack.c.l.b16 %v1923
        %v2263 = vunpack.c.h.b16 %v1923
        %v2264 = vunpack.c.l.b16 %v1924
        %v2265 = vunpack.c.h.b16 %v1924
        %v2266 = vunpack.c.l.b16 %v1925
        %v2267 = vunpack.c.h.b16 %v1925
        %v2268 = vunpack.c.l.b16 %v1926
        %v2269 = vunpack.c.h.b16 %v1926
        %v2270 = vunpack.c.l.b16 %v1927
        %v2271 = vunpack.c.h.b16 %v1927
        %v2272 = vunpack.c.l.b16 %v1928
        %v2273 = vunpack.c.h.b16 %v1928
        %v2274 = vunpack.c.l.b16 %v1929
        %v2275 = vunpack.c.h.b16 %v1929
        %v2276 = vunpack.c.l.b16 %v1930
        %v2277 = vunpack.c.h.b16 %v1930
        %v2278 = vunpack.c.l.b16 %v1931
        %v2279 = vunpack.c.h.b16 %v1931
        %v2280 = vunpack.c.l.b16 %v1932
        %v2281 = vunpack.c.h.b16 %v1932
        %v2282 = vunpack.c.l.b16 %v1933
        %v2283 = vunpack.c.h.b16 %v1933
        %v2284 = vunpack.c.l.b16 %v1934
        %v2285 = vunpack.c.h.b16 %v1934
        %v2286 = vunpack.c.l.b16 %v1935
        %v2287 = vunpack.c.h.b16 %v1935
        %v2288 = vunpack.c.l.b16 %v1936
        %v2289 = vunpack.c.h.b16 %v1936
        %v2290 = vunpack.c.l.b16 %v1937
        %v2291 = vunpack.c.h.b16 %v1937
        %v2292 = vunpack.c.l.b16 %v1938
        %v2293 = vunpack.c.h.b16 %v1938
        %v2294 = vunpack.c.l.b16 %v1939
        %v2295 = vunpack.c.h.b16 %v1939
        %v2296 = vunpack.c.l.b16 %v1940
        %v2297 = vunpack.c.h.b16 %v1940
        %v2298 = vunpack.c.l.b16 %v1941
        %v2299 = vunpack.c.h.b16 %v1941
        %v2300 = vunpack.c.l.b16 %v1942
        %v2301 = vunpack.c.h.b16 %v1942
        %v2302 = vunpack.c.l.b16 %v1943
        %v2303 = vunpack.c.h.b16 %v1943
        %v2304 = vunpack.c.l.b16 %v1944
        %v2305 = vunpack.c.h.b16 %v1944
        %v2306 = vunpack.c.l.b16 %v1945
        %v2307 = vunpack.c.h.b16 %v1945
        %v2308 = vunpack.c.l.b16 %v1946
        %v2309 = vunpack.c.h.b16 %v1946
        %v2310 = vunpack.c.l.b16 %v1947
        %v2311 = vunpack.c.h.b16 %v1947
        %v2312 = vunpack.c.l.b16 %v1948
        %v2313 = vunpack.c.h.b16 %v1948
        %v2314 = vunpack.c.l.b16 %v1949
        %v2315 = vunpack.c.h.b16 %v1949
        %v2316 = vunpack.c.l.b16 %v1950
        %v2317 = vunpack.c.h.b16 %v1950
        %v2318 = vunpack.c.l.b16 %v1951
        %v2319 = vunpack.c.h.b16 %v1951
        %v2320 = vunpack.c.l.b16 %v1952
        %v2321 = vunpack.c.h.b16 %v1952
        %v2322 = vunpack.c.l.b16 %v1953
        %v2323 = vunpack.c.h.b16 %v1953
        %v2324 = vunpack.c.l.b16 %v1954
        %v2325 = vunpack.c.h.b16 %v1954
        %v2326 = vunpack.c.l.b16 %v1955
        %v2327 = vunpack.c.h.b16 %v1955
        %v2328 = vunpack.c.l.b16 %v1956
        %v2329 = vunpack.c.h.b16 %v1956
        %v2330 = vunpack.c.l.b16 %v1957
        %v2331 = vunpack.c.h.b16 %v1957
        %v2332 = vunpack.c.l.b16 %v1958
        %v2333 = vunpack.c.h.b16 %v1958
        %v2334 = vunpack.c.l.b16 %v1959
        %v2335 = vunpack.c.h.b16 %v1959
        %v2336 = vunpack.c.l.b16 %v1960
        %v2337 = vunpack.c.h.b16 %v1960
        %v2338 = vunpack.c.l.b16 %v1961
        %v2339 = vunpack.c.h.b16 %v1961
        %v2340 = vunpack.c.l.b16 %v1962
        %v2341 = vunpack.c.h.b16 %v1962
        %v2342 = vunpack.c.l.b16 %v1963
        %v2343 = vunpack.c.h.b16 %v1963
        %v2344 = vunpack.c.l.b16 %v1964
        %v2345 = vunpack.c.h.b16 %v1964
        %v2346 = vunpack.c.l.b16 %v1965
        %v2347 = vunpack.c.h.b16 %v1965
        %v2348 = vunpack.c.l.b16 %v1966
        %v2349 = vunpack.c.h.b16 %v1966
        %v2350 = vunpack.c.l.b16 %v1967
        %v2351 = vunpack.c.h.b16 %v1967
        %v2352 = vunpack.c.l.b16 %v1968
        %v2353 = vunpack.c.h.b16 %v1968
        %v2354 = vunpack.c.l.b16 %v1969
        %v2355 = vunpack.c.h.b16 %v1969
        %v2356 = vunpack.c.l.b16 %v1970
        %v2357 = vunpack.c.h.b16 %v1970
        %v2358 = vunpack.c.l.b16 %v1971
        %v2359 = vunpack.c.h.b16 %v1971
        %v2360 = vunpack.c.l.b16 %v1972
        %v2361 = vunpack.c.h.b16 %v1972
        %v2362 = vunpack.c.l.b16 %v1973
        %v2363 = vunpack.c.h.b16 %v1973
        %v2364 = vunpack.c.l.b16 %v1974
        %v2365 = vunpack.c.h.b16 %v1974
        %v2366 = vunpack.c.l.b16 %v1975
        %v2367 = vunpack.c.h.b16 %v1975
        %v2368 = vunpack.c.l.b16 %v1976
        %v2369 = vunpack.c.h.b16 %v1976
        %v2370 = vunpack.c.l.b16 %v1977
        %v2371 = vunpack.c.h.b16 %v1977
        %v2372 = vunpack.c.l.b16 %v1978
        %v2373 = vunpack.c.h.b16 %v1978
        %v2374 = vunpack.c.l.b16 %v1979
        %v2375 = vunpack.c.h.b16 %v1979
        %v2376 = vunpack.c.l.b16 %v1980
        %v2377 = vunpack.c.h.b16 %v1980
        %v2378 = vunpack.c.l.b16 %v1981
        %v2379 = vunpack.c.h.b16 %v1981
        %v2380 = vunpack.c.l.b16 %v1982
        %v2381 = vunpack.c.h.b16 %v1982
        %v2382 = vunpack.c.l.b16 %v1983
        %v2383 = vunpack.c.h.b16 %v1983
        %v2384 = vunpack.c.l.b16 %v1984
        %v2385 = vunpack.c.h.b16 %v1984
        %v2386 = vunpack.c.l.b16 %v1985
        %v2387 = vunpack.c.h.b16 %v1985
        %v2388 = vunpack.c.l.b16 %v1986
        %v2389 = vunpack.c.h.b16 %v1986
        %v2390 = vunpack.c.l.b16 %v1987
        %v2391 = vunpack.c.h.b16 %v1987
        %v2392 = vunpack.c.l.b16 %v1988
        %v2393 = vunpack.c.h.b16 %v1988
        %v2394 = vunpack.c.l.b16 %v1989
        %v2395 = vunpack.c.h.b16 %v1989
        %v2396 = vunpack.c.l.b16 %v1990
        %v2397 = vunpack.c.h.b16 %v1990
        %v2398 = vunpack.c.l.b16 %v1991
        %v2399 = vunpack.c.h.b16 %v1991
        %v2400 = vunpack.c.l.b16 %v1992
        %v2401 = vunpack.c.h.b16 %v1992
        %v2402 = vunpack.c.l.b16 %v1993
        %v2403 = vunpack.c.h.b16 %v1993
        %v2404 = vunpack.c.l.b16 %v1994
        %v2405 = vunpack.c.h.b16 %v1994
        %v2406 = vunpack.c.l.b16 %v1995
        %v2407 = vunpack.c.h.b16 %v1995
        %v2408 = vunpack.c.l.b16 %v1996
        %v2409 = vunpack.c.h.b16 %v1996
        %v2410 = vunpack.c.l.b16 %v1997
        %v2411 = vunpack.c.h.b16 %v1997
        %v2412 = vunpack.c.l.b16 %v1998
        %v2413 = vunpack.c.h.b16 %v1998
        %v2414 = vunpack.c.l.b16 %v1999
        %v2415 = vunpack.c.h.b16 %v1999
        %v2416 = vunpack.c.l.b16 %v2000
        %v2417 = vunpack.c.h.b16 %v2000
        %v2418 = vpack.c.b16 %v2228, %v2226
        %v2419 = vpack.c.b16 %v2229, %v2227
        %v2420 = vpack.c.b16 %v2232, %v2230
        %v2421 = vpack.c.b16 %v2233, %v2231
        %v2422 = vpack.c.b16 %v2236, %v2234
        %v2423 = vpack.c.b16 %v2237, %v2235
        %v2424 = vpack.c.b16 %v2240, %v2238
        %v2425 = vpack.c.b16 %v2241, %v2239
        %v2426 = vpack.c.b16 %v2244, %v2242
        %v2427 = vpack.c.b16 %v2245, %v2243
        %v2428 = vpack.c.b16 %v2248, %v2246
        %v2429 = vpack.c.b16 %v2249, %v2247
        %v2430 = vpack.c.b16 %v2252, %v2250
        %v2431 = vpack.c.b16 %v2253, %v2251
        %v2432 = vpack.c.b16 %v2256, %v2254
        %v2433 = vpack.c.b16 %v2257, %v2255
        %v2434 = vpack.c.b16 %v2260, %v2258
        %v2435 = vpack.c.b16 %v2261, %v2259
        %v2436 = vpack.c.b16 %v2264, %v2262
        %v2437 = vpack.c.b16 %v2265, %v2263
        %v2438 = vpack.c.b16 %v2268, %v2266
        %v2439 = vpack.c.b16 %v2269, %v2267
        %v2440 = vpack.c.b16 %v2272, %v2270
        %v2441 = vpack.c.b16 %v2273, %v2271
        %v2442 = vpack.c.b16 %v2276, %v2274
        %v2443 = vpack.c.b16 %v2277, %v2275
        %v2444 = vpack.c.b16 %v2280, %v2278
        %v2445 = vpack.c.b16 %v2281, %v2279
        %v2446 = vpack.c.b16 %v2284, %v2282
        %v2447 = vpack.c.b16 %v2285, %v2283
        %v2448 = vpack.c.b16 %v2288, %v2286
        %v2449 = vpack.c.b16 %v2289, %v2287
        %v2450 = vpack.c.b16 %v2292, %v2290
        %v2451 = vpack.c.b16 %v2293, %v2291
        %v2452 = vpack.c.b16 %v2296, %v2294
        %v2453 = vpack.c.b16 %v2297, %v2295
        %v2454 = vpack.c.b16 %v2300, %v2298
        %v2455 = vpack.c.b16 %v2301, %v2299
        %v2456 = vpack.c.b16 %v2304, %v2302
        %v2457 = vpack.c.b16 %v2305, %v2303
        %v2458 = vpack.c.b16 %v2308, %v2306
        %v2459 = vpack.c.b16 %v2309, %v2307
        %v2460 = vpack.c.b16 %v2312, %v2310
        %v2461 = vpack.c.b16 %v2313, %v2311
        %v2462 = vpack.c.b16 %v2316, %v2314
        %v2463 = vpack.c.b16 %v2317, %v2315
        %v2464 = vpack.c.b16 %v2320, %v2318
        %v2465 = vpack.c.b16 %v2321, %v2319
        %v2466 = vpack.c.b16 %v2324, %v2322
        %v2467 = vpack.c.b16 %v2325, %v2323
        %v2468 = vpack.c.b16 %v2328, %v2326
        %v2469 = vpack.c.b16 %v2329, %v2327
        %v2470 = vpack.c.b16 %v2332, %v2330
        %v2471 = vpack.c.b16 %v2333, %v2331
        %v2472 = vpack.c.b16 %v2336, %v2334
        %v2473 = vpack.c.b16 %v2337, %v2335
        %v2474 = vpack.c.b16 %v2340, %v2338
        %v2475 = vpack.c.b16 %v2341, %v2339
        %v2476 = vpack.c.b16 %v2344, %v2342
        %v2477 = vpack.c.b16 %v2345, %v2343
        %v2478 = vpack.c.b16 %v2348, %v2346
        %v2479 = vpack.c.b16 %v2349, %v2347
        %v2480 = vpack.c.b16 %v2352, %v2350
        %v2481 = vpack.c.b16 %v2353, %v2351
        %v2482 = vpack.c.b16 %v2356, %v2354
        %v2483 = vpack.c.b16 %v2357, %v2355
        %v2484 = vpack.c.b16 %v2360, %v2358
        %v2485 = vpack.c.b16 %v2361, %v2359
        %v2486 = vpack.c.b16 %v2364, %v2362
        %v2487 = vpack.c.b16 %v2365, %v2363
        %v2488 = vpack.c.b16 %v2368, %v2366
        %v2489 = vpack.c.b16 %v2369, %v2367
        %v2490 = vpack.c.b16 %v2372, %v2370
        %v2491 = vpack.c.b16 %v2373, %v2371
        %v2492 = vpack.c.b16 %v2376, %v2374
        %v2493 = vpack.c.b16 %v2377, %v2375
        %v2494 = vpack.c.b16 %v2380, %v2378
        %v2495 = vpack.c.b16 %v2381, %v2379
        %v2496 = vpack.c.b16 %v2384, %v2382
        %v2497 = vpack.c.b16 %v2385, %v2383
        %v2498 = vpack.c.b16 %v2388, %v2386
        %v2499 = vpack.c.b16 %v2389, %v2387
        %v2500 = vpack.c.b16 %v2392, %v2390
        %v2501 = vpack.c.b16 %v2393, %v2391
        %v2502 = vpack.c.b16 %v2396, %v2394
        %v2503 = vpack.c.b16 %v2397, %v2395
        %v2504 = vpack.c.b16 %v2400, %v2398
        %v2505 = vpack.c.b16 %v2401, %v2399
        %v2506 = vpack.c.b16 %v2404, %v2402
        %v2507 = vpack.c.b16 %v2405, %v2403
        %v2508 = vpack.c.b16 %v2408, %v2406
        %v2509 = vpack.c.b16 %v2409, %v2407
        %v2510 = vpack.c.b16 %v2412, %v2410
        %v2511 = vpack.c.b16 %v2413, %v2411
        %v2512 = vpack.c.b16 %v2416, %v2414
        %v2513 = vpack.c.b16 %v2417, %v2415
        %2610 = vmatprep.subr.bf16.mxu0 %v2433
        %2611 = vmatpush1.bf16.msra.mxu0 %v2432
        %2612 = vmatprep.subr.bf16.mxu0 %v2431
        %2613 = vmatpush1.bf16.msra.mxu0 %v2430
        %2614 = vmatprep.subr.bf16.mxu0 %v2429
        %2615 = vmatpush1.bf16.msra.mxu0 %v2428
        %2616 = vmatprep.subr.bf16.mxu0 %v2427
        %2617 = vmatpush1.bf16.msra.mxu0 %v2426
        %2618 = vmatprep.subr.bf16.mxu0 %v2425
        %2619 = vmatpush1.bf16.msra.mxu0 %v2424
        %2620 = vmatprep.subr.bf16.mxu0 %v2423
        %2621 = vmatpush1.bf16.msra.mxu0 %v2422
        %2622 = vmatprep.subr.bf16.mxu0 %v2421
        %2623 = vmatpush1.bf16.msra.mxu0 %v2420
        %2624 = vmatprep.subr.bf16.mxu0 %v2419
        %2625 = vmatpush1.bf16.msra.mxu0 %v2418
        %2626 = vmatprep.subr.bf16.mxu0 %v2449
        %2627 = vmatpush2.bf16.msra.mxu0 %v2448
        %2628 = vmatprep.subr.bf16.mxu0 %v2447
        %2629 = vmatpush2.bf16.msra.mxu0 %v2446
        %2630 = vmatprep.subr.bf16.mxu0 %v2445
        %2631 = vmatpush2.bf16.msra.mxu0 %v2444
        %2632 = vmatprep.subr.bf16.mxu0 %v2443
        %2633 = vmatpush2.bf16.msra.mxu0 %v2442
        %2634 = vmatprep.subr.bf16.mxu0 %v2441
        %2635 = vmatpush2.bf16.msra.mxu0 %v2440
        %2636 = vmatprep.subr.bf16.mxu0 %v2439
        %2637 = vmatpush2.bf16.msra.mxu0 %v2438
        %2638 = vmatprep.subr.bf16.mxu0 %v2437
        %2639 = vmatpush2.bf16.msra.mxu0 %v2436
        %2640 = vmatprep.subr.bf16.mxu0 %v2435
        %2641 = vmatpush2.bf16.msra.mxu0 %v2434
        %2642 = vmatprep.mubr.bf16.mxu0 %v2114
        %2643 = vmatmul.mubr.bf16.gmra.mxu0 %v2113
        %v2644 = vpop.f32.mrf.mxu0
        %v2645 = vadd.f32 %v2123, %v2644
        %v2646 = vpop.f32.mrf.mxu0
        %v2647 = vadd.f32 %v2127, %v2646
        %v2648 = vpop.f32.mrf.mxu0
        %v2649 = vpop.f32.mrf.mxu0
        %2650 = vdwg.mxu0
        %2651 = vmatprep.subr.bf16.mxu0 %v2465
        %2652 = vmatpush1.bf16.msra.mxu0 %v2464
        %2653 = vmatprep.subr.bf16.mxu0 %v2463
        %2654 = vmatpush1.bf16.msra.mxu0 %v2462
        %2655 = vmatprep.subr.bf16.mxu0 %v2461
        %2656 = vmatpush1.bf16.msra.mxu0 %v2460
        %2657 = vmatprep.subr.bf16.mxu0 %v2459
        %2658 = vmatpush1.bf16.msra.mxu0 %v2458
        %2659 = vmatprep.subr.bf16.mxu0 %v2457
        %2660 = vmatpush1.bf16.msra.mxu0 %v2456
        %2661 = vmatprep.subr.bf16.mxu0 %v2455
        %2662 = vmatpush1.bf16.msra.mxu0 %v2454
        %2663 = vmatprep.subr.bf16.mxu0 %v2453
        %2664 = vmatpush1.bf16.msra.mxu0 %v2452
        %2665 = vmatprep.subr.bf16.mxu0 %v2451
        %2666 = vmatpush1.bf16.msra.mxu0 %v2450
        %2667 = vmatprep.subr.bf16.mxu0 %v2481
        %2668 = vmatpush2.bf16.msra.mxu0 %v2480
        %2669 = vmatprep.subr.bf16.mxu0 %v2479
        %2670 = vmatpush2.bf16.msra.mxu0 %v2478
        %2671 = vmatprep.subr.bf16.mxu0 %v2477
        %2672 = vmatpush2.bf16.msra.mxu0 %v2476
        %2673 = vmatprep.subr.bf16.mxu0 %v2475
        %2674 = vmatpush2.bf16.msra.mxu0 %v2474
        %2675 = vmatprep.subr.bf16.mxu0 %v2473
        %2676 = vmatpush2.bf16.msra.mxu0 %v2472
        %2677 = vmatprep.subr.bf16.mxu0 %v2471
        %2678 = vmatpush2.bf16.msra.mxu0 %v2470
        %2679 = vmatprep.subr.bf16.mxu0 %v2469
        %2680 = vmatpush2.bf16.msra.mxu0 %v2468
        %2681 = vmatprep.subr.bf16.mxu0 %v2467
        %2682 = vmatpush2.bf16.msra.mxu0 %v2466
        %2683 = vmatprep.mubr.bf16.mxu0 %v2116
        %2684 = vmatmul.mubr.bf16.gmra.mxu0 %v2115
        %v2685 = vpop.f32.mrf.mxu0
        %v2686 = vadd.f32 %v2645, %v2685
        %v2687 = vpop.f32.mrf.mxu0
        %v2688 = vadd.f32 %v2647, %v2687
        %v2689 = vpop.f32.mrf.mxu0
        %v2690 = vpop.f32.mrf.mxu0
        %2691 = vdwg.mxu0
        %2692 = vmatprep.subr.bf16.mxu0 %v2497
        %2693 = vmatpush1.bf16.msra.mxu0 %v2496
        %2694 = vmatprep.subr.bf16.mxu0 %v2495
        %2695 = vmatpush1.bf16.msra.mxu0 %v2494
        %2696 = vmatprep.subr.bf16.mxu0 %v2493
        %2697 = vmatpush1.bf16.msra.mxu0 %v2492
        %2698 = vmatprep.subr.bf16.mxu0 %v2491
        %2699 = vmatpush1.bf16.msra.mxu0 %v2490
        %2700 = vmatprep.subr.bf16.mxu0 %v2489
        %2701 = vmatpush1.bf16.msra.mxu0 %v2488
        %2702 = vmatprep.subr.bf16.mxu0 %v2487
        %2703 = vmatpush1.bf16.msra.mxu0 %v2486
        %2704 = vmatprep.subr.bf16.mxu0 %v2485
        %2705 = vmatpush1.bf16.msra.mxu0 %v2484
        %2706 = vmatprep.subr.bf16.mxu0 %v2483
        %2707 = vmatpush1.bf16.msra.mxu0 %v2482
        %2708 = vmatprep.subr.bf16.mxu0 %v2513
        %2709 = vmatpush2.bf16.msra.mxu0 %v2512
        %2710 = vmatprep.subr.bf16.mxu0 %v2511
        %2711 = vmatpush2.bf16.msra.mxu0 %v2510
        %2712 = vmatprep.subr.bf16.mxu0 %v2509
        %2713 = vmatpush2.bf16.msra.mxu0 %v2508
        %2714 = vmatprep.subr.bf16.mxu0 %v2507
        %2715 = vmatpush2.bf16.msra.mxu0 %v2506
        %2716 = vmatprep.subr.bf16.mxu0 %v2505
        %2717 = vmatpush2.bf16.msra.mxu0 %v2504
        %2718 = vmatprep.subr.bf16.mxu0 %v2503
        %2719 = vmatpush2.bf16.msra.mxu0 %v2502
        %2720 = vmatprep.subr.bf16.mxu0 %v2501
        %2721 = vmatpush2.bf16.msra.mxu0 %v2500
        %2722 = vmatprep.subr.bf16.mxu0 %v2499
        %2723 = vmatpush2.bf16.msra.mxu0 %v2498
        %2724 = vmatprep.mubr.bf16.mxu0 %v2118
        %2725 = vmatmul.mubr.bf16.gmra.mxu0 %v2117
        %v2726 = vpop.f32.mrf.mxu0
        %v2727 = vadd.f32 %v2686, %v2726
        %v2728 = vpop.f32.mrf.mxu0
        %v2729 = vadd.f32 %v2688, %v2728
        %v2730 = vpop.f32.mrf.mxu0
        %v2731 = vpop.f32.mrf.mxu0
        %2732 = vdwg.mxu0
        %v2733 = vpack.c.bf16 %v2107, %v2107
        %v2734 = vpack.c.bf16 %v2108, %v2108
        %v2735 = vpack.c.bf16 %v2109, %v2109
        %v2736 = vpack.c.bf16 %v2110, %v2110
        %v2737 = vpack.c.bf16 %v2111, %v2111
        %v2738 = vpack.c.bf16 %v2112, %v2112
        %v2740 = vlaneseq
        %v2741 = vshrl.u32 %v2740, 7
        %v2742 = vsub.s32 0, %v2741
        %v2743 = vrot.slane %v2098, %v2742
        %v2744 = vlaneseq
        %v2745 = vshrl.u32 %v2744, 7
        %v2746 = vsub.s32 1, %v2745
        %v2747 = vrot.slane %v2098, %v2746
        %v2846 = vunpack.c.l.b16 %v2001
        %v2847 = vunpack.c.h.b16 %v2001
        %v2848 = vunpack.c.l.b16 %v2002
        %v2849 = vunpack.c.h.b16 %v2002
        %v2850 = vunpack.c.l.b16 %v2003
        %v2851 = vunpack.c.h.b16 %v2003
        %v2852 = vunpack.c.l.b16 %v2004
        %v2853 = vunpack.c.h.b16 %v2004
        %v2854 = vunpack.c.l.b16 %v2005
        %v2855 = vunpack.c.h.b16 %v2005
        %v2856 = vunpack.c.l.b16 %v2006
        %v2857 = vunpack.c.h.b16 %v2006
        %v2858 = vunpack.c.l.b16 %v2007
        %v2859 = vunpack.c.h.b16 %v2007
        %v2860 = vunpack.c.l.b16 %v2008
        %v2861 = vunpack.c.h.b16 %v2008
        %v2862 = vunpack.c.l.b16 %v2009
        %v2863 = vunpack.c.h.b16 %v2009
        %v2864 = vunpack.c.l.b16 %v2010
        %v2865 = vunpack.c.h.b16 %v2010
        %v2866 = vunpack.c.l.b16 %v2011
        %v2867 = vunpack.c.h.b16 %v2011
        %v2868 = vunpack.c.l.b16 %v2012
        %v2869 = vunpack.c.h.b16 %v2012
        %v2870 = vunpack.c.l.b16 %v2013
        %v2871 = vunpack.c.h.b16 %v2013
        %v2872 = vunpack.c.l.b16 %v2014
        %v2873 = vunpack.c.h.b16 %v2014
        %v2874 = vunpack.c.l.b16 %v2015
        %v2875 = vunpack.c.h.b16 %v2015
        %v2876 = vunpack.c.l.b16 %v2016
        %v2877 = vunpack.c.h.b16 %v2016
        %v2878 = vunpack.c.l.b16 %v2017
        %v2879 = vunpack.c.h.b16 %v2017
        %v2880 = vunpack.c.l.b16 %v2018
        %v2881 = vunpack.c.h.b16 %v2018
        %v2882 = vunpack.c.l.b16 %v2019
        %v2883 = vunpack.c.h.b16 %v2019
        %v2884 = vunpack.c.l.b16 %v2020
        %v2885 = vunpack.c.h.b16 %v2020
        %v2886 = vunpack.c.l.b16 %v2021
        %v2887 = vunpack.c.h.b16 %v2021
        %v2888 = vunpack.c.l.b16 %v2022
        %v2889 = vunpack.c.h.b16 %v2022
        %v2890 = vunpack.c.l.b16 %v2023
        %v2891 = vunpack.c.h.b16 %v2023
        %v2892 = vunpack.c.l.b16 %v2024
        %v2893 = vunpack.c.h.b16 %v2024
        %v2894 = vunpack.c.l.b16 %v2025
        %v2895 = vunpack.c.h.b16 %v2025
        %v2896 = vunpack.c.l.b16 %v2026
        %v2897 = vunpack.c.h.b16 %v2026
        %v2898 = vunpack.c.l.b16 %v2027
        %v2899 = vunpack.c.h.b16 %v2027
        %v2900 = vunpack.c.l.b16 %v2028
        %v2901 = vunpack.c.h.b16 %v2028
        %v2902 = vunpack.c.l.b16 %v2029
        %v2903 = vunpack.c.h.b16 %v2029
        %v2904 = vunpack.c.l.b16 %v2030
        %v2905 = vunpack.c.h.b16 %v2030
        %v2906 = vunpack.c.l.b16 %v2031
        %v2907 = vunpack.c.h.b16 %v2031
        %v2908 = vunpack.c.l.b16 %v2032
        %v2909 = vunpack.c.h.b16 %v2032
        %v2910 = vunpack.c.l.b16 %v2033
        %v2911 = vunpack.c.h.b16 %v2033
        %v2912 = vunpack.c.l.b16 %v2034
        %v2913 = vunpack.c.h.b16 %v2034
        %v2914 = vunpack.c.l.b16 %v2035
        %v2915 = vunpack.c.h.b16 %v2035
        %v2916 = vunpack.c.l.b16 %v2036
        %v2917 = vunpack.c.h.b16 %v2036
        %v2918 = vunpack.c.l.b16 %v2037
        %v2919 = vunpack.c.h.b16 %v2037
        %v2920 = vunpack.c.l.b16 %v2038
        %v2921 = vunpack.c.h.b16 %v2038
        %v2922 = vunpack.c.l.b16 %v2039
        %v2923 = vunpack.c.h.b16 %v2039
        %v2924 = vunpack.c.l.b16 %v2040
        %v2925 = vunpack.c.h.b16 %v2040
        %v2926 = vunpack.c.l.b16 %v2041
        %v2927 = vunpack.c.h.b16 %v2041
        %v2928 = vunpack.c.l.b16 %v2042
        %v2929 = vunpack.c.h.b16 %v2042
        %v2930 = vunpack.c.l.b16 %v2043
        %v2931 = vunpack.c.h.b16 %v2043
        %v2932 = vunpack.c.l.b16 %v2044
        %v2933 = vunpack.c.h.b16 %v2044
        %v2934 = vunpack.c.l.b16 %v2045
        %v2935 = vunpack.c.h.b16 %v2045
        %v2936 = vunpack.c.l.b16 %v2046
        %v2937 = vunpack.c.h.b16 %v2046
        %v2938 = vunpack.c.l.b16 %v2047
        %v2939 = vunpack.c.h.b16 %v2047
        %v2940 = vunpack.c.l.b16 %v2048
        %v2941 = vunpack.c.h.b16 %v2048
        %v2942 = vunpack.c.l.b16 %v2049
        %v2943 = vunpack.c.h.b16 %v2049
        %v2944 = vunpack.c.l.b16 %v2050
        %v2945 = vunpack.c.h.b16 %v2050
        %v2946 = vunpack.c.l.b16 %v2051
        %v2947 = vunpack.c.h.b16 %v2051
        %v2948 = vunpack.c.l.b16 %v2052
        %v2949 = vunpack.c.h.b16 %v2052
        %v2950 = vunpack.c.l.b16 %v2053
        %v2951 = vunpack.c.h.b16 %v2053
        %v2952 = vunpack.c.l.b16 %v2054
        %v2953 = vunpack.c.h.b16 %v2054
        %v2954 = vunpack.c.l.b16 %v2055
        %v2955 = vunpack.c.h.b16 %v2055
        %v2956 = vunpack.c.l.b16 %v2056
        %v2957 = vunpack.c.h.b16 %v2056
        %v2958 = vunpack.c.l.b16 %v2057
        %v2959 = vunpack.c.h.b16 %v2057
        %v2960 = vunpack.c.l.b16 %v2058
        %v2961 = vunpack.c.h.b16 %v2058
        %v2962 = vunpack.c.l.b16 %v2059
        %v2963 = vunpack.c.h.b16 %v2059
        %v2964 = vunpack.c.l.b16 %v2060
        %v2965 = vunpack.c.h.b16 %v2060
        %v2966 = vunpack.c.l.b16 %v2061
        %v2967 = vunpack.c.h.b16 %v2061
        %v2968 = vunpack.c.l.b16 %v2062
        %v2969 = vunpack.c.h.b16 %v2062
        %v2970 = vunpack.c.l.b16 %v2063
        %v2971 = vunpack.c.h.b16 %v2063
        %v2972 = vunpack.c.l.b16 %v2064
        %v2973 = vunpack.c.h.b16 %v2064
        %v2974 = vunpack.c.l.b16 %v2065
        %v2975 = vunpack.c.h.b16 %v2065
        %v2976 = vunpack.c.l.b16 %v2066
        %v2977 = vunpack.c.h.b16 %v2066
        %v2978 = vunpack.c.l.b16 %v2067
        %v2979 = vunpack.c.h.b16 %v2067
        %v2980 = vunpack.c.l.b16 %v2068
        %v2981 = vunpack.c.h.b16 %v2068
        %v2982 = vunpack.c.l.b16 %v2069
        %v2983 = vunpack.c.h.b16 %v2069
        %v2984 = vunpack.c.l.b16 %v2070
        %v2985 = vunpack.c.h.b16 %v2070
        %v2986 = vunpack.c.l.b16 %v2071
        %v2987 = vunpack.c.h.b16 %v2071
        %v2988 = vunpack.c.l.b16 %v2072
        %v2989 = vunpack.c.h.b16 %v2072
        %v2990 = vunpack.c.l.b16 %v2073
        %v2991 = vunpack.c.h.b16 %v2073
        %v2992 = vunpack.c.l.b16 %v2074
        %v2993 = vunpack.c.h.b16 %v2074
        %v2994 = vunpack.c.l.b16 %v2075
        %v2995 = vunpack.c.h.b16 %v2075
        %v2996 = vunpack.c.l.b16 %v2076
        %v2997 = vunpack.c.h.b16 %v2076
        %v2998 = vunpack.c.l.b16 %v2077
        %v2999 = vunpack.c.h.b16 %v2077
        %v3000 = vunpack.c.l.b16 %v2078
        %v3001 = vunpack.c.h.b16 %v2078
        %v3002 = vunpack.c.l.b16 %v2079
        %v3003 = vunpack.c.h.b16 %v2079
        %v3004 = vunpack.c.l.b16 %v2080
        %v3005 = vunpack.c.h.b16 %v2080
        %v3006 = vunpack.c.l.b16 %v2081
        %v3007 = vunpack.c.h.b16 %v2081
        %v3008 = vunpack.c.l.b16 %v2082
        %v3009 = vunpack.c.h.b16 %v2082
        %v3010 = vunpack.c.l.b16 %v2083
        %v3011 = vunpack.c.h.b16 %v2083
        %v3012 = vunpack.c.l.b16 %v2084
        %v3013 = vunpack.c.h.b16 %v2084
        %v3014 = vunpack.c.l.b16 %v2085
        %v3015 = vunpack.c.h.b16 %v2085
        %v3016 = vunpack.c.l.b16 %v2086
        %v3017 = vunpack.c.h.b16 %v2086
        %v3018 = vunpack.c.l.b16 %v2087
        %v3019 = vunpack.c.h.b16 %v2087
        %v3020 = vunpack.c.l.b16 %v2088
        %v3021 = vunpack.c.h.b16 %v2088
        %v3022 = vunpack.c.l.b16 %v2089
        %v3023 = vunpack.c.h.b16 %v2089
        %v3024 = vunpack.c.l.b16 %v2090
        %v3025 = vunpack.c.h.b16 %v2090
        %v3026 = vunpack.c.l.b16 %v2091
        %v3027 = vunpack.c.h.b16 %v2091
        %v3028 = vunpack.c.l.b16 %v2092
        %v3029 = vunpack.c.h.b16 %v2092
        %v3030 = vunpack.c.l.b16 %v2093
        %v3031 = vunpack.c.h.b16 %v2093
        %v3032 = vunpack.c.l.b16 %v2094
        %v3033 = vunpack.c.h.b16 %v2094
        %v3034 = vunpack.c.l.b16 %v2095
        %v3035 = vunpack.c.h.b16 %v2095
        %v3036 = vunpack.c.l.b16 %v2096
        %v3037 = vunpack.c.h.b16 %v2096
        %v3038 = vpack.c.b16 %v2848, %v2846
        %v3039 = vpack.c.b16 %v2849, %v2847
        %v3040 = vpack.c.b16 %v2852, %v2850
        %v3041 = vpack.c.b16 %v2853, %v2851
        %v3042 = vpack.c.b16 %v2856, %v2854
        %v3043 = vpack.c.b16 %v2857, %v2855
        %v3044 = vpack.c.b16 %v2860, %v2858
        %v3045 = vpack.c.b16 %v2861, %v2859
        %v3046 = vpack.c.b16 %v2864, %v2862
        %v3047 = vpack.c.b16 %v2865, %v2863
        %v3048 = vpack.c.b16 %v2868, %v2866
        %v3049 = vpack.c.b16 %v2869, %v2867
        %v3050 = vpack.c.b16 %v2872, %v2870
        %v3051 = vpack.c.b16 %v2873, %v2871
        %v3052 = vpack.c.b16 %v2876, %v2874
        %v3053 = vpack.c.b16 %v2877, %v2875
        %v3054 = vpack.c.b16 %v2880, %v2878
        %v3055 = vpack.c.b16 %v2881, %v2879
        %v3056 = vpack.c.b16 %v2884, %v2882
        %v3057 = vpack.c.b16 %v2885, %v2883
        %v3058 = vpack.c.b16 %v2888, %v2886
        %v3059 = vpack.c.b16 %v2889, %v2887
        %v3060 = vpack.c.b16 %v2892, %v2890
        %v3061 = vpack.c.b16 %v2893, %v2891
        %v3062 = vpack.c.b16 %v2896, %v2894
        %v3063 = vpack.c.b16 %v2897, %v2895
        %v3064 = vpack.c.b16 %v2900, %v2898
        %v3065 = vpack.c.b16 %v2901, %v2899
        %v3066 = vpack.c.b16 %v2904, %v2902
        %v3067 = vpack.c.b16 %v2905, %v2903
        %v3068 = vpack.c.b16 %v2908, %v2906
        %v3069 = vpack.c.b16 %v2909, %v2907
        %v3070 = vpack.c.b16 %v2912, %v2910
        %v3071 = vpack.c.b16 %v2913, %v2911
        %v3072 = vpack.c.b16 %v2916, %v2914
        %v3073 = vpack.c.b16 %v2917, %v2915
        %v3074 = vpack.c.b16 %v2920, %v2918
        %v3075 = vpack.c.b16 %v2921, %v2919
        %v3076 = vpack.c.b16 %v2924, %v2922
        %v3077 = vpack.c.b16 %v2925, %v2923
        %v3078 = vpack.c.b16 %v2928, %v2926
        %v3079 = vpack.c.b16 %v2929, %v2927
        %v3080 = vpack.c.b16 %v2932, %v2930
        %v3081 = vpack.c.b16 %v2933, %v2931
        %v3082 = vpack.c.b16 %v2936, %v2934
        %v3083 = vpack.c.b16 %v2937, %v2935
        %v3084 = vpack.c.b16 %v2940, %v2938
        %v3085 = vpack.c.b16 %v2941, %v2939
        %v3086 = vpack.c.b16 %v2944, %v2942
        %v3087 = vpack.c.b16 %v2945, %v2943
        %v3088 = vpack.c.b16 %v2948, %v2946
        %v3089 = vpack.c.b16 %v2949, %v2947
        %v3090 = vpack.c.b16 %v2952, %v2950
        %v3091 = vpack.c.b16 %v2953, %v2951
        %v3092 = vpack.c.b16 %v2956, %v2954
        %v3093 = vpack.c.b16 %v2957, %v2955
        %v3094 = vpack.c.b16 %v2960, %v2958
        %v3095 = vpack.c.b16 %v2961, %v2959
        %v3096 = vpack.c.b16 %v2964, %v2962
        %v3097 = vpack.c.b16 %v2965, %v2963
        %v3098 = vpack.c.b16 %v2968, %v2966
        %v3099 = vpack.c.b16 %v2969, %v2967
        %v3100 = vpack.c.b16 %v2972, %v2970
        %v3101 = vpack.c.b16 %v2973, %v2971
        %v3102 = vpack.c.b16 %v2976, %v2974
        %v3103 = vpack.c.b16 %v2977, %v2975
        %v3104 = vpack.c.b16 %v2980, %v2978
        %v3105 = vpack.c.b16 %v2981, %v2979
        %v3106 = vpack.c.b16 %v2984, %v2982
        %v3107 = vpack.c.b16 %v2985, %v2983
        %v3108 = vpack.c.b16 %v2988, %v2986
        %v3109 = vpack.c.b16 %v2989, %v2987
        %v3110 = vpack.c.b16 %v2992, %v2990
        %v3111 = vpack.c.b16 %v2993, %v2991
        %v3112 = vpack.c.b16 %v2996, %v2994
        %v3113 = vpack.c.b16 %v2997, %v2995
        %v3114 = vpack.c.b16 %v3000, %v2998
        %v3115 = vpack.c.b16 %v3001, %v2999
        %v3116 = vpack.c.b16 %v3004, %v3002
        %v3117 = vpack.c.b16 %v3005, %v3003
        %v3118 = vpack.c.b16 %v3008, %v3006
        %v3119 = vpack.c.b16 %v3009, %v3007
        %v3120 = vpack.c.b16 %v3012, %v3010
        %v3121 = vpack.c.b16 %v3013, %v3011
        %v3122 = vpack.c.b16 %v3016, %v3014
        %v3123 = vpack.c.b16 %v3017, %v3015
        %v3124 = vpack.c.b16 %v3020, %v3018
        %v3125 = vpack.c.b16 %v3021, %v3019
        %v3126 = vpack.c.b16 %v3024, %v3022
        %v3127 = vpack.c.b16 %v3025, %v3023
        %v3128 = vpack.c.b16 %v3028, %v3026
        %v3129 = vpack.c.b16 %v3029, %v3027
        %v3130 = vpack.c.b16 %v3032, %v3030
        %v3131 = vpack.c.b16 %v3033, %v3031
        %v3132 = vpack.c.b16 %v3036, %v3034
        %v3133 = vpack.c.b16 %v3037, %v3035
        %3230 = vmatprep.subr.bf16.mxu0 %v3053
        %3231 = vmatpush1.bf16.msra.mxu0 %v3052
        %3232 = vmatprep.subr.bf16.mxu0 %v3051
        %3233 = vmatpush1.bf16.msra.mxu0 %v3050
        %3234 = vmatprep.subr.bf16.mxu0 %v3049
        %3235 = vmatpush1.bf16.msra.mxu0 %v3048
        %3236 = vmatprep.subr.bf16.mxu0 %v3047
        %3237 = vmatpush1.bf16.msra.mxu0 %v3046
        %3238 = vmatprep.subr.bf16.mxu0 %v3045
        %3239 = vmatpush1.bf16.msra.mxu0 %v3044
        %3240 = vmatprep.subr.bf16.mxu0 %v3043
        %3241 = vmatpush1.bf16.msra.mxu0 %v3042
        %3242 = vmatprep.subr.bf16.mxu0 %v3041
        %3243 = vmatpush1.bf16.msra.mxu0 %v3040
        %3244 = vmatprep.subr.bf16.mxu0 %v3039
        %3245 = vmatpush1.bf16.msra.mxu0 %v3038
        %3246 = vmatprep.subr.bf16.mxu0 %v3069
        %3247 = vmatpush2.bf16.msra.mxu0 %v3068
        %3248 = vmatprep.subr.bf16.mxu0 %v3067
        %3249 = vmatpush2.bf16.msra.mxu0 %v3066
        %3250 = vmatprep.subr.bf16.mxu0 %v3065
        %3251 = vmatpush2.bf16.msra.mxu0 %v3064
        %3252 = vmatprep.subr.bf16.mxu0 %v3063
        %3253 = vmatpush2.bf16.msra.mxu0 %v3062
        %3254 = vmatprep.subr.bf16.mxu0 %v3061
        %3255 = vmatpush2.bf16.msra.mxu0 %v3060
        %3256 = vmatprep.subr.bf16.mxu0 %v3059
        %3257 = vmatpush2.bf16.msra.mxu0 %v3058
        %3258 = vmatprep.subr.bf16.mxu0 %v3057
        %3259 = vmatpush2.bf16.msra.mxu0 %v3056
        %3260 = vmatprep.subr.bf16.mxu0 %v3055
        %3261 = vmatpush2.bf16.msra.mxu0 %v3054
        %3262 = vmatprep.mubr.bf16.mxu0 %v2734
        %3263 = vmatmul.mubr.bf16.gmra.mxu0 %v2733
        %v3264 = vpop.f32.mrf.mxu0
        %v3265 = vadd.f32 %v2743, %v3264
        %v3266 = vpop.f32.mrf.mxu0
        %v3267 = vadd.f32 %v2747, %v3266
        %v3268 = vpop.f32.mrf.mxu0
        %v3269 = vpop.f32.mrf.mxu0
        %3270 = vdwg.mxu0
        %3271 = vmatprep.subr.bf16.mxu0 %v3085
        %3272 = vmatpush1.bf16.msra.mxu0 %v3084
        %3273 = vmatprep.subr.bf16.mxu0 %v3083
        %3274 = vmatpush1.bf16.msra.mxu0 %v3082
        %3275 = vmatprep.subr.bf16.mxu0 %v3081
        %3276 = vmatpush1.bf16.msra.mxu0 %v3080
        %3277 = vmatprep.subr.bf16.mxu0 %v3079
        %3278 = vmatpush1.bf16.msra.mxu0 %v3078
        %3279 = vmatprep.subr.bf16.mxu0 %v3077
        %3280 = vmatpush1.bf16.msra.mxu0 %v3076
        %3281 = vmatprep.subr.bf16.mxu0 %v3075
        %3282 = vmatpush1.bf16.msra.mxu0 %v3074
        %3283 = vmatprep.subr.bf16.mxu0 %v3073
        %3284 = vmatpush1.bf16.msra.mxu0 %v3072
        %3285 = vmatprep.subr.bf16.mxu0 %v3071
        %3286 = vmatpush1.bf16.msra.mxu0 %v3070
        %3287 = vmatprep.subr.bf16.mxu0 %v3101
        %3288 = vmatpush2.bf16.msra.mxu0 %v3100
        %3289 = vmatprep.subr.bf16.mxu0 %v3099
        %3290 = vmatpush2.bf16.msra.mxu0 %v3098
        %3291 = vmatprep.subr.bf16.mxu0 %v3097
        %3292 = vmatpush2.bf16.msra.mxu0 %v3096
        %3293 = vmatprep.subr.bf16.mxu0 %v3095
        %3294 = vmatpush2.bf16.msra.mxu0 %v3094
        %3295 = vmatprep.subr.bf16.mxu0 %v3093
        %3296 = vmatpush2.bf16.msra.mxu0 %v3092
        %3297 = vmatprep.subr.bf16.mxu0 %v3091
        %3298 = vmatpush2.bf16.msra.mxu0 %v3090
        %3299 = vmatprep.subr.bf16.mxu0 %v3089
        %3300 = vmatpush2.bf16.msra.mxu0 %v3088
        %3301 = vmatprep.subr.bf16.mxu0 %v3087
        %3302 = vmatpush2.bf16.msra.mxu0 %v3086
        %3303 = vmatprep.mubr.bf16.mxu0 %v2736
        %3304 = vmatmul.mubr.bf16.gmra.mxu0 %v2735
        %v3305 = vpop.f32.mrf.mxu0
        %v3306 = vadd.f32 %v3265, %v3305
        %v3307 = vpop.f32.mrf.mxu0
        %v3308 = vadd.f32 %v3267, %v3307
        %v3309 = vpop.f32.mrf.mxu0
        %v3310 = vpop.f32.mrf.mxu0
        %3311 = vdwg.mxu0
        %3312 = vmatprep.subr.bf16.mxu0 %v3117
        %3313 = vmatpush1.bf16.msra.mxu0 %v3116
        %3314 = vmatprep.subr.bf16.mxu0 %v3115
        %3315 = vmatpush1.bf16.msra.mxu0 %v3114
        %3316 = vmatprep.subr.bf16.mxu0 %v3113
        %3317 = vmatpush1.bf16.msra.mxu0 %v3112
        %3318 = vmatprep.subr.bf16.mxu0 %v3111
        %3319 = vmatpush1.bf16.msra.mxu0 %v3110
        %3320 = vmatprep.subr.bf16.mxu0 %v3109
        %3321 = vmatpush1.bf16.msra.mxu0 %v3108
        %3322 = vmatprep.subr.bf16.mxu0 %v3107
        %3323 = vmatpush1.bf16.msra.mxu0 %v3106
        %3324 = vmatprep.subr.bf16.mxu0 %v3105
        %3325 = vmatpush1.bf16.msra.mxu0 %v3104
        %3326 = vmatprep.subr.bf16.mxu0 %v3103
        %3327 = vmatpush1.bf16.msra.mxu0 %v3102
        %3328 = vmatprep.subr.bf16.mxu0 %v3133
        %3329 = vmatpush2.bf16.msra.mxu0 %v3132
        %3330 = vmatprep.subr.bf16.mxu0 %v3131
        %3331 = vmatpush2.bf16.msra.mxu0 %v3130
        %3332 = vmatprep.subr.bf16.mxu0 %v3129
        %3333 = vmatpush2.bf16.msra.mxu0 %v3128
        %3334 = vmatprep.subr.bf16.mxu0 %v3127
        %3335 = vmatpush2.bf16.msra.mxu0 %v3126
        %3336 = vmatprep.subr.bf16.mxu0 %v3125
        %3337 = vmatpush2.bf16.msra.mxu0 %v3124
        %3338 = vmatprep.subr.bf16.mxu0 %v3123
        %3339 = vmatpush2.bf16.msra.mxu0 %v3122
        %3340 = vmatprep.subr.bf16.mxu0 %v3121
        %3341 = vmatpush2.bf16.msra.mxu0 %v3120
        %3342 = vmatprep.subr.bf16.mxu0 %v3119
        %3343 = vmatpush2.bf16.msra.mxu0 %v3118
        %3344 = vmatprep.mubr.bf16.mxu0 %v2738
        %3345 = vmatmul.mubr.bf16.gmra.mxu0 %v2737
        %v3346 = vpop.f32.mrf.mxu0
        %v3347 = vadd.f32 %v3306, %v3346
        %v3348 = vpop.f32.mrf.mxu0
        %v3349 = vadd.f32 %v3308, %v3348
        %v3350 = vpop.f32.mrf.mxu0
        %v3351 = vpop.f32.mrf.mxu0
        %3352 = vdwg.mxu0
        %v3354 = vlaneseq
        %v3355 = vshrl.u32 %v3354, 7
        %v3356 = vsub.s32 0, %v3355
        %v3357 = vrot.slane %v2099, %v3356
        %v3358 = vlaneseq
        %v3359 = vshrl.u32 %v3358, 7
        %v3360 = vsub.s32 1, %v3359
        %v3361 = vrot.slane %v2099, %v3360
        %v3362 = vlaneseq
        %v3363 = vshrl.u32 %v3362, 7
        %v3364 = vsub.s32 2, %v3363
        %v3365 = vrot.slane %v2099, %v3364
        %v3366 = vlaneseq
        %v3367 = vshrl.u32 %v3366, 7
        %v3368 = vsub.s32 3, %v3367
        %v3369 = vrot.slane %v2099, %v3368
        %v3370 = vlaneseq
        %v3371 = vshrl.u32 %v3370, 7
        %v3372 = vsub.s32 4, %v3371
        %v3373 = vrot.slane %v2099, %v3372
        %v3374 = vlaneseq
        %v3375 = vshrl.u32 %v3374, 7
        %v3376 = vsub.s32 5, %v3375
        %v3377 = vrot.slane %v2099, %v3376
        %v3384 = vmul.f32 %v2101, %v3357
        %v3385 = vmul.f32 %v2102, %v3361
        %v3386 = vmul.f32 %v2103, %v3365
        %v3387 = vmul.f32 %v2104, %v3369
        %v3388 = vmul.f32 %v2105, %v3373
        %v3389 = vmul.f32 %v2106, %v3377
        %v3390 = vadd.f32 %v3384, %v3385
        %v3391 = vadd.f32 %v3390, %v3386
        %v3392 = vadd.f32 %v3391, %v3387
        %v3393 = vadd.f32 %v3392, %v3388
        %v3394 = vadd.f32 %v3393, %v3389
        %3395 = vadd.xlane.f32.xlu0 %v3394
        %v3396 = vpop.xlane.xlu0 %3395
        %v3398 = vlaneseq
        %v3399 = vshrl.u32 %v3398, 7
        %v3400 = vsub.s32 0, %v3399
        %v3401 = vrot.slane %v2100, %v3400
        %v3403 = vadd.f32 %v3396, %v3401
        %v3404 = vld [vmem:[%s1321] sm:$0xff]
        %v3405 = vld [vmem:[%s1321 + $0x8] sm:$0xff]
        %v3406 = vld [vmem:[%s1321 + $0x10] sm:$0xff]
        %v3407 = vld [vmem:[%s1321 + $0x18] sm:$0xff]
        %v3408 = vld [vmem:[%s1321 + $0x20] sm:$0xff]
        %v3409 = vld [vmem:[%s1321 + $0x28] sm:$0xff]
        %v3410 = vld [vmem:[%s1348] sm:$0xff]
        %v3411 = vld [vmem:[%s1348 + $0x8] sm:$0xff]
        %v3412 = vld [vmem:[%s1348 + $0x10] sm:$0xff]
        %v3413 = vld [vmem:[%s1348 + $0x18] sm:$0xff]
        %v3414 = vld [vmem:[%s1348 + $0x20] sm:$0xff]
        %v3415 = vld [vmem:[%s1348 + $0x28] sm:$0xff]
        %v3416 = vpack.c.bf16 %v3404, %v3404
        %v3417 = vpack.c.bf16 %v3405, %v3405
        %v3418 = vpack.c.bf16 %v3406, %v3406
        %v3419 = vpack.c.bf16 %v3407, %v3407
        %v3420 = vpack.c.bf16 %v3408, %v3408
        %v3421 = vpack.c.bf16 %v3409, %v3409
        %3422 = vmatprep.subr.bf16.mxu0 %v2433
        %3423 = vmatpush1.bf16.msra.mxu0 %v2432
        %3424 = vmatprep.subr.bf16.mxu0 %v2431
        %3425 = vmatpush1.bf16.msra.mxu0 %v2430
        %3426 = vmatprep.subr.bf16.mxu0 %v2429
        %3427 = vmatpush1.bf16.msra.mxu0 %v2428
        %3428 = vmatprep.subr.bf16.mxu0 %v2427
        %3429 = vmatpush1.bf16.msra.mxu0 %v2426
        %3430 = vmatprep.subr.bf16.mxu0 %v2425
        %3431 = vmatpush1.bf16.msra.mxu0 %v2424
        %3432 = vmatprep.subr.bf16.mxu0 %v2423
        %3433 = vmatpush1.bf16.msra.mxu0 %v2422
        %3434 = vmatprep.subr.bf16.mxu0 %v2421
        %3435 = vmatpush1.bf16.msra.mxu0 %v2420
        %3436 = vmatprep.subr.bf16.mxu0 %v2419
        %3437 = vmatpush1.bf16.msra.mxu0 %v2418
        %3438 = vmatprep.subr.bf16.mxu0 %v2449
        %3439 = vmatpush2.bf16.msra.mxu0 %v2448
        %3440 = vmatprep.subr.bf16.mxu0 %v2447
        %3441 = vmatpush2.bf16.msra.mxu0 %v2446
        %3442 = vmatprep.subr.bf16.mxu0 %v2445
        %3443 = vmatpush2.bf16.msra.mxu0 %v2444
        %3444 = vmatprep.subr.bf16.mxu0 %v2443
        %3445 = vmatpush2.bf16.msra.mxu0 %v2442
        %3446 = vmatprep.subr.bf16.mxu0 %v2441
        %3447 = vmatpush2.bf16.msra.mxu0 %v2440
        %3448 = vmatprep.subr.bf16.mxu0 %v2439
        %3449 = vmatpush2.bf16.msra.mxu0 %v2438
        %3450 = vmatprep.subr.bf16.mxu0 %v2437
        %3451 = vmatpush2.bf16.msra.mxu0 %v2436
        %3452 = vmatprep.subr.bf16.mxu0 %v2435
        %3453 = vmatpush2.bf16.msra.mxu0 %v2434
        %3454 = vmatprep.mubr.bf16.mxu0 %v3417
        %3455 = vmatmul.mubr.bf16.gmra.mxu0 %v3416
        %v3456 = vpop.f32.mrf.mxu0
        %v3457 = vadd.f32 %v2123, %v3456
        %v3458 = vpop.f32.mrf.mxu0
        %v3459 = vadd.f32 %v2127, %v3458
        %v3460 = vpop.f32.mrf.mxu0
        %v3461 = vpop.f32.mrf.mxu0
        %3462 = vdwg.mxu0
        %3463 = vmatprep.subr.bf16.mxu0 %v2465
        %3464 = vmatpush1.bf16.msra.mxu0 %v2464
        %3465 = vmatprep.subr.bf16.mxu0 %v2463
        %3466 = vmatpush1.bf16.msra.mxu0 %v2462
        %3467 = vmatprep.subr.bf16.mxu0 %v2461
        %3468 = vmatpush1.bf16.msra.mxu0 %v2460
        %3469 = vmatprep.subr.bf16.mxu0 %v2459
        %3470 = vmatpush1.bf16.msra.mxu0 %v2458
        %3471 = vmatprep.subr.bf16.mxu0 %v2457
        %3472 = vmatpush1.bf16.msra.mxu0 %v2456
        %3473 = vmatprep.subr.bf16.mxu0 %v2455
        %3474 = vmatpush1.bf16.msra.mxu0 %v2454
        %3475 = vmatprep.subr.bf16.mxu0 %v2453
        %3476 = vmatpush1.bf16.msra.mxu0 %v2452
        %3477 = vmatprep.subr.bf16.mxu0 %v2451
        %3478 = vmatpush1.bf16.msra.mxu0 %v2450
        %3479 = vmatprep.subr.bf16.mxu0 %v2481
        %3480 = vmatpush2.bf16.msra.mxu0 %v2480
        %3481 = vmatprep.subr.bf16.mxu0 %v2479
        %3482 = vmatpush2.bf16.msra.mxu0 %v2478
        %3483 = vmatprep.subr.bf16.mxu0 %v2477
        %3484 = vmatpush2.bf16.msra.mxu0 %v2476
        %3485 = vmatprep.subr.bf16.mxu0 %v2475
        %3486 = vmatpush2.bf16.msra.mxu0 %v2474
        %3487 = vmatprep.subr.bf16.mxu0 %v2473
        %3488 = vmatpush2.bf16.msra.mxu0 %v2472
        %3489 = vmatprep.subr.bf16.mxu0 %v2471
        %3490 = vmatpush2.bf16.msra.mxu0 %v2470
        %3491 = vmatprep.subr.bf16.mxu0 %v2469
        %3492 = vmatpush2.bf16.msra.mxu0 %v2468
        %3493 = vmatprep.subr.bf16.mxu0 %v2467
        %3494 = vmatpush2.bf16.msra.mxu0 %v2466
        %3495 = vmatprep.mubr.bf16.mxu0 %v3419
        %3496 = vmatmul.mubr.bf16.gmra.mxu0 %v3418
        %v3497 = vpop.f32.mrf.mxu0
        %v3498 = vadd.f32 %v3457, %v3497
        %v3499 = vpop.f32.mrf.mxu0
        %v3500 = vadd.f32 %v3459, %v3499
        %v3501 = vpop.f32.mrf.mxu0
        %v3502 = vpop.f32.mrf.mxu0
        %3503 = vdwg.mxu0
        %3504 = vmatprep.subr.bf16.mxu0 %v2497
        %3505 = vmatpush1.bf16.msra.mxu0 %v2496
        %3506 = vmatprep.subr.bf16.mxu0 %v2495
        %3507 = vmatpush1.bf16.msra.mxu0 %v2494
        %3508 = vmatprep.subr.bf16.mxu0 %v2493
        %3509 = vmatpush1.bf16.msra.mxu0 %v2492
        %3510 = vmatprep.subr.bf16.mxu0 %v2491
        %3511 = vmatpush1.bf16.msra.mxu0 %v2490
        %3512 = vmatprep.subr.bf16.mxu0 %v2489
        %3513 = vmatpush1.bf16.msra.mxu0 %v2488
        %3514 = vmatprep.subr.bf16.mxu0 %v2487
        %3515 = vmatpush1.bf16.msra.mxu0 %v2486
        %3516 = vmatprep.subr.bf16.mxu0 %v2485
        %3517 = vmatpush1.bf16.msra.mxu0 %v2484
        %3518 = vmatprep.subr.bf16.mxu0 %v2483
        %3519 = vmatpush1.bf16.msra.mxu0 %v2482
        %3520 = vmatprep.subr.bf16.mxu0 %v2513
        %3521 = vmatpush2.bf16.msra.mxu0 %v2512
        %3522 = vmatprep.subr.bf16.mxu0 %v2511
        %3523 = vmatpush2.bf16.msra.mxu0 %v2510
        %3524 = vmatprep.subr.bf16.mxu0 %v2509
        %3525 = vmatpush2.bf16.msra.mxu0 %v2508
        %3526 = vmatprep.subr.bf16.mxu0 %v2507
        %3527 = vmatpush2.bf16.msra.mxu0 %v2506
        %3528 = vmatprep.subr.bf16.mxu0 %v2505
        %3529 = vmatpush2.bf16.msra.mxu0 %v2504
        %3530 = vmatprep.subr.bf16.mxu0 %v2503
        %3531 = vmatpush2.bf16.msra.mxu0 %v2502
        %3532 = vmatprep.subr.bf16.mxu0 %v2501
        %3533 = vmatpush2.bf16.msra.mxu0 %v2500
        %3534 = vmatprep.subr.bf16.mxu0 %v2499
        %3535 = vmatpush2.bf16.msra.mxu0 %v2498
        %3536 = vmatprep.mubr.bf16.mxu0 %v3421
        %3537 = vmatmul.mubr.bf16.gmra.mxu0 %v3420
        %v3538 = vpop.f32.mrf.mxu0
        %v3539 = vadd.f32 %v3498, %v3538
        %v3540 = vpop.f32.mrf.mxu0
        %v3541 = vadd.f32 %v3500, %v3540
        %v3542 = vpop.f32.mrf.mxu0
        %v3543 = vpop.f32.mrf.mxu0
        %3544 = vdwg.mxu0
        %v3545 = vpack.c.bf16 %v3410, %v3410
        %v3546 = vpack.c.bf16 %v3411, %v3411
        %v3547 = vpack.c.bf16 %v3412, %v3412
        %v3548 = vpack.c.bf16 %v3413, %v3413
        %v3549 = vpack.c.bf16 %v3414, %v3414
        %v3550 = vpack.c.bf16 %v3415, %v3415
        %3551 = vmatprep.subr.bf16.mxu0 %v3053
        %3552 = vmatpush1.bf16.msra.mxu0 %v3052
        %3553 = vmatprep.subr.bf16.mxu0 %v3051
        %3554 = vmatpush1.bf16.msra.mxu0 %v3050
        %3555 = vmatprep.subr.bf16.mxu0 %v3049
        %3556 = vmatpush1.bf16.msra.mxu0 %v3048
        %3557 = vmatprep.subr.bf16.mxu0 %v3047
        %3558 = vmatpush1.bf16.msra.mxu0 %v3046
        %3559 = vmatprep.subr.bf16.mxu0 %v3045
        %3560 = vmatpush1.bf16.msra.mxu0 %v3044
        %3561 = vmatprep.subr.bf16.mxu0 %v3043
        %3562 = vmatpush1.bf16.msra.mxu0 %v3042
        %3563 = vmatprep.subr.bf16.mxu0 %v3041
        %3564 = vmatpush1.bf16.msra.mxu0 %v3040
        %3565 = vmatprep.subr.bf16.mxu0 %v3039
        %3566 = vmatpush1.bf16.msra.mxu0 %v3038
        %3567 = vmatprep.subr.bf16.mxu0 %v3069
        %3568 = vmatpush2.bf16.msra.mxu0 %v3068
        %3569 = vmatprep.subr.bf16.mxu0 %v3067
        %3570 = vmatpush2.bf16.msra.mxu0 %v3066
        %3571 = vmatprep.subr.bf16.mxu0 %v3065
        %3572 = vmatpush2.bf16.msra.mxu0 %v3064
        %3573 = vmatprep.subr.bf16.mxu0 %v3063
        %3574 = vmatpush2.bf16.msra.mxu0 %v3062
        %3575 = vmatprep.subr.bf16.mxu0 %v3061
        %3576 = vmatpush2.bf16.msra.mxu0 %v3060
        %3577 = vmatprep.subr.bf16.mxu0 %v3059
        %3578 = vmatpush2.bf16.msra.mxu0 %v3058
        %3579 = vmatprep.subr.bf16.mxu0 %v3057
        %3580 = vmatpush2.bf16.msra.mxu0 %v3056
        %3581 = vmatprep.subr.bf16.mxu0 %v3055
        %3582 = vmatpush2.bf16.msra.mxu0 %v3054
        %3583 = vmatprep.mubr.bf16.mxu0 %v3546
        %3584 = vmatmul.mubr.bf16.gmra.mxu0 %v3545
        %v3585 = vpop.f32.mrf.mxu0
        %v3586 = vadd.f32 %v2743, %v3585
        %v3587 = vpop.f32.mrf.mxu0
        %v3588 = vadd.f32 %v2747, %v3587
        %v3589 = vpop.f32.mrf.mxu0
        %v3590 = vpop.f32.mrf.mxu0
        %3591 = vdwg.mxu0
        %3592 = vmatprep.subr.bf16.mxu0 %v3085
        %3593 = vmatpush1.bf16.msra.mxu0 %v3084
        %3594 = vmatprep.subr.bf16.mxu0 %v3083
        %3595 = vmatpush1.bf16.msra.mxu0 %v3082
        %3596 = vmatprep.subr.bf16.mxu0 %v3081
        %3597 = vmatpush1.bf16.msra.mxu0 %v3080
        %3598 = vmatprep.subr.bf16.mxu0 %v3079
        %3599 = vmatpush1.bf16.msra.mxu0 %v3078
        %3600 = vmatprep.subr.bf16.mxu0 %v3077
        %3601 = vmatpush1.bf16.msra.mxu0 %v3076
        %3602 = vmatprep.subr.bf16.mxu0 %v3075
        %3603 = vmatpush1.bf16.msra.mxu0 %v3074
        %3604 = vmatprep.subr.bf16.mxu0 %v3073
        %3605 = vmatpush1.bf16.msra.mxu0 %v3072
        %3606 = vmatprep.subr.bf16.mxu0 %v3071
        %3607 = vmatpush1.bf16.msra.mxu0 %v3070
        %3608 = vmatprep.subr.bf16.mxu0 %v3101
        %3609 = vmatpush2.bf16.msra.mxu0 %v3100
        %3610 = vmatprep.subr.bf16.mxu0 %v3099
        %3611 = vmatpush2.bf16.msra.mxu0 %v3098
        %3612 = vmatprep.subr.bf16.mxu0 %v3097
        %3613 = vmatpush2.bf16.msra.mxu0 %v3096
        %3614 = vmatprep.subr.bf16.mxu0 %v3095
        %3615 = vmatpush2.bf16.msra.mxu0 %v3094
        %3616 = vmatprep.subr.bf16.mxu0 %v3093
        %3617 = vmatpush2.bf16.msra.mxu0 %v3092
        %3618 = vmatprep.subr.bf16.mxu0 %v3091
        %3619 = vmatpush2.bf16.msra.mxu0 %v3090
        %3620 = vmatprep.subr.bf16.mxu0 %v3089
        %3621 = vmatpush2.bf16.msra.mxu0 %v3088
        %3622 = vmatprep.subr.bf16.mxu0 %v3087
        %3623 = vmatpush2.bf16.msra.mxu0 %v3086
        %3624 = vmatprep.mubr.bf16.mxu0 %v3548
        %3625 = vmatmul.mubr.bf16.gmra.mxu0 %v3547
        %v3626 = vpop.f32.mrf.mxu0
        %v3627 = vadd.f32 %v3586, %v3626
        %v3628 = vpop.f32.mrf.mxu0
        %v3629 = vadd.f32 %v3588, %v3628
        %v3630 = vpop.f32.mrf.mxu0
        %v3631 = vpop.f32.mrf.mxu0
        %3632 = vdwg.mxu0
        %3633 = vmatprep.subr.bf16.mxu0 %v3117
        %3634 = vmatpush1.bf16.msra.mxu0 %v3116
        %3635 = vmatprep.subr.bf16.mxu0 %v3115
        %3636 = vmatpush1.bf16.msra.mxu0 %v3114
        %3637 = vmatprep.subr.bf16.mxu0 %v3113
        %3638 = vmatpush1.bf16.msra.mxu0 %v3112
        %3639 = vmatprep.subr.bf16.mxu0 %v3111
        %3640 = vmatpush1.bf16.msra.mxu0 %v3110
        %3641 = vmatprep.subr.bf16.mxu0 %v3109
        %3642 = vmatpush1.bf16.msra.mxu0 %v3108
        %3643 = vmatprep.subr.bf16.mxu0 %v3107
        %3644 = vmatpush1.bf16.msra.mxu0 %v3106
        %3645 = vmatprep.subr.bf16.mxu0 %v3105
        %3646 = vmatpush1.bf16.msra.mxu0 %v3104
        %3647 = vmatprep.subr.bf16.mxu0 %v3103
        %3648 = vmatpush1.bf16.msra.mxu0 %v3102
        %3649 = vmatprep.subr.bf16.mxu0 %v3133
        %3650 = vmatpush2.bf16.msra.mxu0 %v3132
        %3651 = vmatprep.subr.bf16.mxu0 %v3131
        %3652 = vmatpush2.bf16.msra.mxu0 %v3130
        %3653 = vmatprep.subr.bf16.mxu0 %v3129
        %3654 = vmatpush2.bf16.msra.mxu0 %v3128
        %3655 = vmatprep.subr.bf16.mxu0 %v3127
        %3656 = vmatpush2.bf16.msra.mxu0 %v3126
        %3657 = vmatprep.subr.bf16.mxu0 %v3125
        %3658 = vmatpush2.bf16.msra.mxu0 %v3124
        %3659 = vmatprep.subr.bf16.mxu0 %v3123
        %3660 = vmatpush2.bf16.msra.mxu0 %v3122
        %3661 = vmatprep.subr.bf16.mxu0 %v3121
        %3662 = vmatpush2.bf16.msra.mxu0 %v3120
        %3663 = vmatprep.subr.bf16.mxu0 %v3119
        %3664 = vmatpush2.bf16.msra.mxu0 %v3118
        %3665 = vmatprep.mubr.bf16.mxu0 %v3550
        %3666 = vmatmul.mubr.bf16.gmra.mxu0 %v3549
        %v3667 = vpop.f32.mrf.mxu0
        %v3668 = vadd.f32 %v3627, %v3667
        %v3669 = vpop.f32.mrf.mxu0
        %v3670 = vadd.f32 %v3629, %v3669
        %v3671 = vpop.f32.mrf.mxu0
        %v3672 = vpop.f32.mrf.mxu0
        %3673 = vdwg.mxu0
        %v3674 = vmul.f32 %v3404, %v3357
        %v3675 = vmul.f32 %v3405, %v3361
        %v3676 = vmul.f32 %v3406, %v3365
        %v3677 = vmul.f32 %v3407, %v3369
        %v3678 = vmul.f32 %v3408, %v3373
        %v3679 = vmul.f32 %v3409, %v3377
        %v3680 = vadd.f32 %v3674, %v3675
        %v3681 = vadd.f32 %v3680, %v3676
        %v3682 = vadd.f32 %v3681, %v3677
        %v3683 = vadd.f32 %v3682, %v3678
        %v3684 = vadd.f32 %v3683, %v3679
        %3685 = vadd.xlane.f32.xlu0 %v3684
        %v3686 = vpop.xlane.xlu0 %3685
        %v3687 = vadd.f32 %v3686, %v3401
        %v3688 = vld [vmem:[%s1330] sm:$0xff]
        %v3689 = vld [vmem:[%s1330 + $0x8] sm:$0xff]
        %v3690 = vld [vmem:[%s1330 + $0x10] sm:$0xff]
        %v3691 = vld [vmem:[%s1330 + $0x18] sm:$0xff]
        %v3692 = vld [vmem:[%s1330 + $0x20] sm:$0xff]
        %v3693 = vld [vmem:[%s1330 + $0x28] sm:$0xff]
        %v3694 = vld [vmem:[%s1357] sm:$0xff]
        %v3695 = vld [vmem:[%s1357 + $0x8] sm:$0xff]
        %v3696 = vld [vmem:[%s1357 + $0x10] sm:$0xff]
        %v3697 = vld [vmem:[%s1357 + $0x18] sm:$0xff]
        %v3698 = vld [vmem:[%s1357 + $0x20] sm:$0xff]
        %v3699 = vld [vmem:[%s1357 + $0x28] sm:$0xff]
        %v3700 = vpack.c.bf16 %v3688, %v3688
        %v3701 = vpack.c.bf16 %v3689, %v3689
        %v3702 = vpack.c.bf16 %v3690, %v3690
        %v3703 = vpack.c.bf16 %v3691, %v3691
        %v3704 = vpack.c.bf16 %v3692, %v3692
        %v3705 = vpack.c.bf16 %v3693, %v3693
        %3706 = vmatprep.subr.bf16.mxu0 %v2433
        %3707 = vmatpush1.bf16.msra.mxu0 %v2432
        %3708 = vmatprep.subr.bf16.mxu0 %v2431
        %3709 = vmatpush1.bf16.msra.mxu0 %v2430
        %3710 = vmatprep.subr.bf16.mxu0 %v2429
        %3711 = vmatpush1.bf16.msra.mxu0 %v2428
        %3712 = vmatprep.subr.bf16.mxu0 %v2427
        %3713 = vmatpush1.bf16.msra.mxu0 %v2426
        %3714 = vmatprep.subr.bf16.mxu0 %v2425
        %3715 = vmatpush1.bf16.msra.mxu0 %v2424
        %3716 = vmatprep.subr.bf16.mxu0 %v2423
        %3717 = vmatpush1.bf16.msra.mxu0 %v2422
        %3718 = vmatprep.subr.bf16.mxu0 %v2421
        %3719 = vmatpush1.bf16.msra.mxu0 %v2420
        %3720 = vmatprep.subr.bf16.mxu0 %v2419
        %3721 = vmatpush1.bf16.msra.mxu0 %v2418
        %3722 = vmatprep.subr.bf16.mxu0 %v2449
        %3723 = vmatpush2.bf16.msra.mxu0 %v2448
        %3724 = vmatprep.subr.bf16.mxu0 %v2447
        %3725 = vmatpush2.bf16.msra.mxu0 %v2446
        %3726 = vmatprep.subr.bf16.mxu0 %v2445
        %3727 = vmatpush2.bf16.msra.mxu0 %v2444
        %3728 = vmatprep.subr.bf16.mxu0 %v2443
        %3729 = vmatpush2.bf16.msra.mxu0 %v2442
        %3730 = vmatprep.subr.bf16.mxu0 %v2441
        %3731 = vmatpush2.bf16.msra.mxu0 %v2440
        %3732 = vmatprep.subr.bf16.mxu0 %v2439
        %3733 = vmatpush2.bf16.msra.mxu0 %v2438
        %3734 = vmatprep.subr.bf16.mxu0 %v2437
        %3735 = vmatpush2.bf16.msra.mxu0 %v2436
        %3736 = vmatprep.subr.bf16.mxu0 %v2435
        %3737 = vmatpush2.bf16.msra.mxu0 %v2434
        %3738 = vmatprep.mubr.bf16.mxu0 %v3701
        %3739 = vmatmul.mubr.bf16.gmra.mxu0 %v3700
        %v3740 = vpop.f32.mrf.mxu0
        %v3741 = vadd.f32 %v2123, %v3740
        %v3742 = vpop.f32.mrf.mxu0
        %v3743 = vadd.f32 %v2127, %v3742
        %v3744 = vpop.f32.mrf.mxu0
        %v3745 = vpop.f32.mrf.mxu0
        %3746 = vdwg.mxu0
        %3747 = vmatprep.subr.bf16.mxu0 %v2465
        %3748 = vmatpush1.bf16.msra.mxu0 %v2464
        %3749 = vmatprep.subr.bf16.mxu0 %v2463
        %3750 = vmatpush1.bf16.msra.mxu0 %v2462
        %3751 = vmatprep.subr.bf16.mxu0 %v2461
        %3752 = vmatpush1.bf16.msra.mxu0 %v2460
        %3753 = vmatprep.subr.bf16.mxu0 %v2459
        %3754 = vmatpush1.bf16.msra.mxu0 %v2458
        %3755 = vmatprep.subr.bf16.mxu0 %v2457
        %3756 = vmatpush1.bf16.msra.mxu0 %v2456
        %3757 = vmatprep.subr.bf16.mxu0 %v2455
        %3758 = vmatpush1.bf16.msra.mxu0 %v2454
        %3759 = vmatprep.subr.bf16.mxu0 %v2453
        %3760 = vmatpush1.bf16.msra.mxu0 %v2452
        %3761 = vmatprep.subr.bf16.mxu0 %v2451
        %3762 = vmatpush1.bf16.msra.mxu0 %v2450
        %3763 = vmatprep.subr.bf16.mxu0 %v2481
        %3764 = vmatpush2.bf16.msra.mxu0 %v2480
        %3765 = vmatprep.subr.bf16.mxu0 %v2479
        %3766 = vmatpush2.bf16.msra.mxu0 %v2478
        %3767 = vmatprep.subr.bf16.mxu0 %v2477
        %3768 = vmatpush2.bf16.msra.mxu0 %v2476
        %3769 = vmatprep.subr.bf16.mxu0 %v2475
        %3770 = vmatpush2.bf16.msra.mxu0 %v2474
        %3771 = vmatprep.subr.bf16.mxu0 %v2473
        %3772 = vmatpush2.bf16.msra.mxu0 %v2472
        %3773 = vmatprep.subr.bf16.mxu0 %v2471
        %3774 = vmatpush2.bf16.msra.mxu0 %v2470
        %3775 = vmatprep.subr.bf16.mxu0 %v2469
        %3776 = vmatpush2.bf16.msra.mxu0 %v2468
        %3777 = vmatprep.subr.bf16.mxu0 %v2467
        %3778 = vmatpush2.bf16.msra.mxu0 %v2466
        %3779 = vmatprep.mubr.bf16.mxu0 %v3703
        %3780 = vmatmul.mubr.bf16.gmra.mxu0 %v3702
        %v3781 = vpop.f32.mrf.mxu0
        %v3782 = vadd.f32 %v3741, %v3781
        %v3783 = vpop.f32.mrf.mxu0
        %v3784 = vadd.f32 %v3743, %v3783
        %v3785 = vpop.f32.mrf.mxu0
        %v3786 = vpop.f32.mrf.mxu0
        %3787 = vdwg.mxu0
        %3788 = vmatprep.subr.bf16.mxu0 %v2497
        %3789 = vmatpush1.bf16.msra.mxu0 %v2496
        %3790 = vmatprep.subr.bf16.mxu0 %v2495
        %3791 = vmatpush1.bf16.msra.mxu0 %v2494
        %3792 = vmatprep.subr.bf16.mxu0 %v2493
        %3793 = vmatpush1.bf16.msra.mxu0 %v2492
        %3794 = vmatprep.subr.bf16.mxu0 %v2491
        %3795 = vmatpush1.bf16.msra.mxu0 %v2490
        %3796 = vmatprep.subr.bf16.mxu0 %v2489
        %3797 = vmatpush1.bf16.msra.mxu0 %v2488
        %3798 = vmatprep.subr.bf16.mxu0 %v2487
        %3799 = vmatpush1.bf16.msra.mxu0 %v2486
        %3800 = vmatprep.subr.bf16.mxu0 %v2485
        %3801 = vmatpush1.bf16.msra.mxu0 %v2484
        %3802 = vmatprep.subr.bf16.mxu0 %v2483
        %3803 = vmatpush1.bf16.msra.mxu0 %v2482
        %3804 = vmatprep.subr.bf16.mxu0 %v2513
        %3805 = vmatpush2.bf16.msra.mxu0 %v2512
        %3806 = vmatprep.subr.bf16.mxu0 %v2511
        %3807 = vmatpush2.bf16.msra.mxu0 %v2510
        %3808 = vmatprep.subr.bf16.mxu0 %v2509
        %3809 = vmatpush2.bf16.msra.mxu0 %v2508
        %3810 = vmatprep.subr.bf16.mxu0 %v2507
        %3811 = vmatpush2.bf16.msra.mxu0 %v2506
        %3812 = vmatprep.subr.bf16.mxu0 %v2505
        %3813 = vmatpush2.bf16.msra.mxu0 %v2504
        %3814 = vmatprep.subr.bf16.mxu0 %v2503
        %3815 = vmatpush2.bf16.msra.mxu0 %v2502
        %3816 = vmatprep.subr.bf16.mxu0 %v2501
        %3817 = vmatpush2.bf16.msra.mxu0 %v2500
        %3818 = vmatprep.subr.bf16.mxu0 %v2499
        %3819 = vmatpush2.bf16.msra.mxu0 %v2498
        %3820 = vmatprep.mubr.bf16.mxu0 %v3705
        %3821 = vmatmul.mubr.bf16.gmra.mxu0 %v3704
        %v3822 = vpop.f32.mrf.mxu0
        %v3823 = vadd.f32 %v3782, %v3822
        %v3824 = vpop.f32.mrf.mxu0
        %v3825 = vadd.f32 %v3784, %v3824
        %v3826 = vpop.f32.mrf.mxu0
        %v3827 = vpop.f32.mrf.mxu0
        %3828 = vdwg.mxu0
        %v3829 = vpack.c.bf16 %v3694, %v3694
        %v3830 = vpack.c.bf16 %v3695, %v3695
        %v3831 = vpack.c.bf16 %v3696, %v3696
        %v3832 = vpack.c.bf16 %v3697, %v3697
        %v3833 = vpack.c.bf16 %v3698, %v3698
        %v3834 = vpack.c.bf16 %v3699, %v3699
        %3835 = vmatprep.subr.bf16.mxu0 %v3053
        %3836 = vmatpush1.bf16.msra.mxu0 %v3052
        %3837 = vmatprep.subr.bf16.mxu0 %v3051
        %3838 = vmatpush1.bf16.msra.mxu0 %v3050
        %3839 = vmatprep.subr.bf16.mxu0 %v3049
        %3840 = vmatpush1.bf16.msra.mxu0 %v3048
        %3841 = vmatprep.subr.bf16.mxu0 %v3047
        %3842 = vmatpush1.bf16.msra.mxu0 %v3046
        %3843 = vmatprep.subr.bf16.mxu0 %v3045
        %3844 = vmatpush1.bf16.msra.mxu0 %v3044
        %3845 = vmatprep.subr.bf16.mxu0 %v3043
        %3846 = vmatpush1.bf16.msra.mxu0 %v3042
        %3847 = vmatprep.subr.bf16.mxu0 %v3041
        %3848 = vmatpush1.bf16.msra.mxu0 %v3040
        %3849 = vmatprep.subr.bf16.mxu0 %v3039
        %3850 = vmatpush1.bf16.msra.mxu0 %v3038
        %3851 = vmatprep.subr.bf16.mxu0 %v3069
        %3852 = vmatpush2.bf16.msra.mxu0 %v3068
        %3853 = vmatprep.subr.bf16.mxu0 %v3067
        %3854 = vmatpush2.bf16.msra.mxu0 %v3066
        %3855 = vmatprep.subr.bf16.mxu0 %v3065
        %3856 = vmatpush2.bf16.msra.mxu0 %v3064
        %3857 = vmatprep.subr.bf16.mxu0 %v3063
        %3858 = vmatpush2.bf16.msra.mxu0 %v3062
        %3859 = vmatprep.subr.bf16.mxu0 %v3061
        %3860 = vmatpush2.bf16.msra.mxu0 %v3060
        %3861 = vmatprep.subr.bf16.mxu0 %v3059
        %3862 = vmatpush2.bf16.msra.mxu0 %v3058
        %3863 = vmatprep.subr.bf16.mxu0 %v3057
        %3864 = vmatpush2.bf16.msra.mxu0 %v3056
        %3865 = vmatprep.subr.bf16.mxu0 %v3055
        %3866 = vmatpush2.bf16.msra.mxu0 %v3054
        %3867 = vmatprep.mubr.bf16.mxu0 %v3830
        %3868 = vmatmul.mubr.bf16.gmra.mxu0 %v3829
        %v3869 = vpop.f32.mrf.mxu0
        %v3870 = vadd.f32 %v2743, %v3869
        %v3871 = vpop.f32.mrf.mxu0
        %v3872 = vadd.f32 %v2747, %v3871
        %v3873 = vpop.f32.mrf.mxu0
        %v3874 = vpop.f32.mrf.mxu0
        %3875 = vdwg.mxu0
        %3876 = vmatprep.subr.bf16.mxu0 %v3085
        %3877 = vmatpush1.bf16.msra.mxu0 %v3084
        %3878 = vmatprep.subr.bf16.mxu0 %v3083
        %3879 = vmatpush1.bf16.msra.mxu0 %v3082
        %3880 = vmatprep.subr.bf16.mxu0 %v3081
        %3881 = vmatpush1.bf16.msra.mxu0 %v3080
        %3882 = vmatprep.subr.bf16.mxu0 %v3079
        %3883 = vmatpush1.bf16.msra.mxu0 %v3078
        %3884 = vmatprep.subr.bf16.mxu0 %v3077
        %3885 = vmatpush1.bf16.msra.mxu0 %v3076
        %3886 = vmatprep.subr.bf16.mxu0 %v3075
        %3887 = vmatpush1.bf16.msra.mxu0 %v3074
        %3888 = vmatprep.subr.bf16.mxu0 %v3073
        %3889 = vmatpush1.bf16.msra.mxu0 %v3072
        %3890 = vmatprep.subr.bf16.mxu0 %v3071
        %3891 = vmatpush1.bf16.msra.mxu0 %v3070
        %3892 = vmatprep.subr.bf16.mxu0 %v3101
        %3893 = vmatpush2.bf16.msra.mxu0 %v3100
        %3894 = vmatprep.subr.bf16.mxu0 %v3099
        %3895 = vmatpush2.bf16.msra.mxu0 %v3098
        %3896 = vmatprep.subr.bf16.mxu0 %v3097
        %3897 = vmatpush2.bf16.msra.mxu0 %v3096
        %3898 = vmatprep.subr.bf16.mxu0 %v3095
        %3899 = vmatpush2.bf16.msra.mxu0 %v3094
        %3900 = vmatprep.subr.bf16.mxu0 %v3093
        %3901 = vmatpush2.bf16.msra.mxu0 %v3092
        %3902 = vmatprep.subr.bf16.mxu0 %v3091
        %3903 = vmatpush2.bf16.msra.mxu0 %v3090
        %3904 = vmatprep.subr.bf16.mxu0 %v3089
        %3905 = vmatpush2.bf16.msra.mxu0 %v3088
        %3906 = vmatprep.subr.bf16.mxu0 %v3087
        %3907 = vmatpush2.bf16.msra.mxu0 %v3086
        %3908 = vmatprep.mubr.bf16.mxu0 %v3832
        %3909 = vmatmul.mubr.bf16.gmra.mxu0 %v3831
        %v3910 = vpop.f32.mrf.mxu0
        %v3911 = vadd.f32 %v3870, %v3910
        %v3912 = vpop.f32.mrf.mxu0
        %v3913 = vadd.f32 %v3872, %v3912
        %v3914 = vpop.f32.mrf.mxu0
        %v3915 = vpop.f32.mrf.mxu0
        %3916 = vdwg.mxu0
        %3917 = vmatprep.subr.bf16.mxu0 %v3117
        %3918 = vmatpush1.bf16.msra.mxu0 %v3116
        %3919 = vmatprep.subr.bf16.mxu0 %v3115
        %3920 = vmatpush1.bf16.msra.mxu0 %v3114
        %3921 = vmatprep.subr.bf16.mxu0 %v3113
        %3922 = vmatpush1.bf16.msra.mxu0 %v3112
        %3923 = vmatprep.subr.bf16.mxu0 %v3111
        %3924 = vmatpush1.bf16.msra.mxu0 %v3110
        %3925 = vmatprep.subr.bf16.mxu0 %v3109
        %3926 = vmatpush1.bf16.msra.mxu0 %v3108
        %3927 = vmatprep.subr.bf16.mxu0 %v3107
        %3928 = vmatpush1.bf16.msra.mxu0 %v3106
        %3929 = vmatprep.subr.bf16.mxu0 %v3105
        %3930 = vmatpush1.bf16.msra.mxu0 %v3104
        %3931 = vmatprep.subr.bf16.mxu0 %v3103
        %3932 = vmatpush1.bf16.msra.mxu0 %v3102
        %3933 = vmatprep.subr.bf16.mxu0 %v3133
        %3934 = vmatpush2.bf16.msra.mxu0 %v3132
        %3935 = vmatprep.subr.bf16.mxu0 %v3131
        %3936 = vmatpush2.bf16.msra.mxu0 %v3130
        %3937 = vmatprep.subr.bf16.mxu0 %v3129
        %3938 = vmatpush2.bf16.msra.mxu0 %v3128
        %3939 = vmatprep.subr.bf16.mxu0 %v3127
        %3940 = vmatpush2.bf16.msra.mxu0 %v3126
        %3941 = vmatprep.subr.bf16.mxu0 %v3125
        %3942 = vmatpush2.bf16.msra.mxu0 %v3124
        %3943 = vmatprep.subr.bf16.mxu0 %v3123
        %3944 = vmatpush2.bf16.msra.mxu0 %v3122
        %3945 = vmatprep.subr.bf16.mxu0 %v3121
        %3946 = vmatpush2.bf16.msra.mxu0 %v3120
        %3947 = vmatprep.subr.bf16.mxu0 %v3119
        %3948 = vmatpush2.bf16.msra.mxu0 %v3118
        %3949 = vmatprep.mubr.bf16.mxu0 %v3834
        %3950 = vmatmul.mubr.bf16.gmra.mxu0 %v3833
        %v3951 = vpop.f32.mrf.mxu0
        %v3952 = vadd.f32 %v3911, %v3951
        %v3953 = vpop.f32.mrf.mxu0
        %v3954 = vadd.f32 %v3913, %v3953
        %v3955 = vpop.f32.mrf.mxu0
        %v3956 = vpop.f32.mrf.mxu0
        %3957 = vdwg.mxu0
        %v3958 = vmul.f32 %v3688, %v3357
        %v3959 = vmul.f32 %v3689, %v3361
        %v3960 = vmul.f32 %v3690, %v3365
        %v3961 = vmul.f32 %v3691, %v3369
        %v3962 = vmul.f32 %v3692, %v3373
        %v3963 = vmul.f32 %v3693, %v3377
        %v3964 = vadd.f32 %v3958, %v3959
        %v3965 = vadd.f32 %v3964, %v3960
        %v3966 = vadd.f32 %v3965, %v3961
        %v3967 = vadd.f32 %v3966, %v3962
        %v3968 = vadd.f32 %v3967, %v3963
        %3969 = vadd.xlane.f32.xlu0 %v3968
        %v3970 = vpop.xlane.xlu0 %3969
        %v3971 = vadd.f32 %v3970, %v3401
        %v3972 = vxor.u32 %v2727, 2147483648
        %v3973 = vxor.u32 %v2729, 2147483648
        %v3974 = vmul.f32 %v3972, 1.442695
        %v3975 = vpow.pop %v3974
        %v3976 = vmul.f32 %v3973, 1.442695
        %v3977 = vpow.pop %v3976
        %v3978 = vadd.f32 %v3975, 1.0
        %v3979 = vadd.f32 %v3977, 1.0
        %v3980 = vrcp.pop %v3978
        %v3981 = vmul.f32 1.0, %v3980
        %v3982 = vrcp.pop %v3979
        %v3983 = vmul.f32 1.0, %v3982
        %v3984 = vxor.u32 %v3347, 2147483648
        %v3985 = vxor.u32 %v3349, 2147483648
        %v3986 = vmul.f32 %v3984, 1.442695
        %v3987 = vpow.pop %v3986
        %v3988 = vmul.f32 %v3985, 1.442695
        %v3989 = vpow.pop %v3988
        %v3990 = vadd.f32 %v3987, 1.0
        %v3991 = vadd.f32 %v3989, 1.0
        %v3992 = vrcp.pop %v3990
        %v3993 = vmul.f32 1.0, %v3992
        %v3994 = vrcp.pop %v3991
        %v3995 = vmul.f32 1.0, %v3994
        %v3996 = vxor.u32 %v3403, 2147483648
        %v3997 = vmul.f32 %v3996, 1.442695
        %v3998 = vpow.pop %v3997
        %v3999 = vadd.f32 %v3998, 1.0
        %v4000 = vrcp.pop %v3999
        %v4001 = vmul.f32 1.0, %v4000
        %v4002 = vxor.u32 %v4001, 2147483648
        %v4003 = vmul.f32 %v4002, 1.442695
        %v4004 = vpow.pop %v4003
        %v4005 = vadd.f32 %v4004, 1.0
        %v4006 = vrcp.pop %v4005
        %v4007 = vmul.f32 1.0, %v4006
        %v4008 = vmul.f32 %v4007, 10.0
        %v4009 = vxor.u32 %v3687, 2147483648
        %v4010 = vmul.f32 %v4009, 1.442695
        %v4011 = vpow.pop %v4010
        %v4012 = vadd.f32 %v4011, 1.0
        %v4013 = vrcp.pop %v4012
        %v4014 = vmul.f32 1.0, %v4013
        %v4015 = vmul.f32 %v4014, 10.0
        %v4016 = vxor.u32 %v3971, 2147483648
        %v4017 = vmul.f32 %v4016, 1.442695
        %v4018 = vpow.pop %v4017
        %v4019 = vadd.f32 %v4018, 1.0
        %v4020 = vrcp.pop %v4019
        %v4021 = vmul.f32 1.0, %v4020
        %v4022 = vmul.f32 %v4021, 10.0
        %v4023 = vld [vmem:[#allocation27] sm:$0xf]
        %v4024 = vld [vmem:[#allocation27 + $0x4] sm:$0xf]
        %v4025 = vld [vmem:[#allocation27 + $0x8] sm:$0xf]
        %v4026 = vld [vmem:[#allocation27 + $0xc] sm:$0xf]
        %v4027 = vld [vmem:[#allocation27 + $0x10] sm:$0xf]
        %v4028 = vld [vmem:[#allocation27 + $0x14] sm:$0xf]
        %v4029 = vld [vmem:[#allocation27 + $0x18] sm:$0xf]
        %v4030 = vld [vmem:[#allocation27 + $0x1c] sm:$0xf]
        %v4031 = vld [vmem:[#allocation27 + $0x20] sm:$0xf]
        %v4032 = vld [vmem:[#allocation27 + $0x24] sm:$0xf]
        %v4033 = vld [vmem:[#allocation27 + $0x28] sm:$0xf]
        %v4034 = vld [vmem:[#allocation27 + $0x2c] sm:$0xf]
        %v4035 = vld [vmem:[#allocation27 + $0x30] sm:$0xf]
        %v4036 = vld [vmem:[#allocation27 + $0x34] sm:$0xf]
        %v4037 = vld [vmem:[#allocation27 + $0x38] sm:$0xf]
        %v4038 = vld [vmem:[#allocation27 + $0x3c] sm:$0xf]
        %v4039 = vld [vmem:[#allocation27 + $0x40] sm:$0xf]
        %v4040 = vld [vmem:[#allocation27 + $0x44] sm:$0xf]
        %v4041 = vld [vmem:[#allocation27 + $0x48] sm:$0xf]
        %v4042 = vld [vmem:[#allocation27 + $0x4c] sm:$0xf]
        %v4043 = vld [vmem:[#allocation27 + $0x50] sm:$0xf]
        %v4044 = vld [vmem:[#allocation27 + $0x54] sm:$0xf]
        %v4045 = vld [vmem:[#allocation27 + $0x58] sm:$0xf]
        %v4046 = vld [vmem:[#allocation27 + $0x5c] sm:$0xf]
        %v4047 = vld [vmem:[#allocation27 + $0x60] sm:$0xf]
        %v4048 = vld [vmem:[#allocation27 + $0x64] sm:$0xf]
        %v4049 = vld [vmem:[#allocation27 + $0x68] sm:$0xf]
        %v4050 = vld [vmem:[#allocation27 + $0x6c] sm:$0xf]
        %v4051 = vld [vmem:[#allocation27 + $0x70] sm:$0xf]
        %v4052 = vld [vmem:[#allocation27 + $0x74] sm:$0xf]
        %v4053 = vld [vmem:[#allocation27 + $0x78] sm:$0xf]
        %v4054 = vld [vmem:[#allocation27 + $0x7c] sm:$0xf]
        %v4055 = vld [vmem:[#allocation29] sm:$0xf]
        %v4056 = vld [vmem:[#allocation29 + $0x4] sm:$0xf]
        %v4057 = vld [vmem:[#allocation29 + $0x8] sm:$0xf]
        %v4058 = vld [vmem:[#allocation29 + $0xc] sm:$0xf]
        %v4059 = vld [vmem:[#allocation29 + $0x10] sm:$0xf]
        %v4060 = vld [vmem:[#allocation29 + $0x14] sm:$0xf]
        %v4061 = vld [vmem:[#allocation29 + $0x18] sm:$0xf]
        %v4062 = vld [vmem:[#allocation29 + $0x1c] sm:$0xf]
        %v4063 = vld [vmem:[#allocation29 + $0x20] sm:$0xf]
        %v4064 = vld [vmem:[#allocation29 + $0x24] sm:$0xf]
        %v4065 = vld [vmem:[#allocation29 + $0x28] sm:$0xf]
        %v4066 = vld [vmem:[#allocation29 + $0x2c] sm:$0xf]
        %v4067 = vld [vmem:[#allocation29 + $0x30] sm:$0xf]
        %v4068 = vld [vmem:[#allocation29 + $0x34] sm:$0xf]
        %v4069 = vld [vmem:[#allocation29 + $0x38] sm:$0xf]
        %v4070 = vld [vmem:[#allocation29 + $0x3c] sm:$0xf]
        %v4071 = vld [vmem:[#allocation29 + $0x40] sm:$0xf]
        %v4072 = vld [vmem:[#allocation29 + $0x44] sm:$0xf]
        %v4073 = vld [vmem:[#allocation29 + $0x48] sm:$0xf]
        %v4074 = vld [vmem:[#allocation29 + $0x4c] sm:$0xf]
        %v4075 = vld [vmem:[#allocation29 + $0x50] sm:$0xf]
        %v4076 = vld [vmem:[#allocation29 + $0x54] sm:$0xf]
        %v4077 = vld [vmem:[#allocation29 + $0x58] sm:$0xf]
        %v4078 = vld [vmem:[#allocation29 + $0x5c] sm:$0xf]
        %v4079 = vld [vmem:[#allocation29 + $0x60] sm:$0xf]
        %v4080 = vld [vmem:[#allocation29 + $0x64] sm:$0xf]
        %v4081 = vld [vmem:[#allocation29 + $0x68] sm:$0xf]
        %v4082 = vld [vmem:[#allocation29 + $0x6c] sm:$0xf]
        %v4083 = vld [vmem:[#allocation29 + $0x70] sm:$0xf]
        %v4084 = vld [vmem:[#allocation29 + $0x74] sm:$0xf]
        %v4085 = vld [vmem:[#allocation29 + $0x78] sm:$0xf]
        %v4086 = vld [vmem:[#allocation29 + $0x7c] sm:$0xf]
        %v4087 = vld [vmem:[#allocation30] sm:$0x1]
        %v4088 = vld [vmem:[#allocation32] sm:$0xf]
        %v4089 = vld [vmem:[#allocation32 + $0x4] sm:$0xf]
        %v4090 = vld [vmem:[#allocation32 + $0x8] sm:$0xf]
        %v4091 = vld [vmem:[#allocation32 + $0xc] sm:$0xf]
        %v4092 = vld [vmem:[#allocation32 + $0x10] sm:$0xf]
        %v4093 = vld [vmem:[#allocation32 + $0x14] sm:$0xf]
        %v4094 = vld [vmem:[#allocation32 + $0x18] sm:$0xf]
        %v4095 = vld [vmem:[#allocation32 + $0x1c] sm:$0xf]
        %v4096 = vld [vmem:[#allocation32 + $0x20] sm:$0xf]
        %v4097 = vld [vmem:[#allocation32 + $0x24] sm:$0xf]
        %v4098 = vld [vmem:[#allocation32 + $0x28] sm:$0xf]
        %v4099 = vld [vmem:[#allocation32 + $0x2c] sm:$0xf]
        %v4100 = vld [vmem:[#allocation32 + $0x30] sm:$0xf]
        %v4101 = vld [vmem:[#allocation32 + $0x34] sm:$0xf]
        %v4102 = vld [vmem:[#allocation32 + $0x38] sm:$0xf]
        %v4103 = vld [vmem:[#allocation32 + $0x3c] sm:$0xf]
        %v4104 = vld [vmem:[#allocation32 + $0x40] sm:$0xf]
        %v4105 = vld [vmem:[#allocation32 + $0x44] sm:$0xf]
        %v4106 = vld [vmem:[#allocation32 + $0x48] sm:$0xf]
        %v4107 = vld [vmem:[#allocation32 + $0x4c] sm:$0xf]
        %v4108 = vld [vmem:[#allocation32 + $0x50] sm:$0xf]
        %v4109 = vld [vmem:[#allocation32 + $0x54] sm:$0xf]
        %v4110 = vld [vmem:[#allocation32 + $0x58] sm:$0xf]
        %v4111 = vld [vmem:[#allocation32 + $0x5c] sm:$0xf]
        %v4112 = vld [vmem:[#allocation32 + $0x60] sm:$0xf]
        %v4113 = vld [vmem:[#allocation32 + $0x64] sm:$0xf]
        %v4114 = vld [vmem:[#allocation32 + $0x68] sm:$0xf]
        %v4115 = vld [vmem:[#allocation32 + $0x6c] sm:$0xf]
        %v4116 = vld [vmem:[#allocation32 + $0x70] sm:$0xf]
        %v4117 = vld [vmem:[#allocation32 + $0x74] sm:$0xf]
        %v4118 = vld [vmem:[#allocation32 + $0x78] sm:$0xf]
        %v4119 = vld [vmem:[#allocation32 + $0x7c] sm:$0xf]
        %v4120 = vld [vmem:[#allocation33] sm:$0xf]
        %v4121 = vld [vmem:[#allocation33 + $0x4] sm:$0xf]
        %v4122 = vld [vmem:[#allocation33 + $0x8] sm:$0xf]
        %v4123 = vld [vmem:[#allocation33 + $0xc] sm:$0xf]
        %v4124 = vld [vmem:[#allocation33 + $0x10] sm:$0xf]
        %v4125 = vld [vmem:[#allocation33 + $0x14] sm:$0xf]
        %v4126 = vld [vmem:[#allocation33 + $0x18] sm:$0xf]
        %v4127 = vld [vmem:[#allocation33 + $0x1c] sm:$0xf]
        %v4128 = vld [vmem:[#allocation33 + $0x20] sm:$0xf]
        %v4129 = vld [vmem:[#allocation33 + $0x24] sm:$0xf]
        %v4130 = vld [vmem:[#allocation33 + $0x28] sm:$0xf]
        %v4131 = vld [vmem:[#allocation33 + $0x2c] sm:$0xf]
        %v4132 = vld [vmem:[#allocation33 + $0x30] sm:$0xf]
        %v4133 = vld [vmem:[#allocation33 + $0x34] sm:$0xf]
        %v4134 = vld [vmem:[#allocation33 + $0x38] sm:$0xf]
        %v4135 = vld [vmem:[#allocation33 + $0x3c] sm:$0xf]
        %v4136 = vld [vmem:[#allocation33 + $0x40] sm:$0xf]
        %v4137 = vld [vmem:[#allocation33 + $0x44] sm:$0xf]
        %v4138 = vld [vmem:[#allocation33 + $0x48] sm:$0xf]
        %v4139 = vld [vmem:[#allocation33 + $0x4c] sm:$0xf]
        %v4140 = vld [vmem:[#allocation33 + $0x50] sm:$0xf]
        %v4141 = vld [vmem:[#allocation33 + $0x54] sm:$0xf]
        %v4142 = vld [vmem:[#allocation33 + $0x58] sm:$0xf]
        %v4143 = vld [vmem:[#allocation33 + $0x5c] sm:$0xf]
        %v4144 = vld [vmem:[#allocation33 + $0x60] sm:$0xf]
        %v4145 = vld [vmem:[#allocation33 + $0x64] sm:$0xf]
        %v4146 = vld [vmem:[#allocation33 + $0x68] sm:$0xf]
        %v4147 = vld [vmem:[#allocation33 + $0x6c] sm:$0xf]
        %v4148 = vld [vmem:[#allocation33 + $0x70] sm:$0xf]
        %v4149 = vld [vmem:[#allocation33 + $0x74] sm:$0xf]
        %v4150 = vld [vmem:[#allocation33 + $0x78] sm:$0xf]
        %v4151 = vld [vmem:[#allocation33 + $0x7c] sm:$0xf]
        %v4152 = vld [vmem:[#allocation35] sm:$0x1]
        %v4153 = vpack.c.bf16 %v1709, %v1709
        %v4154 = vpack.c.bf16 %v1711, %v1711
        %v4155 = vpack.c.bf16 %v3993, %v3993
        %v4156 = vpack.c.bf16 %v3995, %v3995
        %v4189 = vunpack.c.l.b16 %v4055
        %v4190 = vunpack.c.l.b16 %v4056
        %v4191 = vunpack.c.l.b16 %v4057
        %v4192 = vunpack.c.l.b16 %v4058
        %v4193 = vunpack.c.l.b16 %v4059
        %v4194 = vunpack.c.l.b16 %v4060
        %v4195 = vunpack.c.l.b16 %v4061
        %v4196 = vunpack.c.l.b16 %v4062
        %v4197 = vunpack.c.l.b16 %v4063
        %v4198 = vunpack.c.l.b16 %v4064
        %v4199 = vunpack.c.l.b16 %v4065
        %v4200 = vunpack.c.l.b16 %v4066
        %v4201 = vunpack.c.l.b16 %v4067
        %v4202 = vunpack.c.l.b16 %v4068
        %v4203 = vunpack.c.l.b16 %v4069
        %v4204 = vunpack.c.l.b16 %v4070
        %v4205 = vunpack.c.l.b16 %v4071
        %v4206 = vunpack.c.l.b16 %v4072
        %v4207 = vunpack.c.l.b16 %v4073
        %v4208 = vunpack.c.l.b16 %v4074
        %v4209 = vunpack.c.l.b16 %v4075
        %v4210 = vunpack.c.l.b16 %v4076
        %v4211 = vunpack.c.l.b16 %v4077
        %v4212 = vunpack.c.l.b16 %v4078
        %v4213 = vunpack.c.l.b16 %v4079
        %v4214 = vunpack.c.l.b16 %v4080
        %v4215 = vunpack.c.l.b16 %v4081
        %v4216 = vunpack.c.l.b16 %v4082
        %v4217 = vunpack.c.l.b16 %v4083
        %v4218 = vunpack.c.l.b16 %v4084
        %v4219 = vunpack.c.l.b16 %v4085
        %v4220 = vunpack.c.l.b16 %v4086
        %v4221 = vpack.c.b16 %v4190, %v4189
        %v4222 = vpack.c.b16 %v4192, %v4191
        %v4223 = vpack.c.b16 %v4194, %v4193
        %v4224 = vpack.c.b16 %v4196, %v4195
        %v4225 = vpack.c.b16 %v4198, %v4197
        %v4226 = vpack.c.b16 %v4200, %v4199
        %v4227 = vpack.c.b16 %v4202, %v4201
        %v4228 = vpack.c.b16 %v4204, %v4203
        %v4229 = vpack.c.b16 %v4206, %v4205
        %v4230 = vpack.c.b16 %v4208, %v4207
        %v4231 = vpack.c.b16 %v4210, %v4209
        %v4232 = vpack.c.b16 %v4212, %v4211
        %v4233 = vpack.c.b16 %v4214, %v4213
        %v4234 = vpack.c.b16 %v4216, %v4215
        %v4235 = vpack.c.b16 %v4218, %v4217
        %v4236 = vpack.c.b16 %v4220, %v4219
        %4253 = vmatprep.subr.bf16.mxu0 0
        %4254 = vmatpush1.bf16.msra.mxu0 %v4228
        %4255 = vmatprep.subr.bf16.mxu0 0
        %4256 = vmatpush1.bf16.msra.mxu0 %v4227
        %4257 = vmatprep.subr.bf16.mxu0 0
        %4258 = vmatpush1.bf16.msra.mxu0 %v4226
        %4259 = vmatprep.subr.bf16.mxu0 0
        %4260 = vmatpush1.bf16.msra.mxu0 %v4225
        %4261 = vmatprep.subr.bf16.mxu0 0
        %4262 = vmatpush1.bf16.msra.mxu0 %v4224
        %4263 = vmatprep.subr.bf16.mxu0 0
        %4264 = vmatpush1.bf16.msra.mxu0 %v4223
        %4265 = vmatprep.subr.bf16.mxu0 0
        %4266 = vmatpush1.bf16.msra.mxu0 %v4222
        %4267 = vmatprep.subr.bf16.mxu0 0
        %4268 = vmatpush1.bf16.msra.mxu0 %v4221
        %4269 = vmatprep.subr.bf16.mxu0 0
        %4270 = vmatpush2.bf16.msra.mxu0 %v4236
        %4271 = vmatprep.subr.bf16.mxu0 0
        %4272 = vmatpush2.bf16.msra.mxu0 %v4235
        %4273 = vmatprep.subr.bf16.mxu0 0
        %4274 = vmatpush2.bf16.msra.mxu0 %v4234
        %4275 = vmatprep.subr.bf16.mxu0 0
        %4276 = vmatpush2.bf16.msra.mxu0 %v4233
        %4277 = vmatprep.subr.bf16.mxu0 0
        %4278 = vmatpush2.bf16.msra.mxu0 %v4232
        %4279 = vmatprep.subr.bf16.mxu0 0
        %4280 = vmatpush2.bf16.msra.mxu0 %v4231
        %4281 = vmatprep.subr.bf16.mxu0 0
        %4282 = vmatpush2.bf16.msra.mxu0 %v4230
        %4283 = vmatprep.subr.bf16.mxu0 0
        %4284 = vmatpush2.bf16.msra.mxu0 %v4229
        %4285 = vmatprep.mubr.bf16.mxu0 %v4156
        %4286 = vmatmul.mubr.bf16.gmra.mxu0 %v4155
        %v4287 = vpop.f32.mrf.mxu0
        %v4288 = vadd.f32 0.0, %v4287
        %v4289 = vpop.f32.mrf.mxu0
        %v4290 = vpop.f32.mrf.mxu0
        %v4291 = vpop.f32.mrf.mxu0
        %4292 = vdwg.mxu0
        %v4325 = vunpack.c.l.b16 %v4023
        %v4326 = vunpack.c.l.b16 %v4024
        %v4327 = vunpack.c.l.b16 %v4025
        %v4328 = vunpack.c.l.b16 %v4026
        %v4329 = vunpack.c.l.b16 %v4027
        %v4330 = vunpack.c.l.b16 %v4028
        %v4331 = vunpack.c.l.b16 %v4029
        %v4332 = vunpack.c.l.b16 %v4030
        %v4333 = vunpack.c.l.b16 %v4031
        %v4334 = vunpack.c.l.b16 %v4032
        %v4335 = vunpack.c.l.b16 %v4033
        %v4336 = vunpack.c.l.b16 %v4034
        %v4337 = vunpack.c.l.b16 %v4035
        %v4338 = vunpack.c.l.b16 %v4036
        %v4339 = vunpack.c.l.b16 %v4037
        %v4340 = vunpack.c.l.b16 %v4038
        %v4341 = vunpack.c.l.b16 %v4039
        %v4342 = vunpack.c.l.b16 %v4040
        %v4343 = vunpack.c.l.b16 %v4041
        %v4344 = vunpack.c.l.b16 %v4042
        %v4345 = vunpack.c.l.b16 %v4043
        %v4346 = vunpack.c.l.b16 %v4044
        %v4347 = vunpack.c.l.b16 %v4045
        %v4348 = vunpack.c.l.b16 %v4046
        %v4349 = vunpack.c.l.b16 %v4047
        %v4350 = vunpack.c.l.b16 %v4048
        %v4351 = vunpack.c.l.b16 %v4049
        %v4352 = vunpack.c.l.b16 %v4050
        %v4353 = vunpack.c.l.b16 %v4051
        %v4354 = vunpack.c.l.b16 %v4052
        %v4355 = vunpack.c.l.b16 %v4053
        %v4356 = vunpack.c.l.b16 %v4054
        %v4357 = vpack.c.b16 %v4326, %v4325
        %v4358 = vpack.c.b16 %v4328, %v4327
        %v4359 = vpack.c.b16 %v4330, %v4329
        %v4360 = vpack.c.b16 %v4332, %v4331
        %v4361 = vpack.c.b16 %v4334, %v4333
        %v4362 = vpack.c.b16 %v4336, %v4335
        %v4363 = vpack.c.b16 %v4338, %v4337
        %v4364 = vpack.c.b16 %v4340, %v4339
        %v4365 = vpack.c.b16 %v4342, %v4341
        %v4366 = vpack.c.b16 %v4344, %v4343
        %v4367 = vpack.c.b16 %v4346, %v4345
        %v4368 = vpack.c.b16 %v4348, %v4347
        %v4369 = vpack.c.b16 %v4350, %v4349
        %v4370 = vpack.c.b16 %v4352, %v4351
        %v4371 = vpack.c.b16 %v4354, %v4353
        %v4372 = vpack.c.b16 %v4356, %v4355
        %4389 = vmatprep.subr.bf16.mxu0 0
        %4390 = vmatpush1.bf16.msra.mxu0 %v4364
        %4391 = vmatprep.subr.bf16.mxu0 0
        %4392 = vmatpush1.bf16.msra.mxu0 %v4363
        %4393 = vmatprep.subr.bf16.mxu0 0
        %4394 = vmatpush1.bf16.msra.mxu0 %v4362
        %4395 = vmatprep.subr.bf16.mxu0 0
        %4396 = vmatpush1.bf16.msra.mxu0 %v4361
        %4397 = vmatprep.subr.bf16.mxu0 0
        %4398 = vmatpush1.bf16.msra.mxu0 %v4360
        %4399 = vmatprep.subr.bf16.mxu0 0
        %4400 = vmatpush1.bf16.msra.mxu0 %v4359
        %4401 = vmatprep.subr.bf16.mxu0 0
        %4402 = vmatpush1.bf16.msra.mxu0 %v4358
        %4403 = vmatprep.subr.bf16.mxu0 0
        %4404 = vmatpush1.bf16.msra.mxu0 %v4357
        %4405 = vmatprep.subr.bf16.mxu0 0
        %4406 = vmatpush2.bf16.msra.mxu0 %v4372
        %4407 = vmatprep.subr.bf16.mxu0 0
        %4408 = vmatpush2.bf16.msra.mxu0 %v4371
        %4409 = vmatprep.subr.bf16.mxu0 0
        %4410 = vmatpush2.bf16.msra.mxu0 %v4370
        %4411 = vmatprep.subr.bf16.mxu0 0
        %4412 = vmatpush2.bf16.msra.mxu0 %v4369
        %4413 = vmatprep.subr.bf16.mxu0 0
        %4414 = vmatpush2.bf16.msra.mxu0 %v4368
        %4415 = vmatprep.subr.bf16.mxu0 0
        %4416 = vmatpush2.bf16.msra.mxu0 %v4367
        %4417 = vmatprep.subr.bf16.mxu0 0
        %4418 = vmatpush2.bf16.msra.mxu0 %v4366
        %4419 = vmatprep.subr.bf16.mxu0 0
        %4420 = vmatpush2.bf16.msra.mxu0 %v4365
        %4421 = vmatprep.mubr.bf16.mxu0 %v4154
        %4422 = vmatmul.mubr.bf16.gmra.mxu0 %v4153
        %v4423 = vpop.f32.mrf.mxu0
        %v4424 = vadd.f32 %v4288, %v4423
        %v4425 = vpop.f32.mrf.mxu0
        %v4426 = vpop.f32.mrf.mxu0
        %v4427 = vpop.f32.mrf.mxu0
        %4428 = vdwg.mxu0
        %v4430 = vlaneseq
        %v4431 = vshrl.u32 %v4430, 7
        %v4432 = vsub.s32 0, %v4431
        %v4433 = vrot.slane %v4087, %v4432
        %v4435 = vadd.f32 %v4424, %v4433
        %v4436 = vxor.u32 %v4435, 2147483648
        %v4437 = vmul.f32 %v4436, 1.442695
        %v4438 = vpow.pop %v4437
        %v4439 = vadd.f32 %v4438, 1.0
        %v4440 = vrcp.pop %v4439
        %v4441 = vmul.f32 1.0, %v4440
        %v4442 = vpack.c.bf16 %v1758, %v1758
        %v4443 = vpack.c.bf16 %v1760, %v1760
        %v4444 = vpack.c.bf16 %v3668, %v3668
        %v4445 = vpack.c.bf16 %v3670, %v3670
        %4446 = vmatprep.subr.bf16.mxu0 0
        %4447 = vmatpush1.bf16.msra.mxu0 %v4228
        %4448 = vmatprep.subr.bf16.mxu0 0
        %4449 = vmatpush1.bf16.msra.mxu0 %v4227
        %4450 = vmatprep.subr.bf16.mxu0 0
        %4451 = vmatpush1.bf16.msra.mxu0 %v4226
        %4452 = vmatprep.subr.bf16.mxu0 0
        %4453 = vmatpush1.bf16.msra.mxu0 %v4225
        %4454 = vmatprep.subr.bf16.mxu0 0
        %4455 = vmatpush1.bf16.msra.mxu0 %v4224
        %4456 = vmatprep.subr.bf16.mxu0 0
        %4457 = vmatpush1.bf16.msra.mxu0 %v4223
        %4458 = vmatprep.subr.bf16.mxu0 0
        %4459 = vmatpush1.bf16.msra.mxu0 %v4222
        %4460 = vmatprep.subr.bf16.mxu0 0
        %4461 = vmatpush1.bf16.msra.mxu0 %v4221
        %4462 = vmatprep.subr.bf16.mxu0 0
        %4463 = vmatpush2.bf16.msra.mxu0 %v4236
        %4464 = vmatprep.subr.bf16.mxu0 0
        %4465 = vmatpush2.bf16.msra.mxu0 %v4235
        %4466 = vmatprep.subr.bf16.mxu0 0
        %4467 = vmatpush2.bf16.msra.mxu0 %v4234
        %4468 = vmatprep.subr.bf16.mxu0 0
        %4469 = vmatpush2.bf16.msra.mxu0 %v4233
        %4470 = vmatprep.subr.bf16.mxu0 0
        %4471 = vmatpush2.bf16.msra.mxu0 %v4232
        %4472 = vmatprep.subr.bf16.mxu0 0
        %4473 = vmatpush2.bf16.msra.mxu0 %v4231
        %4474 = vmatprep.subr.bf16.mxu0 0
        %4475 = vmatpush2.bf16.msra.mxu0 %v4230
        %4476 = vmatprep.subr.bf16.mxu0 0
        %4477 = vmatpush2.bf16.msra.mxu0 %v4229
        %4478 = vmatprep.mubr.bf16.mxu0 %v4445
        %4479 = vmatmul.mubr.bf16.gmra.mxu0 %v4444
        %v4480 = vpop.f32.mrf.mxu0
        %v4481 = vadd.f32 0.0, %v4480
        %v4482 = vpop.f32.mrf.mxu0
        %v4483 = vpop.f32.mrf.mxu0
        %v4484 = vpop.f32.mrf.mxu0
        %4485 = vdwg.mxu0
        %4486 = vmatprep.subr.bf16.mxu0 0
        %4487 = vmatpush1.bf16.msra.mxu0 %v4364
        %4488 = vmatprep.subr.bf16.mxu0 0
        %4489 = vmatpush1.bf16.msra.mxu0 %v4363
        %4490 = vmatprep.subr.bf16.mxu0 0
        %4491 = vmatpush1.bf16.msra.mxu0 %v4362
        %4492 = vmatprep.subr.bf16.mxu0 0
        %4493 = vmatpush1.bf16.msra.mxu0 %v4361
        %4494 = vmatprep.subr.bf16.mxu0 0
        %4495 = vmatpush1.bf16.msra.mxu0 %v4360
        %4496 = vmatprep.subr.bf16.mxu0 0
        %4497 = vmatpush1.bf16.msra.mxu0 %v4359
        %4498 = vmatprep.subr.bf16.mxu0 0
        %4499 = vmatpush1.bf16.msra.mxu0 %v4358
        %4500 = vmatprep.subr.bf16.mxu0 0
        %4501 = vmatpush1.bf16.msra.mxu0 %v4357
        %4502 = vmatprep.subr.bf16.mxu0 0
        %4503 = vmatpush2.bf16.msra.mxu0 %v4372
        %4504 = vmatprep.subr.bf16.mxu0 0
        %4505 = vmatpush2.bf16.msra.mxu0 %v4371
        %4506 = vmatprep.subr.bf16.mxu0 0
        %4507 = vmatpush2.bf16.msra.mxu0 %v4370
        %4508 = vmatprep.subr.bf16.mxu0 0
        %4509 = vmatpush2.bf16.msra.mxu0 %v4369
        %4510 = vmatprep.subr.bf16.mxu0 0
        %4511 = vmatpush2.bf16.msra.mxu0 %v4368
        %4512 = vmatprep.subr.bf16.mxu0 0
        %4513 = vmatpush2.bf16.msra.mxu0 %v4367
        %4514 = vmatprep.subr.bf16.mxu0 0
        %4515 = vmatpush2.bf16.msra.mxu0 %v4366
        %4516 = vmatprep.subr.bf16.mxu0 0
        %4517 = vmatpush2.bf16.msra.mxu0 %v4365
        %4518 = vmatprep.mubr.bf16.mxu0 %v4443
        %4519 = vmatmul.mubr.bf16.gmra.mxu0 %v4442
        %v4520 = vpop.f32.mrf.mxu0
        %v4521 = vadd.f32 %v4481, %v4520
        %v4522 = vpop.f32.mrf.mxu0
        %v4523 = vpop.f32.mrf.mxu0
        %v4524 = vpop.f32.mrf.mxu0
        %4525 = vdwg.mxu0
        %v4526 = vadd.f32 %v4521, %v4433
        %v4527 = vxor.u32 %v4526, 2147483648
        %v4528 = vmul.f32 %v4527, 1.442695
        %v4529 = vpow.pop %v4528
        %v4530 = vadd.f32 %v4529, 1.0
        %v4531 = vrcp.pop %v4530
        %v4532 = vmul.f32 1.0, %v4531
        %v4533 = vpack.c.bf16 %v1858, %v1858
        %v4534 = vpack.c.bf16 %v1860, %v1860
        %v4535 = vpack.c.bf16 %v3952, %v3952
        %v4536 = vpack.c.bf16 %v3954, %v3954
        %4537 = vmatprep.subr.bf16.mxu0 0
        %4538 = vmatpush1.bf16.msra.mxu0 %v4228
        %4539 = vmatprep.subr.bf16.mxu0 0
        %4540 = vmatpush1.bf16.msra.mxu0 %v4227
        %4541 = vmatprep.subr.bf16.mxu0 0
        %4542 = vmatpush1.bf16.msra.mxu0 %v4226
        %4543 = vmatprep.subr.bf16.mxu0 0
        %4544 = vmatpush1.bf16.msra.mxu0 %v4225
        %4545 = vmatprep.subr.bf16.mxu0 0
        %4546 = vmatpush1.bf16.msra.mxu0 %v4224
        %4547 = vmatprep.subr.bf16.mxu0 0
        %4548 = vmatpush1.bf16.msra.mxu0 %v4223
        %4549 = vmatprep.subr.bf16.mxu0 0
        %4550 = vmatpush1.bf16.msra.mxu0 %v4222
        %4551 = vmatprep.subr.bf16.mxu0 0
        %4552 = vmatpush1.bf16.msra.mxu0 %v4221
        %4553 = vmatprep.subr.bf16.mxu0 0
        %4554 = vmatpush2.bf16.msra.mxu0 %v4236
        %4555 = vmatprep.subr.bf16.mxu0 0
        %4556 = vmatpush2.bf16.msra.mxu0 %v4235
        %4557 = vmatprep.subr.bf16.mxu0 0
        %4558 = vmatpush2.bf16.msra.mxu0 %v4234
        %4559 = vmatprep.subr.bf16.mxu0 0
        %4560 = vmatpush2.bf16.msra.mxu0 %v4233
        %4561 = vmatprep.subr.bf16.mxu0 0
        %4562 = vmatpush2.bf16.msra.mxu0 %v4232
        %4563 = vmatprep.subr.bf16.mxu0 0
        %4564 = vmatpush2.bf16.msra.mxu0 %v4231
        %4565 = vmatprep.subr.bf16.mxu0 0
        %4566 = vmatpush2.bf16.msra.mxu0 %v4230
        %4567 = vmatprep.subr.bf16.mxu0 0
        %4568 = vmatpush2.bf16.msra.mxu0 %v4229
        %4569 = vmatprep.mubr.bf16.mxu0 %v4536
        %4570 = vmatmul.mubr.bf16.gmra.mxu0 %v4535
        %v4571 = vpop.f32.mrf.mxu0
        %v4572 = vadd.f32 0.0, %v4571
        %v4573 = vpop.f32.mrf.mxu0
        %v4574 = vpop.f32.mrf.mxu0
        %v4575 = vpop.f32.mrf.mxu0
        %4576 = vdwg.mxu0
        %4577 = vmatprep.subr.bf16.mxu0 0
        %4578 = vmatpush1.bf16.msra.mxu0 %v4364
        %4579 = vmatprep.subr.bf16.mxu0 0
        %4580 = vmatpush1.bf16.msra.mxu0 %v4363
        %4581 = vmatprep.subr.bf16.mxu0 0
        %4582 = vmatpush1.bf16.msra.mxu0 %v4362
        %4583 = vmatprep.subr.bf16.mxu0 0
        %4584 = vmatpush1.bf16.msra.mxu0 %v4361
        %4585 = vmatprep.subr.bf16.mxu0 0
        %4586 = vmatpush1.bf16.msra.mxu0 %v4360
        %4587 = vmatprep.subr.bf16.mxu0 0
        %4588 = vmatpush1.bf16.msra.mxu0 %v4359
        %4589 = vmatprep.subr.bf16.mxu0 0
        %4590 = vmatpush1.bf16.msra.mxu0 %v4358
        %4591 = vmatprep.subr.bf16.mxu0 0
        %4592 = vmatpush1.bf16.msra.mxu0 %v4357
        %4593 = vmatprep.subr.bf16.mxu0 0
        %4594 = vmatpush2.bf16.msra.mxu0 %v4372
        %4595 = vmatprep.subr.bf16.mxu0 0
        %4596 = vmatpush2.bf16.msra.mxu0 %v4371
        %4597 = vmatprep.subr.bf16.mxu0 0
        %4598 = vmatpush2.bf16.msra.mxu0 %v4370
        %4599 = vmatprep.subr.bf16.mxu0 0
        %4600 = vmatpush2.bf16.msra.mxu0 %v4369
        %4601 = vmatprep.subr.bf16.mxu0 0
        %4602 = vmatpush2.bf16.msra.mxu0 %v4368
        %4603 = vmatprep.subr.bf16.mxu0 0
        %4604 = vmatpush2.bf16.msra.mxu0 %v4367
        %4605 = vmatprep.subr.bf16.mxu0 0
        %4606 = vmatpush2.bf16.msra.mxu0 %v4366
        %4607 = vmatprep.subr.bf16.mxu0 0
        %4608 = vmatpush2.bf16.msra.mxu0 %v4365
        %4609 = vmatprep.mubr.bf16.mxu0 %v4534
        %4610 = vmatmul.mubr.bf16.gmra.mxu0 %v4533
        %v4611 = vpop.f32.mrf.mxu0
        %v4612 = vadd.f32 %v4572, %v4611
        %v4613 = vpop.f32.mrf.mxu0
        %v4614 = vpop.f32.mrf.mxu0
        %v4615 = vpop.f32.mrf.mxu0
        %4616 = vdwg.mxu0
        %v4617 = vadd.f32 %v4612, %v4433
        %v4618 = vxor.u32 %v4617, 2147483648
        %v4619 = vmul.f32 %v4618, 1.442695
        %v4620 = vpow.pop %v4619
        %v4621 = vadd.f32 %v4620, 1.0
        %v4622 = vrcp.pop %v4621
        %v4623 = vmul.f32 1.0, %v4622
        %v4624 = vpack.c.bf16 %v1899, %v1899
        %v4625 = vpack.c.bf16 %v1901, %v1901
        %4626 = vmatprep.subr.bf16.mxu0 0
        %4627 = vmatpush1.bf16.msra.mxu0 %v4364
        %4628 = vmatprep.subr.bf16.mxu0 0
        %4629 = vmatpush1.bf16.msra.mxu0 %v4363
        %4630 = vmatprep.subr.bf16.mxu0 0
        %4631 = vmatpush1.bf16.msra.mxu0 %v4362
        %4632 = vmatprep.subr.bf16.mxu0 0
        %4633 = vmatpush1.bf16.msra.mxu0 %v4361
        %4634 = vmatprep.subr.bf16.mxu0 0
        %4635 = vmatpush1.bf16.msra.mxu0 %v4360
        %4636 = vmatprep.subr.bf16.mxu0 0
        %4637 = vmatpush1.bf16.msra.mxu0 %v4359
        %4638 = vmatprep.subr.bf16.mxu0 0
        %4639 = vmatpush1.bf16.msra.mxu0 %v4358
        %4640 = vmatprep.subr.bf16.mxu0 0
        %4641 = vmatpush1.bf16.msra.mxu0 %v4357
        %4642 = vmatprep.subr.bf16.mxu0 0
        %4643 = vmatpush2.bf16.msra.mxu0 %v4372
        %4644 = vmatprep.subr.bf16.mxu0 0
        %4645 = vmatpush2.bf16.msra.mxu0 %v4371
        %4646 = vmatprep.subr.bf16.mxu0 0
        %4647 = vmatpush2.bf16.msra.mxu0 %v4370
        %4648 = vmatprep.subr.bf16.mxu0 0
        %4649 = vmatpush2.bf16.msra.mxu0 %v4369
        %4650 = vmatprep.subr.bf16.mxu0 0
        %4651 = vmatpush2.bf16.msra.mxu0 %v4368
        %4652 = vmatprep.subr.bf16.mxu0 0
        %4653 = vmatpush2.bf16.msra.mxu0 %v4367
        %4654 = vmatprep.subr.bf16.mxu0 0
        %4655 = vmatpush2.bf16.msra.mxu0 %v4366
        %4656 = vmatprep.subr.bf16.mxu0 0
        %4657 = vmatpush2.bf16.msra.mxu0 %v4365
        %4658 = vmatprep.mubr.bf16.mxu0 %v4625
        %4659 = vmatmul.mubr.bf16.gmra.mxu0 %v4624
        %v4660 = vpop.f32.mrf.mxu0
        %v4661 = vadd.f32 %v4288, %v4660
        %v4662 = vpop.f32.mrf.mxu0
        %v4663 = vpop.f32.mrf.mxu0
        %v4664 = vpop.f32.mrf.mxu0
        %4665 = vdwg.mxu0
        %v4666 = vadd.f32 %v4661, %v4433
        %v4667 = vxor.u32 %v4666, 2147483648
        %v4668 = vmul.f32 %v4667, 1.442695
        %v4669 = vpow.pop %v4668
        %v4670 = vadd.f32 %v4669, 1.0
        %v4671 = vrcp.pop %v4670
        %v4672 = vmul.f32 1.0, %v4671
        %v4673 = vpack.c.bf16 %v3981, %v3981
        %v4674 = vpack.c.bf16 %v3983, %v3983
        %v4707 = vunpack.c.l.b16 %v4120
        %v4708 = vunpack.c.l.b16 %v4121
        %v4709 = vunpack.c.l.b16 %v4122
        %v4710 = vunpack.c.l.b16 %v4123
        %v4711 = vunpack.c.l.b16 %v4124
        %v4712 = vunpack.c.l.b16 %v4125
        %v4713 = vunpack.c.l.b16 %v4126
        %v4714 = vunpack.c.l.b16 %v4127
        %v4715 = vunpack.c.l.b16 %v4128
        %v4716 = vunpack.c.l.b16 %v4129
        %v4717 = vunpack.c.l.b16 %v4130
        %v4718 = vunpack.c.l.b16 %v4131
        %v4719 = vunpack.c.l.b16 %v4132
        %v4720 = vunpack.c.l.b16 %v4133
        %v4721 = vunpack.c.l.b16 %v4134
        %v4722 = vunpack.c.l.b16 %v4135
        %v4723 = vunpack.c.l.b16 %v4136
        %v4724 = vunpack.c.l.b16 %v4137
        %v4725 = vunpack.c.l.b16 %v4138
        %v4726 = vunpack.c.l.b16 %v4139
        %v4727 = vunpack.c.l.b16 %v4140
        %v4728 = vunpack.c.l.b16 %v4141
        %v4729 = vunpack.c.l.b16 %v4142
        %v4730 = vunpack.c.l.b16 %v4143
        %v4731 = vunpack.c.l.b16 %v4144
        %v4732 = vunpack.c.l.b16 %v4145
        %v4733 = vunpack.c.l.b16 %v4146
        %v4734 = vunpack.c.l.b16 %v4147
        %v4735 = vunpack.c.l.b16 %v4148
        %v4736 = vunpack.c.l.b16 %v4149
        %v4737 = vunpack.c.l.b16 %v4150
        %v4738 = vunpack.c.l.b16 %v4151
        %v4739 = vpack.c.b16 %v4708, %v4707
        %v4740 = vpack.c.b16 %v4710, %v4709
        %v4741 = vpack.c.b16 %v4712, %v4711
        %v4742 = vpack.c.b16 %v4714, %v4713
        %v4743 = vpack.c.b16 %v4716, %v4715
        %v4744 = vpack.c.b16 %v4718, %v4717
        %v4745 = vpack.c.b16 %v4720, %v4719
        %v4746 = vpack.c.b16 %v4722, %v4721
        %v4747 = vpack.c.b16 %v4724, %v4723
        %v4748 = vpack.c.b16 %v4726, %v4725
        %v4749 = vpack.c.b16 %v4728, %v4727
        %v4750 = vpack.c.b16 %v4730, %v4729
        %v4751 = vpack.c.b16 %v4732, %v4731
        %v4752 = vpack.c.b16 %v4734, %v4733
        %v4753 = vpack.c.b16 %v4736, %v4735
        %v4754 = vpack.c.b16 %v4738, %v4737
        %4771 = vmatprep.subr.bf16.mxu0 0
        %4772 = vmatpush1.bf16.msra.mxu0 %v4746
        %4773 = vmatprep.subr.bf16.mxu0 0
        %4774 = vmatpush1.bf16.msra.mxu0 %v4745
        %4775 = vmatprep.subr.bf16.mxu0 0
        %4776 = vmatpush1.bf16.msra.mxu0 %v4744
        %4777 = vmatprep.subr.bf16.mxu0 0
        %4778 = vmatpush1.bf16.msra.mxu0 %v4743
        %4779 = vmatprep.subr.bf16.mxu0 0
        %4780 = vmatpush1.bf16.msra.mxu0 %v4742
        %4781 = vmatprep.subr.bf16.mxu0 0
        %4782 = vmatpush1.bf16.msra.mxu0 %v4741
        %4783 = vmatprep.subr.bf16.mxu0 0
        %4784 = vmatpush1.bf16.msra.mxu0 %v4740
        %4785 = vmatprep.subr.bf16.mxu0 0
        %4786 = vmatpush1.bf16.msra.mxu0 %v4739
        %4787 = vmatprep.subr.bf16.mxu0 0
        %4788 = vmatpush2.bf16.msra.mxu0 %v4754
        %4789 = vmatprep.subr.bf16.mxu0 0
        %4790 = vmatpush2.bf16.msra.mxu0 %v4753
        %4791 = vmatprep.subr.bf16.mxu0 0
        %4792 = vmatpush2.bf16.msra.mxu0 %v4752
        %4793 = vmatprep.subr.bf16.mxu0 0
        %4794 = vmatpush2.bf16.msra.mxu0 %v4751
        %4795 = vmatprep.subr.bf16.mxu0 0
        %4796 = vmatpush2.bf16.msra.mxu0 %v4750
        %4797 = vmatprep.subr.bf16.mxu0 0
        %4798 = vmatpush2.bf16.msra.mxu0 %v4749
        %4799 = vmatprep.subr.bf16.mxu0 0
        %4800 = vmatpush2.bf16.msra.mxu0 %v4748
        %4801 = vmatprep.subr.bf16.mxu0 0
        %4802 = vmatpush2.bf16.msra.mxu0 %v4747
        %4803 = vmatprep.mubr.bf16.mxu0 %v4156
        %4804 = vmatmul.mubr.bf16.gmra.mxu0 %v4155
        %v4805 = vpop.f32.mrf.mxu0
        %v4806 = vadd.f32 0.0, %v4805
        %v4807 = vpop.f32.mrf.mxu0
        %v4808 = vpop.f32.mrf.mxu0
        %v4809 = vpop.f32.mrf.mxu0
        %4810 = vdwg.mxu0
        %v4843 = vunpack.c.l.b16 %v4088
        %v4844 = vunpack.c.l.b16 %v4089
        %v4845 = vunpack.c.l.b16 %v4090
        %v4846 = vunpack.c.l.b16 %v4091
        %v4847 = vunpack.c.l.b16 %v4092
        %v4848 = vunpack.c.l.b16 %v4093
        %v4849 = vunpack.c.l.b16 %v4094
        %v4850 = vunpack.c.l.b16 %v4095
        %v4851 = vunpack.c.l.b16 %v4096
        %v4852 = vunpack.c.l.b16 %v4097
        %v4853 = vunpack.c.l.b16 %v4098
        %v4854 = vunpack.c.l.b16 %v4099
        %v4855 = vunpack.c.l.b16 %v4100
        %v4856 = vunpack.c.l.b16 %v4101
        %v4857 = vunpack.c.l.b16 %v4102
        %v4858 = vunpack.c.l.b16 %v4103
        %v4859 = vunpack.c.l.b16 %v4104
        %v4860 = vunpack.c.l.b16 %v4105
        %v4861 = vunpack.c.l.b16 %v4106
        %v4862 = vunpack.c.l.b16 %v4107
        %v4863 = vunpack.c.l.b16 %v4108
        %v4864 = vunpack.c.l.b16 %v4109
        %v4865 = vunpack.c.l.b16 %v4110
        %v4866 = vunpack.c.l.b16 %v4111
        %v4867 = vunpack.c.l.b16 %v4112
        %v4868 = vunpack.c.l.b16 %v4113
        %v4869 = vunpack.c.l.b16 %v4114
        %v4870 = vunpack.c.l.b16 %v4115
        %v4871 = vunpack.c.l.b16 %v4116
        %v4872 = vunpack.c.l.b16 %v4117
        %v4873 = vunpack.c.l.b16 %v4118
        %v4874 = vunpack.c.l.b16 %v4119
        %v4875 = vpack.c.b16 %v4844, %v4843
        %v4876 = vpack.c.b16 %v4846, %v4845
        %v4877 = vpack.c.b16 %v4848, %v4847
        %v4878 = vpack.c.b16 %v4850, %v4849
        %v4879 = vpack.c.b16 %v4852, %v4851
        %v4880 = vpack.c.b16 %v4854, %v4853
        %v4881 = vpack.c.b16 %v4856, %v4855
        %v4882 = vpack.c.b16 %v4858, %v4857
        %v4883 = vpack.c.b16 %v4860, %v4859
        %v4884 = vpack.c.b16 %v4862, %v4861
        %v4885 = vpack.c.b16 %v4864, %v4863
        %v4886 = vpack.c.b16 %v4866, %v4865
        %v4887 = vpack.c.b16 %v4868, %v4867
        %v4888 = vpack.c.b16 %v4870, %v4869
        %v4889 = vpack.c.b16 %v4872, %v4871
        %v4890 = vpack.c.b16 %v4874, %v4873
        %4907 = vmatprep.subr.bf16.mxu0 0
        %4908 = vmatpush1.bf16.msra.mxu0 %v4882
        %4909 = vmatprep.subr.bf16.mxu0 0
        %4910 = vmatpush1.bf16.msra.mxu0 %v4881
        %4911 = vmatprep.subr.bf16.mxu0 0
        %4912 = vmatpush1.bf16.msra.mxu0 %v4880
        %4913 = vmatprep.subr.bf16.mxu0 0
        %4914 = vmatpush1.bf16.msra.mxu0 %v4879
        %4915 = vmatprep.subr.bf16.mxu0 0
        %4916 = vmatpush1.bf16.msra.mxu0 %v4878
        %4917 = vmatprep.subr.bf16.mxu0 0
        %4918 = vmatpush1.bf16.msra.mxu0 %v4877
        %4919 = vmatprep.subr.bf16.mxu0 0
        %4920 = vmatpush1.bf16.msra.mxu0 %v4876
        %4921 = vmatprep.subr.bf16.mxu0 0
        %4922 = vmatpush1.bf16.msra.mxu0 %v4875
        %4923 = vmatprep.subr.bf16.mxu0 0
        %4924 = vmatpush2.bf16.msra.mxu0 %v4890
        %4925 = vmatprep.subr.bf16.mxu0 0
        %4926 = vmatpush2.bf16.msra.mxu0 %v4889
        %4927 = vmatprep.subr.bf16.mxu0 0
        %4928 = vmatpush2.bf16.msra.mxu0 %v4888
        %4929 = vmatprep.subr.bf16.mxu0 0
        %4930 = vmatpush2.bf16.msra.mxu0 %v4887
        %4931 = vmatprep.subr.bf16.mxu0 0
        %4932 = vmatpush2.bf16.msra.mxu0 %v4886
        %4933 = vmatprep.subr.bf16.mxu0 0
        %4934 = vmatpush2.bf16.msra.mxu0 %v4885
        %4935 = vmatprep.subr.bf16.mxu0 0
        %4936 = vmatpush2.bf16.msra.mxu0 %v4884
        %4937 = vmatprep.subr.bf16.mxu0 0
        %4938 = vmatpush2.bf16.msra.mxu0 %v4883
        %4939 = vmatprep.mubr.bf16.mxu0 %v4674
        %4940 = vmatmul.mubr.bf16.gmra.mxu0 %v4673
        %v4941 = vpop.f32.mrf.mxu0
        %v4942 = vadd.f32 %v4806, %v4941
        %v4943 = vpop.f32.mrf.mxu0
        %v4944 = vpop.f32.mrf.mxu0
        %v4945 = vpop.f32.mrf.mxu0
        %4946 = vdwg.mxu0
        %v4948 = vlaneseq
        %v4949 = vshrl.u32 %v4948, 7
        %v4950 = vsub.s32 0, %v4949
        %v4951 = vrot.slane %v4152, %v4950
        %v4953 = vadd.f32 %v4942, %v4951
        %v4954 = vxor.u32 %v4953, 2147483648
        %v4955 = vmul.f32 %v4954, 1.442695
        %v4956 = vpow.pop %v4955
        %v4957 = vadd.f32 %v4956, 1.0
        %v4958 = vrcp.pop %v4957
        %v4959 = vmul.f32 1.0, %v4958
        %v4960 = vpack.c.bf16 %v3539, %v3539
        %v4961 = vpack.c.bf16 %v3541, %v3541
        %4962 = vmatprep.subr.bf16.mxu0 0
        %4963 = vmatpush1.bf16.msra.mxu0 %v4746
        %4964 = vmatprep.subr.bf16.mxu0 0
        %4965 = vmatpush1.bf16.msra.mxu0 %v4745
        %4966 = vmatprep.subr.bf16.mxu0 0
        %4967 = vmatpush1.bf16.msra.mxu0 %v4744
        %4968 = vmatprep.subr.bf16.mxu0 0
        %4969 = vmatpush1.bf16.msra.mxu0 %v4743
        %4970 = vmatprep.subr.bf16.mxu0 0
        %4971 = vmatpush1.bf16.msra.mxu0 %v4742
        %4972 = vmatprep.subr.bf16.mxu0 0
        %4973 = vmatpush1.bf16.msra.mxu0 %v4741
        %4974 = vmatprep.subr.bf16.mxu0 0
        %4975 = vmatpush1.bf16.msra.mxu0 %v4740
        %4976 = vmatprep.subr.bf16.mxu0 0
        %4977 = vmatpush1.bf16.msra.mxu0 %v4739
        %4978 = vmatprep.subr.bf16.mxu0 0
        %4979 = vmatpush2.bf16.msra.mxu0 %v4754
        %4980 = vmatprep.subr.bf16.mxu0 0
        %4981 = vmatpush2.bf16.msra.mxu0 %v4753
        %4982 = vmatprep.subr.bf16.mxu0 0
        %4983 = vmatpush2.bf16.msra.mxu0 %v4752
        %4984 = vmatprep.subr.bf16.mxu0 0
        %4985 = vmatpush2.bf16.msra.mxu0 %v4751
        %4986 = vmatprep.subr.bf16.mxu0 0
        %4987 = vmatpush2.bf16.msra.mxu0 %v4750
        %4988 = vmatprep.subr.bf16.mxu0 0
        %4989 = vmatpush2.bf16.msra.mxu0 %v4749
        %4990 = vmatprep.subr.bf16.mxu0 0
        %4991 = vmatpush2.bf16.msra.mxu0 %v4748
        %4992 = vmatprep.subr.bf16.mxu0 0
        %4993 = vmatpush2.bf16.msra.mxu0 %v4747
        %4994 = vmatprep.mubr.bf16.mxu0 %v4445
        %4995 = vmatmul.mubr.bf16.gmra.mxu0 %v4444
        %v4996 = vpop.f32.mrf.mxu0
        %v4997 = vadd.f32 0.0, %v4996
        %v4998 = vpop.f32.mrf.mxu0
        %v4999 = vpop.f32.mrf.mxu0
        %v5000 = vpop.f32.mrf.mxu0
        %5001 = vdwg.mxu0
        %5002 = vmatprep.subr.bf16.mxu0 0
        %5003 = vmatpush1.bf16.msra.mxu0 %v4882
        %5004 = vmatprep.subr.bf16.mxu0 0
        %5005 = vmatpush1.bf16.msra.mxu0 %v4881
        %5006 = vmatprep.subr.bf16.mxu0 0
        %5007 = vmatpush1.bf16.msra.mxu0 %v4880
        %5008 = vmatprep.subr.bf16.mxu0 0
        %5009 = vmatpush1.bf16.msra.mxu0 %v4879
        %5010 = vmatprep.subr.bf16.mxu0 0
        %5011 = vmatpush1.bf16.msra.mxu0 %v4878
        %5012 = vmatprep.subr.bf16.mxu0 0
        %5013 = vmatpush1.bf16.msra.mxu0 %v4877
        %5014 = vmatprep.subr.bf16.mxu0 0
        %5015 = vmatpush1.bf16.msra.mxu0 %v4876
        %5016 = vmatprep.subr.bf16.mxu0 0
        %5017 = vmatpush1.bf16.msra.mxu0 %v4875
        %5018 = vmatprep.subr.bf16.mxu0 0
        %5019 = vmatpush2.bf16.msra.mxu0 %v4890
        %5020 = vmatprep.subr.bf16.mxu0 0
        %5021 = vmatpush2.bf16.msra.mxu0 %v4889
        %5022 = vmatprep.subr.bf16.mxu0 0
        %5023 = vmatpush2.bf16.msra.mxu0 %v4888
        %5024 = vmatprep.subr.bf16.mxu0 0
        %5025 = vmatpush2.bf16.msra.mxu0 %v4887
        %5026 = vmatprep.subr.bf16.mxu0 0
        %5027 = vmatpush2.bf16.msra.mxu0 %v4886
        %5028 = vmatprep.subr.bf16.mxu0 0
        %5029 = vmatpush2.bf16.msra.mxu0 %v4885
        %5030 = vmatprep.subr.bf16.mxu0 0
        %5031 = vmatpush2.bf16.msra.mxu0 %v4884
        %5032 = vmatprep.subr.bf16.mxu0 0
        %5033 = vmatpush2.bf16.msra.mxu0 %v4883
        %5034 = vmatprep.mubr.bf16.mxu0 %v4961
        %5035 = vmatmul.mubr.bf16.gmra.mxu0 %v4960
        %v5036 = vpop.f32.mrf.mxu0
        %v5037 = vadd.f32 %v4997, %v5036
        %v5038 = vpop.f32.mrf.mxu0
        %v5039 = vpop.f32.mrf.mxu0
        %v5040 = vpop.f32.mrf.mxu0
        %5041 = vdwg.mxu0
        %v5042 = vadd.f32 %v5037, %v4951
        %v5043 = vxor.u32 %v5042, 2147483648
        %v5044 = vmul.f32 %v5043, 1.442695
        %v5045 = vpow.pop %v5044
        %v5046 = vadd.f32 %v5045, 1.0
        %v5047 = vrcp.pop %v5046
        %v5048 = vmul.f32 1.0, %v5047
        %v5049 = vpack.c.bf16 %v3823, %v3823
        %v5050 = vpack.c.bf16 %v3825, %v3825
        %5051 = vmatprep.subr.bf16.mxu0 0
        %5052 = vmatpush1.bf16.msra.mxu0 %v4746
        %5053 = vmatprep.subr.bf16.mxu0 0
        %5054 = vmatpush1.bf16.msra.mxu0 %v4745
        %5055 = vmatprep.subr.bf16.mxu0 0
        %5056 = vmatpush1.bf16.msra.mxu0 %v4744
        %5057 = vmatprep.subr.bf16.mxu0 0
        %5058 = vmatpush1.bf16.msra.mxu0 %v4743
        %5059 = vmatprep.subr.bf16.mxu0 0
        %5060 = vmatpush1.bf16.msra.mxu0 %v4742
        %5061 = vmatprep.subr.bf16.mxu0 0
        %5062 = vmatpush1.bf16.msra.mxu0 %v4741
        %5063 = vmatprep.subr.bf16.mxu0 0
        %5064 = vmatpush1.bf16.msra.mxu0 %v4740
        %5065 = vmatprep.subr.bf16.mxu0 0
        %5066 = vmatpush1.bf16.msra.mxu0 %v4739
        %5067 = vmatprep.subr.bf16.mxu0 0
        %5068 = vmatpush2.bf16.msra.mxu0 %v4754
        %5069 = vmatprep.subr.bf16.mxu0 0
        %5070 = vmatpush2.bf16.msra.mxu0 %v4753
        %5071 = vmatprep.subr.bf16.mxu0 0
        %5072 = vmatpush2.bf16.msra.mxu0 %v4752
        %5073 = vmatprep.subr.bf16.mxu0 0
        %5074 = vmatpush2.bf16.msra.mxu0 %v4751
        %5075 = vmatprep.subr.bf16.mxu0 0
        %5076 = vmatpush2.bf16.msra.mxu0 %v4750
        %5077 = vmatprep.subr.bf16.mxu0 0
        %5078 = vmatpush2.bf16.msra.mxu0 %v4749
        %5079 = vmatprep.subr.bf16.mxu0 0
        %5080 = vmatpush2.bf16.msra.mxu0 %v4748
        %5081 = vmatprep.subr.bf16.mxu0 0
        %5082 = vmatpush2.bf16.msra.mxu0 %v4747
        %5083 = vmatprep.mubr.bf16.mxu0 %v4536
        %5084 = vmatmul.mubr.bf16.gmra.mxu0 %v4535
        %v5085 = vpop.f32.mrf.mxu0
        %v5086 = vadd.f32 0.0, %v5085
        %v5087 = vpop.f32.mrf.mxu0
        %v5088 = vpop.f32.mrf.mxu0
        %v5089 = vpop.f32.mrf.mxu0
        %5090 = vdwg.mxu0
        %5091 = vmatprep.subr.bf16.mxu0 0
        %5092 = vmatpush1.bf16.msra.mxu0 %v4882
        %5093 = vmatprep.subr.bf16.mxu0 0
        %5094 = vmatpush1.bf16.msra.mxu0 %v4881
        %5095 = vmatprep.subr.bf16.mxu0 0
        %5096 = vmatpush1.bf16.msra.mxu0 %v4880
        %5097 = vmatprep.subr.bf16.mxu0 0
        %5098 = vmatpush1.bf16.msra.mxu0 %v4879
        %5099 = vmatprep.subr.bf16.mxu0 0
        %5100 = vmatpush1.bf16.msra.mxu0 %v4878
        %5101 = vmatprep.subr.bf16.mxu0 0
        %5102 = vmatpush1.bf16.msra.mxu0 %v4877
        %5103 = vmatprep.subr.bf16.mxu0 0
        %5104 = vmatpush1.bf16.msra.mxu0 %v4876
        %5105 = vmatprep.subr.bf16.mxu0 0
        %5106 = vmatpush1.bf16.msra.mxu0 %v4875
        %5107 = vmatprep.subr.bf16.mxu0 0
        %5108 = vmatpush2.bf16.msra.mxu0 %v4890
        %5109 = vmatprep.subr.bf16.mxu0 0
        %5110 = vmatpush2.bf16.msra.mxu0 %v4889
        %5111 = vmatprep.subr.bf16.mxu0 0
        %5112 = vmatpush2.bf16.msra.mxu0 %v4888
        %5113 = vmatprep.subr.bf16.mxu0 0
        %5114 = vmatpush2.bf16.msra.mxu0 %v4887
        %5115 = vmatprep.subr.bf16.mxu0 0
        %5116 = vmatpush2.bf16.msra.mxu0 %v4886
        %5117 = vmatprep.subr.bf16.mxu0 0
        %5118 = vmatpush2.bf16.msra.mxu0 %v4885
        %5119 = vmatprep.subr.bf16.mxu0 0
        %5120 = vmatpush2.bf16.msra.mxu0 %v4884
        %5121 = vmatprep.subr.bf16.mxu0 0
        %5122 = vmatpush2.bf16.msra.mxu0 %v4883
        %5123 = vmatprep.mubr.bf16.mxu0 %v5050
        %5124 = vmatmul.mubr.bf16.gmra.mxu0 %v5049
        %v5125 = vpop.f32.mrf.mxu0
        %v5126 = vadd.f32 %v5086, %v5125
        %v5127 = vpop.f32.mrf.mxu0
        %v5128 = vpop.f32.mrf.mxu0
        %v5129 = vpop.f32.mrf.mxu0
        %5130 = vdwg.mxu0
        %v5131 = vadd.f32 %v5126, %v4951
        %v5132 = vxor.u32 %v5131, 2147483648
        %v5133 = vmul.f32 %v5132, 1.442695
        %v5134 = vpow.pop %v5133
        %v5135 = vadd.f32 %v5134, 1.0
        %v5136 = vrcp.pop %v5135
        %v5137 = vmul.f32 1.0, %v5136
        %v5138 = vld [vmem:[%s1294] sm:$0xff]
        %v5139 = vld [vmem:[%s1303] sm:$0xff]
        %v5140 = vld [vmem:[%s1312] sm:$0xff]
        %v5141 = vsub.f32 %v4441, %v4959
        %5143 = vset.pattern.permute.xlu0 0
        %5144 = vperm.xlu0 %5143, %v4008
        %v5145 = vpop.permute.xlu0 %5144
        %v5147 = vmul.f32 %v5145, %v5141
        %v5148 = vmul.f32 %v5147, %v5138
        %v5149 = vsub.f32 %v4532, %v5048
        %5151 = vset.pattern.permute.xlu0 0
        %5152 = vperm.xlu0 %5151, %v4015
        %v5153 = vpop.permute.xlu0 %5152
        %v5155 = vmul.f32 %v5153, %v5149
        %v5156 = vmul.f32 %v5155, %v5139
        %v5157 = vsub.f32 %v4623, %v5137
        %5159 = vset.pattern.permute.xlu0 0
        %5160 = vperm.xlu0 %5159, %v4022
        %v5161 = vpop.permute.xlu0 %5160
        %v5163 = vmul.f32 %v5161, %v5157
        %v5164 = vmul.f32 %v5163, %v5140
        %v5165 = vsub.f32 %v4672, %v4959
        %v5166 = vmul.f32 %v5145, %v5165
        %v5167 = vmul.f32 %v5166, %v5138
        %v5168 = vld [vmem:[#allocation36] sm:$0xff]
        %v5169 = vld [vmem:[#allocation36 + $0x8] sm:$0xff]
        %v5170 = vld [vmem:[#allocation36 + $0x10] sm:$0xff]
        %v5171 = vld [vmem:[#allocation36 + $0x18] sm:$0xff]
        %v5172 = vld [vmem:[#allocation36 + $0x20] sm:$0xff]
        %v5173 = vld [vmem:[#allocation36 + $0x28] sm:$0xff]
        %v5174 = vld [vmem:[#allocation36 + $0x30] sm:$0xff]
        %v5175 = vld [vmem:[#allocation36 + $0x38] sm:$0xff]
        %v5176 = vld [vmem:[#allocation36 + $0x40] sm:$0xff]
        %v5177 = vld [vmem:[#allocation36 + $0x48] sm:$0xff]
        %v5178 = vld [vmem:[#allocation36 + $0x50] sm:$0xff]
        %v5179 = vld [vmem:[#allocation36 + $0x58] sm:$0xff]
        %v5180 = vld [vmem:[#allocation36 + $0x60] sm:$0xff]
        %v5181 = vld [vmem:[#allocation36 + $0x68] sm:$0xff]
        %v5182 = vld [vmem:[#allocation36 + $0x70] sm:$0xff]
        %v5183 = vld [vmem:[#allocation36 + $0x78] sm:$0xff]
        %v5184 = vld [vmem:[#allocation36 + $0x80] sm:$0xff]
        %v5185 = vld [vmem:[#allocation36 + $0x88] sm:$0xff]
        %v5186 = vld [vmem:[#allocation36 + $0x90] sm:$0xff]
        %v5187 = vld [vmem:[#allocation36 + $0x98] sm:$0xff]
        %v5188 = vld [vmem:[#allocation36 + $0xa0] sm:$0xff]
        %v5189 = vld [vmem:[#allocation36 + $0xa8] sm:$0xff]
        %v5190 = vld [vmem:[#allocation36 + $0xb0] sm:$0xff]
        %v5191 = vld [vmem:[#allocation36 + $0xb8] sm:$0xff]
        %v5192 = vld [vmem:[#allocation36 + $0xc0] sm:$0xff]
        %v5193 = vld [vmem:[#allocation36 + $0xc8] sm:$0xff]
        %v5194 = vld [vmem:[#allocation36 + $0xd0] sm:$0xff]
        %v5195 = vld [vmem:[#allocation36 + $0xd8] sm:$0xff]
        %v5196 = vld [vmem:[#allocation36 + $0xe0] sm:$0xff]
        %v5197 = vld [vmem:[#allocation36 + $0xe8] sm:$0xff]
        %v5198 = vld [vmem:[#allocation36 + $0xf0] sm:$0xff]
        %v5199 = vld [vmem:[#allocation36 + $0xf8] sm:$0xff]
        %v5200 = vld [vmem:[%s55] sm:$0xf]
        %v5201 = vld [vmem:[#allocation38] sm:$0xf]
        %v5202 = vld [vmem:[#allocation3] sm:$0x1]
        %v5203 = vpack.c.bf16 %v5148, %v5148
        %v5205 = vlaneseq
        %v5206 = vshrl.u32 %v5205, 7
        %v5207 = vsub.s32 0, %v5206
        %v5208 = vrot.slane %v5200, %v5207
        %v5209 = vlaneseq
        %v5210 = vshrl.u32 %v5209, 7
        %v5211 = vsub.s32 1, %v5210
        %v5212 = vrot.slane %v5200, %v5211
        %v5213 = vlaneseq
        %v5214 = vshrl.u32 %v5213, 7
        %v5215 = vsub.s32 2, %v5214
        %v5216 = vrot.slane %v5200, %v5215
        %v5217 = vlaneseq
        %v5218 = vshrl.u32 %v5217, 7
        %v5219 = vsub.s32 3, %v5218
        %v5220 = vrot.slane %v5200, %v5219
        %v5257 = vunpack.c.l.b16 %v5168
        %v5258 = vunpack.c.h.b16 %v5168
        %v5259 = vunpack.c.l.b16 %v5169
        %v5260 = vunpack.c.h.b16 %v5169
        %v5261 = vunpack.c.l.b16 %v5170
        %v5262 = vunpack.c.h.b16 %v5170
        %v5263 = vunpack.c.l.b16 %v5171
        %v5264 = vunpack.c.h.b16 %v5171
        %v5265 = vunpack.c.l.b16 %v5172
        %v5266 = vunpack.c.h.b16 %v5172
        %v5267 = vunpack.c.l.b16 %v5173
        %v5268 = vunpack.c.h.b16 %v5173
        %v5269 = vunpack.c.l.b16 %v5174
        %v5270 = vunpack.c.h.b16 %v5174
        %v5271 = vunpack.c.l.b16 %v5175
        %v5272 = vunpack.c.h.b16 %v5175
        %v5273 = vunpack.c.l.b16 %v5176
        %v5274 = vunpack.c.h.b16 %v5176
        %v5275 = vunpack.c.l.b16 %v5177
        %v5276 = vunpack.c.h.b16 %v5177
        %v5277 = vunpack.c.l.b16 %v5178
        %v5278 = vunpack.c.h.b16 %v5178
        %v5279 = vunpack.c.l.b16 %v5179
        %v5280 = vunpack.c.h.b16 %v5179
        %v5281 = vunpack.c.l.b16 %v5180
        %v5282 = vunpack.c.h.b16 %v5180
        %v5283 = vunpack.c.l.b16 %v5181
        %v5284 = vunpack.c.h.b16 %v5181
        %v5285 = vunpack.c.l.b16 %v5182
        %v5286 = vunpack.c.h.b16 %v5182
        %v5287 = vunpack.c.l.b16 %v5183
        %v5288 = vunpack.c.h.b16 %v5183
        %v5289 = vunpack.c.l.b16 %v5184
        %v5290 = vunpack.c.h.b16 %v5184
        %v5291 = vunpack.c.l.b16 %v5185
        %v5292 = vunpack.c.h.b16 %v5185
        %v5293 = vunpack.c.l.b16 %v5186
        %v5294 = vunpack.c.h.b16 %v5186
        %v5295 = vunpack.c.l.b16 %v5187
        %v5296 = vunpack.c.h.b16 %v5187
        %v5297 = vunpack.c.l.b16 %v5188
        %v5298 = vunpack.c.h.b16 %v5188
        %v5299 = vunpack.c.l.b16 %v5189
        %v5300 = vunpack.c.h.b16 %v5189
        %v5301 = vunpack.c.l.b16 %v5190
        %v5302 = vunpack.c.h.b16 %v5190
        %v5303 = vunpack.c.l.b16 %v5191
        %v5304 = vunpack.c.h.b16 %v5191
        %v5305 = vunpack.c.l.b16 %v5192
        %v5306 = vunpack.c.h.b16 %v5192
        %v5307 = vunpack.c.l.b16 %v5193
        %v5308 = vunpack.c.h.b16 %v5193
        %v5309 = vunpack.c.l.b16 %v5194
        %v5310 = vunpack.c.h.b16 %v5194
        %v5311 = vunpack.c.l.b16 %v5195
        %v5312 = vunpack.c.h.b16 %v5195
        %v5313 = vunpack.c.l.b16 %v5196
        %v5314 = vunpack.c.h.b16 %v5196
        %v5315 = vunpack.c.l.b16 %v5197
        %v5316 = vunpack.c.h.b16 %v5197
        %v5317 = vunpack.c.l.b16 %v5198
        %v5318 = vunpack.c.h.b16 %v5198
        %v5319 = vunpack.c.l.b16 %v5199
        %v5320 = vunpack.c.h.b16 %v5199
        %v5321 = vpack.c.b16 %v5261, %v5257
        %v5322 = vpack.c.b16 %v5262, %v5258
        %v5323 = vpack.c.b16 %v5263, %v5259
        %v5324 = vpack.c.b16 %v5264, %v5260
        %v5325 = vpack.c.b16 %v5269, %v5265
        %v5326 = vpack.c.b16 %v5270, %v5266
        %v5327 = vpack.c.b16 %v5271, %v5267
        %v5328 = vpack.c.b16 %v5272, %v5268
        %v5329 = vpack.c.b16 %v5277, %v5273
        %v5330 = vpack.c.b16 %v5278, %v5274
        %v5331 = vpack.c.b16 %v5279, %v5275
        %v5332 = vpack.c.b16 %v5280, %v5276
        %v5333 = vpack.c.b16 %v5285, %v5281
        %v5334 = vpack.c.b16 %v5286, %v5282
        %v5335 = vpack.c.b16 %v5287, %v5283
        %v5336 = vpack.c.b16 %v5288, %v5284
        %v5337 = vpack.c.b16 %v5293, %v5289
        %v5338 = vpack.c.b16 %v5294, %v5290
        %v5339 = vpack.c.b16 %v5295, %v5291
        %v5340 = vpack.c.b16 %v5296, %v5292
        %v5341 = vpack.c.b16 %v5301, %v5297
        %v5342 = vpack.c.b16 %v5302, %v5298
        %v5343 = vpack.c.b16 %v5303, %v5299
        %v5344 = vpack.c.b16 %v5304, %v5300
        %v5345 = vpack.c.b16 %v5309, %v5305
        %v5346 = vpack.c.b16 %v5310, %v5306
        %v5347 = vpack.c.b16 %v5311, %v5307
        %v5348 = vpack.c.b16 %v5312, %v5308
        %v5349 = vpack.c.b16 %v5317, %v5313
        %v5350 = vpack.c.b16 %v5318, %v5314
        %v5351 = vpack.c.b16 %v5319, %v5315
        %v5352 = vpack.c.b16 %v5320, %v5316
        %5385 = vmatprep.subr.bf16.mxu0 %v5350
        %5386 = vmatpush1.bf16.msra.mxu0 %v5349
        %5387 = vmatprep.subr.bf16.mxu0 %v5346
        %5388 = vmatpush1.bf16.msra.mxu0 %v5345
        %5389 = vmatprep.subr.bf16.mxu0 %v5342
        %5390 = vmatpush1.bf16.msra.mxu0 %v5341
        %5391 = vmatprep.subr.bf16.mxu0 %v5338
        %5392 = vmatpush1.bf16.msra.mxu0 %v5337
        %5393 = vmatprep.subr.bf16.mxu0 %v5334
        %5394 = vmatpush1.bf16.msra.mxu0 %v5333
        %5395 = vmatprep.subr.bf16.mxu0 %v5330
        %5396 = vmatpush1.bf16.msra.mxu0 %v5329
        %5397 = vmatprep.subr.bf16.mxu0 %v5326
        %5398 = vmatpush1.bf16.msra.mxu0 %v5325
        %5399 = vmatprep.subr.bf16.mxu0 %v5322
        %5400 = vmatpush1.bf16.msra.mxu0 %v5321
        %5401 = vmatprep.subr.bf16.mxu0 0
        %5402 = vmatpush2.bf16.msra.mxu0 0
        %5403 = vmatprep.subr.bf16.mxu0 0
        %5404 = vmatpush2.bf16.msra.mxu0 0
        %5405 = vmatprep.subr.bf16.mxu0 0
        %5406 = vmatpush2.bf16.msra.mxu0 0
        %5407 = vmatprep.subr.bf16.mxu0 0
        %5408 = vmatpush2.bf16.msra.mxu0 0
        %5409 = vmatprep.subr.bf16.mxu0 0
        %5410 = vmatpush2.bf16.msra.mxu0 0
        %5411 = vmatprep.subr.bf16.mxu0 0
        %5412 = vmatpush2.bf16.msra.mxu0 0
        %5413 = vmatprep.subr.bf16.mxu0 0
        %5414 = vmatpush2.bf16.msra.mxu0 0
        %5415 = vmatprep.subr.bf16.mxu0 0
        %5416 = vmatpush2.bf16.msra.mxu0 0
        %5417 = vmatprep.mubr.bf16.mxu0 0
        %5418 = vmatmul.mubr.bf16.gmra.mxu0 %v5203
        %v5419 = vpop.f32.mrf.mxu0
        %v5420 = vadd.f32 %v5208, %v5419
        %v5421 = vpop.f32.mrf.mxu0
        %v5422 = vadd.f32 %v5212, %v5421
        %v5423 = vpop.f32.mrf.mxu0
        %v5424 = vpop.f32.mrf.mxu0
        %5425 = vdwg.mxu0
        %5426 = vmatprep.subr.bf16.mxu0 %v5352
        %5427 = vmatpush1.bf16.msra.mxu0 %v5351
        %5428 = vmatprep.subr.bf16.mxu0 %v5348
        %5429 = vmatpush1.bf16.msra.mxu0 %v5347
        %5430 = vmatprep.subr.bf16.mxu0 %v5344
        %5431 = vmatpush1.bf16.msra.mxu0 %v5343
        %5432 = vmatprep.subr.bf16.mxu0 %v5340
        %5433 = vmatpush1.bf16.msra.mxu0 %v5339
        %5434 = vmatprep.subr.bf16.mxu0 %v5336
        %5435 = vmatpush1.bf16.msra.mxu0 %v5335
        %5436 = vmatprep.subr.bf16.mxu0 %v5332
        %5437 = vmatpush1.bf16.msra.mxu0 %v5331
        %5438 = vmatprep.subr.bf16.mxu0 %v5328
        %5439 = vmatpush1.bf16.msra.mxu0 %v5327
        %5440 = vmatprep.subr.bf16.mxu0 %v5324
        %5441 = vmatpush1.bf16.msra.mxu0 %v5323
        %5442 = vmatprep.subr.bf16.mxu0 0
        %5443 = vmatpush2.bf16.msra.mxu0 0
        %5444 = vmatprep.subr.bf16.mxu0 0
        %5445 = vmatpush2.bf16.msra.mxu0 0
        %5446 = vmatprep.subr.bf16.mxu0 0
        %5447 = vmatpush2.bf16.msra.mxu0 0
        %5448 = vmatprep.subr.bf16.mxu0 0
        %5449 = vmatpush2.bf16.msra.mxu0 0
        %5450 = vmatprep.subr.bf16.mxu0 0
        %5451 = vmatpush2.bf16.msra.mxu0 0
        %5452 = vmatprep.subr.bf16.mxu0 0
        %5453 = vmatpush2.bf16.msra.mxu0 0
        %5454 = vmatprep.subr.bf16.mxu0 0
        %5455 = vmatpush2.bf16.msra.mxu0 0
        %5456 = vmatprep.subr.bf16.mxu0 0
        %5457 = vmatpush2.bf16.msra.mxu0 0
        %5458 = vmatprep.mubr.bf16.mxu0 0
        %5459 = vmatmul.mubr.bf16.gmra.mxu0 %v5203
        %v5460 = vpop.f32.mrf.mxu0
        %v5461 = vadd.f32 %v5216, %v5460
        %v5462 = vpop.f32.mrf.mxu0
        %v5463 = vadd.f32 %v5220, %v5462
        %v5464 = vpop.f32.mrf.mxu0
        %v5465 = vpop.f32.mrf.mxu0
        %5466 = vdwg.mxu0
        %v5467 = vxor.u32 %v5420, 2147483648
        %v5468 = vxor.u32 %v5422, 2147483648
        %v5469 = vxor.u32 %v5461, 2147483648
        %v5470 = vxor.u32 %v5463, 2147483648
        %v5471 = vmul.f32 %v5467, 1.442695
        %v5472 = vpow.pop %v5471
        %v5473 = vmul.f32 %v5468, 1.442695
        %v5474 = vpow.pop %v5473
        %v5475 = vmul.f32 %v5469, 1.442695
        %v5476 = vpow.pop %v5475
        %v5477 = vmul.f32 %v5470, 1.442695
        %v5478 = vpow.pop %v5477
        %v5479 = vadd.f32 %v5472, 1.0
        %v5480 = vadd.f32 %v5474, 1.0
        %v5481 = vadd.f32 %v5476, 1.0
        %v5482 = vadd.f32 %v5478, 1.0
        %v5483 = vrcp.pop %v5479
        %v5484 = vmul.f32 1.0, %v5483
        %v5485 = vrcp.pop %v5480
        %v5486 = vmul.f32 1.0, %v5485
        %v5487 = vrcp.pop %v5481
        %v5488 = vmul.f32 1.0, %v5487
        %v5489 = vrcp.pop %v5482
        %v5490 = vmul.f32 1.0, %v5489
        %v5492 = vlaneseq
        %v5493 = vshrl.u32 %v5492, 7
        %v5494 = vsub.s32 0, %v5493
        %v5495 = vrot.slane %v5201, %v5494
        %v5496 = vlaneseq
        %v5497 = vshrl.u32 %v5496, 7
        %v5498 = vsub.s32 1, %v5497
        %v5499 = vrot.slane %v5201, %v5498
        %v5500 = vlaneseq
        %v5501 = vshrl.u32 %v5500, 7
        %v5502 = vsub.s32 2, %v5501
        %v5503 = vrot.slane %v5201, %v5502
        %v5504 = vlaneseq
        %v5505 = vshrl.u32 %v5504, 7
        %v5506 = vsub.s32 3, %v5505
        %v5507 = vrot.slane %v5201, %v5506
        %v5512 = vmul.f32 %v5484, %v5495
        %v5513 = vmul.f32 %v5486, %v5499
        %v5514 = vmul.f32 %v5488, %v5503
        %v5515 = vmul.f32 %v5490, %v5507
        %v5516 = vadd.f32 %v5512, %v5513
        %v5517 = vadd.f32 %v5516, %v5514
        %v5518 = vadd.f32 %v5517, %v5515
        %5519 = vadd.xlane.f32.xlu0 %v5518
        %v5520 = vpop.xlane.xlu0 %5519
        %v5522 = vlaneseq
        %v5523 = vshrl.u32 %v5522, 7
        %v5524 = vsub.s32 0, %v5523
        %v5525 = vrot.slane %v5202, %v5524
        %v5527 = vadd.f32 %v5520, %v5525
        %v5528 = vxor.u32 %v5527, 2147483648
        %v5529 = vmul.f32 %v5528, 1.442695
        %v5530 = vpow.pop %v5529
        %v5531 = vadd.f32 %v5530, 1.0
        %v5532 = vrcp.pop %v5531
        %v5533 = vmul.f32 1.0, %v5532
        %vm5534 = vcmask 7168
        %5535 = vst.msk [vmem:[%s1583] sm:$0xff] %vm5534, %v5533
        %v5536 = vpack.c.bf16 %v5156, %v5156
        %5537 = vmatprep.subr.bf16.mxu0 %v5350
        %5538 = vmatpush1.bf16.msra.mxu0 %v5349
        %5539 = vmatprep.subr.bf16.mxu0 %v5346
        %5540 = vmatpush1.bf16.msra.mxu0 %v5345
        %5541 = vmatprep.subr.bf16.mxu0 %v5342
        %5542 = vmatpush1.bf16.msra.mxu0 %v5341
        %5543 = vmatprep.subr.bf16.mxu0 %v5338
        %5544 = vmatpush1.bf16.msra.mxu0 %v5337
        %5545 = vmatprep.subr.bf16.mxu0 %v5334
        %5546 = vmatpush1.bf16.msra.mxu0 %v5333
        %5547 = vmatprep.subr.bf16.mxu0 %v5330
        %5548 = vmatpush1.bf16.msra.mxu0 %v5329
        %5549 = vmatprep.subr.bf16.mxu0 %v5326
        %5550 = vmatpush1.bf16.msra.mxu0 %v5325
        %5551 = vmatprep.subr.bf16.mxu0 %v5322
        %5552 = vmatpush1.bf16.msra.mxu0 %v5321
        %5553 = vmatprep.subr.bf16.mxu0 0
        %5554 = vmatpush2.bf16.msra.mxu0 0
        %5555 = vmatprep.subr.bf16.mxu0 0
        %5556 = vmatpush2.bf16.msra.mxu0 0
        %5557 = vmatprep.subr.bf16.mxu0 0
        %5558 = vmatpush2.bf16.msra.mxu0 0
        %5559 = vmatprep.subr.bf16.mxu0 0
        %5560 = vmatpush2.bf16.msra.mxu0 0
        %5561 = vmatprep.subr.bf16.mxu0 0
        %5562 = vmatpush2.bf16.msra.mxu0 0
        %5563 = vmatprep.subr.bf16.mxu0 0
        %5564 = vmatpush2.bf16.msra.mxu0 0
        %5565 = vmatprep.subr.bf16.mxu0 0
        %5566 = vmatpush2.bf16.msra.mxu0 0
        %5567 = vmatprep.subr.bf16.mxu0 0
        %5568 = vmatpush2.bf16.msra.mxu0 0
        %5569 = vmatprep.mubr.bf16.mxu0 0
        %5570 = vmatmul.mubr.bf16.gmra.mxu0 %v5536
        %v5571 = vpop.f32.mrf.mxu0
        %v5572 = vadd.f32 %v5208, %v5571
        %v5573 = vpop.f32.mrf.mxu0
        %v5574 = vadd.f32 %v5212, %v5573
        %v5575 = vpop.f32.mrf.mxu0
        %v5576 = vpop.f32.mrf.mxu0
        %5577 = vdwg.mxu0
        %5578 = vmatprep.subr.bf16.mxu0 %v5352
        %5579 = vmatpush1.bf16.msra.mxu0 %v5351
        %5580 = vmatprep.subr.bf16.mxu0 %v5348
        %5581 = vmatpush1.bf16.msra.mxu0 %v5347
        %5582 = vmatprep.subr.bf16.mxu0 %v5344
        %5583 = vmatpush1.bf16.msra.mxu0 %v5343
        %5584 = vmatprep.subr.bf16.mxu0 %v5340
        %5585 = vmatpush1.bf16.msra.mxu0 %v5339
        %5586 = vmatprep.subr.bf16.mxu0 %v5336
        %5587 = vmatpush1.bf16.msra.mxu0 %v5335
        %5588 = vmatprep.subr.bf16.mxu0 %v5332
        %5589 = vmatpush1.bf16.msra.mxu0 %v5331
        %5590 = vmatprep.subr.bf16.mxu0 %v5328
        %5591 = vmatpush1.bf16.msra.mxu0 %v5327
        %5592 = vmatprep.subr.bf16.mxu0 %v5324
        %5593 = vmatpush1.bf16.msra.mxu0 %v5323
        %5594 = vmatprep.subr.bf16.mxu0 0
        %5595 = vmatpush2.bf16.msra.mxu0 0
        %5596 = vmatprep.subr.bf16.mxu0 0
        %5597 = vmatpush2.bf16.msra.mxu0 0
        %5598 = vmatprep.subr.bf16.mxu0 0
        %5599 = vmatpush2.bf16.msra.mxu0 0
        %5600 = vmatprep.subr.bf16.mxu0 0
        %5601 = vmatpush2.bf16.msra.mxu0 0
        %5602 = vmatprep.subr.bf16.mxu0 0
        %5603 = vmatpush2.bf16.msra.mxu0 0
        %5604 = vmatprep.subr.bf16.mxu0 0
        %5605 = vmatpush2.bf16.msra.mxu0 0
        %5606 = vmatprep.subr.bf16.mxu0 0
        %5607 = vmatpush2.bf16.msra.mxu0 0
        %5608 = vmatprep.subr.bf16.mxu0 0
        %5609 = vmatpush2.bf16.msra.mxu0 0
        %5610 = vmatprep.mubr.bf16.mxu0 0
        %5611 = vmatmul.mubr.bf16.gmra.mxu0 %v5536
        %v5612 = vpop.f32.mrf.mxu0
        %v5613 = vadd.f32 %v5216, %v5612
        %v5614 = vpop.f32.mrf.mxu0
        %v5615 = vadd.f32 %v5220, %v5614
        %v5616 = vpop.f32.mrf.mxu0
        %v5617 = vpop.f32.mrf.mxu0
        %5618 = vdwg.mxu0
        %v5619 = vxor.u32 %v5572, 2147483648
        %v5620 = vxor.u32 %v5574, 2147483648
        %v5621 = vxor.u32 %v5613, 2147483648
        %v5622 = vxor.u32 %v5615, 2147483648
        %v5623 = vmul.f32 %v5619, 1.442695
        %v5624 = vpow.pop %v5623
        %v5625 = vmul.f32 %v5620, 1.442695
        %v5626 = vpow.pop %v5625
        %v5627 = vmul.f32 %v5621, 1.442695
        %v5628 = vpow.pop %v5627
        %v5629 = vmul.f32 %v5622, 1.442695
        %v5630 = vpow.pop %v5629
        %v5631 = vadd.f32 %v5624, 1.0
        %v5632 = vadd.f32 %v5626, 1.0
        %v5633 = vadd.f32 %v5628, 1.0
        %v5634 = vadd.f32 %v5630, 1.0
        %v5635 = vrcp.pop %v5631
        %v5636 = vmul.f32 1.0, %v5635
        %v5637 = vrcp.pop %v5632
        %v5638 = vmul.f32 1.0, %v5637
        %v5639 = vrcp.pop %v5633
        %v5640 = vmul.f32 1.0, %v5639
        %v5641 = vrcp.pop %v5634
        %v5642 = vmul.f32 1.0, %v5641
        %v5643 = vmul.f32 %v5636, %v5495
        %v5644 = vmul.f32 %v5638, %v5499
        %v5645 = vmul.f32 %v5640, %v5503
        %v5646 = vmul.f32 %v5642, %v5507
        %v5647 = vadd.f32 %v5643, %v5644
        %v5648 = vadd.f32 %v5647, %v5645
        %v5649 = vadd.f32 %v5648, %v5646
        %5650 = vadd.xlane.f32.xlu0 %v5649
        %v5651 = vpop.xlane.xlu0 %5650
        %v5652 = vadd.f32 %v5651, %v5525
        %v5653 = vxor.u32 %v5652, 2147483648
        %v5654 = vmul.f32 %v5653, 1.442695
        %v5655 = vpow.pop %v5654
        %v5656 = vadd.f32 %v5655, 1.0
        %v5657 = vrcp.pop %v5656
        %v5658 = vmul.f32 1.0, %v5657
        %5659 = vst.msk [vmem:[%s1587] sm:$0xff] %vm5534, %v5658
        %v5660 = vpack.c.bf16 %v5164, %v5164
        %5661 = vmatprep.subr.bf16.mxu0 %v5350
        %5662 = vmatpush1.bf16.msra.mxu0 %v5349
        %5663 = vmatprep.subr.bf16.mxu0 %v5346
        %5664 = vmatpush1.bf16.msra.mxu0 %v5345
        %5665 = vmatprep.subr.bf16.mxu0 %v5342
        %5666 = vmatpush1.bf16.msra.mxu0 %v5341
        %5667 = vmatprep.subr.bf16.mxu0 %v5338
        %5668 = vmatpush1.bf16.msra.mxu0 %v5337
        %5669 = vmatprep.subr.bf16.mxu0 %v5334
        %5670 = vmatpush1.bf16.msra.mxu0 %v5333
        %5671 = vmatprep.subr.bf16.mxu0 %v5330
        %5672 = vmatpush1.bf16.msra.mxu0 %v5329
        %5673 = vmatprep.subr.bf16.mxu0 %v5326
        %5674 = vmatpush1.bf16.msra.mxu0 %v5325
        %5675 = vmatprep.subr.bf16.mxu0 %v5322
        %5676 = vmatpush1.bf16.msra.mxu0 %v5321
        %5677 = vmatprep.subr.bf16.mxu0 0
        %5678 = vmatpush2.bf16.msra.mxu0 0
        %5679 = vmatprep.subr.bf16.mxu0 0
        %5680 = vmatpush2.bf16.msra.mxu0 0
        %5681 = vmatprep.subr.bf16.mxu0 0
        %5682 = vmatpush2.bf16.msra.mxu0 0
        %5683 = vmatprep.subr.bf16.mxu0 0
        %5684 = vmatpush2.bf16.msra.mxu0 0
        %5685 = vmatprep.subr.bf16.mxu0 0
        %5686 = vmatpush2.bf16.msra.mxu0 0
        %5687 = vmatprep.subr.bf16.mxu0 0
        %5688 = vmatpush2.bf16.msra.mxu0 0
        %5689 = vmatprep.subr.bf16.mxu0 0
        %5690 = vmatpush2.bf16.msra.mxu0 0
        %5691 = vmatprep.subr.bf16.mxu0 0
        %5692 = vmatpush2.bf16.msra.mxu0 0
        %5693 = vmatprep.mubr.bf16.mxu0 0
        %5694 = vmatmul.mubr.bf16.gmra.mxu0 %v5660
        %v5695 = vpop.f32.mrf.mxu0
        %v5696 = vadd.f32 %v5208, %v5695
        %v5697 = vpop.f32.mrf.mxu0
        %v5698 = vadd.f32 %v5212, %v5697
        %v5699 = vpop.f32.mrf.mxu0
        %v5700 = vpop.f32.mrf.mxu0
        %5701 = vdwg.mxu0
        %5702 = vmatprep.subr.bf16.mxu0 %v5352
        %5703 = vmatpush1.bf16.msra.mxu0 %v5351
        %5704 = vmatprep.subr.bf16.mxu0 %v5348
        %5705 = vmatpush1.bf16.msra.mxu0 %v5347
        %5706 = vmatprep.subr.bf16.mxu0 %v5344
        %5707 = vmatpush1.bf16.msra.mxu0 %v5343
        %5708 = vmatprep.subr.bf16.mxu0 %v5340
        %5709 = vmatpush1.bf16.msra.mxu0 %v5339
        %5710 = vmatprep.subr.bf16.mxu0 %v5336
        %5711 = vmatpush1.bf16.msra.mxu0 %v5335
        %5712 = vmatprep.subr.bf16.mxu0 %v5332
        %5713 = vmatpush1.bf16.msra.mxu0 %v5331
        %5714 = vmatprep.subr.bf16.mxu0 %v5328
        %5715 = vmatpush1.bf16.msra.mxu0 %v5327
        %5716 = vmatprep.subr.bf16.mxu0 %v5324
        %5717 = vmatpush1.bf16.msra.mxu0 %v5323
        %5718 = vmatprep.subr.bf16.mxu0 0
        %5719 = vmatpush2.bf16.msra.mxu0 0
        %5720 = vmatprep.subr.bf16.mxu0 0
        %5721 = vmatpush2.bf16.msra.mxu0 0
        %5722 = vmatprep.subr.bf16.mxu0 0
        %5723 = vmatpush2.bf16.msra.mxu0 0
        %5724 = vmatprep.subr.bf16.mxu0 0
        %5725 = vmatpush2.bf16.msra.mxu0 0
        %5726 = vmatprep.subr.bf16.mxu0 0
        %5727 = vmatpush2.bf16.msra.mxu0 0
        %5728 = vmatprep.subr.bf16.mxu0 0
        %5729 = vmatpush2.bf16.msra.mxu0 0
        %5730 = vmatprep.subr.bf16.mxu0 0
        %5731 = vmatpush2.bf16.msra.mxu0 0
        %5732 = vmatprep.subr.bf16.mxu0 0
        %5733 = vmatpush2.bf16.msra.mxu0 0
        %5734 = vmatprep.mubr.bf16.mxu0 0
        %5735 = vmatmul.mubr.bf16.gmra.mxu0 %v5660
        %v5736 = vpop.f32.mrf.mxu0
        %v5737 = vadd.f32 %v5216, %v5736
        %v5738 = vpop.f32.mrf.mxu0
        %v5739 = vadd.f32 %v5220, %v5738
        %v5740 = vpop.f32.mrf.mxu0
        %v5741 = vpop.f32.mrf.mxu0
        %5742 = vdwg.mxu0
        %v5743 = vxor.u32 %v5696, 2147483648
        %v5744 = vxor.u32 %v5698, 2147483648
        %v5745 = vxor.u32 %v5737, 2147483648
        %v5746 = vxor.u32 %v5739, 2147483648
        %v5747 = vmul.f32 %v5743, 1.442695
        %v5748 = vpow.pop %v5747
        %v5749 = vmul.f32 %v5744, 1.442695
        %v5750 = vpow.pop %v5749
        %v5751 = vmul.f32 %v5745, 1.442695
        %v5752 = vpow.pop %v5751
        %v5753 = vmul.f32 %v5746, 1.442695
        %v5754 = vpow.pop %v5753
        %v5755 = vadd.f32 %v5748, 1.0
        %v5756 = vadd.f32 %v5750, 1.0
        %v5757 = vadd.f32 %v5752, 1.0
        %v5758 = vadd.f32 %v5754, 1.0
        %v5759 = vrcp.pop %v5755
        %v5760 = vmul.f32 1.0, %v5759
        %v5761 = vrcp.pop %v5756
        %v5762 = vmul.f32 1.0, %v5761
        %v5763 = vrcp.pop %v5757
        %v5764 = vmul.f32 1.0, %v5763
        %v5765 = vrcp.pop %v5758
        %v5766 = vmul.f32 1.0, %v5765
        %v5767 = vmul.f32 %v5760, %v5495
        %v5768 = vmul.f32 %v5762, %v5499
        %v5769 = vmul.f32 %v5764, %v5503
        %v5770 = vmul.f32 %v5766, %v5507
        %v5771 = vadd.f32 %v5767, %v5768
        %v5772 = vadd.f32 %v5771, %v5769
        %v5773 = vadd.f32 %v5772, %v5770
        %5774 = vadd.xlane.f32.xlu0 %v5773
        %v5775 = vpop.xlane.xlu0 %5774
        %v5776 = vadd.f32 %v5775, %v5525
        %v5777 = vxor.u32 %v5776, 2147483648
        %v5778 = vmul.f32 %v5777, 1.442695
        %v5779 = vpow.pop %v5778
        %v5780 = vadd.f32 %v5779, 1.0
        %v5781 = vrcp.pop %v5780
        %v5782 = vmul.f32 1.0, %v5781
        %5783 = vst.msk [vmem:[%s1591] sm:$0xff] %vm5534, %v5782
        %v5784 = vpack.c.bf16 %v5167, %v5167
        %5785 = vmatprep.subr.bf16.mxu0 %v5350
        %5786 = vmatpush1.bf16.msra.mxu0 %v5349
        %5787 = vmatprep.subr.bf16.mxu0 %v5346
        %5788 = vmatpush1.bf16.msra.mxu0 %v5345
        %5789 = vmatprep.subr.bf16.mxu0 %v5342
        %5790 = vmatpush1.bf16.msra.mxu0 %v5341
        %5791 = vmatprep.subr.bf16.mxu0 %v5338
        %5792 = vmatpush1.bf16.msra.mxu0 %v5337
        %5793 = vmatprep.subr.bf16.mxu0 %v5334
        %5794 = vmatpush1.bf16.msra.mxu0 %v5333
        %5795 = vmatprep.subr.bf16.mxu0 %v5330
        %5796 = vmatpush1.bf16.msra.mxu0 %v5329
        %5797 = vmatprep.subr.bf16.mxu0 %v5326
        %5798 = vmatpush1.bf16.msra.mxu0 %v5325
        %5799 = vmatprep.subr.bf16.mxu0 %v5322
        %5800 = vmatpush1.bf16.msra.mxu0 %v5321
        %5801 = vmatprep.subr.bf16.mxu0 0
        %5802 = vmatpush2.bf16.msra.mxu0 0
        %5803 = vmatprep.subr.bf16.mxu0 0
        %5804 = vmatpush2.bf16.msra.mxu0 0
        %5805 = vmatprep.subr.bf16.mxu0 0
        %5806 = vmatpush2.bf16.msra.mxu0 0
        %5807 = vmatprep.subr.bf16.mxu0 0
        %5808 = vmatpush2.bf16.msra.mxu0 0
        %5809 = vmatprep.subr.bf16.mxu0 0
        %5810 = vmatpush2.bf16.msra.mxu0 0
        %5811 = vmatprep.subr.bf16.mxu0 0
        %5812 = vmatpush2.bf16.msra.mxu0 0
        %5813 = vmatprep.subr.bf16.mxu0 0
        %5814 = vmatpush2.bf16.msra.mxu0 0
        %5815 = vmatprep.subr.bf16.mxu0 0
        %5816 = vmatpush2.bf16.msra.mxu0 0
        %5817 = vmatprep.mubr.bf16.mxu0 0
        %5818 = vmatmul.mubr.bf16.gmra.mxu0 %v5784
        %v5819 = vpop.f32.mrf.mxu0
        %v5820 = vadd.f32 %v5208, %v5819
        %v5821 = vpop.f32.mrf.mxu0
        %v5822 = vadd.f32 %v5212, %v5821
        %v5823 = vpop.f32.mrf.mxu0
        %v5824 = vpop.f32.mrf.mxu0
        %5825 = vdwg.mxu0
        %5826 = vmatprep.subr.bf16.mxu0 %v5352
        %5827 = vmatpush1.bf16.msra.mxu0 %v5351
        %5828 = vmatprep.subr.bf16.mxu0 %v5348
        %5829 = vmatpush1.bf16.msra.mxu0 %v5347
        %5830 = vmatprep.subr.bf16.mxu0 %v5344
        %5831 = vmatpush1.bf16.msra.mxu0 %v5343
        %5832 = vmatprep.subr.bf16.mxu0 %v5340
        %5833 = vmatpush1.bf16.msra.mxu0 %v5339
        %5834 = vmatprep.subr.bf16.mxu0 %v5336
        %5835 = vmatpush1.bf16.msra.mxu0 %v5335
        %5836 = vmatprep.subr.bf16.mxu0 %v5332
        %5837 = vmatpush1.bf16.msra.mxu0 %v5331
        %5838 = vmatprep.subr.bf16.mxu0 %v5328
        %5839 = vmatpush1.bf16.msra.mxu0 %v5327
        %5840 = vmatprep.subr.bf16.mxu0 %v5324
        %5841 = vmatpush1.bf16.msra.mxu0 %v5323
        %5842 = vmatprep.subr.bf16.mxu0 0
        %5843 = vmatpush2.bf16.msra.mxu0 0
        %5844 = vmatprep.subr.bf16.mxu0 0
        %5845 = vmatpush2.bf16.msra.mxu0 0
        %5846 = vmatprep.subr.bf16.mxu0 0
        %5847 = vmatpush2.bf16.msra.mxu0 0
        %5848 = vmatprep.subr.bf16.mxu0 0
        %5849 = vmatpush2.bf16.msra.mxu0 0
        %5850 = vmatprep.subr.bf16.mxu0 0
        %5851 = vmatpush2.bf16.msra.mxu0 0
        %5852 = vmatprep.subr.bf16.mxu0 0
        %5853 = vmatpush2.bf16.msra.mxu0 0
        %5854 = vmatprep.subr.bf16.mxu0 0
        %5855 = vmatpush2.bf16.msra.mxu0 0
        %5856 = vmatprep.subr.bf16.mxu0 0
        %5857 = vmatpush2.bf16.msra.mxu0 0
        %5858 = vmatprep.mubr.bf16.mxu0 0
        %5859 = vmatmul.mubr.bf16.gmra.mxu0 %v5784
        %v5860 = vpop.f32.mrf.mxu0
        %v5861 = vadd.f32 %v5216, %v5860
        %v5862 = vpop.f32.mrf.mxu0
        %v5863 = vadd.f32 %v5220, %v5862
        %v5864 = vpop.f32.mrf.mxu0
        %v5865 = vpop.f32.mrf.mxu0
        %5866 = vdwg.mxu0
        %v5867 = vxor.u32 %v5820, 2147483648
        %v5868 = vxor.u32 %v5822, 2147483648
        %v5869 = vxor.u32 %v5861, 2147483648
        %v5870 = vxor.u32 %v5863, 2147483648
        %v5871 = vmul.f32 %v5867, 1.442695
        %v5872 = vpow.pop %v5871
        %v5873 = vmul.f32 %v5868, 1.442695
        %v5874 = vpow.pop %v5873
        %v5875 = vmul.f32 %v5869, 1.442695
        %v5876 = vpow.pop %v5875
        %v5877 = vmul.f32 %v5870, 1.442695
        %v5878 = vpow.pop %v5877
        %v5879 = vadd.f32 %v5872, 1.0
        %v5880 = vadd.f32 %v5874, 1.0
        %v5881 = vadd.f32 %v5876, 1.0
        %v5882 = vadd.f32 %v5878, 1.0
        %v5883 = vrcp.pop %v5879
        %v5884 = vmul.f32 1.0, %v5883
        %v5885 = vrcp.pop %v5880
        %v5886 = vmul.f32 1.0, %v5885
        %v5887 = vrcp.pop %v5881
        %v5888 = vmul.f32 1.0, %v5887
        %v5889 = vrcp.pop %v5882
        %v5890 = vmul.f32 1.0, %v5889
        %v5891 = vmul.f32 %v5884, %v5495
        %v5892 = vmul.f32 %v5886, %v5499
        %v5893 = vmul.f32 %v5888, %v5503
        %v5894 = vmul.f32 %v5890, %v5507
        %v5895 = vadd.f32 %v5891, %v5892
        %v5896 = vadd.f32 %v5895, %v5893
        %v5897 = vadd.f32 %v5896, %v5894
        %5898 = vadd.xlane.f32.xlu0 %v5897
        %v5899 = vpop.xlane.xlu0 %5898
        %v5900 = vadd.f32 %v5899, %v5525
        %v5901 = vxor.u32 %v5900, 2147483648
        %v5902 = vmul.f32 %v5901, 1.442695
        %v5903 = vpow.pop %v5902
        %v5904 = vadd.f32 %v5903, 1.0
        %v5905 = vrcp.pop %v5904
        %v5906 = vmul.f32 1.0, %v5905
        %5907 = vst.msk [vmem:[%s1595] sm:$0xff] %vm5534, %v5906
        %p5908 = scmp.lt.s32.totalorder %s105, 1
        %s5909 = scalar_select %p5908, %s105, 1
        %s5910 = smul.addr %s5909, 8
        %s5911 = scalar_lea.vmem %s61, %s5910
        %p5912 = scmp.lt.s32.totalorder %s105, 1
        %s5913 = scalar_select %p5912, %s105, 1
        %s5914 = smul.addr %s5913, 8
        %s5915 = scalar_lea.vmem %s63, %s5914
        %p5916 = scmp.lt.s32.totalorder %s105, 1
        %s5917 = scalar_select %p5916, %s105, 1
        %s5918 = smul.addr %s5917, 8
        %s5919 = scalar_lea.vmem %s65, %s5918
        %p5920 = scmp.lt.s32.totalorder %s105, 1
        %s5921 = scalar_select %p5920, %s105, 1
        %s5922 = smul.addr %s5921, 8
        %s5923 = scalar_lea.vmem %s67, %s5922
        // Predicated region
        $region233: #{net_forward.1} parent=139 // pred_check
          %p5924 = pneg %p813
        $region234: #{net_forward.1} parent=139 // pred_check_branch
          %5926 = sbr.rel (%p5924) target = $region236
        $region235: #{net_forward.1} parent=139 // pred_region
          _
        $region236: #{net_forward.1} parent=139 // pred_fallthru
          _
        // Predicated region
        $region237: #{net_forward.1} parent=139 // pred_check
          %p5927 = pneg %p839
        $region238: #{net_forward.1} parent=139 // pred_check_branch
          %5929 = sbr.rel (%p5927) target = $region240
        $region239: #{net_forward.1} parent=139 // pred_region
          _
        $region240: #{net_forward.1} parent=139 // pred_fallthru
          _
        // Predicated region
        $region241: #{net_forward.1} parent=139 // pred_check
          %p5930 = pneg %p865
        $region242: #{net_forward.1} parent=139 // pred_check_branch
          %5932 = sbr.rel (%p5930) target = $region244
        $region243: #{net_forward.1} parent=139 // pred_region
          _
        $region244: #{net_forward.1} parent=139 // pred_fallthru
          _
        // Predicated region
        $region245: #{net_forward.1} parent=139 // pred_check
          %p5933 = pneg %p891
        $region246: #{net_forward.1} parent=139 // pred_check_branch
          %5935 = sbr.rel (%p5933) target = $region248
        $region247: #{net_forward.1} parent=139 // pred_region
          _
        $region248: #{net_forward.1} parent=139 // pred_fallthru
          _
      $region140: #{net_forward.1} parent=5 // pred_fallthru
        _
      %p5936 = scmp.le.s32.totalorder 2, %s100
      // Predicated region
      $region249: #{net_forward.1} parent=5 // pred_check
        %p5937 = pneg %p5936
      $region250: #{net_forward.1} parent=5 // pred_check_branch
        %5939 = sbr.rel (%p5937) target = $region252
      $region251: #{net_forward.1} parent=5 // pred_region
        %s5940 = ssub.s32 %s100, 2
        // Predicated region
        $region253: #{net_forward.1} parent=251 // pred_check
          %p5941 = pneg %p819
        $region254: #{net_forward.1} parent=251 // pred_check_branch
          %5943 = sbr.rel (%p5941) target = $region256
        $region255: #{net_forward.1} parent=251 // pred_region
          %p5944 = scmp.lt.s32.totalorder %s106, 1
          %s5945 = scalar_select %p5944, %s106, 1
          %s5946 = smul.addr %s5945, 8
          %s5947 = scalar_lea.vmem %s61, %s5946
        $region256: #{net_forward.1} parent=251 // pred_fallthru
          _
        // Predicated region
        $region257: #{net_forward.1} parent=251 // pred_check
          %p5948 = pneg %p845
        $region258: #{net_forward.1} parent=251 // pred_check_branch
          %5950 = sbr.rel (%p5948) target = $region260
        $region259: #{net_forward.1} parent=251 // pred_region
          %p5951 = scmp.lt.s32.totalorder %s106, 1
          %s5952 = scalar_select %p5951, %s106, 1
          %s5953 = smul.addr %s5952, 8
          %s5954 = scalar_lea.vmem %s63, %s5953
        $region260: #{net_forward.1} parent=251 // pred_fallthru
          _
        // Predicated region
        $region261: #{net_forward.1} parent=251 // pred_check
          %p5955 = pneg %p871
        $region262: #{net_forward.1} parent=251 // pred_check_branch
          %5957 = sbr.rel (%p5955) target = $region264
        $region263: #{net_forward.1} parent=251 // pred_region
          %p5958 = scmp.lt.s32.totalorder %s106, 1
          %s5959 = scalar_select %p5958, %s106, 1
          %s5960 = smul.addr %s5959, 8
          %s5961 = scalar_lea.vmem %s65, %s5960
        $region264: #{net_forward.1} parent=251 // pred_fallthru
          _
        // Predicated region
        $region265: #{net_forward.1} parent=251 // pred_check
          %p5962 = pneg %p897
        $region266: #{net_forward.1} parent=251 // pred_check_branch
          %5964 = sbr.rel (%p5962) target = $region268
        $region267: #{net_forward.1} parent=251 // pred_region
          %p5965 = scmp.lt.s32.totalorder %s106, 1
          %s5966 = scalar_select %p5965, %s106, 1
          %s5967 = smul.addr %s5966, 8
          %s5968 = scalar_lea.vmem %s67, %s5967
        $region268: #{net_forward.1} parent=251 // pred_fallthru
          _
      $region252: #{net_forward.1} parent=5 // pred_fallthru
        _
    $region6: #{net_forward.1} parent=1 // loop_footer
      %s104 = sadd.s32 1, %s100
    $region7: #{net_forward.1} parent=1 // loop_footer_branch
      %99 = sbr.rel target = $region3
    $region8: #{net_forward.1} parent=1 // loop_exit
      _
    %5969 = vsyncpa [#allocation5], 1
    %s5970 = scalar_lea.sflag [#allocation5], 1
    %5971 = vsyncpa %s5970, 1
    %5972 = vsyncpa [#allocation7], 1
    %s5973 = scalar_lea.sflag [#allocation7], 1
    %5974 = vsyncpa %s5973, 1
    %5975 = vsyncpa [#allocation10], 1
    %s5976 = scalar_lea.sflag [#allocation10], 1
    %5977 = vsyncpa %s5976, 1
    %5978 = vsyncpa [#allocation13], 1
    %s5979 = scalar_lea.sflag [#allocation13], 1
    %5980 = vsyncpa %s5979, 1
    %5981 = vsyncpa [#allocation16], 1
    %s5982 = scalar_lea.sflag [#allocation16], 1
    %5983 = vsyncpa %s5982, 1
    %5984 = vsyncpa [#allocation19], 1
    %5985 = vsyncpa [#allocation22], 1
    %5986 = vsyncpa [#allocation25], 1
    %5987 = vsyncpa [#allocation28], 1
    %5988 = vsyncpa [#allocation31], 1
    %5989 = vsyncpa [#allocation34], 1
    %5990 = vsyncpa [#allocation37], 1

</llo_original>
